<compile_context>
chip_gen: v7x
topology: tpu7x:2x2x1
jax: 0.10.0
libtpu: 0.0.40
codegen_flags: <defaults>
</compile_context>

<pallas_src>
import functools
import math

import jax
import jax.numpy as jnp
from jax.experimental import pallas as pl
from jax.experimental.pallas import tpu as pltpu

CPAD = 128                       # every OUTPUT channel dim padded to one lane width
VMEM_LIMIT = 32 * 1024 * 1024    # per-call footprint is ~2 MiB; safe on v7x (64 MiB)


# --------------------------------------------------------------------------
# Pallas kernels
# --------------------------------------------------------------------------
def _mm_bias_kernel(x_ref, w_ref, b_ref, o_ref, *, relu):
    """out = relu?( x @ w + bias ).  K fits in one tile -> no accumulator needed."""
    acc = jnp.dot(x_ref[...], w_ref[...], preferred_element_type=jnp.float32)
    y = acc + b_ref[...]
    if relu:
        y = jnp.maximum(y, 0.0)
    o_ref[...] = y.astype(o_ref.dtype)


def _mm_bias_res_kernel(x_ref, w_ref, b_ref, r_ref, o_ref, *, relu):
    """Same plus residual add before the ReLU (identity-shortcut blocks)."""
    acc = jnp.dot(x_ref[...], w_ref[...], preferred_element_type=jnp.float32)
    y = acc + b_ref[...] + r_ref[...].astype(jnp.float32)
    if relu:
        y = jnp.maximum(y, 0.0)
    o_ref[...] = y.astype(o_ref.dtype)


def _pool_fc_kernel(x_ref, w_ref, b_ref, o_ref, *, inv_hw):
    """Fused global average pool (B, HW, C) + f32 FC: out = mean_hw(x) @ w + b."""
    pooled = jnp.sum(x_ref[...].astype(jnp.float32), axis=1) * inv_hw   # (B, C) f32
    acc = jnp.dot(pooled, w_ref[...], preferred_element_type=jnp.float32)
    o_ref[...] = (acc + b_ref[...]).astype(o_ref.dtype)


# --------------------------------------------------------------------------
# Pallas wrappers
# --------------------------------------------------------------------------
def _round_up(n, m):
    return ((n + m - 1) // m) * m


def _pick_tp(P):
    """Largest tile <= min(P//2, 1024) dividing P -> >= 2 P-tiles (v7x megacore +
    pipelining), bounded VMEM."""
    cap = min(P // 2, 1024)
    for c in (1024, 512, 256, 128, 64, 32, 16):
        if c <= cap and P % c == 0:
            return c
    return P


def fused_matmul(x, w, bias, residual=None, relu=False, out_dtype=jnp.bfloat16):
    """(P, K) bf16 @ (K, 128) bf16 + bias (+residual) (+ReLU), tiled over P only.

    K (<= 640 here) fits in one tile; the weight is a resident full-array block
    (constant index_map), the output is lane-dense (128 wide)."""
    P, K = x.shape
    C = w.shape[1]

    TP = _pick_tp(P)
    P_pad = _round_up(P, TP)
    if P_pad != P:                       # fallback only; never triggers at batch 2
        x = jnp.pad(x, ((0, P_pad - P), (0, 0)))
        if residual is not None:
            residual = jnp.pad(residual, ((0, P_pad - P), (0, 0)))

    in_specs = [
        pl.BlockSpec((TP, K), lambda p: (p, 0)),
        pl.BlockSpec((K, C), lambda p: (0, 0)),     # resident weight, fetched once
        pl.BlockSpec((1, C), lambda p: (0, 0)),     # folded-BN bias
    ]
    args = [x, w, bias]
    if residual is None:
        kernel = functools.partial(_mm_bias_kernel, relu=relu)
    else:
        kernel = functools.partial(_mm_bias_res_kernel, relu=relu)
        in_specs.append(pl.BlockSpec((TP, C), lambda p: (p, 0)))
        args.append(residual)

    out = pl.pallas_call(
        kernel,
        out_shape=jax.ShapeDtypeStruct((P_pad, C), out_dtype),
        grid=(P_pad // TP,),
        in_specs=in_specs,
        out_specs=pl.BlockSpec((TP, C), lambda p: (p, 0)),
        compiler_params=pltpu.CompilerParams(
            dimension_semantics=("parallel",),
            vmem_limit_bytes=VMEM_LIMIT,
        ),
    )(*args)

    return out[:P] if P_pad != P else out


def avgpool_fc(x, w, b):
    """AvgPool2d(8) on the final 8x8 map (== global mean) fused with the f32 FC."""
    B, H, W, C = x.shape
    xr = x.reshape(B, H * W, C)
    kernel = functools.partial(_pool_fc_kernel, inv_hw=1.0 / float(H * W))
    return pl.pallas_call(
        kernel,
        out_shape=jax.ShapeDtypeStruct((B, C), jnp.float32),
        grid=(1,),
        in_specs=[
            pl.BlockSpec((B, H * W, C), lambda i: (0, 0, 0)),
            pl.BlockSpec((C, C), lambda i: (0, 0)),
            pl.BlockSpec((1, C), lambda i: (0, 0)),
        ],
        out_specs=pl.BlockSpec((B, C), lambda i: (0, 0)),
        compiler_params=pltpu.CompilerParams(vmem_limit_bytes=VMEM_LIMIT),
    )(xr, w, b)


# --------------------------------------------------------------------------
# Plain-JAX glue (fused under jit): compact-K im2col; prep-time prune / BN fold
# --------------------------------------------------------------------------
def _im2col_taps(x, k, stride, padding, c_true):
    """NHWC -> list of k*k tap slices (B,Ho,Wo,c_true); column order (di, dj, c).
    Only the first c_true (real) channels are gathered — no Cin padding in K."""
    B, H, W, _ = x.shape
    x = x[..., :c_true]
    if padding:
        x = jnp.pad(x, ((0, 0), (padding, padding), (padding, padding), (0, 0)))
    Ho = (H + 2 * padding - k) // stride + 1
    Wo = (W + 2 * padding - k) // stride + 1
    taps = []
    for di in range(k):
        for dj in range(k):
            taps.append(x[:, di:di + stride * Ho:stride,
                          dj:dj + stride * Wo:stride, :])
    return taps, (B, Ho, Wo)


def _assemble_patches(taps, B, Ho, Wo, k_pad):
    """Concatenate tap slices (+ zero K-padding to a 128 multiple) into (P, k_pad)."""
    k_true = sum(t.shape[-1] for t in taps)
    if k_pad > k_true:
        taps = list(taps) + [jnp.zeros((B, Ho, Wo, k_pad - k_true), jnp.bfloat16)]
    patches = jnp.concatenate([t.astype(jnp.bfloat16) for t in taps], axis=-1)
    return patches.reshape(B * Ho * Wo, k_pad)


def prune_nm(w, N=2, M=4):
    """Keep the N largest-magnitude weights in every group of M consecutive weights."""
    shape = w.shape
    flat = w.reshape(-1, M)
    order = jnp.argsort(jnp.abs(flat), axis=1)
    ranks = jnp.argsort(order, axis=1)
    mask = (ranks >= (M - N)).astype(w.dtype)
    return (flat * mask).reshape(shape)


def _bn_fold(bn, eps=1e-5):
    scale = bn["gamma"] / jnp.sqrt(bn["var"] + eps)
    bias = bn["beta"] - bn["mean"] * scale
    return scale, bias


def _conv_to_mat(w, scale):
    """(Cout, Cin, k, k) -> (k*k*Cin, Cout) with the BN scale folded into columns."""
    cout, cin, k, _ = w.shape
    wmat = jnp.transpose(w, (2, 3, 1, 0)).reshape(k * k * cin, cout)
    return wmat * scale[None, :]


def prep_conv(w, bn, N, M):
    """SparseConv + BN -> pruned, BN-folded, compact-K, Cout->128-padded bf16 weight."""
    cout, cin, k, _ = w.shape
    scale, bias = _bn_fold(bn)
    wmat = _conv_to_mat(prune_nm(w, N, M), scale)              # (k*k*cin, cout) f32
    ktrue = k * k * cin
    kpad = _round_up(ktrue, 128)
    wmat = jnp.pad(wmat, ((0, kpad - ktrue), (0, CPAD - cout)))
    bias = jnp.pad(bias, (0, CPAD - cout)).reshape(1, CPAD)
    return {"w": wmat.astype(jnp.bfloat16), "bias": bias.astype(jnp.float32),
            "k": k, "cin": cin, "kpad": kpad}


def prep_conv2_ds(w2, bn2, wd, bnd, stride, N, M):
    """Fuse conv2+BN2 with the strided 1x1 downsample conv+BN along K (one matmul)."""
    planes = w2.shape[0]
    inplanes = wd.shape[1]
    s2, b2 = _bn_fold(bn2)
    sd, bd = _bn_fold(bnd)
    w2m = _conv_to_mat(prune_nm(w2, N, M), s2)                 # (9*planes, planes)
    wdm = _conv_to_mat(prune_nm(wd, N, M), sd)                 # (inplanes, planes)
    wcat = jnp.concatenate([w2m, wdm], axis=0)
    ktrue = wcat.shape[0]
    kpad = _round_up(ktrue, 128)
    wcat = jnp.pad(wcat, ((0, kpad - ktrue), (0, CPAD - planes)))
    bias = jnp.pad(b2 + bd, (0, CPAD - planes)).reshape(1, CPAD)
    return {"w": wcat.astype(jnp.bfloat16), "bias": bias.astype(jnp.float32),
            "kpad": kpad, "planes": planes, "inplanes": inplanes, "stride": stride}


def prep_fc(w, b, N, M):
    w = prune_nm(w, N, M)                                      # (num_classes, 64)
    nc, cin = w.shape
    w = jnp.pad(jnp.transpose(w), ((0, CPAD - cin), (0, CPAD - nc)))
    b = jnp.pad(b, (0, CPAD - nc)).reshape(1, CPAD)
    return {"w": w.astype(jnp.float32), "b": b.astype(jnp.float32)}


def prepare_params(params, N=2, M=4):
    """One-time prep: 2:4 prune, fold BN into weights/bias, pad Cout->128, cast bf16."""
    prep = {"conv1": prep_conv(params["conv1"], params["bn1"], N, M)}
    for li in (1, 2, 3):
        blocks = []
        for blk in params[f"layer{li}"]:
            pb = {"conv1": prep_conv(blk["conv1"], blk["bn1"], N, M)}
            if "ds_conv" in blk:
                pb["conv2ds"] = prep_conv2_ds(blk["conv2"], blk["bn2"],
                                              blk["ds_conv"], blk["ds_bn"],
                                              blk["stride"], N, M)
            else:
                pb["conv2"] = prep_conv(blk["conv2"], blk["bn2"], N, M)
            blocks.append(pb)
        prep[f"layer{li}"] = blocks
    prep["fc"] = prep_fc(params["fc_w"], params["fc_b"], N, M)
    return prep


# --------------------------------------------------------------------------
# Forward pass
# --------------------------------------------------------------------------
def conv_bn(x, cw, stride, padding, relu, residual=None):
    """SparseConv (pre-pruned, BN-folded) (+residual) (+ReLU) via one Pallas matmul."""
    taps, (B, Ho, Wo) = _im2col_taps(x, cw["k"], stride, padding, cw["cin"])
    lhs = _assemble_patches(taps, B, Ho, Wo, cw["kpad"])
    res = None if residual is None else residual.reshape(B * Ho * Wo, CPAD)
    out = fused_matmul(lhs, cw["w"], cw["bias"], res, relu)
    return out.reshape(B, Ho, Wo, CPAD)


def conv2_ds_fused(out1, x_in, cw, relu=True):
    """conv2(3x3,s1)+BN2 and the strided 1x1 downsample+BN in ONE Pallas matmul:
    LHS = [im2col(out1) | strided subsample(x_in)], W = [W2' ; Wd'], bias = b2'+bd'."""
    taps, (B, Ho, Wo) = _im2col_taps(out1, 3, 1, 1, cw["planes"])
    ds_taps, _ = _im2col_taps(x_in, 1, cw["stride"], 0, cw["inplanes"])
    lhs = _assemble_patches(taps + ds_taps, B, Ho, Wo, cw["kpad"])
    out = fused_matmul(lhs, cw["w"], cw["bias"], None, relu)
    return out.reshape(B, Ho, Wo, CPAD)


def basic_block(x, pblk, stride):
    out1 = conv_bn(x, pblk["conv1"], stride, 1, relu=True)
    if "conv2ds" in pblk:
        return conv2_ds_fused(out1, x, pblk["conv2ds"], relu=True)
    # identity shortcut (stride 1, same channel count); x is already 128-wide
    return conv_bn(out1, pblk["conv2"], 1, 1, relu=True, residual=x)


def make_forward(prep, strides, num_classes):
    """Returns a jitted forward(x_nchw) -> logits (B, num_classes).  `prep` (arrays +
    static tiling metadata) is closed over so the ints stay Python ints under jit."""

    def fwd(x_nchw):
        x = jnp.transpose(x_nchw.astype(jnp.float32), (0, 2, 3, 1))   # NHWC, 3 chans
        x = x.astype(jnp.bfloat16)
        x = conv_bn(x, prep["conv1"], 1, 1, relu=True)
        for li in (1, 2, 3):
            for bi, s in enumerate(strides[f"layer{li}"]):
                x = basic_block(x, prep[f"layer{li}"][bi], s)
        logits = avgpool_fc(x, prep["fc"]["w"], prep["fc"]["b"])      # (B, 128) f32
        return logits[:, :num_classes]

    return jax.jit(fwd)


# --------------------------------------------------------------------------
# Parameter construction (torch-like init, eval-mode BN stats)
# --------------------------------------------------------------------------
def init_conv(key, cout, cin, k):
    # PyTorch init: normal(0, sqrt(2 / (k*k*out_channels)))
    std = math.sqrt(2.0 / (k * k * cout))
    return jax.random.normal(key, (cout, cin, k, k), jnp.float32) * std


def init_bn(c):
    return dict(
        gamma=jnp.ones((c,), jnp.float32),
        beta=jnp.zeros((c,), jnp.float32),
        mean=jnp.zeros((c,), jnp.float32),
        var=jnp.ones((c,), jnp.float32),
    )


def make_params(key, depth=8, num_classes=100):
    assert (depth - 2) % 6 == 0, "depth should be 6n+2"
    assert depth < 54, "small depth -> BasicBlock path"
    n = (depth - 2) // 6
    keys = iter(jax.random.split(key, 128))

    params = {"conv1": init_conv(next(keys), 16, 3, 3), "bn1": init_bn(16)}
    inplanes = 16
    strides = {}
    for li, (planes, stride) in enumerate([(16, 1), (32, 2), (64, 2)], start=1):
        blocks, bstrides = [], []
        for b in range(n):
            s = stride if b == 0 else 1
            blk = {
                "conv1": init_conv(next(keys), planes, inplanes, 3),
                "bn1": init_bn(planes),
                "conv2": init_conv(next(keys), planes, planes, 3),
                "bn2": init_bn(planes),
                "stride": s,
            }
            if s != 1 or inplanes != planes:          # BasicBlock.expansion == 1
                blk["ds_conv"] = init_conv(next(keys), planes, inplanes, 1)
                blk["ds_bn"] = init_bn(planes)
            blocks.append(blk)
            bstrides.append(s)
            inplanes = planes
        params[f"layer{li}"] = blocks
        strides[f"layer{li}"] = bstrides

    params["fc_w"] = jax.random.normal(next(keys), (num_classes, 64), jnp.float32) * (
        1.0 / math.sqrt(64.0))
    params["fc_b"] = jnp.zeros((num_classes,), jnp.float32)
    return params, strides


# --------------------------------------------------------------------------
if __name__ == "__main__":
    key = jax.random.PRNGKey(0)
    pkey, xkey = jax.random.split(key)

    # depth = 8 -> n = 1 BasicBlock per stage (smallest valid 6n+2 ResNet)
    NUM_CLASSES = 100
    params, strides = make_params(pkey, depth=8, num_classes=NUM_CLASSES)
    prep = prepare_params(params, N=2, M=4)           # one-time weight prep

    forward = make_forward(prep, strides, NUM_CLASSES)

    # CIFAR-style input: batch=2, 3 channels, 32x32 (AvgPool2d(8) sees an 8x8 map,
    # exactly as in the reference module).
    x = jax.random.normal(xkey, (2, 3, 32, 32), jnp.float32)

    logits = forward(x)
    logits = jax.block_until_ready(logits)
    assert logits.shape == (2, NUM_CLASSES), logits.shape
    assert bool(jnp.all(jnp.isfinite(logits)))
    print("KERNEL_OK")
</pallas_src>

<mosaic_0001>
module attributes {stable_mosaic.version = 11 : i64} {
  func.func @_mm_bias_kernel(%arg0: i32, %arg1: memref<1024x128xbf16, #tpu.memory_space<vmem>>, %arg2: memref<128x128xbf16, #tpu.memory_space<vmem>>, %arg3: memref<1x128xf32, #tpu.memory_space<vmem>>, %arg4: memref<1024x128xbf16, #tpu.memory_space<vmem>>) attributes {dimension_semantics = [#tpu.dimension_semantics<parallel>], iteration_bounds = array<i64: 2>, scalar_prefetch = 0 : i64, scratch_operands = 0 : i64, tpu.core_type = #tpu.core_type<tc>, window_params = [{transform_indices = @transform_0, window_bounds = array<i64: 1024, 128>}, {pipeline_mode = #tpu.pipeline_mode<synchronous>, transform_indices = @transform_1, window_bounds = array<i64: 128, 128>}, {pipeline_mode = #tpu.pipeline_mode<synchronous>, transform_indices = @transform_2, window_bounds = array<i64: 1, 128>}, {transform_indices = @transform_3, window_bounds = array<i64: 1024, 128>}]} {
    %c0 = arith.constant 0 : index
    %c0_0 = arith.constant 0 : index
    %0 = vector.load %arg1[%c0, %c0_0] : memref<1024x128xbf16, #tpu.memory_space<vmem>>, vector<1024x128xbf16>
    %c0_1 = arith.constant 0 : index
    %c0_2 = arith.constant 0 : index
    %1 = vector.load %arg2[%c0_1, %c0_2] : memref<128x128xbf16, #tpu.memory_space<vmem>>, vector<128x128xbf16>
    %cst = arith.constant dense<0.000000e+00> : vector<1024x128xf32>
    %2 = tpu.matmul %0, %1, %cst {dimension_numbers = #tpu.dot_dimension_numbers<[1], [0], [0], [1], [0, 0, 1, 1], [], []>} : vector<1024x128xbf16>, vector<128x128xbf16>, vector<1024x128xf32> -> vector<1024x128xf32>
    %c0_3 = arith.constant 0 : index
    %c0_4 = arith.constant 0 : index
    %3 = vector.load %arg3[%c0_3, %c0_4] : memref<1x128xf32, #tpu.memory_space<vmem>>, vector<1x128xf32>
    %4 = vector.broadcast %3 : vector<1x128xf32> to vector<1024x128xf32>
    %5 = arith.addf %2, %4 : vector<1024x128xf32>
    %cst_5 = arith.constant 0.000000e+00 : f32
    %6 = vector.broadcast %cst_5 : f32 to vector<1024x128xf32>
    %7 = arith.maximumf %5, %6 : vector<1024x128xf32>
    %8 = arith.truncf %7 : vector<1024x128xf32> to vector<1024x128xbf16>
    %c0_6 = arith.constant 0 : index
    %c0_7 = arith.constant 0 : index
    %9 = vector.load %arg4[%c0_6, %c0_7] : memref<1024x128xbf16, #tpu.memory_space<vmem>>, vector<1024x128xbf16>
    tpu.vector_store %arg4[%c0_6, %c0_7], %8 {strides = array<i32>} : memref<1024x128xbf16, #tpu.memory_space<vmem>>, vector<1024x128xbf16>,
    return
  }
  func.func @transform_0(%arg0: i32) -> (i32, i32) {
    %c0_i32 = arith.constant 0 : i32
    %c0_i32_0 = arith.constant 0 : i32
    return %arg0, %c0_i32 : i32, i32
  }
  func.func @transform_1(%arg0: i32) -> (i32, i32) {
    %c0_i32 = arith.constant 0 : i32
    %c0_i32_0 = arith.constant 0 : i32
    %c0_i32_1 = arith.constant 0 : i32
    return %c0_i32, %c0_i32_0 : i32, i32
  }
  func.func @transform_2(%arg0: i32) -> (i32, i32) {
    %c0_i32 = arith.constant 0 : i32
    %c0_i32_0 = arith.constant 0 : i32
    %c0_i32_1 = arith.constant 0 : i32
    return %c0_i32, %c0_i32_0 : i32, i32
  }
  func.func @transform_3(%arg0: i32) -> (i32, i32) {
    %c0_i32 = arith.constant 0 : i32
    %c0_i32_0 = arith.constant 0 : i32
    return %arg0, %c0_i32 : i32, i32
  }
}

module attributes {stable_mosaic.version = 11 : i64} {
  func.func @_mm_bias_kernel(%arg0: i32, %arg1: memref<1024x256xbf16, #tpu.memory_space<vmem>>, %arg2: memref<256x128xbf16, #tpu.memory_space<vmem>>, %arg3: memref<1x128xf32, #tpu.memory_space<vmem>>, %arg4: memref<1024x128xbf16, #tpu.memory_space<vmem>>) attributes {dimension_semantics = [#tpu.dimension_semantics<parallel>], iteration_bounds = array<i64: 2>, scalar_prefetch = 0 : i64, scratch_operands = 0 : i64, tpu.core_type = #tpu.core_type<tc>, window_params = [{transform_indices = @transform_0, window_bounds = array<i64: 1024, 256>}, {pipeline_mode = #tpu.pipeline_mode<synchronous>, transform_indices = @transform_1, window_bounds = array<i64: 256, 128>}, {pipeline_mode = #tpu.pipeline_mode<synchronous>, transform_indices = @transform_2, window_bounds = array<i64: 1, 128>}, {transform_indices = @transform_3, window_bounds = array<i64: 1024, 128>}]} {
    %c0 = arith.constant 0 : index
    %c0_0 = arith.constant 0 : index
    %0 = vector.load %arg1[%c0, %c0_0] : memref<1024x256xbf16, #tpu.memory_space<vmem>>, vector<1024x256xbf16>
    %c0_1 = arith.constant 0 : index
    %c0_2 = arith.constant 0 : index
    %1 = vector.load %arg2[%c0_1, %c0_2] : memref<256x128xbf16, #tpu.memory_space<vmem>>, vector<256x128xbf16>
    %cst = arith.constant dense<0.000000e+00> : vector<1024x128xf32>
    %2 = tpu.matmul %0, %1, %cst {dimension_numbers = #tpu.dot_dimension_numbers<[1], [0], [0], [1], [0, 0, 1, 1], [], []>} : vector<1024x256xbf16>, vector<256x128xbf16>, vector<1024x128xf32> -> vector<1024x128xf32>
    %c0_3 = arith.constant 0 : index
    %c0_4 = arith.constant 0 : index
    %3 = vector.load %arg3[%c0_3, %c0_4] : memref<1x128xf32, #tpu.memory_space<vmem>>, vector<1x128xf32>
    %4 = vector.broadcast %3 : vector<1x128xf32> to vector<1024x128xf32>
    %5 = arith.addf %2, %4 : vector<1024x128xf32>
    %cst_5 = arith.constant 0.000000e+00 : f32
    %6 = vector.broadcast %cst_5 : f32 to vector<1024x128xf32>
    %7 = arith.maximumf %5, %6 : vector<1024x128xf32>
    %8 = arith.truncf %7 : vector<1024x128xf32> to vector<1024x128xbf16>
    %c0_6 = arith.constant 0 : index
    %c0_7 = arith.constant 0 : index
    %9 = vector.load %arg4[%c0_6, %c0_7] : memref<1024x128xbf16, #tpu.memory_space<vmem>>, vector<1024x128xbf16>
    tpu.vector_store %arg4[%c0_6, %c0_7], %8 {strides = array<i32>} : memref<1024x128xbf16, #tpu.memory_space<vmem>>, vector<1024x128xbf16>,
    return
  }
  func.func @transform_0(%arg0: i32) -> (i32, i32) {
    %c0_i32 = arith.constant 0 : i32
    %c0_i32_0 = arith.constant 0 : i32
    return %arg0, %c0_i32 : i32, i32
  }
  func.func @transform_1(%arg0: i32) -> (i32, i32) {
    %c0_i32 = arith.constant 0 : i32
    %c0_i32_0 = arith.constant 0 : i32
    %c0_i32_1 = arith.constant 0 : i32
    return %c0_i32, %c0_i32_0 : i32, i32
  }
  func.func @transform_2(%arg0: i32) -> (i32, i32) {
    %c0_i32 = arith.constant 0 : i32
    %c0_i32_0 = arith.constant 0 : i32
    %c0_i32_1 = arith.constant 0 : i32
    return %c0_i32, %c0_i32_0 : i32, i32
  }
  func.func @transform_3(%arg0: i32) -> (i32, i32) {
    %c0_i32 = arith.constant 0 : i32
    %c0_i32_0 = arith.constant 0 : i32
    return %arg0, %c0_i32 : i32, i32
  }
}

module attributes {stable_mosaic.version = 11 : i64} {
  func.func @_mm_bias_res_kernel(%arg0: i32, %arg1: memref<1024x256xbf16, #tpu.memory_space<vmem>>, %arg2: memref<256x128xbf16, #tpu.memory_space<vmem>>, %arg3: memref<1x128xf32, #tpu.memory_space<vmem>>, %arg4: memref<1024x128xbf16, #tpu.memory_space<vmem>>, %arg5: memref<1024x128xbf16, #tpu.memory_space<vmem>>) attributes {dimension_semantics = [#tpu.dimension_semantics<parallel>], iteration_bounds = array<i64: 2>, scalar_prefetch = 0 : i64, scratch_operands = 0 : i64, tpu.core_type = #tpu.core_type<tc>, window_params = [{transform_indices = @transform_0, window_bounds = array<i64: 1024, 256>}, {pipeline_mode = #tpu.pipeline_mode<synchronous>, transform_indices = @transform_1, window_bounds = array<i64: 256, 128>}, {pipeline_mode = #tpu.pipeline_mode<synchronous>, transform_indices = @transform_2, window_bounds = array<i64: 1, 128>}, {transform_indices = @transform_3, window_bounds = array<i64: 1024, 128>}, {transform_indices = @transform_4, window_bounds = array<i64: 1024, 128>}]} {
    %c0 = arith.constant 0 : index
    %c0_0 = arith.constant 0 : index
    %0 = vector.load %arg1[%c0, %c0_0] : memref<1024x256xbf16, #tpu.memory_space<vmem>>, vector<1024x256xbf16>
    %c0_1 = arith.constant 0 : index
    %c0_2 = arith.constant 0 : index
    %1 = vector.load %arg2[%c0_1, %c0_2] : memref<256x128xbf16, #tpu.memory_space<vmem>>, vector<256x128xbf16>
    %cst = arith.constant dense<0.000000e+00> : vector<1024x128xf32>
    %2 = tpu.matmul %0, %1, %cst {dimension_numbers = #tpu.dot_dimension_numbers<[1], [0], [0], [1], [0, 0, 1, 1], [], []>} : vector<1024x256xbf16>, vector<256x128xbf16>, vector<1024x128xf32> -> vector<1024x128xf32>
    %c0_3 = arith.constant 0 : index
    %c0_4 = arith.constant 0 : index
    %3 = vector.load %arg3[%c0_3, %c0_4] : memref<1x128xf32, #tpu.memory_space<vmem>>, vector<1x128xf32>
    %4 = vector.broadcast %3 : vector<1x128xf32> to vector<1024x128xf32>
    %5 = arith.addf %2, %4 : vector<1024x128xf32>
    %c0_5 = arith.constant 0 : index
    %c0_6 = arith.constant 0 : index
    %6 = vector.load %arg4[%c0_5, %c0_6] : memref<1024x128xbf16, #tpu.memory_space<vmem>>, vector<1024x128xbf16>
    %7 = arith.extf %6 : vector<1024x128xbf16> to vector<1024x128xf32>
    %8 = arith.addf %5, %7 : vector<1024x128xf32>
    %cst_7 = arith.constant 0.000000e+00 : f32
    %9 = vector.broadcast %cst_7 : f32 to vector<1024x128xf32>
    %10 = arith.maximumf %8, %9 : vector<1024x128xf32>
    %11 = arith.truncf %10 : vector<1024x128xf32> to vector<1024x128xbf16>
    %c0_8 = arith.constant 0 : index
    %c0_9 = arith.constant 0 : index
    %12 = vector.load %arg5[%c0_8, %c0_9] : memref<1024x128xbf16, #tpu.memory_space<vmem>>, vector<1024x128xbf16>
    tpu.vector_store %arg5[%c0_8, %c0_9], %11 {strides = array<i32>} : memref<1024x128xbf16, #tpu.memory_space<vmem>>, vector<1024x128xbf16>,
    return
  }
  func.func @transform_0(%arg0: i32) -> (i32, i32) {
    %c0_i32 = arith.constant 0 : i32
    %c0_i32_0 = arith.constant 0 : i32
    return %arg0, %c0_i32 : i32, i32
  }
  func.func @transform_1(%arg0: i32) -> (i32, i32) {
    %c0_i32 = arith.constant 0 : i32
    %c0_i32_0 = arith.constant 0 : i32
    %c0_i32_1 = arith.constant 0 : i32
    return %c0_i32, %c0_i32_0 : i32, i32
  }
  func.func @transform_2(%arg0: i32) -> (i32, i32) {
    %c0_i32 = arith.constant 0 : i32
    %c0_i32_0 = arith.constant 0 : i32
    %c0_i32_1 = arith.constant 0 : i32
    return %c0_i32, %c0_i32_0 : i32, i32
  }
  func.func @transform_3(%arg0: i32) -> (i32, i32) {
    %c0_i32 = arith.constant 0 : i32
    %c0_i32_0 = arith.constant 0 : i32
    return %arg0, %c0_i32 : i32, i32
  }
  func.func @transform_4(%arg0: i32) -> (i32, i32) {
    %c0_i32 = arith.constant 0 : i32
    %c0_i32_0 = arith.constant 0 : i32
    return %arg0, %c0_i32 : i32, i32
  }
}

module attributes {stable_mosaic.version = 11 : i64} {
  func.func @_mm_bias_kernel(%arg0: i32, %arg1: memref<256x256xbf16, #tpu.memory_space<vmem>>, %arg2: memref<256x128xbf16, #tpu.memory_space<vmem>>, %arg3: memref<1x128xf32, #tpu.memory_space<vmem>>, %arg4: memref<256x128xbf16, #tpu.memory_space<vmem>>) attributes {dimension_semantics = [#tpu.dimension_semantics<parallel>], iteration_bounds = array<i64: 2>, scalar_prefetch = 0 : i64, scratch_operands = 0 : i64, tpu.core_type = #tpu.core_type<tc>, window_params = [{transform_indices = @transform_0, window_bounds = array<i64: 256, 256>}, {pipeline_mode = #tpu.pipeline_mode<synchronous>, transform_indices = @transform_1, window_bounds = array<i64: 256, 128>}, {pipeline_mode = #tpu.pipeline_mode<synchronous>, transform_indices = @transform_2, window_bounds = array<i64: 1, 128>}, {transform_indices = @transform_3, window_bounds = array<i64: 256, 128>}]} {
    %c0 = arith.constant 0 : index
    %c0_0 = arith.constant 0 : index
    %0 = vector.load %arg1[%c0, %c0_0] : memref<256x256xbf16, #tpu.memory_space<vmem>>, vector<256x256xbf16>
    %c0_1 = arith.constant 0 : index
    %c0_2 = arith.constant 0 : index
    %1 = vector.load %arg2[%c0_1, %c0_2] : memref<256x128xbf16, #tpu.memory_space<vmem>>, vector<256x128xbf16>
    %cst = arith.constant dense<0.000000e+00> : vector<256x128xf32>
    %2 = tpu.matmul %0, %1, %cst {dimension_numbers = #tpu.dot_dimension_numbers<[1], [0], [0], [1], [0, 0, 1, 1], [], []>} : vector<256x256xbf16>, vector<256x128xbf16>, vector<256x128xf32> -> vector<256x128xf32>
    %c0_3 = arith.constant 0 : index
    %c0_4 = arith.constant 0 : index
    %3 = vector.load %arg3[%c0_3, %c0_4] : memref<1x128xf32, #tpu.memory_space<vmem>>, vector<1x128xf32>
    %4 = vector.broadcast %3 : vector<1x128xf32> to vector<256x128xf32>
    %5 = arith.addf %2, %4 : vector<256x128xf32>
    %cst_5 = arith.constant 0.000000e+00 : f32
    %6 = vector.broadcast %cst_5 : f32 to vector<256x128xf32>
    %7 = arith.maximumf %5, %6 : vector<256x128xf32>
    %8 = arith.truncf %7 : vector<256x128xf32> to vector<256x128xbf16>
    %c0_6 = arith.constant 0 : index
    %c0_7 = arith.constant 0 : index
    %9 = vector.load %arg4[%c0_6, %c0_7] : memref<256x128xbf16, #tpu.memory_space<vmem>>, vector<256x128xbf16>
    tpu.vector_store %arg4[%c0_6, %c0_7], %8 {strides = array<i32>} : memref<256x128xbf16, #tpu.memory_space<vmem>>, vector<256x128xbf16>,
    return
  }
  func.func @transform_0(%arg0: i32) -> (i32, i32) {
    %c0_i32 = arith.constant 0 : i32
    %c0_i32_0 = arith.constant 0 : i32
    return %arg0, %c0_i32 : i32, i32
  }
  func.func @transform_1(%arg0: i32) -> (i32, i32) {
    %c0_i32 = arith.constant 0 : i32
    %c0_i32_0 = arith.constant 0 : i32
    %c0_i32_1 = arith.constant 0 : i32
    return %c0_i32, %c0_i32_0 : i32, i32
  }
  func.func @transform_2(%arg0: i32) -> (i32, i32) {
    %c0_i32 = arith.constant 0 : i32
    %c0_i32_0 = arith.constant 0 : i32
    %c0_i32_1 = arith.constant 0 : i32
    return %c0_i32, %c0_i32_0 : i32, i32
  }
  func.func @transform_3(%arg0: i32) -> (i32, i32) {
    %c0_i32 = arith.constant 0 : i32
    %c0_i32_0 = arith.constant 0 : i32
    return %arg0, %c0_i32 : i32, i32
  }
}

module attributes {stable_mosaic.version = 11 : i64} {
  func.func @_mm_bias_kernel(%arg0: i32, %arg1: memref<256x384xbf16, #tpu.memory_space<vmem>>, %arg2: memref<384x128xbf16, #tpu.memory_space<vmem>>, %arg3: memref<1x128xf32, #tpu.memory_space<vmem>>, %arg4: memref<256x128xbf16, #tpu.memory_space<vmem>>) attributes {dimension_semantics = [#tpu.dimension_semantics<parallel>], iteration_bounds = array<i64: 2>, scalar_prefetch = 0 : i64, scratch_operands = 0 : i64, tpu.core_type = #tpu.core_type<tc>, window_params = [{transform_indices = @transform_0, window_bounds = array<i64: 256, 384>}, {pipeline_mode = #tpu.pipeline_mode<synchronous>, transform_indices = @transform_1, window_bounds = array<i64: 384, 128>}, {pipeline_mode = #tpu.pipeline_mode<synchronous>, transform_indices = @transform_2, window_bounds = array<i64: 1, 128>}, {transform_indices = @transform_3, window_bounds = array<i64: 256, 128>}]} {
    %c0 = arith.constant 0 : index
    %c0_0 = arith.constant 0 : index
    %0 = vector.load %arg1[%c0, %c0_0] : memref<256x384xbf16, #tpu.memory_space<vmem>>, vector<256x384xbf16>
    %c0_1 = arith.constant 0 : index
    %c0_2 = arith.constant 0 : index
    %1 = vector.load %arg2[%c0_1, %c0_2] : memref<384x128xbf16, #tpu.memory_space<vmem>>, vector<384x128xbf16>
    %cst = arith.constant dense<0.000000e+00> : vector<256x128xf32>
    %2 = tpu.matmul %0, %1, %cst {dimension_numbers = #tpu.dot_dimension_numbers<[1], [0], [0], [1], [0, 0, 1, 1], [], []>} : vector<256x384xbf16>, vector<384x128xbf16>, vector<256x128xf32> -> vector<256x128xf32>
    %c0_3 = arith.constant 0 : index
    %c0_4 = arith.constant 0 : index
    %3 = vector.load %arg3[%c0_3, %c0_4] : memref<1x128xf32, #tpu.memory_space<vmem>>, vector<1x128xf32>
    %4 = vector.broadcast %3 : vector<1x128xf32> to vector<256x128xf32>
    %5 = arith.addf %2, %4 : vector<256x128xf32>
    %cst_5 = arith.constant 0.000000e+00 : f32
    %6 = vector.broadcast %cst_5 : f32 to vector<256x128xf32>
    %7 = arith.maximumf %5, %6 : vector<256x128xf32>
    %8 = arith.truncf %7 : vector<256x128xf32> to vector<256x128xbf16>
    %c0_6 = arith.constant 0 : index
    %c0_7 = arith.constant 0 : index
    %9 = vector.load %arg4[%c0_6, %c0_7] : memref<256x128xbf16, #tpu.memory_space<vmem>>, vector<256x128xbf16>
    tpu.vector_store %arg4[%c0_6, %c0_7], %8 {strides = array<i32>} : memref<256x128xbf16, #tpu.memory_space<vmem>>, vector<256x128xbf16>,
    return
  }
  func.func @transform_0(%arg0: i32) -> (i32, i32) {
    %c0_i32 = arith.constant 0 : i32
    %c0_i32_0 = arith.constant 0 : i32
    return %arg0, %c0_i32 : i32, i32
  }
  func.func @transform_1(%arg0: i32) -> (i32, i32) {
    %c0_i32 = arith.constant 0 : i32
    %c0_i32_0 = arith.constant 0 : i32
    %c0_i32_1 = arith.constant 0 : i32
    return %c0_i32, %c0_i32_0 : i32, i32
  }
  func.func @transform_2(%arg0: i32) -> (i32, i32) {
    %c0_i32 = arith.constant 0 : i32
    %c0_i32_0 = arith.constant 0 : i32
    %c0_i32_1 = arith.constant 0 : i32
    return %c0_i32, %c0_i32_0 : i32, i32
  }
  func.func @transform_3(%arg0: i32) -> (i32, i32) {
    %c0_i32 = arith.constant 0 : i32
    %c0_i32_0 = arith.constant 0 : i32
    return %arg0, %c0_i32 : i32, i32
  }
}

module attributes {stable_mosaic.version = 11 : i64} {
  func.func @_mm_bias_kernel(%arg0: i32, %arg1: memref<64x384xbf16, #tpu.memory_space<vmem>>, %arg2: memref<384x128xbf16, #tpu.memory_space<vmem>>, %arg3: memref<1x128xf32, #tpu.memory_space<vmem>>, %arg4: memref<64x128xbf16, #tpu.memory_space<vmem>>) attributes {dimension_semantics = [#tpu.dimension_semantics<parallel>], iteration_bounds = array<i64: 2>, scalar_prefetch = 0 : i64, scratch_operands = 0 : i64, tpu.core_type = #tpu.core_type<tc>, window_params = [{transform_indices = @transform_0, window_bounds = array<i64: 64, 384>}, {pipeline_mode = #tpu.pipeline_mode<synchronous>, transform_indices = @transform_1, window_bounds = array<i64: 384, 128>}, {pipeline_mode = #tpu.pipeline_mode<synchronous>, transform_indices = @transform_2, window_bounds = array<i64: 1, 128>}, {transform_indices = @transform_3, window_bounds = array<i64: 64, 128>}]} {
    %c0 = arith.constant 0 : index
    %c0_0 = arith.constant 0 : index
    %0 = vector.load %arg1[%c0, %c0_0] : memref<64x384xbf16, #tpu.memory_space<vmem>>, vector<64x384xbf16>
    %c0_1 = arith.constant 0 : index
    %c0_2 = arith.constant 0 : index
    %1 = vector.load %arg2[%c0_1, %c0_2] : memref<384x128xbf16, #tpu.memory_space<vmem>>, vector<384x128xbf16>
    %cst = arith.constant dense<0.000000e+00> : vector<64x128xf32>
    %2 = tpu.matmul %0, %1, %cst {dimension_numbers = #tpu.dot_dimension_numbers<[1], [0], [0], [1], [0, 0, 1, 1], [], []>} : vector<64x384xbf16>, vector<384x128xbf16>, vector<64x128xf32> -> vector<64x128xf32>
    %c0_3 = arith.constant 0 : index
    %c0_4 = arith.constant 0 : index
    %3 = vector.load %arg3[%c0_3, %c0_4] : memref<1x128xf32, #tpu.memory_space<vmem>>, vector<1x128xf32>
    %4 = vector.broadcast %3 : vector<1x128xf32> to vector<64x128xf32>
    %5 = arith.addf %2, %4 : vector<64x128xf32>
    %cst_5 = arith.constant 0.000000e+00 : f32
    %6 = vector.broadcast %cst_5 : f32 to vector<64x128xf32>
    %7 = arith.maximumf %5, %6 : vector<64x128xf32>
    %8 = arith.truncf %7 : vector<64x128xf32> to vector<64x128xbf16>
    %c0_6 = arith.constant 0 : index
    %c0_7 = arith.constant 0 : index
    %9 = vector.load %arg4[%c0_6, %c0_7] : memref<64x128xbf16, #tpu.memory_space<vmem>>, vector<64x128xbf16>
    tpu.vector_store %arg4[%c0_6, %c0_7], %8 {strides = array<i32>} : memref<64x128xbf16, #tpu.memory_space<vmem>>, vector<64x128xbf16>,
    return
  }
  func.func @transform_0(%arg0: i32) -> (i32, i32) {
    %c0_i32 = arith.constant 0 : i32
    %c0_i32_0 = arith.constant 0 : i32
    return %arg0, %c0_i32 : i32, i32
  }
  func.func @transform_1(%arg0: i32) -> (i32, i32) {
    %c0_i32 = arith.constant 0 : i32
    %c0_i32_0 = arith.constant 0 : i32
    %c0_i32_1 = arith.constant 0 : i32
    return %c0_i32, %c0_i32_0 : i32, i32
  }
  func.func @transform_2(%arg0: i32) -> (i32, i32) {
    %c0_i32 = arith.constant 0 : i32
    %c0_i32_0 = arith.constant 0 : i32
    %c0_i32_1 = arith.constant 0 : i32
    return %c0_i32, %c0_i32_0 : i32, i32
  }
  func.func @transform_3(%arg0: i32) -> (i32, i32) {
    %c0_i32 = arith.constant 0 : i32
    %c0_i32_0 = arith.constant 0 : i32
    return %arg0, %c0_i32 : i32, i32
  }
}

module attributes {stable_mosaic.version = 11 : i64} {
  func.func @_mm_bias_kernel(%arg0: i32, %arg1: memref<64x640xbf16, #tpu.memory_space<vmem>>, %arg2: memref<640x128xbf16, #tpu.memory_space<vmem>>, %arg3: memref<1x128xf32, #tpu.memory_space<vmem>>, %arg4: memref<64x128xbf16, #tpu.memory_space<vmem>>) attributes {dimension_semantics = [#tpu.dimension_semantics<parallel>], iteration_bounds = array<i64: 2>, scalar_prefetch = 0 : i64, scratch_operands = 0 : i64, tpu.core_type = #tpu.core_type<tc>, window_params = [{transform_indices = @transform_0, window_bounds = array<i64: 64, 640>}, {pipeline_mode = #tpu.pipeline_mode<synchronous>, transform_indices = @transform_1, window_bounds = array<i64: 640, 128>}, {pipeline_mode = #tpu.pipeline_mode<synchronous>, transform_indices = @transform_2, window_bounds = array<i64: 1, 128>}, {transform_indices = @transform_3, window_bounds = array<i64: 64, 128>}]} {
    %c0 = arith.constant 0 : index
    %c0_0 = arith.constant 0 : index
    %0 = vector.load %arg1[%c0, %c0_0] : memref<64x640xbf16, #tpu.memory_space<vmem>>, vector<64x640xbf16>
    %c0_1 = arith.constant 0 : index
    %c0_2 = arith.constant 0 : index
    %1 = vector.load %arg2[%c0_1, %c0_2] : memref<640x128xbf16, #tpu.memory_space<vmem>>, vector<640x128xbf16>
    %cst = arith.constant dense<0.000000e+00> : vector<64x128xf32>
    %2 = tpu.matmul %0, %1, %cst {dimension_numbers = #tpu.dot_dimension_numbers<[1], [0], [0], [1], [0, 0, 1, 1], [], []>} : vector<64x640xbf16>, vector<640x128xbf16>, vector<64x128xf32> -> vector<64x128xf32>
    %c0_3 = arith.constant 0 : index
    %c0_4 = arith.constant 0 : index
    %3 = vector.load %arg3[%c0_3, %c0_4] : memref<1x128xf32, #tpu.memory_space<vmem>>, vector<1x128xf32>
    %4 = vector.broadcast %3 : vector<1x128xf32> to vector<64x128xf32>
    %5 = arith.addf %2, %4 : vector<64x128xf32>
    %cst_5 = arith.constant 0.000000e+00 : f32
    %6 = vector.broadcast %cst_5 : f32 to vector<64x128xf32>
    %7 = arith.maximumf %5, %6 : vector<64x128xf32>
    %8 = arith.truncf %7 : vector<64x128xf32> to vector<64x128xbf16>
    %c0_6 = arith.constant 0 : index
    %c0_7 = arith.constant 0 : index
    %9 = vector.load %arg4[%c0_6, %c0_7] : memref<64x128xbf16, #tpu.memory_space<vmem>>, vector<64x128xbf16>
    tpu.vector_store %arg4[%c0_6, %c0_7], %8 {strides = array<i32>} : memref<64x128xbf16, #tpu.memory_space<vmem>>, vector<64x128xbf16>,
    return
  }
  func.func @transform_0(%arg0: i32) -> (i32, i32) {
    %c0_i32 = arith.constant 0 : i32
    %c0_i32_0 = arith.constant 0 : i32
    return %arg0, %c0_i32 : i32, i32
  }
  func.func @transform_1(%arg0: i32) -> (i32, i32) {
    %c0_i32 = arith.constant 0 : i32
    %c0_i32_0 = arith.constant 0 : i32
    %c0_i32_1 = arith.constant 0 : i32
    return %c0_i32, %c0_i32_0 : i32, i32
  }
  func.func @transform_2(%arg0: i32) -> (i32, i32) {
    %c0_i32 = arith.constant 0 : i32
    %c0_i32_0 = arith.constant 0 : i32
    %c0_i32_1 = arith.constant 0 : i32
    return %c0_i32, %c0_i32_0 : i32, i32
  }
  func.func @transform_3(%arg0: i32) -> (i32, i32) {
    %c0_i32 = arith.constant 0 : i32
    %c0_i32_0 = arith.constant 0 : i32
    return %arg0, %c0_i32 : i32, i32
  }
}

module attributes {stable_mosaic.version = 11 : i64} {
  func.func @_pool_fc_kernel(%arg0: i32, %arg1: memref<2x64x128xbf16, #tpu.memory_space<vmem>>, %arg2: memref<128x128xf32, #tpu.memory_space<vmem>>, %arg3: memref<1x128xf32, #tpu.memory_space<vmem>>, %arg4: memref<2x128xf32, #tpu.memory_space<vmem>>) attributes {dimension_semantics = [#tpu.dimension_semantics<arbitrary>], iteration_bounds = array<i64: 1>, scalar_prefetch = 0 : i64, scratch_operands = 0 : i64, tpu.core_type = #tpu.core_type<tc>, window_params = [{pipeline_mode = #tpu.pipeline_mode<synchronous>, transform_indices = @transform_0, window_bounds = array<i64: 2, 64, 128>}, {pipeline_mode = #tpu.pipeline_mode<synchronous>, transform_indices = @transform_1, window_bounds = array<i64: 128, 128>}, {pipeline_mode = #tpu.pipeline_mode<synchronous>, transform_indices = @transform_2, window_bounds = array<i64: 1, 128>}, {pipeline_mode = #tpu.pipeline_mode<synchronous>, transform_indices = @transform_3, window_bounds = array<i64: 2, 128>}]} {
    %c0 = arith.constant 0 : index
    %c0_0 = arith.constant 0 : index
    %c0_1 = arith.constant 0 : index
    %0 = vector.load %arg1[%c0, %c0_0, %c0_1] : memref<2x64x128xbf16, #tpu.memory_space<vmem>>, vector<2x64x128xbf16>
    %1 = arith.extf %0 : vector<2x64x128xbf16> to vector<2x64x128xf32>
    %cst = arith.constant dense<0.000000e+00> : vector<2x128xf32>
    %2 = vector.multi_reduction <add>, %1, %cst [1] : vector<2x64x128xf32> to vector<2x128xf32>
    %cst_2 = arith.constant 1.562500e-02 : f32
    %3 = vector.broadcast %cst_2 : f32 to vector<2x128xf32>
    %4 = arith.mulf %2, %3 : vector<2x128xf32>
    %c0_3 = arith.constant 0 : index
    %c0_4 = arith.constant 0 : index
    %5 = vector.load %arg2[%c0_3, %c0_4] : memref<128x128xf32, #tpu.memory_space<vmem>>, vector<128x128xf32>
    %cst_5 = arith.constant dense<0.000000e+00> : vector<2x128xf32>
    %6 = tpu.matmul %4, %5, %cst_5 {dimension_numbers = #tpu.dot_dimension_numbers<[1], [0], [0], [1], [0, 0, 1, 1], [], []>} : vector<2x128xf32>, vector<128x128xf32>, vector<2x128xf32> -> vector<2x128xf32>
    %c0_6 = arith.constant 0 : index
    %c0_7 = arith.constant 0 : index
    %7 = vector.load %arg3[%c0_6, %c0_7] : memref<1x128xf32, #tpu.memory_space<vmem>>, vector<1x128xf32>
    %8 = vector.broadcast %7 : vector<1x128xf32> to vector<2x128xf32>
    %9 = arith.addf %6, %8 : vector<2x128xf32>
    %c0_8 = arith.constant 0 : index
    %c0_9 = arith.constant 0 : index
    %10 = vector.load %arg4[%c0_8, %c0_9] : memref<2x128xf32, #tpu.memory_space<vmem>>, vector<2x128xf32>
    tpu.vector_store %arg4[%c0_8, %c0_9], %9 {strides = array<i32>} : memref<2x128xf32, #tpu.memory_space<vmem>>, vector<2x128xf32>,
    return
  }
  func.func @transform_0(%arg0: i32) -> (i32, i32, i32) {
    %c0_i32 = arith.constant 0 : i32
    %c0_i32_0 = arith.constant 0 : i32
    %c0_i32_1 = arith.constant 0 : i32
    %c0_i32_2 = arith.constant 0 : i32
    return %c0_i32, %c0_i32_0, %c0_i32_1 : i32, i32, i32
  }
  func.func @transform_1(%arg0: i32) -> (i32, i32) {
    %c0_i32 = arith.constant 0 : i32
    %c0_i32_0 = arith.constant 0 : i32
    %c0_i32_1 = arith.constant 0 : i32
    return %c0_i32, %c0_i32_0 : i32, i32
  }
  func.func @transform_2(%arg0: i32) -> (i32, i32) {
    %c0_i32 = arith.constant 0 : i32
    %c0_i32_0 = arith.constant 0 : i32
    %c0_i32_1 = arith.constant 0 : i32
    return %c0_i32, %c0_i32_0 : i32, i32
  }
  func.func @transform_3(%arg0: i32) -> (i32, i32) {
    %c0_i32 = arith.constant 0 : i32
    %c0_i32_0 = arith.constant 0 : i32
    %c0_i32_1 = arith.constant 0 : i32
    return %c0_i32, %c0_i32_0 : i32, i32
  }
}

</mosaic_0001>

<llo_original>
// kernel: fwd.8
$region0: #{fwd.8}
  #allocation0 [shape = 'u32[]', space=smem, size = 0x4, offset = 0x4, fixed_abs, tag = 'smem constant byte address 0x4 - core index']
  #allocation1 [shape = 'u32[144,128]{1,0:T(1,128)}', space=vmem, size = 0x12000, scoped, tag = 'internal scratch']
  %s0 = inlined_call_operand.vmem [shape: bf16[2048,128], index: 0, kind: input, shape index: {}]
  %s1 = inlined_call_operand.vmem [shape: bf16[128,128], index: 1, kind: input, shape index: {}]
  %s2 = inlined_call_operand.vmem [shape: f32[1,128], index: 2, kind: input, shape index: {}]
  %s3 = inlined_call_operand.vmem [shape: bf16[2048,128], index: 3, kind: output, shape index: {}]
  %s4 = sld [smem:[#allocation0]]
  $region45: #{fwd.8} parent=0
    _
  %s6 = ssub.s32 1, %s4
  %s7 = scalar_select 0, %s6, %s4
  loop: start=0, step=1, limit=4
  $region2: #{fwd.8} parent=0 // loop_pre_header
    _
  $region3: #{fwd.8} parent=0 // loop_header
    %s9 = sphi 0, %s13
    %p10 = scmp.ge.s32.totalorder %s9, 4
    %s19 = sphi 0, %s21
    %s22 = sphi 0, %s19
    %s23 = sphi 0, %s22
    %s39 = sphi 0, %s23
    %s43 = sphi 0, %s43
    %s45 = sphi 0, %s43
    %s46 = sphi 0, %s45
    %s60 = sphi 0, %s46
    %s64 = sphi 0, %s64
    %s66 = sphi 0, %s64
    %s67 = sphi 0, %s66
    %s81 = sphi 0, %s67
    %s87 = sphi 0, %s89
    %s90 = sphi 0, %s87
    %s91 = sphi 0, %s90
    %s107 = sphi 0, %s91
  $region4: #{fwd.8} parent=0 // loop_header_branch
    %12 = sbr.rel (%p10) target = $region8
  $region5: #{fwd.8} parent=0 // loop_body
    %s14 = ssub.s32 %s9, 1
    %s15 = ssub.s32 %s9, 2
    %s16 = sadd.s32 %s9, 1
    %s17 = ssub.s32 %s9, %s16
    %p18 = scmp.eq.s32.totalorder %s17, 0
    %s20 = sadd.s32 %s19, 1
    %s21 = scalar_select %p18, %s19, %s20
    %p24 = pneg %p18
    %p25 = scmp.eq.s32.totalorder %s9, 1
    %p26 = por %p24, %p25
    %p27 = scmp.ne.s32.totalorder %s19, %s22
    %p28 = scmp.eq.s32.totalorder %s9, 0
    %p29 = por %p27, %p28
    %p30 = scmp.ne.s32.totalorder %s19, %s22
    %p31 = scmp.eq.s32.totalorder %s14, 1
    %p32 = por %p30, %p31
    %p33 = scmp.ne.s32.totalorder %s22, %s23
    %p34 = scmp.eq.s32.totalorder %s14, 0
    %p35 = por %p33, %p34
    %p36 = scmp.ne.s32.totalorder %s22, %s23
    %p37 = scmp.eq.s32.totalorder %s15, 1
    %p38 = por %p36, %p37
    %p40 = scmp.ne.s32.totalorder %s23, %s39
    %p41 = scmp.eq.s32.totalorder %s15, 0
    %p42 = por %p40, %p41
    %s44 = sadd.s32 %s43, 1
    %p47 = scmp.eq.s32.totalorder %s9, 1
    %p48 = scmp.ne.s32.totalorder %s43, %s45
    %p49 = scmp.eq.s32.totalorder %s9, 0
    %p50 = por %p48, %p49
    %p51 = scmp.ne.s32.totalorder %s43, %s45
    %p52 = scmp.eq.s32.totalorder %s14, 1
    %p53 = por %p51, %p52
    %p54 = scmp.ne.s32.totalorder %s45, %s46
    %p55 = scmp.eq.s32.totalorder %s14, 0
    %p56 = por %p54, %p55
    %p57 = scmp.ne.s32.totalorder %s45, %s46
    %p58 = scmp.eq.s32.totalorder %s15, 1
    %p59 = por %p57, %p58
    %p61 = scmp.ne.s32.totalorder %s46, %s60
    %p62 = scmp.eq.s32.totalorder %s15, 0
    %p63 = por %p61, %p62
    %s65 = sadd.s32 %s64, 1
    %p68 = scmp.eq.s32.totalorder %s9, 1
    %p69 = scmp.ne.s32.totalorder %s64, %s66
    %p70 = scmp.eq.s32.totalorder %s9, 0
    %p71 = por %p69, %p70
    %p72 = scmp.ne.s32.totalorder %s64, %s66
    %p73 = scmp.eq.s32.totalorder %s14, 1
    %p74 = por %p72, %p73
    %p75 = scmp.ne.s32.totalorder %s66, %s67
    %p76 = scmp.eq.s32.totalorder %s14, 0
    %p77 = por %p75, %p76
    %p78 = scmp.ne.s32.totalorder %s66, %s67
    %p79 = scmp.eq.s32.totalorder %s15, 1
    %p80 = por %p78, %p79
    %p82 = scmp.ne.s32.totalorder %s67, %s81
    %p83 = scmp.eq.s32.totalorder %s15, 0
    %p84 = por %p82, %p83
    %s85 = ssub.s32 %s9, %s16
    %p86 = scmp.eq.s32.totalorder %s85, 0
    %s88 = sadd.s32 %s87, 1
    %s89 = scalar_select %p86, %s87, %s88
    %p92 = pneg %p86
    %p93 = scmp.eq.s32.totalorder %s9, 1
    %p94 = por %p92, %p93
    %p95 = scmp.ne.s32.totalorder %s87, %s90
    %p96 = scmp.eq.s32.totalorder %s9, 0
    %p97 = por %p95, %p96
    %p98 = scmp.ne.s32.totalorder %s87, %s90
    %p99 = scmp.eq.s32.totalorder %s14, 1
    %p100 = por %p98, %p99
    %p101 = scmp.ne.s32.totalorder %s90, %s91
    %p102 = scmp.eq.s32.totalorder %s14, 0
    %p103 = por %p101, %p102
    %p104 = scmp.ne.s32.totalorder %s90, %s91
    %p105 = scmp.eq.s32.totalorder %s15, 1
    %p106 = por %p104, %p105
    %p108 = scmp.ne.s32.totalorder %s91, %s107
    %p109 = scmp.eq.s32.totalorder %s15, 0
    %p110 = por %p108, %p109
    %p111 = scmp.le.s32.totalorder 1, %s9
    %p112 = scmp.lt.s32.totalorder %s9, 3
    %p113 = pnand %p111, %p112
    %p114 = pneg %p113
    // Predicated region
    $region9: #{fwd.8} parent=5 // pred_check
      _
    $region10: #{fwd.8} parent=5 // pred_check_branch
      %116 = sbr.rel (%p113) target = $region12
    $region11: #{fwd.8} parent=5 // pred_region
      %s117 = ssub.s32 %s9, 1
      // Predicated region
      $region13: #{fwd.8} parent=11 // pred_check
        %p118 = pneg %p56
      $region14: #{fwd.8} parent=11 // pred_check_branch
        %120 = sbr.rel (%p118) target = $region16
      $region15: #{fwd.8} parent=11 // pred_region
        _
      $region16: #{fwd.8} parent=11 // pred_fallthru
        _
      // Predicated region
      $region17: #{fwd.8} parent=11 // pred_check
        %p121 = pneg %p77
      $region18: #{fwd.8} parent=11 // pred_check_branch
        %123 = sbr.rel (%p121) target = $region20
      $region19: #{fwd.8} parent=11 // pred_region
        _
      $region20: #{fwd.8} parent=11 // pred_fallthru
        _
    $region12: #{fwd.8} parent=5 // pred_fallthru
      _
    %p124 = scmp.lt.s32.totalorder %s9, 2
    // Predicated region
    $region21: #{fwd.8} parent=5 // pred_check
      %p125 = pneg %p124
    $region22: #{fwd.8} parent=5 // pred_check_branch
      %127 = sbr.rel (%p125) target = $region24
    $region23: #{fwd.8} parent=5 // pred_region
      // Predicated region
      $region25: #{fwd.8} parent=23 // pred_check
        %p128 = pneg %p29
      $region26: #{fwd.8} parent=23 // pred_check_branch
        %130 = sbr.rel (%p128) target = $region28
      $region27: #{fwd.8} parent=23 // pred_region
        %s131 = smul.u32 128, %s9
        %p132 = scmp.lt.s32.totalorder %s131, 255
        %s133 = scalar_select %p132, %s131, 255
        %s134 = smul.addr %s133, 4
        %s135 = scalar_lea.vmem %s0, %s134
        %s136 = smul.u32 128, %s9
      $region28: #{fwd.8} parent=23 // pred_fallthru
        _
    $region24: #{fwd.8} parent=5 // pred_fallthru
      _
    %p137 = scmp.le.s32.totalorder 1, %s9
    %p138 = scmp.lt.s32.totalorder %s9, 3
    %p139 = pnand %p137, %p138
    %p140 = pneg %p139
    // Predicated region
    $region29: #{fwd.8} parent=5 // pred_check
      _
    $region30: #{fwd.8} parent=5 // pred_check_branch
      %142 = sbr.rel (%p139) target = $region32
    $region31: #{fwd.8} parent=5 // pred_region
      %s143 = ssub.s32 %s9, 1
      %s144 = smul.u32 128, %s14
      %p145 = scmp.lt.s32.totalorder %s144, 255
      %s146 = scalar_select %p145, %s144, 255
      %s147 = smul.addr %s146, 4
      %s148 = scalar_lea.vmem %s0, %s147
      %p149 = pneg %p35
      %p150 = pneg %p32
      %p151 = pneg %p56
      %p152 = pneg %p53
      %p153 = pneg %p77
      %p154 = pneg %p74
      %p155 = pneg %p103
      %p156 = pneg %p100
      %s157 = smul.u32 128, %s14
      %p158 = scmp.lt.s32.totalorder %s157, 255
      %s159 = scalar_select %p158, %s157, 255
      %s160 = smul.addr %s159, 4
      %s161 = scalar_lea.vmem %s3, %s160
      %s162 = smul.u32 128, %s14
      %p163 = scmp.lt.s32.totalorder %s162, 255
      %s164 = scalar_select %p163, %s162, 255
      %s165 = smul.addr %s164, 4
      %s166 = scalar_lea.vmem %s0, %s165
      %s167 = smul.u32 128, %s14
      %s168 = smul.u32 128, %s14
      %p169 = scmp.lt.s32.totalorder %s168, 255
      %s170 = scalar_select %p169, %s168, 255
      %s171 = smul.addr %s170, 4
      %s172 = scalar_lea.vmem %s3, %s171
      %s173 = smul.u32 128, %s14
      %v175 = vld [vmem:[%s166] sm:$0xf]
      %v176 = vld [vmem:[%s166 + $0x4] sm:$0xf]
      %v177 = vld [vmem:[%s166 + $0x8] sm:$0xf]
      %v178 = vld [vmem:[%s166 + $0xc] sm:$0xf]
      %v179 = vld [vmem:[%s166 + $0x10] sm:$0xf]
      %v180 = vld [vmem:[%s166 + $0x14] sm:$0xf]
      %v181 = vld [vmem:[%s166 + $0x18] sm:$0xf]
      %v182 = vld [vmem:[%s166 + $0x1c] sm:$0xf]
      %v183 = vld [vmem:[%s166 + $0x20] sm:$0xf]
      %v184 = vld [vmem:[%s166 + $0x24] sm:$0xf]
      %v185 = vld [vmem:[%s166 + $0x28] sm:$0xf]
      %v186 = vld [vmem:[%s166 + $0x2c] sm:$0xf]
      %v187 = vld [vmem:[%s166 + $0x30] sm:$0xf]
      %v188 = vld [vmem:[%s166 + $0x34] sm:$0xf]
      %v189 = vld [vmem:[%s166 + $0x38] sm:$0xf]
      %v190 = vld [vmem:[%s166 + $0x3c] sm:$0xf]
      %v191 = vld [vmem:[%s166 + $0x40] sm:$0xf]
      %v192 = vld [vmem:[%s166 + $0x44] sm:$0xf]
      %v193 = vld [vmem:[%s166 + $0x48] sm:$0xf]
      %v194 = vld [vmem:[%s166 + $0x4c] sm:$0xf]
      %v195 = vld [vmem:[%s166 + $0x50] sm:$0xf]
      %v196 = vld [vmem:[%s166 + $0x54] sm:$0xf]
      %v197 = vld [vmem:[%s166 + $0x58] sm:$0xf]
      %v198 = vld [vmem:[%s166 + $0x5c] sm:$0xf]
      %v199 = vld [vmem:[%s166 + $0x60] sm:$0xf]
      %v200 = vld [vmem:[%s166 + $0x64] sm:$0xf]
      %v201 = vld [vmem:[%s166 + $0x68] sm:$0xf]
      %v202 = vld [vmem:[%s166 + $0x6c] sm:$0xf]
      %v203 = vld [vmem:[%s166 + $0x70] sm:$0xf]
      %v204 = vld [vmem:[%s166 + $0x74] sm:$0xf]
      %v205 = vld [vmem:[%s166 + $0x78] sm:$0xf]
      %v206 = vld [vmem:[%s166 + $0x7c] sm:$0xf]
      %v207 = vld [vmem:[%s166 + $0x80] sm:$0xf]
      %v208 = vld [vmem:[%s166 + $0x84] sm:$0xf]
      %v209 = vld [vmem:[%s166 + $0x88] sm:$0xf]
      %v210 = vld [vmem:[%s166 + $0x8c] sm:$0xf]
      %v211 = vld [vmem:[%s166 + $0x90] sm:$0xf]
      %v212 = vld [vmem:[%s166 + $0x94] sm:$0xf]
      %v213 = vld [vmem:[%s166 + $0x98] sm:$0xf]
      %v214 = vld [vmem:[%s166 + $0x9c] sm:$0xf]
      %v215 = vld [vmem:[%s166 + $0xa0] sm:$0xf]
      %v216 = vld [vmem:[%s166 + $0xa4] sm:$0xf]
      %v217 = vld [vmem:[%s166 + $0xa8] sm:$0xf]
      %v218 = vld [vmem:[%s166 + $0xac] sm:$0xf]
      %v219 = vld [vmem:[%s166 + $0xb0] sm:$0xf]
      %v220 = vld [vmem:[%s166 + $0xb4] sm:$0xf]
      %v221 = vld [vmem:[%s166 + $0xb8] sm:$0xf]
      %v222 = vld [vmem:[%s166 + $0xbc] sm:$0xf]
      %v223 = vld [vmem:[%s166 + $0xc0] sm:$0xf]
      %v224 = vld [vmem:[%s166 + $0xc4] sm:$0xf]
      %v225 = vld [vmem:[%s166 + $0xc8] sm:$0xf]
      %v226 = vld [vmem:[%s166 + $0xcc] sm:$0xf]
      %v227 = vld [vmem:[%s166 + $0xd0] sm:$0xf]
      %v228 = vld [vmem:[%s166 + $0xd4] sm:$0xf]
      %v229 = vld [vmem:[%s166 + $0xd8] sm:$0xf]
      %v230 = vld [vmem:[%s166 + $0xdc] sm:$0xf]
      %v231 = vld [vmem:[%s166 + $0xe0] sm:$0xf]
      %v232 = vld [vmem:[%s166 + $0xe4] sm:$0xf]
      %v233 = vld [vmem:[%s166 + $0xe8] sm:$0xf]
      %v234 = vld [vmem:[%s166 + $0xec] sm:$0xf]
      %v235 = vld [vmem:[%s166 + $0xf0] sm:$0xf]
      %v236 = vld [vmem:[%s166 + $0xf4] sm:$0xf]
      %v237 = vld [vmem:[%s166 + $0xf8] sm:$0xf]
      %v238 = vld [vmem:[%s166 + $0xfc] sm:$0xf]
      %v239 = vld [vmem:[%s166 + $0x100] sm:$0xf]
      %v240 = vld [vmem:[%s166 + $0x104] sm:$0xf]
      %v241 = vld [vmem:[%s166 + $0x108] sm:$0xf]
      %v242 = vld [vmem:[%s166 + $0x10c] sm:$0xf]
      %v243 = vld [vmem:[%s166 + $0x110] sm:$0xf]
      %v244 = vld [vmem:[%s166 + $0x114] sm:$0xf]
      %v245 = vld [vmem:[%s166 + $0x118] sm:$0xf]
      %v246 = vld [vmem:[%s166 + $0x11c] sm:$0xf]
      %v247 = vld [vmem:[%s166 + $0x120] sm:$0xf]
      %v248 = vld [vmem:[%s166 + $0x124] sm:$0xf]
      %v249 = vld [vmem:[%s166 + $0x128] sm:$0xf]
      %v250 = vld [vmem:[%s166 + $0x12c] sm:$0xf]
      %v251 = vld [vmem:[%s166 + $0x130] sm:$0xf]
      %v252 = vld [vmem:[%s166 + $0x134] sm:$0xf]
      %v253 = vld [vmem:[%s166 + $0x138] sm:$0xf]
      %v254 = vld [vmem:[%s166 + $0x13c] sm:$0xf]
      %v255 = vld [vmem:[%s166 + $0x140] sm:$0xf]
      %v256 = vld [vmem:[%s166 + $0x144] sm:$0xf]
      %v257 = vld [vmem:[%s166 + $0x148] sm:$0xf]
      %v258 = vld [vmem:[%s166 + $0x14c] sm:$0xf]
      %v259 = vld [vmem:[%s166 + $0x150] sm:$0xf]
      %v260 = vld [vmem:[%s166 + $0x154] sm:$0xf]
      %v261 = vld [vmem:[%s166 + $0x158] sm:$0xf]
      %v262 = vld [vmem:[%s166 + $0x15c] sm:$0xf]
      %v263 = vld [vmem:[%s166 + $0x160] sm:$0xf]
      %v264 = vld [vmem:[%s166 + $0x164] sm:$0xf]
      %v265 = vld [vmem:[%s166 + $0x168] sm:$0xf]
      %v266 = vld [vmem:[%s166 + $0x16c] sm:$0xf]
      %v267 = vld [vmem:[%s166 + $0x170] sm:$0xf]
      %v268 = vld [vmem:[%s166 + $0x174] sm:$0xf]
      %v269 = vld [vmem:[%s166 + $0x178] sm:$0xf]
      %v270 = vld [vmem:[%s166 + $0x17c] sm:$0xf]
      %v271 = vld [vmem:[%s166 + $0x180] sm:$0xf]
      %v272 = vld [vmem:[%s166 + $0x184] sm:$0xf]
      %v273 = vld [vmem:[%s166 + $0x188] sm:$0xf]
      %v274 = vld [vmem:[%s166 + $0x18c] sm:$0xf]
      %v275 = vld [vmem:[%s166 + $0x190] sm:$0xf]
      %v276 = vld [vmem:[%s166 + $0x194] sm:$0xf]
      %v277 = vld [vmem:[%s166 + $0x198] sm:$0xf]
      %v278 = vld [vmem:[%s166 + $0x19c] sm:$0xf]
      %v279 = vld [vmem:[%s166 + $0x1a0] sm:$0xf]
      %v280 = vld [vmem:[%s166 + $0x1a4] sm:$0xf]
      %v281 = vld [vmem:[%s166 + $0x1a8] sm:$0xf]
      %v282 = vld [vmem:[%s166 + $0x1ac] sm:$0xf]
      %v283 = vld [vmem:[%s166 + $0x1b0] sm:$0xf]
      %v284 = vld [vmem:[%s166 + $0x1b4] sm:$0xf]
      %v285 = vld [vmem:[%s166 + $0x1b8] sm:$0xf]
      %v286 = vld [vmem:[%s166 + $0x1bc] sm:$0xf]
      %v287 = vld [vmem:[%s166 + $0x1c0] sm:$0xf]
      %v288 = vld [vmem:[%s166 + $0x1c4] sm:$0xf]
      %v289 = vld [vmem:[%s166 + $0x1c8] sm:$0xf]
      %v290 = vld [vmem:[%s166 + $0x1cc] sm:$0xf]
      %v291 = vld [vmem:[%s166 + $0x1d0] sm:$0xf]
      %v292 = vld [vmem:[%s166 + $0x1d4] sm:$0xf]
      %v293 = vld [vmem:[%s166 + $0x1d8] sm:$0xf]
      %v294 = vld [vmem:[%s166 + $0x1dc] sm:$0xf]
      %v295 = vld [vmem:[%s166 + $0x1e0] sm:$0xf]
      %v296 = vld [vmem:[%s166 + $0x1e4] sm:$0xf]
      %v297 = vld [vmem:[%s166 + $0x1e8] sm:$0xf]
      %v298 = vld [vmem:[%s166 + $0x1ec] sm:$0xf]
      %v299 = vld [vmem:[%s166 + $0x1f0] sm:$0xf]
      %v300 = vld [vmem:[%s166 + $0x1f4] sm:$0xf]
      %v301 = vld [vmem:[%s166 + $0x1f8] sm:$0xf]
      %v302 = vld [vmem:[%s166 + $0x1fc] sm:$0xf]
      %v303 = vld [vmem:[%s1] sm:$0xf]
      %v304 = vld [vmem:[%s1 + $0x4] sm:$0xf]
      %v305 = vld [vmem:[%s1 + $0x8] sm:$0xf]
      %v306 = vld [vmem:[%s1 + $0xc] sm:$0xf]
      %v307 = vld [vmem:[%s1 + $0x10] sm:$0xf]
      %v308 = vld [vmem:[%s1 + $0x14] sm:$0xf]
      %v309 = vld [vmem:[%s1 + $0x18] sm:$0xf]
      %v310 = vld [vmem:[%s1 + $0x1c] sm:$0xf]
      %v311 = vld [vmem:[%s1 + $0x20] sm:$0xf]
      %v312 = vld [vmem:[%s1 + $0x24] sm:$0xf]
      %v313 = vld [vmem:[%s1 + $0x28] sm:$0xf]
      %v314 = vld [vmem:[%s1 + $0x2c] sm:$0xf]
      %v315 = vld [vmem:[%s1 + $0x30] sm:$0xf]
      %v316 = vld [vmem:[%s1 + $0x34] sm:$0xf]
      %v317 = vld [vmem:[%s1 + $0x38] sm:$0xf]
      %v318 = vld [vmem:[%s1 + $0x3c] sm:$0xf]
      %v319 = vld [vmem:[%s2] sm:$0x1]
      %v321 = vlaneseq
      %v322 = vshrl.u32 %v321, 7
      %v323 = vsub.s32 0, %v322
      %v324 = vrot.slane %v319, %v323
      %v454 = vunpack.c.l.b16 %v175
      %v455 = vunpack.c.l.b16 %v176
      %v456 = vunpack.c.l.b16 %v177
      %v457 = vunpack.c.l.b16 %v178
      %v458 = vunpack.c.l.b16 %v179
      %v459 = vunpack.c.l.b16 %v180
      %v460 = vunpack.c.l.b16 %v181
      %v461 = vunpack.c.l.b16 %v182
      %v462 = vunpack.c.l.b16 %v183
      %v463 = vunpack.c.l.b16 %v184
      %v464 = vunpack.c.l.b16 %v185
      %v465 = vunpack.c.l.b16 %v186
      %v466 = vunpack.c.l.b16 %v187
      %v467 = vunpack.c.l.b16 %v188
      %v468 = vunpack.c.l.b16 %v189
      %v469 = vunpack.c.l.b16 %v190
      %v470 = vunpack.c.l.b16 %v191
      %v471 = vunpack.c.l.b16 %v192
      %v472 = vunpack.c.l.b16 %v193
      %v473 = vunpack.c.l.b16 %v194
      %v474 = vunpack.c.l.b16 %v195
      %v475 = vunpack.c.l.b16 %v196
      %v476 = vunpack.c.l.b16 %v197
      %v477 = vunpack.c.l.b16 %v198
      %v478 = vunpack.c.l.b16 %v199
      %v479 = vunpack.c.l.b16 %v200
      %v480 = vunpack.c.l.b16 %v201
      %v481 = vunpack.c.l.b16 %v202
      %v482 = vunpack.c.l.b16 %v203
      %v483 = vunpack.c.l.b16 %v204
      %v484 = vunpack.c.l.b16 %v205
      %v485 = vunpack.c.l.b16 %v206
      %v486 = vunpack.c.l.b16 %v207
      %v487 = vunpack.c.l.b16 %v208
      %v488 = vunpack.c.l.b16 %v209
      %v489 = vunpack.c.l.b16 %v210
      %v490 = vunpack.c.l.b16 %v211
      %v491 = vunpack.c.l.b16 %v212
      %v492 = vunpack.c.l.b16 %v213
      %v493 = vunpack.c.l.b16 %v214
      %v494 = vunpack.c.l.b16 %v215
      %v495 = vunpack.c.l.b16 %v216
      %v496 = vunpack.c.l.b16 %v217
      %v497 = vunpack.c.l.b16 %v218
      %v498 = vunpack.c.l.b16 %v219
      %v499 = vunpack.c.l.b16 %v220
      %v500 = vunpack.c.l.b16 %v221
      %v501 = vunpack.c.l.b16 %v222
      %v502 = vunpack.c.l.b16 %v223
      %v503 = vunpack.c.l.b16 %v224
      %v504 = vunpack.c.l.b16 %v225
      %v505 = vunpack.c.l.b16 %v226
      %v506 = vunpack.c.l.b16 %v227
      %v507 = vunpack.c.l.b16 %v228
      %v508 = vunpack.c.l.b16 %v229
      %v509 = vunpack.c.l.b16 %v230
      %v510 = vunpack.c.l.b16 %v231
      %v511 = vunpack.c.l.b16 %v232
      %v512 = vunpack.c.l.b16 %v233
      %v513 = vunpack.c.l.b16 %v234
      %v514 = vunpack.c.l.b16 %v235
      %v515 = vunpack.c.l.b16 %v236
      %v516 = vunpack.c.l.b16 %v237
      %v517 = vunpack.c.l.b16 %v238
      %v518 = vunpack.c.l.b16 %v239
      %v519 = vunpack.c.l.b16 %v240
      %v520 = vunpack.c.l.b16 %v241
      %v521 = vunpack.c.l.b16 %v242
      %v522 = vunpack.c.l.b16 %v243
      %v523 = vunpack.c.l.b16 %v244
      %v524 = vunpack.c.l.b16 %v245
      %v525 = vunpack.c.l.b16 %v246
      %v526 = vunpack.c.l.b16 %v247
      %v527 = vunpack.c.l.b16 %v248
      %v528 = vunpack.c.l.b16 %v249
      %v529 = vunpack.c.l.b16 %v250
      %v530 = vunpack.c.l.b16 %v251
      %v531 = vunpack.c.l.b16 %v252
      %v532 = vunpack.c.l.b16 %v253
      %v533 = vunpack.c.l.b16 %v254
      %v534 = vunpack.c.l.b16 %v255
      %v535 = vunpack.c.l.b16 %v256
      %v536 = vunpack.c.l.b16 %v257
      %v537 = vunpack.c.l.b16 %v258
      %v538 = vunpack.c.l.b16 %v259
      %v539 = vunpack.c.l.b16 %v260
      %v540 = vunpack.c.l.b16 %v261
      %v541 = vunpack.c.l.b16 %v262
      %v542 = vunpack.c.l.b16 %v263
      %v543 = vunpack.c.l.b16 %v264
      %v544 = vunpack.c.l.b16 %v265
      %v545 = vunpack.c.l.b16 %v266
      %v546 = vunpack.c.l.b16 %v267
      %v547 = vunpack.c.l.b16 %v268
      %v548 = vunpack.c.l.b16 %v269
      %v549 = vunpack.c.l.b16 %v270
      %v550 = vunpack.c.l.b16 %v271
      %v551 = vunpack.c.l.b16 %v272
      %v552 = vunpack.c.l.b16 %v273
      %v553 = vunpack.c.l.b16 %v274
      %v554 = vunpack.c.l.b16 %v275
      %v555 = vunpack.c.l.b16 %v276
      %v556 = vunpack.c.l.b16 %v277
      %v557 = vunpack.c.l.b16 %v278
      %v558 = vunpack.c.l.b16 %v279
      %v559 = vunpack.c.l.b16 %v280
      %v560 = vunpack.c.l.b16 %v281
      %v561 = vunpack.c.l.b16 %v282
      %v562 = vunpack.c.l.b16 %v283
      %v563 = vunpack.c.l.b16 %v284
      %v564 = vunpack.c.l.b16 %v285
      %v565 = vunpack.c.l.b16 %v286
      %v566 = vunpack.c.l.b16 %v287
      %v567 = vunpack.c.l.b16 %v288
      %v568 = vunpack.c.l.b16 %v289
      %v569 = vunpack.c.l.b16 %v290
      %v570 = vunpack.c.l.b16 %v291
      %v571 = vunpack.c.l.b16 %v292
      %v572 = vunpack.c.l.b16 %v293
      %v573 = vunpack.c.l.b16 %v294
      %v574 = vunpack.c.l.b16 %v295
      %v575 = vunpack.c.l.b16 %v296
      %v576 = vunpack.c.l.b16 %v297
      %v577 = vunpack.c.l.b16 %v298
      %v578 = vunpack.c.l.b16 %v299
      %v579 = vunpack.c.l.b16 %v300
      %v580 = vunpack.c.l.b16 %v301
      %v581 = vunpack.c.l.b16 %v302
      %v582 = vpack.c.b16 %v455, %v454
      %v583 = vpack.c.b16 %v457, %v456
      %v584 = vpack.c.b16 %v459, %v458
      %v585 = vpack.c.b16 %v461, %v460
      %v586 = vpack.c.b16 %v463, %v462
      %v587 = vpack.c.b16 %v465, %v464
      %v588 = vpack.c.b16 %v467, %v466
      %v589 = vpack.c.b16 %v469, %v468
      %v590 = vpack.c.b16 %v471, %v470
      %v591 = vpack.c.b16 %v473, %v472
      %v592 = vpack.c.b16 %v475, %v474
      %v593 = vpack.c.b16 %v477, %v476
      %v594 = vpack.c.b16 %v479, %v478
      %v595 = vpack.c.b16 %v481, %v480
      %v596 = vpack.c.b16 %v483, %v482
      %v597 = vpack.c.b16 %v485, %v484
      %v598 = vpack.c.b16 %v487, %v486
      %v599 = vpack.c.b16 %v489, %v488
      %v600 = vpack.c.b16 %v491, %v490
      %v601 = vpack.c.b16 %v493, %v492
      %v602 = vpack.c.b16 %v495, %v494
      %v603 = vpack.c.b16 %v497, %v496
      %v604 = vpack.c.b16 %v499, %v498
      %v605 = vpack.c.b16 %v501, %v500
      %v606 = vpack.c.b16 %v503, %v502
      %v607 = vpack.c.b16 %v505, %v504
      %v608 = vpack.c.b16 %v507, %v506
      %v609 = vpack.c.b16 %v509, %v508
      %v610 = vpack.c.b16 %v511, %v510
      %v611 = vpack.c.b16 %v513, %v512
      %v612 = vpack.c.b16 %v515, %v514
      %v613 = vpack.c.b16 %v517, %v516
      %v614 = vpack.c.b16 %v519, %v518
      %v615 = vpack.c.b16 %v521, %v520
      %v616 = vpack.c.b16 %v523, %v522
      %v617 = vpack.c.b16 %v525, %v524
      %v618 = vpack.c.b16 %v527, %v526
      %v619 = vpack.c.b16 %v529, %v528
      %v620 = vpack.c.b16 %v531, %v530
      %v621 = vpack.c.b16 %v533, %v532
      %v622 = vpack.c.b16 %v535, %v534
      %v623 = vpack.c.b16 %v537, %v536
      %v624 = vpack.c.b16 %v539, %v538
      %v625 = vpack.c.b16 %v541, %v540
      %v626 = vpack.c.b16 %v543, %v542
      %v627 = vpack.c.b16 %v545, %v544
      %v628 = vpack.c.b16 %v547, %v546
      %v629 = vpack.c.b16 %v549, %v548
      %v630 = vpack.c.b16 %v551, %v550
      %v631 = vpack.c.b16 %v553, %v552
      %v632 = vpack.c.b16 %v555, %v554
      %v633 = vpack.c.b16 %v557, %v556
      %v634 = vpack.c.b16 %v559, %v558
      %v635 = vpack.c.b16 %v561, %v560
      %v636 = vpack.c.b16 %v563, %v562
      %v637 = vpack.c.b16 %v565, %v564
      %v638 = vpack.c.b16 %v567, %v566
      %v639 = vpack.c.b16 %v569, %v568
      %v640 = vpack.c.b16 %v571, %v570
      %v641 = vpack.c.b16 %v573, %v572
      %v642 = vpack.c.b16 %v575, %v574
      %v643 = vpack.c.b16 %v577, %v576
      %v644 = vpack.c.b16 %v579, %v578
      %v645 = vpack.c.b16 %v581, %v580
      %v726 = vunpack.c.l.b16 %v303
      %v727 = vunpack.c.l.b16 %v304
      %v728 = vunpack.c.l.b16 %v305
      %v729 = vunpack.c.l.b16 %v306
      %v730 = vunpack.c.l.b16 %v307
      %v731 = vunpack.c.l.b16 %v308
      %v732 = vunpack.c.l.b16 %v309
      %v733 = vunpack.c.l.b16 %v310
      %v734 = vunpack.c.l.b16 %v311
      %v735 = vunpack.c.l.b16 %v312
      %v736 = vunpack.c.l.b16 %v313
      %v737 = vunpack.c.l.b16 %v314
      %v738 = vunpack.c.l.b16 %v315
      %v739 = vunpack.c.l.b16 %v316
      %v740 = vunpack.c.l.b16 %v317
      %v741 = vunpack.c.l.b16 %v318
      %v742 = vpack.c.b16 %v727, %v726
      %v743 = vpack.c.b16 %v729, %v728
      %v744 = vpack.c.b16 %v731, %v730
      %v745 = vpack.c.b16 %v733, %v732
      %v746 = vpack.c.b16 %v735, %v734
      %v747 = vpack.c.b16 %v737, %v736
      %v748 = vpack.c.b16 %v739, %v738
      %v749 = vpack.c.b16 %v741, %v740
      %758 = vmatprep.subr.bf16.mxu0 0
      %759 = vmatpush1.bf16.msra.mxu0 %v742
      %760 = vmatprep.subr.bf16.mxu0 0
      %761 = vmatpush1.bf16.msra.mxu0 %v743
      %762 = vmatprep.subr.bf16.mxu0 0
      %763 = vmatpush1.bf16.msra.mxu0 %v744
      %764 = vmatprep.subr.bf16.mxu0 0
      %765 = vmatpush1.bf16.msra.mxu0 %v745
      %766 = vmatprep.subr.bf16.mxu0 0
      %767 = vmatpush1.bf16.msra.mxu0 %v746
      %768 = vmatprep.subr.bf16.mxu0 0
      %769 = vmatpush1.bf16.msra.mxu0 %v747
      %770 = vmatprep.subr.bf16.mxu0 0
      %771 = vmatpush1.bf16.msra.mxu0 %v748
      %772 = vmatprep.subr.bf16.mxu0 0
      %773 = vmatpush1.bf16.msra.mxu0 %v749
      %774 = vmatprep.subr.bf16.mxu0 0
      %775 = vmatpush1.bf16.msra.mxu0 0
      %776 = vmatprep.subr.bf16.mxu0 0
      %777 = vmatpush1.bf16.msra.mxu0 0
      %778 = vmatprep.subr.bf16.mxu0 0
      %779 = vmatpush1.bf16.msra.mxu0 0
      %780 = vmatprep.subr.bf16.mxu0 0
      %781 = vmatpush1.bf16.msra.mxu0 0
      %782 = vmatprep.subr.bf16.mxu0 0
      %783 = vmatpush1.bf16.msra.mxu0 0
      %784 = vmatprep.subr.bf16.mxu0 0
      %785 = vmatpush1.bf16.msra.mxu0 0
      %786 = vmatprep.subr.bf16.mxu0 0
      %787 = vmatpush1.bf16.msra.mxu0 0
      %788 = vmatprep.subr.bf16.mxu0 0
      %789 = vmatpush1.bf16.msra.mxu0 0
      %790 = vmatprep.mubr.bf16.mxu0 0
      %791 = vmatmul.mubr.bf16.gmra.mrb[0].mxu0 %v582
      %v792 = vpop.f32.mrb[0].mxu0
      %v793 = vadd.f32 %v324, %v792
      %v794 = vpop.f32.mrb[0].mxu0
      %v795 = vpop.f32.mrb[0].mxu0
      %v796 = vadd.f32 %v324, %v795
      %v797 = vpop.f32.mrb[0].mxu0
      %798 = vmatprep.mubr.bf16.mxu0 0
      %799 = vmatmul.mubr.bf16.gmra.mrb[0].mxu0 %v583
      %v800 = vpop.f32.mrb[0].mxu0
      %v801 = vadd.f32 %v324, %v800
      %v802 = vpop.f32.mrb[0].mxu0
      %v803 = vpop.f32.mrb[0].mxu0
      %v804 = vadd.f32 %v324, %v803
      %v805 = vpop.f32.mrb[0].mxu0
      %806 = vmatprep.mubr.bf16.mxu0 0
      %807 = vmatmul.mubr.bf16.gmra.mrb[0].mxu0 %v584
      %v808 = vpop.f32.mrb[0].mxu0
      %v809 = vadd.f32 %v324, %v808
      %v810 = vpop.f32.mrb[0].mxu0
      %v811 = vpop.f32.mrb[0].mxu0
      %v812 = vadd.f32 %v324, %v811
      %v813 = vpop.f32.mrb[0].mxu0
      %814 = vmatprep.mubr.bf16.mxu0 0
      %815 = vmatmul.mubr.bf16.gmra.mrb[0].mxu0 %v585
      %v816 = vpop.f32.mrb[0].mxu0
      %v817 = vadd.f32 %v324, %v816
      %v818 = vpop.f32.mrb[0].mxu0
      %v819 = vpop.f32.mrb[0].mxu0
      %v820 = vadd.f32 %v324, %v819
      %v821 = vpop.f32.mrb[0].mxu0
      %822 = vmatprep.mubr.bf16.mxu0 0
      %823 = vmatmul.mubr.bf16.gmra.mrb[0].mxu0 %v586
      %v824 = vpop.f32.mrb[0].mxu0
      %v825 = vadd.f32 %v324, %v824
      %v826 = vpop.f32.mrb[0].mxu0
      %v827 = vpop.f32.mrb[0].mxu0
      %v828 = vadd.f32 %v324, %v827
      %v829 = vpop.f32.mrb[0].mxu0
      %830 = vmatprep.mubr.bf16.mxu0 0
      %831 = vmatmul.mubr.bf16.gmra.mrb[0].mxu0 %v587
      %v832 = vpop.f32.mrb[0].mxu0
      %v833 = vadd.f32 %v324, %v832
      %v834 = vpop.f32.mrb[0].mxu0
      %v835 = vpop.f32.mrb[0].mxu0
      %v836 = vadd.f32 %v324, %v835
      %v837 = vpop.f32.mrb[0].mxu0
      %838 = vmatprep.mubr.bf16.mxu0 0
      %839 = vmatmul.mubr.bf16.gmra.mrb[0].mxu0 %v588
      %v840 = vpop.f32.mrb[0].mxu0
      %v841 = vadd.f32 %v324, %v840
      %v842 = vpop.f32.mrb[0].mxu0
      %v843 = vpop.f32.mrb[0].mxu0
      %v844 = vadd.f32 %v324, %v843
      %v845 = vpop.f32.mrb[0].mxu0
      %846 = vmatprep.mubr.bf16.mxu0 0
      %847 = vmatmul.mubr.bf16.gmra.mrb[0].mxu0 %v589
      %v848 = vpop.f32.mrb[0].mxu0
      %v849 = vadd.f32 %v324, %v848
      %v850 = vpop.f32.mrb[0].mxu0
      %v851 = vpop.f32.mrb[0].mxu0
      %v852 = vadd.f32 %v324, %v851
      %v853 = vpop.f32.mrb[0].mxu0
      %854 = vmatprep.mubr.bf16.mxu0 0
      %855 = vmatmul.mubr.bf16.gmra.mrb[0].mxu0 %v590
      %v856 = vpop.f32.mrb[0].mxu0
      %v857 = vadd.f32 %v324, %v856
      %v858 = vpop.f32.mrb[0].mxu0
      %v859 = vpop.f32.mrb[0].mxu0
      %v860 = vadd.f32 %v324, %v859
      %v861 = vpop.f32.mrb[0].mxu0
      %862 = vmatprep.mubr.bf16.mxu0 0
      %863 = vmatmul.mubr.bf16.gmra.mrb[0].mxu0 %v591
      %v864 = vpop.f32.mrb[0].mxu0
      %v865 = vadd.f32 %v324, %v864
      %v866 = vpop.f32.mrb[0].mxu0
      %v867 = vpop.f32.mrb[0].mxu0
      %v868 = vadd.f32 %v324, %v867
      %v869 = vpop.f32.mrb[0].mxu0
      %870 = vmatprep.mubr.bf16.mxu0 0
      %871 = vmatmul.mubr.bf16.gmra.mrb[0].mxu0 %v592
      %v872 = vpop.f32.mrb[0].mxu0
      %v873 = vadd.f32 %v324, %v872
      %v874 = vpop.f32.mrb[0].mxu0
      %v875 = vpop.f32.mrb[0].mxu0
      %v876 = vadd.f32 %v324, %v875
      %v877 = vpop.f32.mrb[0].mxu0
      %878 = vmatprep.mubr.bf16.mxu0 0
      %879 = vmatmul.mubr.bf16.gmra.mrb[0].mxu0 %v593
      %v880 = vpop.f32.mrb[0].mxu0
      %v881 = vadd.f32 %v324, %v880
      %v882 = vpop.f32.mrb[0].mxu0
      %v883 = vpop.f32.mrb[0].mxu0
      %v884 = vadd.f32 %v324, %v883
      %v885 = vpop.f32.mrb[0].mxu0
      %886 = vmatprep.mubr.bf16.mxu0 0
      %887 = vmatmul.mubr.bf16.gmra.mrb[0].mxu0 %v594
      %v888 = vpop.f32.mrb[0].mxu0
      %v889 = vadd.f32 %v324, %v888
      %v890 = vpop.f32.mrb[0].mxu0
      %v891 = vpop.f32.mrb[0].mxu0
      %v892 = vadd.f32 %v324, %v891
      %v893 = vpop.f32.mrb[0].mxu0
      %894 = vmatprep.mubr.bf16.mxu0 0
      %895 = vmatmul.mubr.bf16.gmra.mrb[0].mxu0 %v595
      %v896 = vpop.f32.mrb[0].mxu0
      %v897 = vadd.f32 %v324, %v896
      %v898 = vpop.f32.mrb[0].mxu0
      %v899 = vpop.f32.mrb[0].mxu0
      %v900 = vadd.f32 %v324, %v899
      %v901 = vpop.f32.mrb[0].mxu0
      %902 = vmatprep.mubr.bf16.mxu0 0
      %903 = vmatmul.mubr.bf16.gmra.mrb[0].mxu0 %v596
      %v904 = vpop.f32.mrb[0].mxu0
      %v905 = vadd.f32 %v324, %v904
      %v906 = vpop.f32.mrb[0].mxu0
      %v907 = vpop.f32.mrb[0].mxu0
      %v908 = vadd.f32 %v324, %v907
      %v909 = vpop.f32.mrb[0].mxu0
      %910 = vmatprep.mubr.bf16.mxu0 0
      %911 = vmatmul.mubr.bf16.gmra.mrb[0].mxu0 %v597
      %v912 = vpop.f32.mrb[0].mxu0
      %v913 = vadd.f32 %v324, %v912
      %v914 = vpop.f32.mrb[0].mxu0
      %v915 = vpop.f32.mrb[0].mxu0
      %v916 = vadd.f32 %v324, %v915
      %v917 = vpop.f32.mrb[0].mxu0
      %918 = vmatprep.mubr.bf16.mxu0 0
      %919 = vmatmul.mubr.bf16.gmra.mrb[0].mxu0 %v598
      %v920 = vpop.f32.mrb[0].mxu0
      %v921 = vadd.f32 %v324, %v920
      %v922 = vpop.f32.mrb[0].mxu0
      %v923 = vpop.f32.mrb[0].mxu0
      %v924 = vadd.f32 %v324, %v923
      %v925 = vpop.f32.mrb[0].mxu0
      %926 = vmatprep.mubr.bf16.mxu0 0
      %927 = vmatmul.mubr.bf16.gmra.mrb[0].mxu0 %v599
      %v928 = vpop.f32.mrb[0].mxu0
      %v929 = vadd.f32 %v324, %v928
      %v930 = vpop.f32.mrb[0].mxu0
      %v931 = vpop.f32.mrb[0].mxu0
      %v932 = vadd.f32 %v324, %v931
      %v933 = vpop.f32.mrb[0].mxu0
      %934 = vmatprep.mubr.bf16.mxu0 0
      %935 = vmatmul.mubr.bf16.gmra.mrb[0].mxu0 %v600
      %v936 = vpop.f32.mrb[0].mxu0
      %v937 = vadd.f32 %v324, %v936
      %v938 = vpop.f32.mrb[0].mxu0
      %v939 = vpop.f32.mrb[0].mxu0
      %v940 = vadd.f32 %v324, %v939
      %v941 = vpop.f32.mrb[0].mxu0
      %942 = vmatprep.mubr.bf16.mxu0 0
      %943 = vmatmul.mubr.bf16.gmra.mrb[0].mxu0 %v601
      %v944 = vpop.f32.mrb[0].mxu0
      %v945 = vadd.f32 %v324, %v944
      %v946 = vpop.f32.mrb[0].mxu0
      %v947 = vpop.f32.mrb[0].mxu0
      %v948 = vadd.f32 %v324, %v947
      %v949 = vpop.f32.mrb[0].mxu0
      %950 = vmatprep.mubr.bf16.mxu0 0
      %951 = vmatmul.mubr.bf16.gmra.mrb[0].mxu0 %v602
      %v952 = vpop.f32.mrb[0].mxu0
      %v953 = vadd.f32 %v324, %v952
      %v954 = vpop.f32.mrb[0].mxu0
      %v955 = vpop.f32.mrb[0].mxu0
      %v956 = vadd.f32 %v324, %v955
      %v957 = vpop.f32.mrb[0].mxu0
      %958 = vmatprep.mubr.bf16.mxu0 0
      %959 = vmatmul.mubr.bf16.gmra.mrb[0].mxu0 %v603
      %v960 = vpop.f32.mrb[0].mxu0
      %v961 = vadd.f32 %v324, %v960
      %v962 = vpop.f32.mrb[0].mxu0
      %v963 = vpop.f32.mrb[0].mxu0
      %v964 = vadd.f32 %v324, %v963
      %v965 = vpop.f32.mrb[0].mxu0
      %966 = vmatprep.mubr.bf16.mxu0 0
      %967 = vmatmul.mubr.bf16.gmra.mrb[0].mxu0 %v604
      %v968 = vpop.f32.mrb[0].mxu0
      %v969 = vadd.f32 %v324, %v968
      %v970 = vpop.f32.mrb[0].mxu0
      %v971 = vpop.f32.mrb[0].mxu0
      %v972 = vadd.f32 %v324, %v971
      %v973 = vpop.f32.mrb[0].mxu0
      %974 = vmatprep.mubr.bf16.mxu0 0
      %975 = vmatmul.mubr.bf16.gmra.mrb[0].mxu0 %v605
      %v976 = vpop.f32.mrb[0].mxu0
      %v977 = vadd.f32 %v324, %v976
      %v978 = vpop.f32.mrb[0].mxu0
      %v979 = vpop.f32.mrb[0].mxu0
      %v980 = vadd.f32 %v324, %v979
      %v981 = vpop.f32.mrb[0].mxu0
      %982 = vmatprep.mubr.bf16.mxu0 0
      %983 = vmatmul.mubr.bf16.gmra.mrb[0].mxu0 %v606
      %v984 = vpop.f32.mrb[0].mxu0
      %v985 = vadd.f32 %v324, %v984
      %v986 = vpop.f32.mrb[0].mxu0
      %v987 = vpop.f32.mrb[0].mxu0
      %v988 = vadd.f32 %v324, %v987
      %v989 = vpop.f32.mrb[0].mxu0
      %990 = vmatprep.mubr.bf16.mxu0 0
      %991 = vmatmul.mubr.bf16.gmra.mrb[0].mxu0 %v607
      %v992 = vpop.f32.mrb[0].mxu0
      %v993 = vadd.f32 %v324, %v992
      %v994 = vpop.f32.mrb[0].mxu0
      %v995 = vpop.f32.mrb[0].mxu0
      %v996 = vadd.f32 %v324, %v995
      %v997 = vpop.f32.mrb[0].mxu0
      %998 = vmatprep.mubr.bf16.mxu0 0
      %999 = vmatmul.mubr.bf16.gmra.mrb[0].mxu0 %v608
      %v1000 = vpop.f32.mrb[0].mxu0
      %v1001 = vadd.f32 %v324, %v1000
      %v1002 = vpop.f32.mrb[0].mxu0
      %v1003 = vpop.f32.mrb[0].mxu0
      %v1004 = vadd.f32 %v324, %v1003
      %v1005 = vpop.f32.mrb[0].mxu0
      %1006 = vmatprep.mubr.bf16.mxu0 0
      %1007 = vmatmul.mubr.bf16.gmra.mrb[0].mxu0 %v609
      %v1008 = vpop.f32.mrb[0].mxu0
      %v1009 = vadd.f32 %v324, %v1008
      %v1010 = vpop.f32.mrb[0].mxu0
      %v1011 = vpop.f32.mrb[0].mxu0
      %v1012 = vadd.f32 %v324, %v1011
      %v1013 = vpop.f32.mrb[0].mxu0
      %1014 = vmatprep.mubr.bf16.mxu0 0
      %1015 = vmatmul.mubr.bf16.gmra.mrb[0].mxu0 %v610
      %v1016 = vpop.f32.mrb[0].mxu0
      %v1017 = vadd.f32 %v324, %v1016
      %v1018 = vpop.f32.mrb[0].mxu0
      %v1019 = vpop.f32.mrb[0].mxu0
      %v1020 = vadd.f32 %v324, %v1019
      %v1021 = vpop.f32.mrb[0].mxu0
      %1022 = vmatprep.mubr.bf16.mxu0 0
      %1023 = vmatmul.mubr.bf16.gmra.mrb[0].mxu0 %v611
      %v1024 = vpop.f32.mrb[0].mxu0
      %v1025 = vadd.f32 %v324, %v1024
      %v1026 = vpop.f32.mrb[0].mxu0
      %v1027 = vpop.f32.mrb[0].mxu0
      %v1028 = vadd.f32 %v324, %v1027
      %v1029 = vpop.f32.mrb[0].mxu0
      %1030 = vmatprep.mubr.bf16.mxu0 0
      %1031 = vmatmul.mubr.bf16.gmra.mrb[0].mxu0 %v612
      %v1032 = vpop.f32.mrb[0].mxu0
      %v1033 = vadd.f32 %v324, %v1032
      %v1034 = vpop.f32.mrb[0].mxu0
      %v1035 = vpop.f32.mrb[0].mxu0
      %v1036 = vadd.f32 %v324, %v1035
      %v1037 = vpop.f32.mrb[0].mxu0
      %1038 = vmatprep.mubr.bf16.mxu0 0
      %1039 = vmatmul.mubr.bf16.gmra.mrb[0].mxu0 %v613
      %v1040 = vpop.f32.mrb[0].mxu0
      %v1041 = vadd.f32 %v324, %v1040
      %v1042 = vpop.f32.mrb[0].mxu0
      %v1043 = vpop.f32.mrb[0].mxu0
      %v1044 = vadd.f32 %v324, %v1043
      %v1045 = vpop.f32.mrb[0].mxu0
      %1046 = vmatprep.mubr.bf16.mxu0 0
      %1047 = vmatmul.mubr.bf16.gmra.mrb[0].mxu0 %v614
      %v1048 = vpop.f32.mrb[0].mxu0
      %v1049 = vadd.f32 %v324, %v1048
      %v1050 = vpop.f32.mrb[0].mxu0
      %v1051 = vpop.f32.mrb[0].mxu0
      %v1052 = vadd.f32 %v324, %v1051
      %v1053 = vpop.f32.mrb[0].mxu0
      %1054 = vmatprep.mubr.bf16.mxu0 0
      %1055 = vmatmul.mubr.bf16.gmra.mrb[0].mxu0 %v615
      %v1056 = vpop.f32.mrb[0].mxu0
      %v1057 = vadd.f32 %v324, %v1056
      %v1058 = vpop.f32.mrb[0].mxu0
      %v1059 = vpop.f32.mrb[0].mxu0
      %v1060 = vadd.f32 %v324, %v1059
      %v1061 = vpop.f32.mrb[0].mxu0
      %1062 = vmatprep.mubr.bf16.mxu0 0
      %1063 = vmatmul.mubr.bf16.gmra.mrb[0].mxu0 %v616
      %v1064 = vpop.f32.mrb[0].mxu0
      %v1065 = vadd.f32 %v324, %v1064
      %v1066 = vpop.f32.mrb[0].mxu0
      %v1067 = vpop.f32.mrb[0].mxu0
      %v1068 = vadd.f32 %v324, %v1067
      %v1069 = vpop.f32.mrb[0].mxu0
      %1070 = vmatprep.mubr.bf16.mxu0 0
      %1071 = vmatmul.mubr.bf16.gmra.mrb[0].mxu0 %v617
      %v1072 = vpop.f32.mrb[0].mxu0
      %v1073 = vadd.f32 %v324, %v1072
      %v1074 = vpop.f32.mrb[0].mxu0
      %v1075 = vpop.f32.mrb[0].mxu0
      %v1076 = vadd.f32 %v324, %v1075
      %v1077 = vpop.f32.mrb[0].mxu0
      %1078 = vmatprep.mubr.bf16.mxu0 0
      %1079 = vmatmul.mubr.bf16.gmra.mrb[0].mxu0 %v618
      %v1080 = vpop.f32.mrb[0].mxu0
      %v1081 = vadd.f32 %v324, %v1080
      %v1082 = vpop.f32.mrb[0].mxu0
      %v1083 = vpop.f32.mrb[0].mxu0
      %v1084 = vadd.f32 %v324, %v1083
      %v1085 = vpop.f32.mrb[0].mxu0
      %1086 = vmatprep.mubr.bf16.mxu0 0
      %1087 = vmatmul.mubr.bf16.gmra.mrb[0].mxu0 %v619
      %v1088 = vpop.f32.mrb[0].mxu0
      %v1089 = vadd.f32 %v324, %v1088
      %v1090 = vpop.f32.mrb[0].mxu0
      %v1091 = vpop.f32.mrb[0].mxu0
      %v1092 = vadd.f32 %v324, %v1091
      %v1093 = vpop.f32.mrb[0].mxu0
      %1094 = vmatprep.mubr.bf16.mxu0 0
      %1095 = vmatmul.mubr.bf16.gmra.mrb[0].mxu0 %v620
      %v1096 = vpop.f32.mrb[0].mxu0
      %v1097 = vadd.f32 %v324, %v1096
      %v1098 = vpop.f32.mrb[0].mxu0
      %v1099 = vpop.f32.mrb[0].mxu0
      %v1100 = vadd.f32 %v324, %v1099
      %v1101 = vpop.f32.mrb[0].mxu0
      %1102 = vmatprep.mubr.bf16.mxu0 0
      %1103 = vmatmul.mubr.bf16.gmra.mrb[0].mxu0 %v621
      %v1104 = vpop.f32.mrb[0].mxu0
      %v1105 = vadd.f32 %v324, %v1104
      %v1106 = vpop.f32.mrb[0].mxu0
      %v1107 = vpop.f32.mrb[0].mxu0
      %v1108 = vadd.f32 %v324, %v1107
      %v1109 = vpop.f32.mrb[0].mxu0
      %1110 = vmatprep.mubr.bf16.mxu0 0
      %1111 = vmatmul.mubr.bf16.gmra.mrb[0].mxu0 %v622
      %v1112 = vpop.f32.mrb[0].mxu0
      %v1113 = vadd.f32 %v324, %v1112
      %v1114 = vpop.f32.mrb[0].mxu0
      %v1115 = vpop.f32.mrb[0].mxu0
      %v1116 = vadd.f32 %v324, %v1115
      %v1117 = vpop.f32.mrb[0].mxu0
      %1118 = vmatprep.mubr.bf16.mxu0 0
      %1119 = vmatmul.mubr.bf16.gmra.mrb[0].mxu0 %v623
      %v1120 = vpop.f32.mrb[0].mxu0
      %v1121 = vadd.f32 %v324, %v1120
      %v1122 = vpop.f32.mrb[0].mxu0
      %v1123 = vpop.f32.mrb[0].mxu0
      %v1124 = vadd.f32 %v324, %v1123
      %v1125 = vpop.f32.mrb[0].mxu0
      %1126 = vmatprep.mubr.bf16.mxu0 0
      %1127 = vmatmul.mubr.bf16.gmra.mrb[0].mxu0 %v624
      %v1128 = vpop.f32.mrb[0].mxu0
      %v1129 = vadd.f32 %v324, %v1128
      %v1130 = vpop.f32.mrb[0].mxu0
      %v1131 = vpop.f32.mrb[0].mxu0
      %v1132 = vadd.f32 %v324, %v1131
      %v1133 = vpop.f32.mrb[0].mxu0
      %1134 = vmatprep.mubr.bf16.mxu0 0
      %1135 = vmatmul.mubr.bf16.gmra.mrb[0].mxu0 %v625
      %v1136 = vpop.f32.mrb[0].mxu0
      %v1137 = vadd.f32 %v324, %v1136
      %v1138 = vpop.f32.mrb[0].mxu0
      %v1139 = vpop.f32.mrb[0].mxu0
      %v1140 = vadd.f32 %v324, %v1139
      %v1141 = vpop.f32.mrb[0].mxu0
      %1142 = vmatprep.mubr.bf16.mxu0 0
      %1143 = vmatmul.mubr.bf16.gmra.mrb[0].mxu0 %v626
      %v1144 = vpop.f32.mrb[0].mxu0
      %v1145 = vadd.f32 %v324, %v1144
      %v1146 = vpop.f32.mrb[0].mxu0
      %v1147 = vpop.f32.mrb[0].mxu0
      %v1148 = vadd.f32 %v324, %v1147
      %v1149 = vpop.f32.mrb[0].mxu0
      %1150 = vmatprep.mubr.bf16.mxu0 0
      %1151 = vmatmul.mubr.bf16.gmra.mrb[0].mxu0 %v627
      %v1152 = vpop.f32.mrb[0].mxu0
      %v1153 = vadd.f32 %v324, %v1152
      %v1154 = vpop.f32.mrb[0].mxu0
      %v1155 = vpop.f32.mrb[0].mxu0
      %v1156 = vadd.f32 %v324, %v1155
      %v1157 = vpop.f32.mrb[0].mxu0
      %1158 = vmatprep.mubr.bf16.mxu0 0
      %1159 = vmatmul.mubr.bf16.gmra.mrb[0].mxu0 %v628
      %v1160 = vpop.f32.mrb[0].mxu0
      %v1161 = vadd.f32 %v324, %v1160
      %v1162 = vpop.f32.mrb[0].mxu0
      %v1163 = vpop.f32.mrb[0].mxu0
      %v1164 = vadd.f32 %v324, %v1163
      %v1165 = vpop.f32.mrb[0].mxu0
      %1166 = vmatprep.mubr.bf16.mxu0 0
      %1167 = vmatmul.mubr.bf16.gmra.mrb[0].mxu0 %v629
      %v1168 = vpop.f32.mrb[0].mxu0
      %v1169 = vadd.f32 %v324, %v1168
      %v1170 = vpop.f32.mrb[0].mxu0
      %v1171 = vpop.f32.mrb[0].mxu0
      %v1172 = vadd.f32 %v324, %v1171
      %v1173 = vpop.f32.mrb[0].mxu0
      %1174 = vmatprep.mubr.bf16.mxu0 0
      %1175 = vmatmul.mubr.bf16.gmra.mrb[0].mxu0 %v630
      %v1176 = vpop.f32.mrb[0].mxu0
      %v1177 = vadd.f32 %v324, %v1176
      %v1178 = vpop.f32.mrb[0].mxu0
      %v1179 = vpop.f32.mrb[0].mxu0
      %v1180 = vadd.f32 %v324, %v1179
      %v1181 = vpop.f32.mrb[0].mxu0
      %1182 = vmatprep.mubr.bf16.mxu0 0
      %1183 = vmatmul.mubr.bf16.gmra.mrb[0].mxu0 %v631
      %v1184 = vpop.f32.mrb[0].mxu0
      %v1185 = vadd.f32 %v324, %v1184
      %v1186 = vpop.f32.mrb[0].mxu0
      %v1187 = vpop.f32.mrb[0].mxu0
      %v1188 = vadd.f32 %v324, %v1187
      %v1189 = vpop.f32.mrb[0].mxu0
      %1190 = vmatprep.mubr.bf16.mxu0 0
      %1191 = vmatmul.mubr.bf16.gmra.mrb[0].mxu0 %v632
      %v1192 = vpop.f32.mrb[0].mxu0
      %v1193 = vadd.f32 %v324, %v1192
      %v1194 = vpop.f32.mrb[0].mxu0
      %v1195 = vpop.f32.mrb[0].mxu0
      %v1196 = vadd.f32 %v324, %v1195
      %v1197 = vpop.f32.mrb[0].mxu0
      %1198 = vmatprep.mubr.bf16.mxu0 0
      %1199 = vmatmul.mubr.bf16.gmra.mrb[0].mxu0 %v633
      %v1200 = vpop.f32.mrb[0].mxu0
      %v1201 = vadd.f32 %v324, %v1200
      %v1202 = vpop.f32.mrb[0].mxu0
      %v1203 = vpop.f32.mrb[0].mxu0
      %v1204 = vadd.f32 %v324, %v1203
      %v1205 = vpop.f32.mrb[0].mxu0
      %1206 = vmatprep.mubr.bf16.mxu0 0
      %1207 = vmatmul.mubr.bf16.gmra.mrb[0].mxu0 %v634
      %v1208 = vpop.f32.mrb[0].mxu0
      %v1209 = vadd.f32 %v324, %v1208
      %v1210 = vpop.f32.mrb[0].mxu0
      %v1211 = vpop.f32.mrb[0].mxu0
      %v1212 = vadd.f32 %v324, %v1211
      %v1213 = vpop.f32.mrb[0].mxu0
      %1214 = vmatprep.mubr.bf16.mxu0 0
      %1215 = vmatmul.mubr.bf16.gmra.mrb[0].mxu0 %v635
      %v1216 = vpop.f32.mrb[0].mxu0
      %v1217 = vadd.f32 %v324, %v1216
      %v1218 = vpop.f32.mrb[0].mxu0
      %v1219 = vpop.f32.mrb[0].mxu0
      %v1220 = vadd.f32 %v324, %v1219
      %v1221 = vpop.f32.mrb[0].mxu0
      %1222 = vmatprep.mubr.bf16.mxu0 0
      %1223 = vmatmul.mubr.bf16.gmra.mrb[0].mxu0 %v636
      %v1224 = vpop.f32.mrb[0].mxu0
      %v1225 = vadd.f32 %v324, %v1224
      %v1226 = vpop.f32.mrb[0].mxu0
      %v1227 = vpop.f32.mrb[0].mxu0
      %v1228 = vadd.f32 %v324, %v1227
      %v1229 = vpop.f32.mrb[0].mxu0
      %1230 = vmatprep.mubr.bf16.mxu0 0
      %1231 = vmatmul.mubr.bf16.gmra.mrb[0].mxu0 %v637
      %v1232 = vpop.f32.mrb[0].mxu0
      %v1233 = vadd.f32 %v324, %v1232
      %v1234 = vpop.f32.mrb[0].mxu0
      %v1235 = vpop.f32.mrb[0].mxu0
      %v1236 = vadd.f32 %v324, %v1235
      %v1237 = vpop.f32.mrb[0].mxu0
      %1238 = vmatprep.mubr.bf16.mxu0 0
      %1239 = vmatmul.mubr.bf16.gmra.mrb[0].mxu0 %v638
      %v1240 = vpop.f32.mrb[0].mxu0
      %v1241 = vadd.f32 %v324, %v1240
      %v1242 = vpop.f32.mrb[0].mxu0
      %v1243 = vpop.f32.mrb[0].mxu0
      %v1244 = vadd.f32 %v324, %v1243
      %v1245 = vpop.f32.mrb[0].mxu0
      %1246 = vmatprep.mubr.bf16.mxu0 0
      %1247 = vmatmul.mubr.bf16.gmra.mrb[0].mxu0 %v639
      %v1248 = vpop.f32.mrb[0].mxu0
      %v1249 = vadd.f32 %v324, %v1248
      %v1250 = vpop.f32.mrb[0].mxu0
      %v1251 = vpop.f32.mrb[0].mxu0
      %v1252 = vadd.f32 %v324, %v1251
      %v1253 = vpop.f32.mrb[0].mxu0
      %1254 = vmatprep.mubr.bf16.mxu0 0
      %1255 = vmatmul.mubr.bf16.gmra.mrb[0].mxu0 %v640
      %v1256 = vpop.f32.mrb[0].mxu0
      %v1257 = vadd.f32 %v324, %v1256
      %v1258 = vpop.f32.mrb[0].mxu0
      %v1259 = vpop.f32.mrb[0].mxu0
      %v1260 = vadd.f32 %v324, %v1259
      %v1261 = vpop.f32.mrb[0].mxu0
      %1262 = vmatprep.mubr.bf16.mxu0 0
      %1263 = vmatmul.mubr.bf16.gmra.mrb[0].mxu0 %v641
      %v1264 = vpop.f32.mrb[0].mxu0
      %v1265 = vadd.f32 %v324, %v1264
      %v1266 = vpop.f32.mrb[0].mxu0
      %v1267 = vpop.f32.mrb[0].mxu0
      %v1268 = vadd.f32 %v324, %v1267
      %v1269 = vpop.f32.mrb[0].mxu0
      %1270 = vmatprep.mubr.bf16.mxu0 0
      %1271 = vmatmul.mubr.bf16.gmra.mrb[0].mxu0 %v642
      %v1272 = vpop.f32.mrb[0].mxu0
      %v1273 = vadd.f32 %v324, %v1272
      %v1274 = vpop.f32.mrb[0].mxu0
      %v1275 = vpop.f32.mrb[0].mxu0
      %v1276 = vadd.f32 %v324, %v1275
      %v1277 = vpop.f32.mrb[0].mxu0
      %1278 = vmatprep.mubr.bf16.mxu0 0
      %1279 = vmatmul.mubr.bf16.gmra.mrb[0].mxu0 %v643
      %v1280 = vpop.f32.mrb[0].mxu0
      %v1281 = vadd.f32 %v324, %v1280
      %v1282 = vpop.f32.mrb[0].mxu0
      %v1283 = vpop.f32.mrb[0].mxu0
      %v1284 = vadd.f32 %v324, %v1283
      %v1285 = vpop.f32.mrb[0].mxu0
      %1286 = vmatprep.mubr.bf16.mxu0 0
      %1287 = vmatmul.mubr.bf16.gmra.mrb[0].mxu0 %v644
      %v1288 = vpop.f32.mrb[0].mxu0
      %v1289 = vadd.f32 %v324, %v1288
      %v1290 = vpop.f32.mrb[0].mxu0
      %v1291 = vpop.f32.mrb[0].mxu0
      %v1292 = vadd.f32 %v324, %v1291
      %v1293 = vpop.f32.mrb[0].mxu0
      %1294 = vmatprep.mubr.bf16.mxu0 0
      %1295 = vmatmul.mubr.bf16.gmra.mrb[0].mxu0 %v645
      %v1296 = vpop.f32.mrb[0].mxu0
      %v1297 = vadd.f32 %v324, %v1296
      %v1298 = vpop.f32.mrb[0].mxu0
      %v1299 = vpop.f32.mrb[0].mxu0
      %v1300 = vadd.f32 %v324, %v1299
      %v1301 = vpop.f32.mrb[0].mxu0
      %1302 = vdwg.mxu0
      %v1303 = vmax.f32 %v793, 0.0
      %v1304 = vmax.f32 %v796, 0.0
      %v1305 = vmax.f32 %v801, 0.0
      %v1306 = vmax.f32 %v804, 0.0
      %v1307 = vmax.f32 %v809, 0.0
      %v1308 = vmax.f32 %v812, 0.0
      %v1309 = vmax.f32 %v817, 0.0
      %v1310 = vmax.f32 %v820, 0.0
      %v1311 = vmax.f32 %v825, 0.0
      %v1312 = vmax.f32 %v828, 0.0
      %v1313 = vmax.f32 %v833, 0.0
      %v1314 = vmax.f32 %v836, 0.0
      %v1315 = vmax.f32 %v841, 0.0
      %v1316 = vmax.f32 %v844, 0.0
      %v1317 = vmax.f32 %v849, 0.0
      %v1318 = vmax.f32 %v852, 0.0
      %v1319 = vmax.f32 %v857, 0.0
      %v1320 = vmax.f32 %v860, 0.0
      %v1321 = vmax.f32 %v865, 0.0
      %v1322 = vmax.f32 %v868, 0.0
      %v1323 = vmax.f32 %v873, 0.0
      %v1324 = vmax.f32 %v876, 0.0
      %v1325 = vmax.f32 %v881, 0.0
      %v1326 = vmax.f32 %v884, 0.0
      %v1327 = vmax.f32 %v889, 0.0
      %v1328 = vmax.f32 %v892, 0.0
      %v1329 = vmax.f32 %v897, 0.0
      %v1330 = vmax.f32 %v900, 0.0
      %v1331 = vmax.f32 %v905, 0.0
      %v1332 = vmax.f32 %v908, 0.0
      %v1333 = vmax.f32 %v913, 0.0
      %v1334 = vmax.f32 %v916, 0.0
      %v1335 = vmax.f32 %v921, 0.0
      %v1336 = vmax.f32 %v924, 0.0
      %v1337 = vmax.f32 %v929, 0.0
      %v1338 = vmax.f32 %v932, 0.0
      %v1339 = vmax.f32 %v937, 0.0
      %v1340 = vmax.f32 %v940, 0.0
      %v1341 = vmax.f32 %v945, 0.0
      %v1342 = vmax.f32 %v948, 0.0
      %v1343 = vmax.f32 %v953, 0.0
      %v1344 = vmax.f32 %v956, 0.0
      %v1345 = vmax.f32 %v961, 0.0
      %v1346 = vmax.f32 %v964, 0.0
      %v1347 = vmax.f32 %v969, 0.0
      %v1348 = vmax.f32 %v972, 0.0
      %v1349 = vmax.f32 %v977, 0.0
      %v1350 = vmax.f32 %v980, 0.0
      %v1351 = vmax.f32 %v985, 0.0
      %v1352 = vmax.f32 %v988, 0.0
      %v1353 = vmax.f32 %v993, 0.0
      %v1354 = vmax.f32 %v996, 0.0
      %v1355 = vmax.f32 %v1001, 0.0
      %v1356 = vmax.f32 %v1004, 0.0
      %v1357 = vmax.f32 %v1009, 0.0
      %v1358 = vmax.f32 %v1012, 0.0
      %v1359 = vmax.f32 %v1017, 0.0
      %v1360 = vmax.f32 %v1020, 0.0
      %v1361 = vmax.f32 %v1025, 0.0
      %v1362 = vmax.f32 %v1028, 0.0
      %v1363 = vmax.f32 %v1033, 0.0
      %v1364 = vmax.f32 %v1036, 0.0
      %v1365 = vmax.f32 %v1041, 0.0
      %v1366 = vmax.f32 %v1044, 0.0
      %v1367 = vmax.f32 %v1049, 0.0
      %v1368 = vmax.f32 %v1052, 0.0
      %v1369 = vmax.f32 %v1057, 0.0
      %v1370 = vmax.f32 %v1060, 0.0
      %v1371 = vmax.f32 %v1065, 0.0
      %v1372 = vmax.f32 %v1068, 0.0
      %v1373 = vmax.f32 %v1073, 0.0
      %v1374 = vmax.f32 %v1076, 0.0
      %v1375 = vmax.f32 %v1081, 0.0
      %v1376 = vmax.f32 %v1084, 0.0
      %v1377 = vmax.f32 %v1089, 0.0
      %v1378 = vmax.f32 %v1092, 0.0
      %v1379 = vmax.f32 %v1097, 0.0
      %v1380 = vmax.f32 %v1100, 0.0
      %v1381 = vmax.f32 %v1105, 0.0
      %v1382 = vmax.f32 %v1108, 0.0
      %v1383 = vmax.f32 %v1113, 0.0
      %v1384 = vmax.f32 %v1116, 0.0
      %v1385 = vmax.f32 %v1121, 0.0
      %v1386 = vmax.f32 %v1124, 0.0
      %v1387 = vmax.f32 %v1129, 0.0
      %v1388 = vmax.f32 %v1132, 0.0
      %v1389 = vmax.f32 %v1137, 0.0
      %v1390 = vmax.f32 %v1140, 0.0
      %v1391 = vmax.f32 %v1145, 0.0
      %v1392 = vmax.f32 %v1148, 0.0
      %v1393 = vmax.f32 %v1153, 0.0
      %v1394 = vmax.f32 %v1156, 0.0
      %v1395 = vmax.f32 %v1161, 0.0
      %v1396 = vmax.f32 %v1164, 0.0
      %v1397 = vmax.f32 %v1169, 0.0
      %v1398 = vmax.f32 %v1172, 0.0
      %v1399 = vmax.f32 %v1177, 0.0
      %v1400 = vmax.f32 %v1180, 0.0
      %v1401 = vmax.f32 %v1185, 0.0
      %v1402 = vmax.f32 %v1188, 0.0
      %v1403 = vmax.f32 %v1193, 0.0
      %v1404 = vmax.f32 %v1196, 0.0
      %v1405 = vmax.f32 %v1201, 0.0
      %v1406 = vmax.f32 %v1204, 0.0
      %v1407 = vmax.f32 %v1209, 0.0
      %v1408 = vmax.f32 %v1212, 0.0
      %v1409 = vmax.f32 %v1217, 0.0
      %v1410 = vmax.f32 %v1220, 0.0
      %v1411 = vmax.f32 %v1225, 0.0
      %v1412 = vmax.f32 %v1228, 0.0
      %v1413 = vmax.f32 %v1233, 0.0
      %v1414 = vmax.f32 %v1236, 0.0
      %v1415 = vmax.f32 %v1241, 0.0
      %v1416 = vmax.f32 %v1244, 0.0
      %v1417 = vmax.f32 %v1249, 0.0
      %v1418 = vmax.f32 %v1252, 0.0
      %v1419 = vmax.f32 %v1257, 0.0
      %v1420 = vmax.f32 %v1260, 0.0
      %v1421 = vmax.f32 %v1265, 0.0
      %v1422 = vmax.f32 %v1268, 0.0
      %v1423 = vmax.f32 %v1273, 0.0
      %v1424 = vmax.f32 %v1276, 0.0
      %v1425 = vmax.f32 %v1281, 0.0
      %v1426 = vmax.f32 %v1284, 0.0
      %v1427 = vmax.f32 %v1289, 0.0
      %v1428 = vmax.f32 %v1292, 0.0
      %v1429 = vmax.f32 %v1297, 0.0
      %v1430 = vmax.f32 %v1300, 0.0
      %v1431 = vpack.c.bf16 %v1304, %v1303
      %v1432 = vpack.c.bf16 %v1306, %v1305
      %v1433 = vpack.c.bf16 %v1308, %v1307
      %v1434 = vpack.c.bf16 %v1310, %v1309
      %v1435 = vpack.c.bf16 %v1312, %v1311
      %v1436 = vpack.c.bf16 %v1314, %v1313
      %v1437 = vpack.c.bf16 %v1316, %v1315
      %v1438 = vpack.c.bf16 %v1318, %v1317
      %v1439 = vpack.c.bf16 %v1320, %v1319
      %v1440 = vpack.c.bf16 %v1322, %v1321
      %v1441 = vpack.c.bf16 %v1324, %v1323
      %v1442 = vpack.c.bf16 %v1326, %v1325
      %v1443 = vpack.c.bf16 %v1328, %v1327
      %v1444 = vpack.c.bf16 %v1330, %v1329
      %v1445 = vpack.c.bf16 %v1332, %v1331
      %v1446 = vpack.c.bf16 %v1334, %v1333
      %v1447 = vpack.c.bf16 %v1336, %v1335
      %v1448 = vpack.c.bf16 %v1338, %v1337
      %v1449 = vpack.c.bf16 %v1340, %v1339
      %v1450 = vpack.c.bf16 %v1342, %v1341
      %v1451 = vpack.c.bf16 %v1344, %v1343
      %v1452 = vpack.c.bf16 %v1346, %v1345
      %v1453 = vpack.c.bf16 %v1348, %v1347
      %v1454 = vpack.c.bf16 %v1350, %v1349
      %v1455 = vpack.c.bf16 %v1352, %v1351
      %v1456 = vpack.c.bf16 %v1354, %v1353
      %v1457 = vpack.c.bf16 %v1356, %v1355
      %v1458 = vpack.c.bf16 %v1358, %v1357
      %v1459 = vpack.c.bf16 %v1360, %v1359
      %v1460 = vpack.c.bf16 %v1362, %v1361
      %v1461 = vpack.c.bf16 %v1364, %v1363
      %v1462 = vpack.c.bf16 %v1366, %v1365
      %v1463 = vpack.c.bf16 %v1368, %v1367
      %v1464 = vpack.c.bf16 %v1370, %v1369
      %v1465 = vpack.c.bf16 %v1372, %v1371
      %v1466 = vpack.c.bf16 %v1374, %v1373
      %v1467 = vpack.c.bf16 %v1376, %v1375
      %v1468 = vpack.c.bf16 %v1378, %v1377
      %v1469 = vpack.c.bf16 %v1380, %v1379
      %v1470 = vpack.c.bf16 %v1382, %v1381
      %v1471 = vpack.c.bf16 %v1384, %v1383
      %v1472 = vpack.c.bf16 %v1386, %v1385
      %v1473 = vpack.c.bf16 %v1388, %v1387
      %v1474 = vpack.c.bf16 %v1390, %v1389
      %v1475 = vpack.c.bf16 %v1392, %v1391
      %v1476 = vpack.c.bf16 %v1394, %v1393
      %v1477 = vpack.c.bf16 %v1396, %v1395
      %v1478 = vpack.c.bf16 %v1398, %v1397
      %v1479 = vpack.c.bf16 %v1400, %v1399
      %v1480 = vpack.c.bf16 %v1402, %v1401
      %v1481 = vpack.c.bf16 %v1404, %v1403
      %v1482 = vpack.c.bf16 %v1406, %v1405
      %v1483 = vpack.c.bf16 %v1408, %v1407
      %v1484 = vpack.c.bf16 %v1410, %v1409
      %v1485 = vpack.c.bf16 %v1412, %v1411
      %v1486 = vpack.c.bf16 %v1414, %v1413
      %v1487 = vpack.c.bf16 %v1416, %v1415
      %v1488 = vpack.c.bf16 %v1418, %v1417
      %v1489 = vpack.c.bf16 %v1420, %v1419
      %v1490 = vpack.c.bf16 %v1422, %v1421
      %v1491 = vpack.c.bf16 %v1424, %v1423
      %v1492 = vpack.c.bf16 %v1426, %v1425
      %v1493 = vpack.c.bf16 %v1428, %v1427
      %v1494 = vpack.c.bf16 %v1430, %v1429
      %v1559 = vunpack.c.l.b16 %v1431
      %v1560 = vunpack.c.h.b16 %v1431
      %v1561 = vunpack.c.l.b16 %v1432
      %v1562 = vunpack.c.h.b16 %v1432
      %v1563 = vunpack.c.l.b16 %v1433
      %v1564 = vunpack.c.h.b16 %v1433
      %v1565 = vunpack.c.l.b16 %v1434
      %v1566 = vunpack.c.h.b16 %v1434
      %v1567 = vunpack.c.l.b16 %v1435
      %v1568 = vunpack.c.h.b16 %v1435
      %v1569 = vunpack.c.l.b16 %v1436
      %v1570 = vunpack.c.h.b16 %v1436
      %v1571 = vunpack.c.l.b16 %v1437
      %v1572 = vunpack.c.h.b16 %v1437
      %v1573 = vunpack.c.l.b16 %v1438
      %v1574 = vunpack.c.h.b16 %v1438
      %v1575 = vunpack.c.l.b16 %v1439
      %v1576 = vunpack.c.h.b16 %v1439
      %v1577 = vunpack.c.l.b16 %v1440
      %v1578 = vunpack.c.h.b16 %v1440
      %v1579 = vunpack.c.l.b16 %v1441
      %v1580 = vunpack.c.h.b16 %v1441
      %v1581 = vunpack.c.l.b16 %v1442
      %v1582 = vunpack.c.h.b16 %v1442
      %v1583 = vunpack.c.l.b16 %v1443
      %v1584 = vunpack.c.h.b16 %v1443
      %v1585 = vunpack.c.l.b16 %v1444
      %v1586 = vunpack.c.h.b16 %v1444
      %v1587 = vunpack.c.l.b16 %v1445
      %v1588 = vunpack.c.h.b16 %v1445
      %v1589 = vunpack.c.l.b16 %v1446
      %v1590 = vunpack.c.h.b16 %v1446
      %v1591 = vunpack.c.l.b16 %v1447
      %v1592 = vunpack.c.h.b16 %v1447
      %v1593 = vunpack.c.l.b16 %v1448
      %v1594 = vunpack.c.h.b16 %v1448
      %v1595 = vunpack.c.l.b16 %v1449
      %v1596 = vunpack.c.h.b16 %v1449
      %v1597 = vunpack.c.l.b16 %v1450
      %v1598 = vunpack.c.h.b16 %v1450
      %v1599 = vunpack.c.l.b16 %v1451
      %v1600 = vunpack.c.h.b16 %v1451
      %v1601 = vunpack.c.l.b16 %v1452
      %v1602 = vunpack.c.h.b16 %v1452
      %v1603 = vunpack.c.l.b16 %v1453
      %v1604 = vunpack.c.h.b16 %v1453
      %v1605 = vunpack.c.l.b16 %v1454
      %v1606 = vunpack.c.h.b16 %v1454
      %v1607 = vunpack.c.l.b16 %v1455
      %v1608 = vunpack.c.h.b16 %v1455
      %v1609 = vunpack.c.l.b16 %v1456
      %v1610 = vunpack.c.h.b16 %v1456
      %v1611 = vunpack.c.l.b16 %v1457
      %v1612 = vunpack.c.h.b16 %v1457
      %v1613 = vunpack.c.l.b16 %v1458
      %v1614 = vunpack.c.h.b16 %v1458
      %v1615 = vunpack.c.l.b16 %v1459
      %v1616 = vunpack.c.h.b16 %v1459
      %v1617 = vunpack.c.l.b16 %v1460
      %v1618 = vunpack.c.h.b16 %v1460
      %v1619 = vunpack.c.l.b16 %v1461
      %v1620 = vunpack.c.h.b16 %v1461
      %v1621 = vunpack.c.l.b16 %v1462
      %v1622 = vunpack.c.h.b16 %v1462
      %v1623 = vunpack.c.l.b16 %v1463
      %v1624 = vunpack.c.h.b16 %v1463
      %v1625 = vunpack.c.l.b16 %v1464
      %v1626 = vunpack.c.h.b16 %v1464
      %v1627 = vunpack.c.l.b16 %v1465
      %v1628 = vunpack.c.h.b16 %v1465
      %v1629 = vunpack.c.l.b16 %v1466
      %v1630 = vunpack.c.h.b16 %v1466
      %v1631 = vunpack.c.l.b16 %v1467
      %v1632 = vunpack.c.h.b16 %v1467
      %v1633 = vunpack.c.l.b16 %v1468
      %v1634 = vunpack.c.h.b16 %v1468
      %v1635 = vunpack.c.l.b16 %v1469
      %v1636 = vunpack.c.h.b16 %v1469
      %v1637 = vunpack.c.l.b16 %v1470
      %v1638 = vunpack.c.h.b16 %v1470
      %v1639 = vunpack.c.l.b16 %v1471
      %v1640 = vunpack.c.h.b16 %v1471
      %v1641 = vunpack.c.l.b16 %v1472
      %v1642 = vunpack.c.h.b16 %v1472
      %v1643 = vunpack.c.l.b16 %v1473
      %v1644 = vunpack.c.h.b16 %v1473
      %v1645 = vunpack.c.l.b16 %v1474
      %v1646 = vunpack.c.h.b16 %v1474
      %v1647 = vunpack.c.l.b16 %v1475
      %v1648 = vunpack.c.h.b16 %v1475
      %v1649 = vunpack.c.l.b16 %v1476
      %v1650 = vunpack.c.h.b16 %v1476
      %v1651 = vunpack.c.l.b16 %v1477
      %v1652 = vunpack.c.h.b16 %v1477
      %v1653 = vunpack.c.l.b16 %v1478
      %v1654 = vunpack.c.h.b16 %v1478
      %v1655 = vunpack.c.l.b16 %v1479
      %v1656 = vunpack.c.h.b16 %v1479
      %v1657 = vunpack.c.l.b16 %v1480
      %v1658 = vunpack.c.h.b16 %v1480
      %v1659 = vunpack.c.l.b16 %v1481
      %v1660 = vunpack.c.h.b16 %v1481
      %v1661 = vunpack.c.l.b16 %v1482
      %v1662 = vunpack.c.h.b16 %v1482
      %v1663 = vunpack.c.l.b16 %v1483
      %v1664 = vunpack.c.h.b16 %v1483
      %v1665 = vunpack.c.l.b16 %v1484
      %v1666 = vunpack.c.h.b16 %v1484
      %v1667 = vunpack.c.l.b16 %v1485
      %v1668 = vunpack.c.h.b16 %v1485
      %v1669 = vunpack.c.l.b16 %v1486
      %v1670 = vunpack.c.h.b16 %v1486
      %v1671 = vunpack.c.l.b16 %v1487
      %v1672 = vunpack.c.h.b16 %v1487
      %v1673 = vunpack.c.l.b16 %v1488
      %v1674 = vunpack.c.h.b16 %v1488
      %v1675 = vunpack.c.l.b16 %v1489
      %v1676 = vunpack.c.h.b16 %v1489
      %v1677 = vunpack.c.l.b16 %v1490
      %v1678 = vunpack.c.h.b16 %v1490
      %v1679 = vunpack.c.l.b16 %v1491
      %v1680 = vunpack.c.h.b16 %v1491
      %v1681 = vunpack.c.l.b16 %v1492
      %v1682 = vunpack.c.h.b16 %v1492
      %v1683 = vunpack.c.l.b16 %v1493
      %v1684 = vunpack.c.h.b16 %v1493
      %v1685 = vunpack.c.l.b16 %v1494
      %v1686 = vunpack.c.h.b16 %v1494
      %v1687 = vpack.c.b16 %v1559, %v1559
      %v1688 = vpack.c.b16 %v1560, %v1560
      %v1689 = vpack.c.b16 %v1561, %v1561
      %v1690 = vpack.c.b16 %v1562, %v1562
      %v1691 = vpack.c.b16 %v1563, %v1563
      %v1692 = vpack.c.b16 %v1564, %v1564
      %v1693 = vpack.c.b16 %v1565, %v1565
      %v1694 = vpack.c.b16 %v1566, %v1566
      %v1695 = vpack.c.b16 %v1567, %v1567
      %v1696 = vpack.c.b16 %v1568, %v1568
      %v1697 = vpack.c.b16 %v1569, %v1569
      %v1698 = vpack.c.b16 %v1570, %v1570
      %v1699 = vpack.c.b16 %v1571, %v1571
      %v1700 = vpack.c.b16 %v1572, %v1572
      %v1701 = vpack.c.b16 %v1573, %v1573
      %v1702 = vpack.c.b16 %v1574, %v1574
      %v1703 = vpack.c.b16 %v1575, %v1575
      %v1704 = vpack.c.b16 %v1576, %v1576
      %v1705 = vpack.c.b16 %v1577, %v1577
      %v1706 = vpack.c.b16 %v1578, %v1578
      %v1707 = vpack.c.b16 %v1579, %v1579
      %v1708 = vpack.c.b16 %v1580, %v1580
      %v1709 = vpack.c.b16 %v1581, %v1581
      %v1710 = vpack.c.b16 %v1582, %v1582
      %v1711 = vpack.c.b16 %v1583, %v1583
      %v1712 = vpack.c.b16 %v1584, %v1584
      %v1713 = vpack.c.b16 %v1585, %v1585
      %v1714 = vpack.c.b16 %v1586, %v1586
      %v1715 = vpack.c.b16 %v1587, %v1587
      %v1716 = vpack.c.b16 %v1588, %v1588
      %v1717 = vpack.c.b16 %v1589, %v1589
      %v1718 = vpack.c.b16 %v1590, %v1590
      %v1719 = vpack.c.b16 %v1591, %v1591
      %v1720 = vpack.c.b16 %v1592, %v1592
      %v1721 = vpack.c.b16 %v1593, %v1593
      %v1722 = vpack.c.b16 %v1594, %v1594
      %v1723 = vpack.c.b16 %v1595, %v1595
      %v1724 = vpack.c.b16 %v1596, %v1596
      %v1725 = vpack.c.b16 %v1597, %v1597
      %v1726 = vpack.c.b16 %v1598, %v1598
      %v1727 = vpack.c.b16 %v1599, %v1599
      %v1728 = vpack.c.b16 %v1600, %v1600
      %v1729 = vpack.c.b16 %v1601, %v1601
      %v1730 = vpack.c.b16 %v1602, %v1602
      %v1731 = vpack.c.b16 %v1603, %v1603
      %v1732 = vpack.c.b16 %v1604, %v1604
      %v1733 = vpack.c.b16 %v1605, %v1605
      %v1734 = vpack.c.b16 %v1606, %v1606
      %v1735 = vpack.c.b16 %v1607, %v1607
      %v1736 = vpack.c.b16 %v1608, %v1608
      %v1737 = vpack.c.b16 %v1609, %v1609
      %v1738 = vpack.c.b16 %v1610, %v1610
      %v1739 = vpack.c.b16 %v1611, %v1611
      %v1740 = vpack.c.b16 %v1612, %v1612
      %v1741 = vpack.c.b16 %v1613, %v1613
      %v1742 = vpack.c.b16 %v1614, %v1614
      %v1743 = vpack.c.b16 %v1615, %v1615
      %v1744 = vpack.c.b16 %v1616, %v1616
      %v1745 = vpack.c.b16 %v1617, %v1617
      %v1746 = vpack.c.b16 %v1618, %v1618
      %v1747 = vpack.c.b16 %v1619, %v1619
      %v1748 = vpack.c.b16 %v1620, %v1620
      %v1749 = vpack.c.b16 %v1621, %v1621
      %v1750 = vpack.c.b16 %v1622, %v1622
      %v1751 = vpack.c.b16 %v1623, %v1623
      %v1752 = vpack.c.b16 %v1624, %v1624
      %v1753 = vpack.c.b16 %v1625, %v1625
      %v1754 = vpack.c.b16 %v1626, %v1626
      %v1755 = vpack.c.b16 %v1627, %v1627
      %v1756 = vpack.c.b16 %v1628, %v1628
      %v1757 = vpack.c.b16 %v1629, %v1629
      %v1758 = vpack.c.b16 %v1630, %v1630
      %v1759 = vpack.c.b16 %v1631, %v1631
      %v1760 = vpack.c.b16 %v1632, %v1632
      %v1761 = vpack.c.b16 %v1633, %v1633
      %v1762 = vpack.c.b16 %v1634, %v1634
      %v1763 = vpack.c.b16 %v1635, %v1635
      %v1764 = vpack.c.b16 %v1636, %v1636
      %v1765 = vpack.c.b16 %v1637, %v1637
      %v1766 = vpack.c.b16 %v1638, %v1638
      %v1767 = vpack.c.b16 %v1639, %v1639
      %v1768 = vpack.c.b16 %v1640, %v1640
      %v1769 = vpack.c.b16 %v1641, %v1641
      %v1770 = vpack.c.b16 %v1642, %v1642
      %v1771 = vpack.c.b16 %v1643, %v1643
      %v1772 = vpack.c.b16 %v1644, %v1644
      %v1773 = vpack.c.b16 %v1645, %v1645
      %v1774 = vpack.c.b16 %v1646, %v1646
      %v1775 = vpack.c.b16 %v1647, %v1647
      %v1776 = vpack.c.b16 %v1648, %v1648
      %v1777 = vpack.c.b16 %v1649, %v1649
      %v1778 = vpack.c.b16 %v1650, %v1650
      %v1779 = vpack.c.b16 %v1651, %v1651
      %v1780 = vpack.c.b16 %v1652, %v1652
      %v1781 = vpack.c.b16 %v1653, %v1653
      %v1782 = vpack.c.b16 %v1654, %v1654
      %v1783 = vpack.c.b16 %v1655, %v1655
      %v1784 = vpack.c.b16 %v1656, %v1656
      %v1785 = vpack.c.b16 %v1657, %v1657
      %v1786 = vpack.c.b16 %v1658, %v1658
      %v1787 = vpack.c.b16 %v1659, %v1659
      %v1788 = vpack.c.b16 %v1660, %v1660
      %v1789 = vpack.c.b16 %v1661, %v1661
      %v1790 = vpack.c.b16 %v1662, %v1662
      %v1791 = vpack.c.b16 %v1663, %v1663
      %v1792 = vpack.c.b16 %v1664, %v1664
      %v1793 = vpack.c.b16 %v1665, %v1665
      %v1794 = vpack.c.b16 %v1666, %v1666
      %v1795 = vpack.c.b16 %v1667, %v1667
      %v1796 = vpack.c.b16 %v1668, %v1668
      %v1797 = vpack.c.b16 %v1669, %v1669
      %v1798 = vpack.c.b16 %v1670, %v1670
      %v1799 = vpack.c.b16 %v1671, %v1671
      %v1800 = vpack.c.b16 %v1672, %v1672
      %v1801 = vpack.c.b16 %v1673, %v1673
      %v1802 = vpack.c.b16 %v1674, %v1674
      %v1803 = vpack.c.b16 %v1675, %v1675
      %v1804 = vpack.c.b16 %v1676, %v1676
      %v1805 = vpack.c.b16 %v1677, %v1677
      %v1806 = vpack.c.b16 %v1678, %v1678
      %v1807 = vpack.c.b16 %v1679, %v1679
      %v1808 = vpack.c.b16 %v1680, %v1680
      %v1809 = vpack.c.b16 %v1681, %v1681
      %v1810 = vpack.c.b16 %v1682, %v1682
      %v1811 = vpack.c.b16 %v1683, %v1683
      %v1812 = vpack.c.b16 %v1684, %v1684
      %v1813 = vpack.c.b16 %v1685, %v1685
      %v1814 = vpack.c.b16 %v1686, %v1686
      %1943 = vst [vmem:[%s172] sm:$0xf] %v1687
      %1944 = vst [vmem:[%s172 + $0x4] sm:$0xf] %v1688
      %1945 = vst [vmem:[%s172 + $0x8] sm:$0xf] %v1689
      %1946 = vst [vmem:[%s172 + $0xc] sm:$0xf] %v1690
      %1947 = vst [vmem:[%s172 + $0x10] sm:$0xf] %v1691
      %1948 = vst [vmem:[%s172 + $0x14] sm:$0xf] %v1692
      %1949 = vst [vmem:[%s172 + $0x18] sm:$0xf] %v1693
      %1950 = vst [vmem:[%s172 + $0x1c] sm:$0xf] %v1694
      %1951 = vst [vmem:[%s172 + $0x20] sm:$0xf] %v1695
      %1952 = vst [vmem:[%s172 + $0x24] sm:$0xf] %v1696
      %1953 = vst [vmem:[%s172 + $0x28] sm:$0xf] %v1697
      %1954 = vst [vmem:[%s172 + $0x2c] sm:$0xf] %v1698
      %1955 = vst [vmem:[%s172 + $0x30] sm:$0xf] %v1699
      %1956 = vst [vmem:[%s172 + $0x34] sm:$0xf] %v1700
      %1957 = vst [vmem:[%s172 + $0x38] sm:$0xf] %v1701
      %1958 = vst [vmem:[%s172 + $0x3c] sm:$0xf] %v1702
      %1959 = vst [vmem:[%s172 + $0x40] sm:$0xf] %v1703
      %1960 = vst [vmem:[%s172 + $0x44] sm:$0xf] %v1704
      %1961 = vst [vmem:[%s172 + $0x48] sm:$0xf] %v1705
      %1962 = vst [vmem:[%s172 + $0x4c] sm:$0xf] %v1706
      %1963 = vst [vmem:[%s172 + $0x50] sm:$0xf] %v1707
      %1964 = vst [vmem:[%s172 + $0x54] sm:$0xf] %v1708
      %1965 = vst [vmem:[%s172 + $0x58] sm:$0xf] %v1709
      %1966 = vst [vmem:[%s172 + $0x5c] sm:$0xf] %v1710
      %1967 = vst [vmem:[%s172 + $0x60] sm:$0xf] %v1711
      %1968 = vst [vmem:[%s172 + $0x64] sm:$0xf] %v1712
      %1969 = vst [vmem:[%s172 + $0x68] sm:$0xf] %v1713
      %1970 = vst [vmem:[%s172 + $0x6c] sm:$0xf] %v1714
      %1971 = vst [vmem:[%s172 + $0x70] sm:$0xf] %v1715
      %1972 = vst [vmem:[%s172 + $0x74] sm:$0xf] %v1716
      %1973 = vst [vmem:[%s172 + $0x78] sm:$0xf] %v1717
      %1974 = vst [vmem:[%s172 + $0x7c] sm:$0xf] %v1718
      %1975 = vst [vmem:[%s172 + $0x80] sm:$0xf] %v1719
      %1976 = vst [vmem:[%s172 + $0x84] sm:$0xf] %v1720
      %1977 = vst [vmem:[%s172 + $0x88] sm:$0xf] %v1721
      %1978 = vst [vmem:[%s172 + $0x8c] sm:$0xf] %v1722
      %1979 = vst [vmem:[%s172 + $0x90] sm:$0xf] %v1723
      %1980 = vst [vmem:[%s172 + $0x94] sm:$0xf] %v1724
      %1981 = vst [vmem:[%s172 + $0x98] sm:$0xf] %v1725
      %1982 = vst [vmem:[%s172 + $0x9c] sm:$0xf] %v1726
      %1983 = vst [vmem:[%s172 + $0xa0] sm:$0xf] %v1727
      %1984 = vst [vmem:[%s172 + $0xa4] sm:$0xf] %v1728
      %1985 = vst [vmem:[%s172 + $0xa8] sm:$0xf] %v1729
      %1986 = vst [vmem:[%s172 + $0xac] sm:$0xf] %v1730
      %1987 = vst [vmem:[%s172 + $0xb0] sm:$0xf] %v1731
      %1988 = vst [vmem:[%s172 + $0xb4] sm:$0xf] %v1732
      %1989 = vst [vmem:[%s172 + $0xb8] sm:$0xf] %v1733
      %1990 = vst [vmem:[%s172 + $0xbc] sm:$0xf] %v1734
      %1991 = vst [vmem:[%s172 + $0xc0] sm:$0xf] %v1735
      %1992 = vst [vmem:[%s172 + $0xc4] sm:$0xf] %v1736
      %1993 = vst [vmem:[%s172 + $0xc8] sm:$0xf] %v1737
      %1994 = vst [vmem:[%s172 + $0xcc] sm:$0xf] %v1738
      %1995 = vst [vmem:[%s172 + $0xd0] sm:$0xf] %v1739
      %1996 = vst [vmem:[%s172 + $0xd4] sm:$0xf] %v1740
      %1997 = vst [vmem:[%s172 + $0xd8] sm:$0xf] %v1741
      %1998 = vst [vmem:[%s172 + $0xdc] sm:$0xf] %v1742
      %1999 = vst [vmem:[%s172 + $0xe0] sm:$0xf] %v1743
      %2000 = vst [vmem:[%s172 + $0xe4] sm:$0xf] %v1744
      %2001 = vst [vmem:[%s172 + $0xe8] sm:$0xf] %v1745
      %2002 = vst [vmem:[%s172 + $0xec] sm:$0xf] %v1746
      %2003 = vst [vmem:[%s172 + $0xf0] sm:$0xf] %v1747
      %2004 = vst [vmem:[%s172 + $0xf4] sm:$0xf] %v1748
      %2005 = vst [vmem:[%s172 + $0xf8] sm:$0xf] %v1749
      %2006 = vst [vmem:[%s172 + $0xfc] sm:$0xf] %v1750
      %2007 = vst [vmem:[%s172 + $0x100] sm:$0xf] %v1751
      %2008 = vst [vmem:[%s172 + $0x104] sm:$0xf] %v1752
      %2009 = vst [vmem:[%s172 + $0x108] sm:$0xf] %v1753
      %2010 = vst [vmem:[%s172 + $0x10c] sm:$0xf] %v1754
      %2011 = vst [vmem:[%s172 + $0x110] sm:$0xf] %v1755
      %2012 = vst [vmem:[%s172 + $0x114] sm:$0xf] %v1756
      %2013 = vst [vmem:[%s172 + $0x118] sm:$0xf] %v1757
      %2014 = vst [vmem:[%s172 + $0x11c] sm:$0xf] %v1758
      %2015 = vst [vmem:[%s172 + $0x120] sm:$0xf] %v1759
      %2016 = vst [vmem:[%s172 + $0x124] sm:$0xf] %v1760
      %2017 = vst [vmem:[%s172 + $0x128] sm:$0xf] %v1761
      %2018 = vst [vmem:[%s172 + $0x12c] sm:$0xf] %v1762
      %2019 = vst [vmem:[%s172 + $0x130] sm:$0xf] %v1763
      %2020 = vst [vmem:[%s172 + $0x134] sm:$0xf] %v1764
      %2021 = vst [vmem:[%s172 + $0x138] sm:$0xf] %v1765
      %2022 = vst [vmem:[%s172 + $0x13c] sm:$0xf] %v1766
      %2023 = vst [vmem:[%s172 + $0x140] sm:$0xf] %v1767
      %2024 = vst [vmem:[%s172 + $0x144] sm:$0xf] %v1768
      %2025 = vst [vmem:[%s172 + $0x148] sm:$0xf] %v1769
      %2026 = vst [vmem:[%s172 + $0x14c] sm:$0xf] %v1770
      %2027 = vst [vmem:[%s172 + $0x150] sm:$0xf] %v1771
      %2028 = vst [vmem:[%s172 + $0x154] sm:$0xf] %v1772
      %2029 = vst [vmem:[%s172 + $0x158] sm:$0xf] %v1773
      %2030 = vst [vmem:[%s172 + $0x15c] sm:$0xf] %v1774
      %2031 = vst [vmem:[%s172 + $0x160] sm:$0xf] %v1775
      %2032 = vst [vmem:[%s172 + $0x164] sm:$0xf] %v1776
      %2033 = vst [vmem:[%s172 + $0x168] sm:$0xf] %v1777
      %2034 = vst [vmem:[%s172 + $0x16c] sm:$0xf] %v1778
      %2035 = vst [vmem:[%s172 + $0x170] sm:$0xf] %v1779
      %2036 = vst [vmem:[%s172 + $0x174] sm:$0xf] %v1780
      %2037 = vst [vmem:[%s172 + $0x178] sm:$0xf] %v1781
      %2038 = vst [vmem:[%s172 + $0x17c] sm:$0xf] %v1782
      %2039 = vst [vmem:[%s172 + $0x180] sm:$0xf] %v1783
      %2040 = vst [vmem:[%s172 + $0x184] sm:$0xf] %v1784
      %2041 = vst [vmem:[%s172 + $0x188] sm:$0xf] %v1785
      %2042 = vst [vmem:[%s172 + $0x18c] sm:$0xf] %v1786
      %2043 = vst [vmem:[%s172 + $0x190] sm:$0xf] %v1787
      %2044 = vst [vmem:[%s172 + $0x194] sm:$0xf] %v1788
      %2045 = vst [vmem:[%s172 + $0x198] sm:$0xf] %v1789
      %2046 = vst [vmem:[%s172 + $0x19c] sm:$0xf] %v1790
      %2047 = vst [vmem:[%s172 + $0x1a0] sm:$0xf] %v1791
      %2048 = vst [vmem:[%s172 + $0x1a4] sm:$0xf] %v1792
      %2049 = vst [vmem:[%s172 + $0x1a8] sm:$0xf] %v1793
      %2050 = vst [vmem:[%s172 + $0x1ac] sm:$0xf] %v1794
      %2051 = vst [vmem:[%s172 + $0x1b0] sm:$0xf] %v1795
      %2052 = vst [vmem:[%s172 + $0x1b4] sm:$0xf] %v1796
      %2053 = vst [vmem:[%s172 + $0x1b8] sm:$0xf] %v1797
      %2054 = vst [vmem:[%s172 + $0x1bc] sm:$0xf] %v1798
      %2055 = vst [vmem:[%s172 + $0x1c0] sm:$0xf] %v1799
      %2056 = vst [vmem:[%s172 + $0x1c4] sm:$0xf] %v1800
      %2057 = vst [vmem:[%s172 + $0x1c8] sm:$0xf] %v1801
      %2058 = vst [vmem:[%s172 + $0x1cc] sm:$0xf] %v1802
      %2059 = vst [vmem:[%s172 + $0x1d0] sm:$0xf] %v1803
      %2060 = vst [vmem:[%s172 + $0x1d4] sm:$0xf] %v1804
      %2061 = vst [vmem:[%s172 + $0x1d8] sm:$0xf] %v1805
      %2062 = vst [vmem:[%s172 + $0x1dc] sm:$0xf] %v1806
      %2063 = vst [vmem:[%s172 + $0x1e0] sm:$0xf] %v1807
      %2064 = vst [vmem:[%s172 + $0x1e4] sm:$0xf] %v1808
      %2065 = vst [vmem:[%s172 + $0x1e8] sm:$0xf] %v1809
      %2066 = vst [vmem:[%s172 + $0x1ec] sm:$0xf] %v1810
      %2067 = vst [vmem:[%s172 + $0x1f0] sm:$0xf] %v1811
      %2068 = vst [vmem:[%s172 + $0x1f4] sm:$0xf] %v1812
      %2069 = vst [vmem:[%s172 + $0x1f8] sm:$0xf] %v1813
      %2070 = vst [vmem:[%s172 + $0x1fc] sm:$0xf] %v1814
      %s2071 = smul.u32 128, %s14
      %p2072 = scmp.lt.s32.totalorder %s2071, 255
      %s2073 = scalar_select %p2072, %s2071, 255
      %s2074 = smul.addr %s2073, 4
      %s2075 = scalar_lea.vmem %s3, %s2074
      // Predicated region
      $region33: #{fwd.8} parent=31 // pred_check
        %p2076 = pneg %p100
      $region34: #{fwd.8} parent=31 // pred_check_branch
        %2078 = sbr.rel (%p2076) target = $region36
      $region35: #{fwd.8} parent=31 // pred_region
        %s2079 = smul.u32 128, %s14
      $region36: #{fwd.8} parent=31 // pred_fallthru
        _
    $region32: #{fwd.8} parent=5 // pred_fallthru
      _
    %p2080 = scmp.le.s32.totalorder 2, %s9
    // Predicated region
    $region37: #{fwd.8} parent=5 // pred_check
      %p2081 = pneg %p2080
    $region38: #{fwd.8} parent=5 // pred_check_branch
      %2083 = sbr.rel (%p2081) target = $region40
    $region39: #{fwd.8} parent=5 // pred_region
      %s2084 = ssub.s32 %s9, 2
      // Predicated region
      $region41: #{fwd.8} parent=39 // pred_check
        %p2085 = pneg %p106
      $region42: #{fwd.8} parent=39 // pred_check_branch
        %2087 = sbr.rel (%p2085) target = $region44
      $region43: #{fwd.8} parent=39 // pred_region
        %s2088 = smul.u32 128, %s15
        %p2089 = scmp.lt.s32.totalorder %s2088, 255
        %s2090 = scalar_select %p2089, %s2088, 255
        %s2091 = smul.addr %s2090, 4
        %s2092 = scalar_lea.vmem %s3, %s2091
      $region44: #{fwd.8} parent=39 // pred_fallthru
        _
    $region40: #{fwd.8} parent=5 // pred_fallthru
      _
  $region6: #{fwd.8} parent=0 // loop_footer
    %s13 = sadd.s32 1, %s9
  $region7: #{fwd.8} parent=0 // loop_footer_branch
    %8 = sbr.rel target = $region3
  $region8: #{fwd.8} parent=0 // loop_exit
    _

// kernel: fwd.9
$region0: #{fwd.9}
  #allocation0 [shape = 'u32[]', space=smem, size = 0x4, offset = 0x4, fixed_abs, tag = 'smem constant byte address 0x4 - core index']
  #allocation1 [shape = 'u32[144,128]{1,0:T(1,128)}', space=vmem, size = 0x12000, scoped, tag = 'internal scratch']
  %s0 = inlined_call_operand.vmem [shape: bf16[2048,256], index: 0, kind: input, shape index: {}]
  %s1 = inlined_call_operand.vmem [shape: bf16[256,128], index: 1, kind: input, shape index: {}]
  %s2 = inlined_call_operand.vmem [shape: f32[1,128], index: 2, kind: input, shape index: {}]
  %s3 = inlined_call_operand.vmem [shape: bf16[2048,128], index: 3, kind: output, shape index: {}]
  %s4 = sld [smem:[#allocation0]]
  $region45: #{fwd.9} parent=0
    _
  %s6 = ssub.s32 1, %s4
  %s7 = scalar_select 0, %s6, %s4
  loop: start=0, step=1, limit=4
  $region2: #{fwd.9} parent=0 // loop_pre_header
    _
  $region3: #{fwd.9} parent=0 // loop_header
    %s9 = sphi 0, %s13
    %p10 = scmp.ge.s32.totalorder %s9, 4
    %s19 = sphi 0, %s21
    %s22 = sphi 0, %s19
    %s23 = sphi 0, %s22
    %s39 = sphi 0, %s23
    %s43 = sphi 0, %s43
    %s45 = sphi 0, %s43
    %s46 = sphi 0, %s45
    %s60 = sphi 0, %s46
    %s64 = sphi 0, %s64
    %s66 = sphi 0, %s64
    %s67 = sphi 0, %s66
    %s81 = sphi 0, %s67
    %s87 = sphi 0, %s89
    %s90 = sphi 0, %s87
    %s91 = sphi 0, %s90
    %s107 = sphi 0, %s91
  $region4: #{fwd.9} parent=0 // loop_header_branch
    %12 = sbr.rel (%p10) target = $region8
  $region5: #{fwd.9} parent=0 // loop_body
    %s14 = ssub.s32 %s9, 1
    %s15 = ssub.s32 %s9, 2
    %s16 = sadd.s32 %s9, 1
    %s17 = ssub.s32 %s9, %s16
    %p18 = scmp.eq.s32.totalorder %s17, 0
    %s20 = sadd.s32 %s19, 1
    %s21 = scalar_select %p18, %s19, %s20
    %p24 = pneg %p18
    %p25 = scmp.eq.s32.totalorder %s9, 1
    %p26 = por %p24, %p25
    %p27 = scmp.ne.s32.totalorder %s19, %s22
    %p28 = scmp.eq.s32.totalorder %s9, 0
    %p29 = por %p27, %p28
    %p30 = scmp.ne.s32.totalorder %s19, %s22
    %p31 = scmp.eq.s32.totalorder %s14, 1
    %p32 = por %p30, %p31
    %p33 = scmp.ne.s32.totalorder %s22, %s23
    %p34 = scmp.eq.s32.totalorder %s14, 0
    %p35 = por %p33, %p34
    %p36 = scmp.ne.s32.totalorder %s22, %s23
    %p37 = scmp.eq.s32.totalorder %s15, 1
    %p38 = por %p36, %p37
    %p40 = scmp.ne.s32.totalorder %s23, %s39
    %p41 = scmp.eq.s32.totalorder %s15, 0
    %p42 = por %p40, %p41
    %s44 = sadd.s32 %s43, 1
    %p47 = scmp.eq.s32.totalorder %s9, 1
    %p48 = scmp.ne.s32.totalorder %s43, %s45
    %p49 = scmp.eq.s32.totalorder %s9, 0
    %p50 = por %p48, %p49
    %p51 = scmp.ne.s32.totalorder %s43, %s45
    %p52 = scmp.eq.s32.totalorder %s14, 1
    %p53 = por %p51, %p52
    %p54 = scmp.ne.s32.totalorder %s45, %s46
    %p55 = scmp.eq.s32.totalorder %s14, 0
    %p56 = por %p54, %p55
    %p57 = scmp.ne.s32.totalorder %s45, %s46
    %p58 = scmp.eq.s32.totalorder %s15, 1
    %p59 = por %p57, %p58
    %p61 = scmp.ne.s32.totalorder %s46, %s60
    %p62 = scmp.eq.s32.totalorder %s15, 0
    %p63 = por %p61, %p62
    %s65 = sadd.s32 %s64, 1
    %p68 = scmp.eq.s32.totalorder %s9, 1
    %p69 = scmp.ne.s32.totalorder %s64, %s66
    %p70 = scmp.eq.s32.totalorder %s9, 0
    %p71 = por %p69, %p70
    %p72 = scmp.ne.s32.totalorder %s64, %s66
    %p73 = scmp.eq.s32.totalorder %s14, 1
    %p74 = por %p72, %p73
    %p75 = scmp.ne.s32.totalorder %s66, %s67
    %p76 = scmp.eq.s32.totalorder %s14, 0
    %p77 = por %p75, %p76
    %p78 = scmp.ne.s32.totalorder %s66, %s67
    %p79 = scmp.eq.s32.totalorder %s15, 1
    %p80 = por %p78, %p79
    %p82 = scmp.ne.s32.totalorder %s67, %s81
    %p83 = scmp.eq.s32.totalorder %s15, 0
    %p84 = por %p82, %p83
    %s85 = ssub.s32 %s9, %s16
    %p86 = scmp.eq.s32.totalorder %s85, 0
    %s88 = sadd.s32 %s87, 1
    %s89 = scalar_select %p86, %s87, %s88
    %p92 = pneg %p86
    %p93 = scmp.eq.s32.totalorder %s9, 1
    %p94 = por %p92, %p93
    %p95 = scmp.ne.s32.totalorder %s87, %s90
    %p96 = scmp.eq.s32.totalorder %s9, 0
    %p97 = por %p95, %p96
    %p98 = scmp.ne.s32.totalorder %s87, %s90
    %p99 = scmp.eq.s32.totalorder %s14, 1
    %p100 = por %p98, %p99
    %p101 = scmp.ne.s32.totalorder %s90, %s91
    %p102 = scmp.eq.s32.totalorder %s14, 0
    %p103 = por %p101, %p102
    %p104 = scmp.ne.s32.totalorder %s90, %s91
    %p105 = scmp.eq.s32.totalorder %s15, 1
    %p106 = por %p104, %p105
    %p108 = scmp.ne.s32.totalorder %s91, %s107
    %p109 = scmp.eq.s32.totalorder %s15, 0
    %p110 = por %p108, %p109
    %p111 = scmp.le.s32.totalorder 1, %s9
    %p112 = scmp.lt.s32.totalorder %s9, 3
    %p113 = pnand %p111, %p112
    %p114 = pneg %p113
    // Predicated region
    $region9: #{fwd.9} parent=5 // pred_check
      _
    $region10: #{fwd.9} parent=5 // pred_check_branch
      %116 = sbr.rel (%p113) target = $region12
    $region11: #{fwd.9} parent=5 // pred_region
      %s117 = ssub.s32 %s9, 1
      // Predicated region
      $region13: #{fwd.9} parent=11 // pred_check
        %p118 = pneg %p56
      $region14: #{fwd.9} parent=11 // pred_check_branch
        %120 = sbr.rel (%p118) target = $region16
      $region15: #{fwd.9} parent=11 // pred_region
        _
      $region16: #{fwd.9} parent=11 // pred_fallthru
        _
      // Predicated region
      $region17: #{fwd.9} parent=11 // pred_check
        %p121 = pneg %p77
      $region18: #{fwd.9} parent=11 // pred_check_branch
        %123 = sbr.rel (%p121) target = $region20
      $region19: #{fwd.9} parent=11 // pred_region
        _
      $region20: #{fwd.9} parent=11 // pred_fallthru
        _
    $region12: #{fwd.9} parent=5 // pred_fallthru
      _
    %p124 = scmp.lt.s32.totalorder %s9, 2
    // Predicated region
    $region21: #{fwd.9} parent=5 // pred_check
      %p125 = pneg %p124
    $region22: #{fwd.9} parent=5 // pred_check_branch
      %127 = sbr.rel (%p125) target = $region24
    $region23: #{fwd.9} parent=5 // pred_region
      // Predicated region
      $region25: #{fwd.9} parent=23 // pred_check
        %p128 = pneg %p29
      $region26: #{fwd.9} parent=23 // pred_check_branch
        %130 = sbr.rel (%p128) target = $region28
      $region27: #{fwd.9} parent=23 // pred_region
        %s131 = smul.u32 128, %s9
        %p132 = scmp.lt.s32.totalorder %s131, 255
        %s133 = scalar_select %p132, %s131, 255
        %s134 = smul.addr %s133, 2
        %s135 = smul.addr %s134, 4
        %s136 = scalar_lea.vmem %s0, %s135
        %s137 = smul.u32 128, %s9
      $region28: #{fwd.9} parent=23 // pred_fallthru
        _
    $region24: #{fwd.9} parent=5 // pred_fallthru
      _
    %p138 = scmp.le.s32.totalorder 1, %s9
    %p139 = scmp.lt.s32.totalorder %s9, 3
    %p140 = pnand %p138, %p139
    %p141 = pneg %p140
    // Predicated region
    $region29: #{fwd.9} parent=5 // pred_check
      _
    $region30: #{fwd.9} parent=5 // pred_check_branch
      %143 = sbr.rel (%p140) target = $region32
    $region31: #{fwd.9} parent=5 // pred_region
      %s144 = ssub.s32 %s9, 1
      %s145 = smul.u32 128, %s14
      %p146 = scmp.lt.s32.totalorder %s145, 255
      %s147 = scalar_select %p146, %s145, 255
      %s148 = smul.addr %s147, 2
      %s149 = smul.addr %s148, 4
      %s150 = scalar_lea.vmem %s0, %s149
      %p151 = pneg %p35
      %p152 = pneg %p32
      %p153 = pneg %p56
      %p154 = pneg %p53
      %p155 = pneg %p77
      %p156 = pneg %p74
      %p157 = pneg %p103
      %p158 = pneg %p100
      %s159 = smul.u32 128, %s14
      %p160 = scmp.lt.s32.totalorder %s159, 255
      %s161 = scalar_select %p160, %s159, 255
      %s162 = smul.addr %s161, 4
      %s163 = scalar_lea.vmem %s3, %s162
      %s164 = smul.u32 128, %s14
      %p165 = scmp.lt.s32.totalorder %s164, 255
      %s166 = scalar_select %p165, %s164, 255
      %s167 = smul.addr %s166, 2
      %s168 = smul.addr %s167, 4
      %s169 = scalar_lea.vmem %s0, %s168
      %s170 = smul.u32 128, %s14
      %s171 = smul.u32 128, %s14
      %p172 = scmp.lt.s32.totalorder %s171, 255
      %s173 = scalar_select %p172, %s171, 255
      %s174 = smul.addr %s173, 4
      %s175 = scalar_lea.vmem %s3, %s174
      %s176 = smul.u32 128, %s14
      %v178 = vld [vmem:[%s169] sm:$0xff]
      %v179 = vld [vmem:[%s169 + $0x8] sm:$0xff]
      %v180 = vld [vmem:[%s169 + $0x10] sm:$0xff]
      %v181 = vld [vmem:[%s169 + $0x18] sm:$0xff]
      %v182 = vld [vmem:[%s169 + $0x20] sm:$0xff]
      %v183 = vld [vmem:[%s169 + $0x28] sm:$0xff]
      %v184 = vld [vmem:[%s169 + $0x30] sm:$0xff]
      %v185 = vld [vmem:[%s169 + $0x38] sm:$0xff]
      %v186 = vld [vmem:[%s169 + $0x40] sm:$0xff]
      %v187 = vld [vmem:[%s169 + $0x48] sm:$0xff]
      %v188 = vld [vmem:[%s169 + $0x50] sm:$0xff]
      %v189 = vld [vmem:[%s169 + $0x58] sm:$0xff]
      %v190 = vld [vmem:[%s169 + $0x60] sm:$0xff]
      %v191 = vld [vmem:[%s169 + $0x68] sm:$0xff]
      %v192 = vld [vmem:[%s169 + $0x70] sm:$0xff]
      %v193 = vld [vmem:[%s169 + $0x78] sm:$0xff]
      %v194 = vld [vmem:[%s169 + $0x80] sm:$0xff]
      %v195 = vld [vmem:[%s169 + $0x88] sm:$0xff]
      %v196 = vld [vmem:[%s169 + $0x90] sm:$0xff]
      %v197 = vld [vmem:[%s169 + $0x98] sm:$0xff]
      %v198 = vld [vmem:[%s169 + $0xa0] sm:$0xff]
      %v199 = vld [vmem:[%s169 + $0xa8] sm:$0xff]
      %v200 = vld [vmem:[%s169 + $0xb0] sm:$0xff]
      %v201 = vld [vmem:[%s169 + $0xb8] sm:$0xff]
      %v202 = vld [vmem:[%s169 + $0xc0] sm:$0xff]
      %v203 = vld [vmem:[%s169 + $0xc8] sm:$0xff]
      %v204 = vld [vmem:[%s169 + $0xd0] sm:$0xff]
      %v205 = vld [vmem:[%s169 + $0xd8] sm:$0xff]
      %v206 = vld [vmem:[%s169 + $0xe0] sm:$0xff]
      %v207 = vld [vmem:[%s169 + $0xe8] sm:$0xff]
      %v208 = vld [vmem:[%s169 + $0xf0] sm:$0xff]
      %v209 = vld [vmem:[%s169 + $0xf8] sm:$0xff]
      %v210 = vld [vmem:[%s169 + $0x100] sm:$0xff]
      %v211 = vld [vmem:[%s169 + $0x108] sm:$0xff]
      %v212 = vld [vmem:[%s169 + $0x110] sm:$0xff]
      %v213 = vld [vmem:[%s169 + $0x118] sm:$0xff]
      %v214 = vld [vmem:[%s169 + $0x120] sm:$0xff]
      %v215 = vld [vmem:[%s169 + $0x128] sm:$0xff]
      %v216 = vld [vmem:[%s169 + $0x130] sm:$0xff]
      %v217 = vld [vmem:[%s169 + $0x138] sm:$0xff]
      %v218 = vld [vmem:[%s169 + $0x140] sm:$0xff]
      %v219 = vld [vmem:[%s169 + $0x148] sm:$0xff]
      %v220 = vld [vmem:[%s169 + $0x150] sm:$0xff]
      %v221 = vld [vmem:[%s169 + $0x158] sm:$0xff]
      %v222 = vld [vmem:[%s169 + $0x160] sm:$0xff]
      %v223 = vld [vmem:[%s169 + $0x168] sm:$0xff]
      %v224 = vld [vmem:[%s169 + $0x170] sm:$0xff]
      %v225 = vld [vmem:[%s169 + $0x178] sm:$0xff]
      %v226 = vld [vmem:[%s169 + $0x180] sm:$0xff]
      %v227 = vld [vmem:[%s169 + $0x188] sm:$0xff]
      %v228 = vld [vmem:[%s169 + $0x190] sm:$0xff]
      %v229 = vld [vmem:[%s169 + $0x198] sm:$0xff]
      %v230 = vld [vmem:[%s169 + $0x1a0] sm:$0xff]
      %v231 = vld [vmem:[%s169 + $0x1a8] sm:$0xff]
      %v232 = vld [vmem:[%s169 + $0x1b0] sm:$0xff]
      %v233 = vld [vmem:[%s169 + $0x1b8] sm:$0xff]
      %v234 = vld [vmem:[%s169 + $0x1c0] sm:$0xff]
      %v235 = vld [vmem:[%s169 + $0x1c8] sm:$0xff]
      %v236 = vld [vmem:[%s169 + $0x1d0] sm:$0xff]
      %v237 = vld [vmem:[%s169 + $0x1d8] sm:$0xff]
      %v238 = vld [vmem:[%s169 + $0x1e0] sm:$0xff]
      %v239 = vld [vmem:[%s169 + $0x1e8] sm:$0xff]
      %v240 = vld [vmem:[%s169 + $0x1f0] sm:$0xff]
      %v241 = vld [vmem:[%s169 + $0x1f8] sm:$0xff]
      %v242 = vld [vmem:[%s169 + $0x200] sm:$0xff]
      %v243 = vld [vmem:[%s169 + $0x208] sm:$0xff]
      %v244 = vld [vmem:[%s169 + $0x210] sm:$0xff]
      %v245 = vld [vmem:[%s169 + $0x218] sm:$0xff]
      %v246 = vld [vmem:[%s169 + $0x220] sm:$0xff]
      %v247 = vld [vmem:[%s169 + $0x228] sm:$0xff]
      %v248 = vld [vmem:[%s169 + $0x230] sm:$0xff]
      %v249 = vld [vmem:[%s169 + $0x238] sm:$0xff]
      %v250 = vld [vmem:[%s169 + $0x240] sm:$0xff]
      %v251 = vld [vmem:[%s169 + $0x248] sm:$0xff]
      %v252 = vld [vmem:[%s169 + $0x250] sm:$0xff]
      %v253 = vld [vmem:[%s169 + $0x258] sm:$0xff]
      %v254 = vld [vmem:[%s169 + $0x260] sm:$0xff]
      %v255 = vld [vmem:[%s169 + $0x268] sm:$0xff]
      %v256 = vld [vmem:[%s169 + $0x270] sm:$0xff]
      %v257 = vld [vmem:[%s169 + $0x278] sm:$0xff]
      %v258 = vld [vmem:[%s169 + $0x280] sm:$0xff]
      %v259 = vld [vmem:[%s169 + $0x288] sm:$0xff]
      %v260 = vld [vmem:[%s169 + $0x290] sm:$0xff]
      %v261 = vld [vmem:[%s169 + $0x298] sm:$0xff]
      %v262 = vld [vmem:[%s169 + $0x2a0] sm:$0xff]
      %v263 = vld [vmem:[%s169 + $0x2a8] sm:$0xff]
      %v264 = vld [vmem:[%s169 + $0x2b0] sm:$0xff]
      %v265 = vld [vmem:[%s169 + $0x2b8] sm:$0xff]
      %v266 = vld [vmem:[%s169 + $0x2c0] sm:$0xff]
      %v267 = vld [vmem:[%s169 + $0x2c8] sm:$0xff]
      %v268 = vld [vmem:[%s169 + $0x2d0] sm:$0xff]
      %v269 = vld [vmem:[%s169 + $0x2d8] sm:$0xff]
      %v270 = vld [vmem:[%s169 + $0x2e0] sm:$0xff]
      %v271 = vld [vmem:[%s169 + $0x2e8] sm:$0xff]
      %v272 = vld [vmem:[%s169 + $0x2f0] sm:$0xff]
      %v273 = vld [vmem:[%s169 + $0x2f8] sm:$0xff]
      %v274 = vld [vmem:[%s169 + $0x300] sm:$0xff]
      %v275 = vld [vmem:[%s169 + $0x308] sm:$0xff]
      %v276 = vld [vmem:[%s169 + $0x310] sm:$0xff]
      %v277 = vld [vmem:[%s169 + $0x318] sm:$0xff]
      %v278 = vld [vmem:[%s169 + $0x320] sm:$0xff]
      %v279 = vld [vmem:[%s169 + $0x328] sm:$0xff]
      %v280 = vld [vmem:[%s169 + $0x330] sm:$0xff]
      %v281 = vld [vmem:[%s169 + $0x338] sm:$0xff]
      %v282 = vld [vmem:[%s169 + $0x340] sm:$0xff]
      %v283 = vld [vmem:[%s169 + $0x348] sm:$0xff]
      %v284 = vld [vmem:[%s169 + $0x350] sm:$0xff]
      %v285 = vld [vmem:[%s169 + $0x358] sm:$0xff]
      %v286 = vld [vmem:[%s169 + $0x360] sm:$0xff]
      %v287 = vld [vmem:[%s169 + $0x368] sm:$0xff]
      %v288 = vld [vmem:[%s169 + $0x370] sm:$0xff]
      %v289 = vld [vmem:[%s169 + $0x378] sm:$0xff]
      %v290 = vld [vmem:[%s169 + $0x380] sm:$0xff]
      %v291 = vld [vmem:[%s169 + $0x388] sm:$0xff]
      %v292 = vld [vmem:[%s169 + $0x390] sm:$0xff]
      %v293 = vld [vmem:[%s169 + $0x398] sm:$0xff]
      %v294 = vld [vmem:[%s169 + $0x3a0] sm:$0xff]
      %v295 = vld [vmem:[%s169 + $0x3a8] sm:$0xff]
      %v296 = vld [vmem:[%s169 + $0x3b0] sm:$0xff]
      %v297 = vld [vmem:[%s169 + $0x3b8] sm:$0xff]
      %v298 = vld [vmem:[%s169 + $0x3c0] sm:$0xff]
      %v299 = vld [vmem:[%s169 + $0x3c8] sm:$0xff]
      %v300 = vld [vmem:[%s169 + $0x3d0] sm:$0xff]
      %v301 = vld [vmem:[%s169 + $0x3d8] sm:$0xff]
      %v302 = vld [vmem:[%s169 + $0x3e0] sm:$0xff]
      %v303 = vld [vmem:[%s169 + $0x3e8] sm:$0xff]
      %v304 = vld [vmem:[%s169 + $0x3f0] sm:$0xff]
      %v305 = vld [vmem:[%s169 + $0x3f8] sm:$0xff]
      %v306 = vld [vmem:[%s1] sm:$0xf]
      %v307 = vld [vmem:[%s1 + $0x4] sm:$0xf]
      %v308 = vld [vmem:[%s1 + $0x8] sm:$0xf]
      %v309 = vld [vmem:[%s1 + $0xc] sm:$0xf]
      %v310 = vld [vmem:[%s1 + $0x10] sm:$0xf]
      %v311 = vld [vmem:[%s1 + $0x14] sm:$0xf]
      %v312 = vld [vmem:[%s1 + $0x18] sm:$0xf]
      %v313 = vld [vmem:[%s1 + $0x1c] sm:$0xf]
      %v314 = vld [vmem:[%s1 + $0x20] sm:$0xf]
      %v315 = vld [vmem:[%s1 + $0x24] sm:$0xf]
      %v316 = vld [vmem:[%s1 + $0x28] sm:$0xf]
      %v317 = vld [vmem:[%s1 + $0x2c] sm:$0xf]
      %v318 = vld [vmem:[%s1 + $0x30] sm:$0xf]
      %v319 = vld [vmem:[%s1 + $0x34] sm:$0xf]
      %v320 = vld [vmem:[%s1 + $0x38] sm:$0xf]
      %v321 = vld [vmem:[%s1 + $0x3c] sm:$0xf]
      %v322 = vld [vmem:[%s1 + $0x40] sm:$0xf]
      %v323 = vld [vmem:[%s1 + $0x44] sm:$0xf]
      %v324 = vld [vmem:[%s1 + $0x48] sm:$0xf]
      %v325 = vld [vmem:[%s1 + $0x4c] sm:$0xf]
      %v326 = vld [vmem:[%s1 + $0x50] sm:$0xf]
      %v327 = vld [vmem:[%s1 + $0x54] sm:$0xf]
      %v328 = vld [vmem:[%s1 + $0x58] sm:$0xf]
      %v329 = vld [vmem:[%s1 + $0x5c] sm:$0xf]
      %v330 = vld [vmem:[%s1 + $0x60] sm:$0xf]
      %v331 = vld [vmem:[%s1 + $0x64] sm:$0xf]
      %v332 = vld [vmem:[%s1 + $0x68] sm:$0xf]
      %v333 = vld [vmem:[%s1 + $0x6c] sm:$0xf]
      %v334 = vld [vmem:[%s1 + $0x70] sm:$0xf]
      %v335 = vld [vmem:[%s1 + $0x74] sm:$0xf]
      %v336 = vld [vmem:[%s1 + $0x78] sm:$0xf]
      %v337 = vld [vmem:[%s1 + $0x7c] sm:$0xf]
      %v338 = vld [vmem:[%s2] sm:$0x1]
      %v340 = vlaneseq
      %v341 = vshrl.u32 %v340, 7
      %v342 = vsub.s32 0, %v341
      %v343 = vrot.slane %v338, %v342
      %v473 = vunpack.c.l.b16 %v178
      %v474 = vunpack.c.h.b16 %v178
      %v475 = vunpack.c.l.b16 %v179
      %v476 = vunpack.c.h.b16 %v179
      %v477 = vunpack.c.l.b16 %v180
      %v478 = vunpack.c.h.b16 %v180
      %v479 = vunpack.c.l.b16 %v181
      %v480 = vunpack.c.h.b16 %v181
      %v481 = vunpack.c.l.b16 %v182
      %v482 = vunpack.c.h.b16 %v182
      %v483 = vunpack.c.l.b16 %v183
      %v484 = vunpack.c.h.b16 %v183
      %v485 = vunpack.c.l.b16 %v184
      %v486 = vunpack.c.h.b16 %v184
      %v487 = vunpack.c.l.b16 %v185
      %v488 = vunpack.c.h.b16 %v185
      %v489 = vunpack.c.l.b16 %v186
      %v490 = vunpack.c.h.b16 %v186
      %v491 = vunpack.c.l.b16 %v187
      %v492 = vunpack.c.h.b16 %v187
      %v493 = vunpack.c.l.b16 %v188
      %v494 = vunpack.c.h.b16 %v188
      %v495 = vunpack.c.l.b16 %v189
      %v496 = vunpack.c.h.b16 %v189
      %v497 = vunpack.c.l.b16 %v190
      %v498 = vunpack.c.h.b16 %v190
      %v499 = vunpack.c.l.b16 %v191
      %v500 = vunpack.c.h.b16 %v191
      %v501 = vunpack.c.l.b16 %v192
      %v502 = vunpack.c.h.b16 %v192
      %v503 = vunpack.c.l.b16 %v193
      %v504 = vunpack.c.h.b16 %v193
      %v505 = vunpack.c.l.b16 %v194
      %v506 = vunpack.c.h.b16 %v194
      %v507 = vunpack.c.l.b16 %v195
      %v508 = vunpack.c.h.b16 %v195
      %v509 = vunpack.c.l.b16 %v196
      %v510 = vunpack.c.h.b16 %v196
      %v511 = vunpack.c.l.b16 %v197
      %v512 = vunpack.c.h.b16 %v197
      %v513 = vunpack.c.l.b16 %v198
      %v514 = vunpack.c.h.b16 %v198
      %v515 = vunpack.c.l.b16 %v199
      %v516 = vunpack.c.h.b16 %v199
      %v517 = vunpack.c.l.b16 %v200
      %v518 = vunpack.c.h.b16 %v200
      %v519 = vunpack.c.l.b16 %v201
      %v520 = vunpack.c.h.b16 %v201
      %v521 = vunpack.c.l.b16 %v202
      %v522 = vunpack.c.h.b16 %v202
      %v523 = vunpack.c.l.b16 %v203
      %v524 = vunpack.c.h.b16 %v203
      %v525 = vunpack.c.l.b16 %v204
      %v526 = vunpack.c.h.b16 %v204
      %v527 = vunpack.c.l.b16 %v205
      %v528 = vunpack.c.h.b16 %v205
      %v529 = vunpack.c.l.b16 %v206
      %v530 = vunpack.c.h.b16 %v206
      %v531 = vunpack.c.l.b16 %v207
      %v532 = vunpack.c.h.b16 %v207
      %v533 = vunpack.c.l.b16 %v208
      %v534 = vunpack.c.h.b16 %v208
      %v535 = vunpack.c.l.b16 %v209
      %v536 = vunpack.c.h.b16 %v209
      %v537 = vunpack.c.l.b16 %v210
      %v538 = vunpack.c.h.b16 %v210
      %v539 = vunpack.c.l.b16 %v211
      %v540 = vunpack.c.h.b16 %v211
      %v541 = vunpack.c.l.b16 %v212
      %v542 = vunpack.c.h.b16 %v212
      %v543 = vunpack.c.l.b16 %v213
      %v544 = vunpack.c.h.b16 %v213
      %v545 = vunpack.c.l.b16 %v214
      %v546 = vunpack.c.h.b16 %v214
      %v547 = vunpack.c.l.b16 %v215
      %v548 = vunpack.c.h.b16 %v215
      %v549 = vunpack.c.l.b16 %v216
      %v550 = vunpack.c.h.b16 %v216
      %v551 = vunpack.c.l.b16 %v217
      %v552 = vunpack.c.h.b16 %v217
      %v553 = vunpack.c.l.b16 %v218
      %v554 = vunpack.c.h.b16 %v218
      %v555 = vunpack.c.l.b16 %v219
      %v556 = vunpack.c.h.b16 %v219
      %v557 = vunpack.c.l.b16 %v220
      %v558 = vunpack.c.h.b16 %v220
      %v559 = vunpack.c.l.b16 %v221
      %v560 = vunpack.c.h.b16 %v221
      %v561 = vunpack.c.l.b16 %v222
      %v562 = vunpack.c.h.b16 %v222
      %v563 = vunpack.c.l.b16 %v223
      %v564 = vunpack.c.h.b16 %v223
      %v565 = vunpack.c.l.b16 %v224
      %v566 = vunpack.c.h.b16 %v224
      %v567 = vunpack.c.l.b16 %v225
      %v568 = vunpack.c.h.b16 %v225
      %v569 = vunpack.c.l.b16 %v226
      %v570 = vunpack.c.h.b16 %v226
      %v571 = vunpack.c.l.b16 %v227
      %v572 = vunpack.c.h.b16 %v227
      %v573 = vunpack.c.l.b16 %v228
      %v574 = vunpack.c.h.b16 %v228
      %v575 = vunpack.c.l.b16 %v229
      %v576 = vunpack.c.h.b16 %v229
      %v577 = vunpack.c.l.b16 %v230
      %v578 = vunpack.c.h.b16 %v230
      %v579 = vunpack.c.l.b16 %v231
      %v580 = vunpack.c.h.b16 %v231
      %v581 = vunpack.c.l.b16 %v232
      %v582 = vunpack.c.h.b16 %v232
      %v583 = vunpack.c.l.b16 %v233
      %v584 = vunpack.c.h.b16 %v233
      %v585 = vunpack.c.l.b16 %v234
      %v586 = vunpack.c.h.b16 %v234
      %v587 = vunpack.c.l.b16 %v235
      %v588 = vunpack.c.h.b16 %v235
      %v589 = vunpack.c.l.b16 %v236
      %v590 = vunpack.c.h.b16 %v236
      %v591 = vunpack.c.l.b16 %v237
      %v592 = vunpack.c.h.b16 %v237
      %v593 = vunpack.c.l.b16 %v238
      %v594 = vunpack.c.h.b16 %v238
      %v595 = vunpack.c.l.b16 %v239
      %v596 = vunpack.c.h.b16 %v239
      %v597 = vunpack.c.l.b16 %v240
      %v598 = vunpack.c.h.b16 %v240
      %v599 = vunpack.c.l.b16 %v241
      %v600 = vunpack.c.h.b16 %v241
      %v601 = vunpack.c.l.b16 %v242
      %v602 = vunpack.c.h.b16 %v242
      %v603 = vunpack.c.l.b16 %v243
      %v604 = vunpack.c.h.b16 %v243
      %v605 = vunpack.c.l.b16 %v244
      %v606 = vunpack.c.h.b16 %v244
      %v607 = vunpack.c.l.b16 %v245
      %v608 = vunpack.c.h.b16 %v245
      %v609 = vunpack.c.l.b16 %v246
      %v610 = vunpack.c.h.b16 %v246
      %v611 = vunpack.c.l.b16 %v247
      %v612 = vunpack.c.h.b16 %v247
      %v613 = vunpack.c.l.b16 %v248
      %v614 = vunpack.c.h.b16 %v248
      %v615 = vunpack.c.l.b16 %v249
      %v616 = vunpack.c.h.b16 %v249
      %v617 = vunpack.c.l.b16 %v250
      %v618 = vunpack.c.h.b16 %v250
      %v619 = vunpack.c.l.b16 %v251
      %v620 = vunpack.c.h.b16 %v251
      %v621 = vunpack.c.l.b16 %v252
      %v622 = vunpack.c.h.b16 %v252
      %v623 = vunpack.c.l.b16 %v253
      %v624 = vunpack.c.h.b16 %v253
      %v625 = vunpack.c.l.b16 %v254
      %v626 = vunpack.c.h.b16 %v254
      %v627 = vunpack.c.l.b16 %v255
      %v628 = vunpack.c.h.b16 %v255
      %v629 = vunpack.c.l.b16 %v256
      %v630 = vunpack.c.h.b16 %v256
      %v631 = vunpack.c.l.b16 %v257
      %v632 = vunpack.c.h.b16 %v257
      %v633 = vunpack.c.l.b16 %v258
      %v634 = vunpack.c.h.b16 %v258
      %v635 = vunpack.c.l.b16 %v259
      %v636 = vunpack.c.h.b16 %v259
      %v637 = vunpack.c.l.b16 %v260
      %v638 = vunpack.c.h.b16 %v260
      %v639 = vunpack.c.l.b16 %v261
      %v640 = vunpack.c.h.b16 %v261
      %v641 = vunpack.c.l.b16 %v262
      %v642 = vunpack.c.h.b16 %v262
      %v643 = vunpack.c.l.b16 %v263
      %v644 = vunpack.c.h.b16 %v263
      %v645 = vunpack.c.l.b16 %v264
      %v646 = vunpack.c.h.b16 %v264
      %v647 = vunpack.c.l.b16 %v265
      %v648 = vunpack.c.h.b16 %v265
      %v649 = vunpack.c.l.b16 %v266
      %v650 = vunpack.c.h.b16 %v266
      %v651 = vunpack.c.l.b16 %v267
      %v652 = vunpack.c.h.b16 %v267
      %v653 = vunpack.c.l.b16 %v268
      %v654 = vunpack.c.h.b16 %v268
      %v655 = vunpack.c.l.b16 %v269
      %v656 = vunpack.c.h.b16 %v269
      %v657 = vunpack.c.l.b16 %v270
      %v658 = vunpack.c.h.b16 %v270
      %v659 = vunpack.c.l.b16 %v271
      %v660 = vunpack.c.h.b16 %v271
      %v661 = vunpack.c.l.b16 %v272
      %v662 = vunpack.c.h.b16 %v272
      %v663 = vunpack.c.l.b16 %v273
      %v664 = vunpack.c.h.b16 %v273
      %v665 = vunpack.c.l.b16 %v274
      %v666 = vunpack.c.h.b16 %v274
      %v667 = vunpack.c.l.b16 %v275
      %v668 = vunpack.c.h.b16 %v275
      %v669 = vunpack.c.l.b16 %v276
      %v670 = vunpack.c.h.b16 %v276
      %v671 = vunpack.c.l.b16 %v277
      %v672 = vunpack.c.h.b16 %v277
      %v673 = vunpack.c.l.b16 %v278
      %v674 = vunpack.c.h.b16 %v278
      %v675 = vunpack.c.l.b16 %v279
      %v676 = vunpack.c.h.b16 %v279
      %v677 = vunpack.c.l.b16 %v280
      %v678 = vunpack.c.h.b16 %v280
      %v679 = vunpack.c.l.b16 %v281
      %v680 = vunpack.c.h.b16 %v281
      %v681 = vunpack.c.l.b16 %v282
      %v682 = vunpack.c.h.b16 %v282
      %v683 = vunpack.c.l.b16 %v283
      %v684 = vunpack.c.h.b16 %v283
      %v685 = vunpack.c.l.b16 %v284
      %v686 = vunpack.c.h.b16 %v284
      %v687 = vunpack.c.l.b16 %v285
      %v688 = vunpack.c.h.b16 %v285
      %v689 = vunpack.c.l.b16 %v286
      %v690 = vunpack.c.h.b16 %v286
      %v691 = vunpack.c.l.b16 %v287
      %v692 = vunpack.c.h.b16 %v287
      %v693 = vunpack.c.l.b16 %v288
      %v694 = vunpack.c.h.b16 %v288
      %v695 = vunpack.c.l.b16 %v289
      %v696 = vunpack.c.h.b16 %v289
      %v697 = vunpack.c.l.b16 %v290
      %v698 = vunpack.c.h.b16 %v290
      %v699 = vunpack.c.l.b16 %v291
      %v700 = vunpack.c.h.b16 %v291
      %v701 = vunpack.c.l.b16 %v292
      %v702 = vunpack.c.h.b16 %v292
      %v703 = vunpack.c.l.b16 %v293
      %v704 = vunpack.c.h.b16 %v293
      %v705 = vunpack.c.l.b16 %v294
      %v706 = vunpack.c.h.b16 %v294
      %v707 = vunpack.c.l.b16 %v295
      %v708 = vunpack.c.h.b16 %v295
      %v709 = vunpack.c.l.b16 %v296
      %v710 = vunpack.c.h.b16 %v296
      %v711 = vunpack.c.l.b16 %v297
      %v712 = vunpack.c.h.b16 %v297
      %v713 = vunpack.c.l.b16 %v298
      %v714 = vunpack.c.h.b16 %v298
      %v715 = vunpack.c.l.b16 %v299
      %v716 = vunpack.c.h.b16 %v299
      %v717 = vunpack.c.l.b16 %v300
      %v718 = vunpack.c.h.b16 %v300
      %v719 = vunpack.c.l.b16 %v301
      %v720 = vunpack.c.h.b16 %v301
      %v721 = vunpack.c.l.b16 %v302
      %v722 = vunpack.c.h.b16 %v302
      %v723 = vunpack.c.l.b16 %v303
      %v724 = vunpack.c.h.b16 %v303
      %v725 = vunpack.c.l.b16 %v304
      %v726 = vunpack.c.h.b16 %v304
      %v727 = vunpack.c.l.b16 %v305
      %v728 = vunpack.c.h.b16 %v305
      %v729 = vpack.c.b16 %v475, %v473
      %v730 = vpack.c.b16 %v476, %v474
      %v731 = vpack.c.b16 %v479, %v477
      %v732 = vpack.c.b16 %v480, %v478
      %v733 = vpack.c.b16 %v483, %v481
      %v734 = vpack.c.b16 %v484, %v482
      %v735 = vpack.c.b16 %v487, %v485
      %v736 = vpack.c.b16 %v488, %v486
      %v737 = vpack.c.b16 %v491, %v489
      %v738 = vpack.c.b16 %v492, %v490
      %v739 = vpack.c.b16 %v495, %v493
      %v740 = vpack.c.b16 %v496, %v494
      %v741 = vpack.c.b16 %v499, %v497
      %v742 = vpack.c.b16 %v500, %v498
      %v743 = vpack.c.b16 %v503, %v501
      %v744 = vpack.c.b16 %v504, %v502
      %v745 = vpack.c.b16 %v507, %v505
      %v746 = vpack.c.b16 %v508, %v506
      %v747 = vpack.c.b16 %v511, %v509
      %v748 = vpack.c.b16 %v512, %v510
      %v749 = vpack.c.b16 %v515, %v513
      %v750 = vpack.c.b16 %v516, %v514
      %v751 = vpack.c.b16 %v519, %v517
      %v752 = vpack.c.b16 %v520, %v518
      %v753 = vpack.c.b16 %v523, %v521
      %v754 = vpack.c.b16 %v524, %v522
      %v755 = vpack.c.b16 %v527, %v525
      %v756 = vpack.c.b16 %v528, %v526
      %v757 = vpack.c.b16 %v531, %v529
      %v758 = vpack.c.b16 %v532, %v530
      %v759 = vpack.c.b16 %v535, %v533
      %v760 = vpack.c.b16 %v536, %v534
      %v761 = vpack.c.b16 %v539, %v537
      %v762 = vpack.c.b16 %v540, %v538
      %v763 = vpack.c.b16 %v543, %v541
      %v764 = vpack.c.b16 %v544, %v542
      %v765 = vpack.c.b16 %v547, %v545
      %v766 = vpack.c.b16 %v548, %v546
      %v767 = vpack.c.b16 %v551, %v549
      %v768 = vpack.c.b16 %v552, %v550
      %v769 = vpack.c.b16 %v555, %v553
      %v770 = vpack.c.b16 %v556, %v554
      %v771 = vpack.c.b16 %v559, %v557
      %v772 = vpack.c.b16 %v560, %v558
      %v773 = vpack.c.b16 %v563, %v561
      %v774 = vpack.c.b16 %v564, %v562
      %v775 = vpack.c.b16 %v567, %v565
      %v776 = vpack.c.b16 %v568, %v566
      %v777 = vpack.c.b16 %v571, %v569
      %v778 = vpack.c.b16 %v572, %v570
      %v779 = vpack.c.b16 %v575, %v573
      %v780 = vpack.c.b16 %v576, %v574
      %v781 = vpack.c.b16 %v579, %v577
      %v782 = vpack.c.b16 %v580, %v578
      %v783 = vpack.c.b16 %v583, %v581
      %v784 = vpack.c.b16 %v584, %v582
      %v785 = vpack.c.b16 %v587, %v585
      %v786 = vpack.c.b16 %v588, %v586
      %v787 = vpack.c.b16 %v591, %v589
      %v788 = vpack.c.b16 %v592, %v590
      %v789 = vpack.c.b16 %v595, %v593
      %v790 = vpack.c.b16 %v596, %v594
      %v791 = vpack.c.b16 %v599, %v597
      %v792 = vpack.c.b16 %v600, %v598
      %v793 = vpack.c.b16 %v603, %v601
      %v794 = vpack.c.b16 %v604, %v602
      %v795 = vpack.c.b16 %v607, %v605
      %v796 = vpack.c.b16 %v608, %v606
      %v797 = vpack.c.b16 %v611, %v609
      %v798 = vpack.c.b16 %v612, %v610
      %v799 = vpack.c.b16 %v615, %v613
      %v800 = vpack.c.b16 %v616, %v614
      %v801 = vpack.c.b16 %v619, %v617
      %v802 = vpack.c.b16 %v620, %v618
      %v803 = vpack.c.b16 %v623, %v621
      %v804 = vpack.c.b16 %v624, %v622
      %v805 = vpack.c.b16 %v627, %v625
      %v806 = vpack.c.b16 %v628, %v626
      %v807 = vpack.c.b16 %v631, %v629
      %v808 = vpack.c.b16 %v632, %v630
      %v809 = vpack.c.b16 %v635, %v633
      %v810 = vpack.c.b16 %v636, %v634
      %v811 = vpack.c.b16 %v639, %v637
      %v812 = vpack.c.b16 %v640, %v638
      %v813 = vpack.c.b16 %v643, %v641
      %v814 = vpack.c.b16 %v644, %v642
      %v815 = vpack.c.b16 %v647, %v645
      %v816 = vpack.c.b16 %v648, %v646
      %v817 = vpack.c.b16 %v651, %v649
      %v818 = vpack.c.b16 %v652, %v650
      %v819 = vpack.c.b16 %v655, %v653
      %v820 = vpack.c.b16 %v656, %v654
      %v821 = vpack.c.b16 %v659, %v657
      %v822 = vpack.c.b16 %v660, %v658
      %v823 = vpack.c.b16 %v663, %v661
      %v824 = vpack.c.b16 %v664, %v662
      %v825 = vpack.c.b16 %v667, %v665
      %v826 = vpack.c.b16 %v668, %v666
      %v827 = vpack.c.b16 %v671, %v669
      %v828 = vpack.c.b16 %v672, %v670
      %v829 = vpack.c.b16 %v675, %v673
      %v830 = vpack.c.b16 %v676, %v674
      %v831 = vpack.c.b16 %v679, %v677
      %v832 = vpack.c.b16 %v680, %v678
      %v833 = vpack.c.b16 %v683, %v681
      %v834 = vpack.c.b16 %v684, %v682
      %v835 = vpack.c.b16 %v687, %v685
      %v836 = vpack.c.b16 %v688, %v686
      %v837 = vpack.c.b16 %v691, %v689
      %v838 = vpack.c.b16 %v692, %v690
      %v839 = vpack.c.b16 %v695, %v693
      %v840 = vpack.c.b16 %v696, %v694
      %v841 = vpack.c.b16 %v699, %v697
      %v842 = vpack.c.b16 %v700, %v698
      %v843 = vpack.c.b16 %v703, %v701
      %v844 = vpack.c.b16 %v704, %v702
      %v845 = vpack.c.b16 %v707, %v705
      %v846 = vpack.c.b16 %v708, %v706
      %v847 = vpack.c.b16 %v711, %v709
      %v848 = vpack.c.b16 %v712, %v710
      %v849 = vpack.c.b16 %v715, %v713
      %v850 = vpack.c.b16 %v716, %v714
      %v851 = vpack.c.b16 %v719, %v717
      %v852 = vpack.c.b16 %v720, %v718
      %v853 = vpack.c.b16 %v723, %v721
      %v854 = vpack.c.b16 %v724, %v722
      %v855 = vpack.c.b16 %v727, %v725
      %v856 = vpack.c.b16 %v728, %v726
      %v1017 = vunpack.c.l.b16 %v306
      %v1018 = vunpack.c.l.b16 %v307
      %v1019 = vunpack.c.l.b16 %v308
      %v1020 = vunpack.c.l.b16 %v309
      %v1021 = vunpack.c.l.b16 %v310
      %v1022 = vunpack.c.l.b16 %v311
      %v1023 = vunpack.c.l.b16 %v312
      %v1024 = vunpack.c.l.b16 %v313
      %v1025 = vunpack.c.l.b16 %v314
      %v1026 = vunpack.c.l.b16 %v315
      %v1027 = vunpack.c.l.b16 %v316
      %v1028 = vunpack.c.l.b16 %v317
      %v1029 = vunpack.c.l.b16 %v318
      %v1030 = vunpack.c.l.b16 %v319
      %v1031 = vunpack.c.l.b16 %v320
      %v1032 = vunpack.c.l.b16 %v321
      %v1033 = vunpack.c.l.b16 %v322
      %v1034 = vunpack.c.l.b16 %v323
      %v1035 = vunpack.c.l.b16 %v324
      %v1036 = vunpack.c.l.b16 %v325
      %v1037 = vunpack.c.l.b16 %v326
      %v1038 = vunpack.c.l.b16 %v327
      %v1039 = vunpack.c.l.b16 %v328
      %v1040 = vunpack.c.l.b16 %v329
      %v1041 = vunpack.c.l.b16 %v330
      %v1042 = vunpack.c.l.b16 %v331
      %v1043 = vunpack.c.l.b16 %v332
      %v1044 = vunpack.c.l.b16 %v333
      %v1045 = vunpack.c.l.b16 %v334
      %v1046 = vunpack.c.l.b16 %v335
      %v1047 = vunpack.c.l.b16 %v336
      %v1048 = vunpack.c.l.b16 %v337
      %v1049 = vpack.c.b16 %v1018, %v1017
      %v1050 = vpack.c.b16 %v1020, %v1019
      %v1051 = vpack.c.b16 %v1022, %v1021
      %v1052 = vpack.c.b16 %v1024, %v1023
      %v1053 = vpack.c.b16 %v1026, %v1025
      %v1054 = vpack.c.b16 %v1028, %v1027
      %v1055 = vpack.c.b16 %v1030, %v1029
      %v1056 = vpack.c.b16 %v1032, %v1031
      %v1057 = vpack.c.b16 %v1034, %v1033
      %v1058 = vpack.c.b16 %v1036, %v1035
      %v1059 = vpack.c.b16 %v1038, %v1037
      %v1060 = vpack.c.b16 %v1040, %v1039
      %v1061 = vpack.c.b16 %v1042, %v1041
      %v1062 = vpack.c.b16 %v1044, %v1043
      %v1063 = vpack.c.b16 %v1046, %v1045
      %v1064 = vpack.c.b16 %v1048, %v1047
      %1081 = vmatprep.subr.bf16.mxu0 0
      %1082 = vmatpush1.bf16.msra.mxu0 %v1049
      %1083 = vmatprep.subr.bf16.mxu0 0
      %1084 = vmatpush1.bf16.msra.mxu0 %v1050
      %1085 = vmatprep.subr.bf16.mxu0 0
      %1086 = vmatpush1.bf16.msra.mxu0 %v1051
      %1087 = vmatprep.subr.bf16.mxu0 0
      %1088 = vmatpush1.bf16.msra.mxu0 %v1052
      %1089 = vmatprep.subr.bf16.mxu0 0
      %1090 = vmatpush1.bf16.msra.mxu0 %v1053
      %1091 = vmatprep.subr.bf16.mxu0 0
      %1092 = vmatpush1.bf16.msra.mxu0 %v1054
      %1093 = vmatprep.subr.bf16.mxu0 0
      %1094 = vmatpush1.bf16.msra.mxu0 %v1055
      %1095 = vmatprep.subr.bf16.mxu0 0
      %1096 = vmatpush1.bf16.msra.mxu0 %v1056
      %1097 = vmatprep.subr.bf16.mxu0 0
      %1098 = vmatpush1.bf16.msra.mxu0 %v1057
      %1099 = vmatprep.subr.bf16.mxu0 0
      %1100 = vmatpush1.bf16.msra.mxu0 %v1058
      %1101 = vmatprep.subr.bf16.mxu0 0
      %1102 = vmatpush1.bf16.msra.mxu0 %v1059
      %1103 = vmatprep.subr.bf16.mxu0 0
      %1104 = vmatpush1.bf16.msra.mxu0 %v1060
      %1105 = vmatprep.subr.bf16.mxu0 0
      %1106 = vmatpush1.bf16.msra.mxu0 %v1061
      %1107 = vmatprep.subr.bf16.mxu0 0
      %1108 = vmatpush1.bf16.msra.mxu0 %v1062
      %1109 = vmatprep.subr.bf16.mxu0 0
      %1110 = vmatpush1.bf16.msra.mxu0 %v1063
      %1111 = vmatprep.subr.bf16.mxu0 0
      %1112 = vmatpush1.bf16.msra.mxu0 %v1064
      %1113 = vmatprep.mubr.bf16.mxu0 %v730
      %1114 = vmatmul.mubr.bf16.gmra.mrb[0].mxu0 %v729
      %v1115 = vpop.f32.mrb[0].mxu0
      %v1116 = vadd.f32 %v343, %v1115
      %v1117 = vpop.f32.mrb[0].mxu0
      %v1118 = vpop.f32.mrb[0].mxu0
      %v1119 = vadd.f32 %v343, %v1118
      %v1120 = vpop.f32.mrb[0].mxu0
      %1121 = vmatprep.mubr.bf16.mxu0 %v732
      %1122 = vmatmul.mubr.bf16.gmra.mrb[0].mxu0 %v731
      %v1123 = vpop.f32.mrb[0].mxu0
      %v1124 = vadd.f32 %v343, %v1123
      %v1125 = vpop.f32.mrb[0].mxu0
      %v1126 = vpop.f32.mrb[0].mxu0
      %v1127 = vadd.f32 %v343, %v1126
      %v1128 = vpop.f32.mrb[0].mxu0
      %1129 = vmatprep.mubr.bf16.mxu0 %v734
      %1130 = vmatmul.mubr.bf16.gmra.mrb[0].mxu0 %v733
      %v1131 = vpop.f32.mrb[0].mxu0
      %v1132 = vadd.f32 %v343, %v1131
      %v1133 = vpop.f32.mrb[0].mxu0
      %v1134 = vpop.f32.mrb[0].mxu0
      %v1135 = vadd.f32 %v343, %v1134
      %v1136 = vpop.f32.mrb[0].mxu0
      %1137 = vmatprep.mubr.bf16.mxu0 %v736
      %1138 = vmatmul.mubr.bf16.gmra.mrb[0].mxu0 %v735
      %v1139 = vpop.f32.mrb[0].mxu0
      %v1140 = vadd.f32 %v343, %v1139
      %v1141 = vpop.f32.mrb[0].mxu0
      %v1142 = vpop.f32.mrb[0].mxu0
      %v1143 = vadd.f32 %v343, %v1142
      %v1144 = vpop.f32.mrb[0].mxu0
      %1145 = vmatprep.mubr.bf16.mxu0 %v738
      %1146 = vmatmul.mubr.bf16.gmra.mrb[0].mxu0 %v737
      %v1147 = vpop.f32.mrb[0].mxu0
      %v1148 = vadd.f32 %v343, %v1147
      %v1149 = vpop.f32.mrb[0].mxu0
      %v1150 = vpop.f32.mrb[0].mxu0
      %v1151 = vadd.f32 %v343, %v1150
      %v1152 = vpop.f32.mrb[0].mxu0
      %1153 = vmatprep.mubr.bf16.mxu0 %v740
      %1154 = vmatmul.mubr.bf16.gmra.mrb[0].mxu0 %v739
      %v1155 = vpop.f32.mrb[0].mxu0
      %v1156 = vadd.f32 %v343, %v1155
      %v1157 = vpop.f32.mrb[0].mxu0
      %v1158 = vpop.f32.mrb[0].mxu0
      %v1159 = vadd.f32 %v343, %v1158
      %v1160 = vpop.f32.mrb[0].mxu0
      %1161 = vmatprep.mubr.bf16.mxu0 %v742
      %1162 = vmatmul.mubr.bf16.gmra.mrb[0].mxu0 %v741
      %v1163 = vpop.f32.mrb[0].mxu0
      %v1164 = vadd.f32 %v343, %v1163
      %v1165 = vpop.f32.mrb[0].mxu0
      %v1166 = vpop.f32.mrb[0].mxu0
      %v1167 = vadd.f32 %v343, %v1166
      %v1168 = vpop.f32.mrb[0].mxu0
      %1169 = vmatprep.mubr.bf16.mxu0 %v744
      %1170 = vmatmul.mubr.bf16.gmra.mrb[0].mxu0 %v743
      %v1171 = vpop.f32.mrb[0].mxu0
      %v1172 = vadd.f32 %v343, %v1171
      %v1173 = vpop.f32.mrb[0].mxu0
      %v1174 = vpop.f32.mrb[0].mxu0
      %v1175 = vadd.f32 %v343, %v1174
      %v1176 = vpop.f32.mrb[0].mxu0
      %1177 = vmatprep.mubr.bf16.mxu0 %v746
      %1178 = vmatmul.mubr.bf16.gmra.mrb[0].mxu0 %v745
      %v1179 = vpop.f32.mrb[0].mxu0
      %v1180 = vadd.f32 %v343, %v1179
      %v1181 = vpop.f32.mrb[0].mxu0
      %v1182 = vpop.f32.mrb[0].mxu0
      %v1183 = vadd.f32 %v343, %v1182
      %v1184 = vpop.f32.mrb[0].mxu0
      %1185 = vmatprep.mubr.bf16.mxu0 %v748
      %1186 = vmatmul.mubr.bf16.gmra.mrb[0].mxu0 %v747
      %v1187 = vpop.f32.mrb[0].mxu0
      %v1188 = vadd.f32 %v343, %v1187
      %v1189 = vpop.f32.mrb[0].mxu0
      %v1190 = vpop.f32.mrb[0].mxu0
      %v1191 = vadd.f32 %v343, %v1190
      %v1192 = vpop.f32.mrb[0].mxu0
      %1193 = vmatprep.mubr.bf16.mxu0 %v750
      %1194 = vmatmul.mubr.bf16.gmra.mrb[0].mxu0 %v749
      %v1195 = vpop.f32.mrb[0].mxu0
      %v1196 = vadd.f32 %v343, %v1195
      %v1197 = vpop.f32.mrb[0].mxu0
      %v1198 = vpop.f32.mrb[0].mxu0
      %v1199 = vadd.f32 %v343, %v1198
      %v1200 = vpop.f32.mrb[0].mxu0
      %1201 = vmatprep.mubr.bf16.mxu0 %v752
      %1202 = vmatmul.mubr.bf16.gmra.mrb[0].mxu0 %v751
      %v1203 = vpop.f32.mrb[0].mxu0
      %v1204 = vadd.f32 %v343, %v1203
      %v1205 = vpop.f32.mrb[0].mxu0
      %v1206 = vpop.f32.mrb[0].mxu0
      %v1207 = vadd.f32 %v343, %v1206
      %v1208 = vpop.f32.mrb[0].mxu0
      %1209 = vmatprep.mubr.bf16.mxu0 %v754
      %1210 = vmatmul.mubr.bf16.gmra.mrb[0].mxu0 %v753
      %v1211 = vpop.f32.mrb[0].mxu0
      %v1212 = vadd.f32 %v343, %v1211
      %v1213 = vpop.f32.mrb[0].mxu0
      %v1214 = vpop.f32.mrb[0].mxu0
      %v1215 = vadd.f32 %v343, %v1214
      %v1216 = vpop.f32.mrb[0].mxu0
      %1217 = vmatprep.mubr.bf16.mxu0 %v756
      %1218 = vmatmul.mubr.bf16.gmra.mrb[0].mxu0 %v755
      %v1219 = vpop.f32.mrb[0].mxu0
      %v1220 = vadd.f32 %v343, %v1219
      %v1221 = vpop.f32.mrb[0].mxu0
      %v1222 = vpop.f32.mrb[0].mxu0
      %v1223 = vadd.f32 %v343, %v1222
      %v1224 = vpop.f32.mrb[0].mxu0
      %1225 = vmatprep.mubr.bf16.mxu0 %v758
      %1226 = vmatmul.mubr.bf16.gmra.mrb[0].mxu0 %v757
      %v1227 = vpop.f32.mrb[0].mxu0
      %v1228 = vadd.f32 %v343, %v1227
      %v1229 = vpop.f32.mrb[0].mxu0
      %v1230 = vpop.f32.mrb[0].mxu0
      %v1231 = vadd.f32 %v343, %v1230
      %v1232 = vpop.f32.mrb[0].mxu0
      %1233 = vmatprep.mubr.bf16.mxu0 %v760
      %1234 = vmatmul.mubr.bf16.gmra.mrb[0].mxu0 %v759
      %v1235 = vpop.f32.mrb[0].mxu0
      %v1236 = vadd.f32 %v343, %v1235
      %v1237 = vpop.f32.mrb[0].mxu0
      %v1238 = vpop.f32.mrb[0].mxu0
      %v1239 = vadd.f32 %v343, %v1238
      %v1240 = vpop.f32.mrb[0].mxu0
      %1241 = vmatprep.mubr.bf16.mxu0 %v762
      %1242 = vmatmul.mubr.bf16.gmra.mrb[0].mxu0 %v761
      %v1243 = vpop.f32.mrb[0].mxu0
      %v1244 = vadd.f32 %v343, %v1243
      %v1245 = vpop.f32.mrb[0].mxu0
      %v1246 = vpop.f32.mrb[0].mxu0
      %v1247 = vadd.f32 %v343, %v1246
      %v1248 = vpop.f32.mrb[0].mxu0
      %1249 = vmatprep.mubr.bf16.mxu0 %v764
      %1250 = vmatmul.mubr.bf16.gmra.mrb[0].mxu0 %v763
      %v1251 = vpop.f32.mrb[0].mxu0
      %v1252 = vadd.f32 %v343, %v1251
      %v1253 = vpop.f32.mrb[0].mxu0
      %v1254 = vpop.f32.mrb[0].mxu0
      %v1255 = vadd.f32 %v343, %v1254
      %v1256 = vpop.f32.mrb[0].mxu0
      %1257 = vmatprep.mubr.bf16.mxu0 %v766
      %1258 = vmatmul.mubr.bf16.gmra.mrb[0].mxu0 %v765
      %v1259 = vpop.f32.mrb[0].mxu0
      %v1260 = vadd.f32 %v343, %v1259
      %v1261 = vpop.f32.mrb[0].mxu0
      %v1262 = vpop.f32.mrb[0].mxu0
      %v1263 = vadd.f32 %v343, %v1262
      %v1264 = vpop.f32.mrb[0].mxu0
      %1265 = vmatprep.mubr.bf16.mxu0 %v768
      %1266 = vmatmul.mubr.bf16.gmra.mrb[0].mxu0 %v767
      %v1267 = vpop.f32.mrb[0].mxu0
      %v1268 = vadd.f32 %v343, %v1267
      %v1269 = vpop.f32.mrb[0].mxu0
      %v1270 = vpop.f32.mrb[0].mxu0
      %v1271 = vadd.f32 %v343, %v1270
      %v1272 = vpop.f32.mrb[0].mxu0
      %1273 = vmatprep.mubr.bf16.mxu0 %v770
      %1274 = vmatmul.mubr.bf16.gmra.mrb[0].mxu0 %v769
      %v1275 = vpop.f32.mrb[0].mxu0
      %v1276 = vadd.f32 %v343, %v1275
      %v1277 = vpop.f32.mrb[0].mxu0
      %v1278 = vpop.f32.mrb[0].mxu0
      %v1279 = vadd.f32 %v343, %v1278
      %v1280 = vpop.f32.mrb[0].mxu0
      %1281 = vmatprep.mubr.bf16.mxu0 %v772
      %1282 = vmatmul.mubr.bf16.gmra.mrb[0].mxu0 %v771
      %v1283 = vpop.f32.mrb[0].mxu0
      %v1284 = vadd.f32 %v343, %v1283
      %v1285 = vpop.f32.mrb[0].mxu0
      %v1286 = vpop.f32.mrb[0].mxu0
      %v1287 = vadd.f32 %v343, %v1286
      %v1288 = vpop.f32.mrb[0].mxu0
      %1289 = vmatprep.mubr.bf16.mxu0 %v774
      %1290 = vmatmul.mubr.bf16.gmra.mrb[0].mxu0 %v773
      %v1291 = vpop.f32.mrb[0].mxu0
      %v1292 = vadd.f32 %v343, %v1291
      %v1293 = vpop.f32.mrb[0].mxu0
      %v1294 = vpop.f32.mrb[0].mxu0
      %v1295 = vadd.f32 %v343, %v1294
      %v1296 = vpop.f32.mrb[0].mxu0
      %1297 = vmatprep.mubr.bf16.mxu0 %v776
      %1298 = vmatmul.mubr.bf16.gmra.mrb[0].mxu0 %v775
      %v1299 = vpop.f32.mrb[0].mxu0
      %v1300 = vadd.f32 %v343, %v1299
      %v1301 = vpop.f32.mrb[0].mxu0
      %v1302 = vpop.f32.mrb[0].mxu0
      %v1303 = vadd.f32 %v343, %v1302
      %v1304 = vpop.f32.mrb[0].mxu0
      %1305 = vmatprep.mubr.bf16.mxu0 %v778
      %1306 = vmatmul.mubr.bf16.gmra.mrb[0].mxu0 %v777
      %v1307 = vpop.f32.mrb[0].mxu0
      %v1308 = vadd.f32 %v343, %v1307
      %v1309 = vpop.f32.mrb[0].mxu0
      %v1310 = vpop.f32.mrb[0].mxu0
      %v1311 = vadd.f32 %v343, %v1310
      %v1312 = vpop.f32.mrb[0].mxu0
      %1313 = vmatprep.mubr.bf16.mxu0 %v780
      %1314 = vmatmul.mubr.bf16.gmra.mrb[0].mxu0 %v779
      %v1315 = vpop.f32.mrb[0].mxu0
      %v1316 = vadd.f32 %v343, %v1315
      %v1317 = vpop.f32.mrb[0].mxu0
      %v1318 = vpop.f32.mrb[0].mxu0
      %v1319 = vadd.f32 %v343, %v1318
      %v1320 = vpop.f32.mrb[0].mxu0
      %1321 = vmatprep.mubr.bf16.mxu0 %v782
      %1322 = vmatmul.mubr.bf16.gmra.mrb[0].mxu0 %v781
      %v1323 = vpop.f32.mrb[0].mxu0
      %v1324 = vadd.f32 %v343, %v1323
      %v1325 = vpop.f32.mrb[0].mxu0
      %v1326 = vpop.f32.mrb[0].mxu0
      %v1327 = vadd.f32 %v343, %v1326
      %v1328 = vpop.f32.mrb[0].mxu0
      %1329 = vmatprep.mubr.bf16.mxu0 %v784
      %1330 = vmatmul.mubr.bf16.gmra.mrb[0].mxu0 %v783
      %v1331 = vpop.f32.mrb[0].mxu0
      %v1332 = vadd.f32 %v343, %v1331
      %v1333 = vpop.f32.mrb[0].mxu0
      %v1334 = vpop.f32.mrb[0].mxu0
      %v1335 = vadd.f32 %v343, %v1334
      %v1336 = vpop.f32.mrb[0].mxu0
      %1337 = vmatprep.mubr.bf16.mxu0 %v786
      %1338 = vmatmul.mubr.bf16.gmra.mrb[0].mxu0 %v785
      %v1339 = vpop.f32.mrb[0].mxu0
      %v1340 = vadd.f32 %v343, %v1339
      %v1341 = vpop.f32.mrb[0].mxu0
      %v1342 = vpop.f32.mrb[0].mxu0
      %v1343 = vadd.f32 %v343, %v1342
      %v1344 = vpop.f32.mrb[0].mxu0
      %1345 = vmatprep.mubr.bf16.mxu0 %v788
      %1346 = vmatmul.mubr.bf16.gmra.mrb[0].mxu0 %v787
      %v1347 = vpop.f32.mrb[0].mxu0
      %v1348 = vadd.f32 %v343, %v1347
      %v1349 = vpop.f32.mrb[0].mxu0
      %v1350 = vpop.f32.mrb[0].mxu0
      %v1351 = vadd.f32 %v343, %v1350
      %v1352 = vpop.f32.mrb[0].mxu0
      %1353 = vmatprep.mubr.bf16.mxu0 %v790
      %1354 = vmatmul.mubr.bf16.gmra.mrb[0].mxu0 %v789
      %v1355 = vpop.f32.mrb[0].mxu0
      %v1356 = vadd.f32 %v343, %v1355
      %v1357 = vpop.f32.mrb[0].mxu0
      %v1358 = vpop.f32.mrb[0].mxu0
      %v1359 = vadd.f32 %v343, %v1358
      %v1360 = vpop.f32.mrb[0].mxu0
      %1361 = vmatprep.mubr.bf16.mxu0 %v792
      %1362 = vmatmul.mubr.bf16.gmra.mrb[0].mxu0 %v791
      %v1363 = vpop.f32.mrb[0].mxu0
      %v1364 = vadd.f32 %v343, %v1363
      %v1365 = vpop.f32.mrb[0].mxu0
      %v1366 = vpop.f32.mrb[0].mxu0
      %v1367 = vadd.f32 %v343, %v1366
      %v1368 = vpop.f32.mrb[0].mxu0
      %1369 = vmatprep.mubr.bf16.mxu0 %v794
      %1370 = vmatmul.mubr.bf16.gmra.mrb[0].mxu0 %v793
      %v1371 = vpop.f32.mrb[0].mxu0
      %v1372 = vadd.f32 %v343, %v1371
      %v1373 = vpop.f32.mrb[0].mxu0
      %v1374 = vpop.f32.mrb[0].mxu0
      %v1375 = vadd.f32 %v343, %v1374
      %v1376 = vpop.f32.mrb[0].mxu0
      %1377 = vmatprep.mubr.bf16.mxu0 %v796
      %1378 = vmatmul.mubr.bf16.gmra.mrb[0].mxu0 %v795
      %v1379 = vpop.f32.mrb[0].mxu0
      %v1380 = vadd.f32 %v343, %v1379
      %v1381 = vpop.f32.mrb[0].mxu0
      %v1382 = vpop.f32.mrb[0].mxu0
      %v1383 = vadd.f32 %v343, %v1382
      %v1384 = vpop.f32.mrb[0].mxu0
      %1385 = vmatprep.mubr.bf16.mxu0 %v798
      %1386 = vmatmul.mubr.bf16.gmra.mrb[0].mxu0 %v797
      %v1387 = vpop.f32.mrb[0].mxu0
      %v1388 = vadd.f32 %v343, %v1387
      %v1389 = vpop.f32.mrb[0].mxu0
      %v1390 = vpop.f32.mrb[0].mxu0
      %v1391 = vadd.f32 %v343, %v1390
      %v1392 = vpop.f32.mrb[0].mxu0
      %1393 = vmatprep.mubr.bf16.mxu0 %v800
      %1394 = vmatmul.mubr.bf16.gmra.mrb[0].mxu0 %v799
      %v1395 = vpop.f32.mrb[0].mxu0
      %v1396 = vadd.f32 %v343, %v1395
      %v1397 = vpop.f32.mrb[0].mxu0
      %v1398 = vpop.f32.mrb[0].mxu0
      %v1399 = vadd.f32 %v343, %v1398
      %v1400 = vpop.f32.mrb[0].mxu0
      %1401 = vmatprep.mubr.bf16.mxu0 %v802
      %1402 = vmatmul.mubr.bf16.gmra.mrb[0].mxu0 %v801
      %v1403 = vpop.f32.mrb[0].mxu0
      %v1404 = vadd.f32 %v343, %v1403
      %v1405 = vpop.f32.mrb[0].mxu0
      %v1406 = vpop.f32.mrb[0].mxu0
      %v1407 = vadd.f32 %v343, %v1406
      %v1408 = vpop.f32.mrb[0].mxu0
      %1409 = vmatprep.mubr.bf16.mxu0 %v804
      %1410 = vmatmul.mubr.bf16.gmra.mrb[0].mxu0 %v803
      %v1411 = vpop.f32.mrb[0].mxu0
      %v1412 = vadd.f32 %v343, %v1411
      %v1413 = vpop.f32.mrb[0].mxu0
      %v1414 = vpop.f32.mrb[0].mxu0
      %v1415 = vadd.f32 %v343, %v1414
      %v1416 = vpop.f32.mrb[0].mxu0
      %1417 = vmatprep.mubr.bf16.mxu0 %v806
      %1418 = vmatmul.mubr.bf16.gmra.mrb[0].mxu0 %v805
      %v1419 = vpop.f32.mrb[0].mxu0
      %v1420 = vadd.f32 %v343, %v1419
      %v1421 = vpop.f32.mrb[0].mxu0
      %v1422 = vpop.f32.mrb[0].mxu0
      %v1423 = vadd.f32 %v343, %v1422
      %v1424 = vpop.f32.mrb[0].mxu0
      %1425 = vmatprep.mubr.bf16.mxu0 %v808
      %1426 = vmatmul.mubr.bf16.gmra.mrb[0].mxu0 %v807
      %v1427 = vpop.f32.mrb[0].mxu0
      %v1428 = vadd.f32 %v343, %v1427
      %v1429 = vpop.f32.mrb[0].mxu0
      %v1430 = vpop.f32.mrb[0].mxu0
      %v1431 = vadd.f32 %v343, %v1430
      %v1432 = vpop.f32.mrb[0].mxu0
      %1433 = vmatprep.mubr.bf16.mxu0 %v810
      %1434 = vmatmul.mubr.bf16.gmra.mrb[0].mxu0 %v809
      %v1435 = vpop.f32.mrb[0].mxu0
      %v1436 = vadd.f32 %v343, %v1435
      %v1437 = vpop.f32.mrb[0].mxu0
      %v1438 = vpop.f32.mrb[0].mxu0
      %v1439 = vadd.f32 %v343, %v1438
      %v1440 = vpop.f32.mrb[0].mxu0
      %1441 = vmatprep.mubr.bf16.mxu0 %v812
      %1442 = vmatmul.mubr.bf16.gmra.mrb[0].mxu0 %v811
      %v1443 = vpop.f32.mrb[0].mxu0
      %v1444 = vadd.f32 %v343, %v1443
      %v1445 = vpop.f32.mrb[0].mxu0
      %v1446 = vpop.f32.mrb[0].mxu0
      %v1447 = vadd.f32 %v343, %v1446
      %v1448 = vpop.f32.mrb[0].mxu0
      %1449 = vmatprep.mubr.bf16.mxu0 %v814
      %1450 = vmatmul.mubr.bf16.gmra.mrb[0].mxu0 %v813
      %v1451 = vpop.f32.mrb[0].mxu0
      %v1452 = vadd.f32 %v343, %v1451
      %v1453 = vpop.f32.mrb[0].mxu0
      %v1454 = vpop.f32.mrb[0].mxu0
      %v1455 = vadd.f32 %v343, %v1454
      %v1456 = vpop.f32.mrb[0].mxu0
      %1457 = vmatprep.mubr.bf16.mxu0 %v816
      %1458 = vmatmul.mubr.bf16.gmra.mrb[0].mxu0 %v815
      %v1459 = vpop.f32.mrb[0].mxu0
      %v1460 = vadd.f32 %v343, %v1459
      %v1461 = vpop.f32.mrb[0].mxu0
      %v1462 = vpop.f32.mrb[0].mxu0
      %v1463 = vadd.f32 %v343, %v1462
      %v1464 = vpop.f32.mrb[0].mxu0
      %1465 = vmatprep.mubr.bf16.mxu0 %v818
      %1466 = vmatmul.mubr.bf16.gmra.mrb[0].mxu0 %v817
      %v1467 = vpop.f32.mrb[0].mxu0
      %v1468 = vadd.f32 %v343, %v1467
      %v1469 = vpop.f32.mrb[0].mxu0
      %v1470 = vpop.f32.mrb[0].mxu0
      %v1471 = vadd.f32 %v343, %v1470
      %v1472 = vpop.f32.mrb[0].mxu0
      %1473 = vmatprep.mubr.bf16.mxu0 %v820
      %1474 = vmatmul.mubr.bf16.gmra.mrb[0].mxu0 %v819
      %v1475 = vpop.f32.mrb[0].mxu0
      %v1476 = vadd.f32 %v343, %v1475
      %v1477 = vpop.f32.mrb[0].mxu0
      %v1478 = vpop.f32.mrb[0].mxu0
      %v1479 = vadd.f32 %v343, %v1478
      %v1480 = vpop.f32.mrb[0].mxu0
      %1481 = vmatprep.mubr.bf16.mxu0 %v822
      %1482 = vmatmul.mubr.bf16.gmra.mrb[0].mxu0 %v821
      %v1483 = vpop.f32.mrb[0].mxu0
      %v1484 = vadd.f32 %v343, %v1483
      %v1485 = vpop.f32.mrb[0].mxu0
      %v1486 = vpop.f32.mrb[0].mxu0
      %v1487 = vadd.f32 %v343, %v1486
      %v1488 = vpop.f32.mrb[0].mxu0
      %1489 = vmatprep.mubr.bf16.mxu0 %v824
      %1490 = vmatmul.mubr.bf16.gmra.mrb[0].mxu0 %v823
      %v1491 = vpop.f32.mrb[0].mxu0
      %v1492 = vadd.f32 %v343, %v1491
      %v1493 = vpop.f32.mrb[0].mxu0
      %v1494 = vpop.f32.mrb[0].mxu0
      %v1495 = vadd.f32 %v343, %v1494
      %v1496 = vpop.f32.mrb[0].mxu0
      %1497 = vmatprep.mubr.bf16.mxu0 %v826
      %1498 = vmatmul.mubr.bf16.gmra.mrb[0].mxu0 %v825
      %v1499 = vpop.f32.mrb[0].mxu0
      %v1500 = vadd.f32 %v343, %v1499
      %v1501 = vpop.f32.mrb[0].mxu0
      %v1502 = vpop.f32.mrb[0].mxu0
      %v1503 = vadd.f32 %v343, %v1502
      %v1504 = vpop.f32.mrb[0].mxu0
      %1505 = vmatprep.mubr.bf16.mxu0 %v828
      %1506 = vmatmul.mubr.bf16.gmra.mrb[0].mxu0 %v827
      %v1507 = vpop.f32.mrb[0].mxu0
      %v1508 = vadd.f32 %v343, %v1507
      %v1509 = vpop.f32.mrb[0].mxu0
      %v1510 = vpop.f32.mrb[0].mxu0
      %v1511 = vadd.f32 %v343, %v1510
      %v1512 = vpop.f32.mrb[0].mxu0
      %1513 = vmatprep.mubr.bf16.mxu0 %v830
      %1514 = vmatmul.mubr.bf16.gmra.mrb[0].mxu0 %v829
      %v1515 = vpop.f32.mrb[0].mxu0
      %v1516 = vadd.f32 %v343, %v1515
      %v1517 = vpop.f32.mrb[0].mxu0
      %v1518 = vpop.f32.mrb[0].mxu0
      %v1519 = vadd.f32 %v343, %v1518
      %v1520 = vpop.f32.mrb[0].mxu0
      %1521 = vmatprep.mubr.bf16.mxu0 %v832
      %1522 = vmatmul.mubr.bf16.gmra.mrb[0].mxu0 %v831
      %v1523 = vpop.f32.mrb[0].mxu0
      %v1524 = vadd.f32 %v343, %v1523
      %v1525 = vpop.f32.mrb[0].mxu0
      %v1526 = vpop.f32.mrb[0].mxu0
      %v1527 = vadd.f32 %v343, %v1526
      %v1528 = vpop.f32.mrb[0].mxu0
      %1529 = vmatprep.mubr.bf16.mxu0 %v834
      %1530 = vmatmul.mubr.bf16.gmra.mrb[0].mxu0 %v833
      %v1531 = vpop.f32.mrb[0].mxu0
      %v1532 = vadd.f32 %v343, %v1531
      %v1533 = vpop.f32.mrb[0].mxu0
      %v1534 = vpop.f32.mrb[0].mxu0
      %v1535 = vadd.f32 %v343, %v1534
      %v1536 = vpop.f32.mrb[0].mxu0
      %1537 = vmatprep.mubr.bf16.mxu0 %v836
      %1538 = vmatmul.mubr.bf16.gmra.mrb[0].mxu0 %v835
      %v1539 = vpop.f32.mrb[0].mxu0
      %v1540 = vadd.f32 %v343, %v1539
      %v1541 = vpop.f32.mrb[0].mxu0
      %v1542 = vpop.f32.mrb[0].mxu0
      %v1543 = vadd.f32 %v343, %v1542
      %v1544 = vpop.f32.mrb[0].mxu0
      %1545 = vmatprep.mubr.bf16.mxu0 %v838
      %1546 = vmatmul.mubr.bf16.gmra.mrb[0].mxu0 %v837
      %v1547 = vpop.f32.mrb[0].mxu0
      %v1548 = vadd.f32 %v343, %v1547
      %v1549 = vpop.f32.mrb[0].mxu0
      %v1550 = vpop.f32.mrb[0].mxu0
      %v1551 = vadd.f32 %v343, %v1550
      %v1552 = vpop.f32.mrb[0].mxu0
      %1553 = vmatprep.mubr.bf16.mxu0 %v840
      %1554 = vmatmul.mubr.bf16.gmra.mrb[0].mxu0 %v839
      %v1555 = vpop.f32.mrb[0].mxu0
      %v1556 = vadd.f32 %v343, %v1555
      %v1557 = vpop.f32.mrb[0].mxu0
      %v1558 = vpop.f32.mrb[0].mxu0
      %v1559 = vadd.f32 %v343, %v1558
      %v1560 = vpop.f32.mrb[0].mxu0
      %1561 = vmatprep.mubr.bf16.mxu0 %v842
      %1562 = vmatmul.mubr.bf16.gmra.mrb[0].mxu0 %v841
      %v1563 = vpop.f32.mrb[0].mxu0
      %v1564 = vadd.f32 %v343, %v1563
      %v1565 = vpop.f32.mrb[0].mxu0
      %v1566 = vpop.f32.mrb[0].mxu0
      %v1567 = vadd.f32 %v343, %v1566
      %v1568 = vpop.f32.mrb[0].mxu0
      %1569 = vmatprep.mubr.bf16.mxu0 %v844
      %1570 = vmatmul.mubr.bf16.gmra.mrb[0].mxu0 %v843
      %v1571 = vpop.f32.mrb[0].mxu0
      %v1572 = vadd.f32 %v343, %v1571
      %v1573 = vpop.f32.mrb[0].mxu0
      %v1574 = vpop.f32.mrb[0].mxu0
      %v1575 = vadd.f32 %v343, %v1574
      %v1576 = vpop.f32.mrb[0].mxu0
      %1577 = vmatprep.mubr.bf16.mxu0 %v846
      %1578 = vmatmul.mubr.bf16.gmra.mrb[0].mxu0 %v845
      %v1579 = vpop.f32.mrb[0].mxu0
      %v1580 = vadd.f32 %v343, %v1579
      %v1581 = vpop.f32.mrb[0].mxu0
      %v1582 = vpop.f32.mrb[0].mxu0
      %v1583 = vadd.f32 %v343, %v1582
      %v1584 = vpop.f32.mrb[0].mxu0
      %1585 = vmatprep.mubr.bf16.mxu0 %v848
      %1586 = vmatmul.mubr.bf16.gmra.mrb[0].mxu0 %v847
      %v1587 = vpop.f32.mrb[0].mxu0
      %v1588 = vadd.f32 %v343, %v1587
      %v1589 = vpop.f32.mrb[0].mxu0
      %v1590 = vpop.f32.mrb[0].mxu0
      %v1591 = vadd.f32 %v343, %v1590
      %v1592 = vpop.f32.mrb[0].mxu0
      %1593 = vmatprep.mubr.bf16.mxu0 %v850
      %1594 = vmatmul.mubr.bf16.gmra.mrb[0].mxu0 %v849
      %v1595 = vpop.f32.mrb[0].mxu0
      %v1596 = vadd.f32 %v343, %v1595
      %v1597 = vpop.f32.mrb[0].mxu0
      %v1598 = vpop.f32.mrb[0].mxu0
      %v1599 = vadd.f32 %v343, %v1598
      %v1600 = vpop.f32.mrb[0].mxu0
      %1601 = vmatprep.mubr.bf16.mxu0 %v852
      %1602 = vmatmul.mubr.bf16.gmra.mrb[0].mxu0 %v851
      %v1603 = vpop.f32.mrb[0].mxu0
      %v1604 = vadd.f32 %v343, %v1603
      %v1605 = vpop.f32.mrb[0].mxu0
      %v1606 = vpop.f32.mrb[0].mxu0
      %v1607 = vadd.f32 %v343, %v1606
      %v1608 = vpop.f32.mrb[0].mxu0
      %1609 = vmatprep.mubr.bf16.mxu0 %v854
      %1610 = vmatmul.mubr.bf16.gmra.mrb[0].mxu0 %v853
      %v1611 = vpop.f32.mrb[0].mxu0
      %v1612 = vadd.f32 %v343, %v1611
      %v1613 = vpop.f32.mrb[0].mxu0
      %v1614 = vpop.f32.mrb[0].mxu0
      %v1615 = vadd.f32 %v343, %v1614
      %v1616 = vpop.f32.mrb[0].mxu0
      %1617 = vmatprep.mubr.bf16.mxu0 %v856
      %1618 = vmatmul.mubr.bf16.gmra.mrb[0].mxu0 %v855
      %v1619 = vpop.f32.mrb[0].mxu0
      %v1620 = vadd.f32 %v343, %v1619
      %v1621 = vpop.f32.mrb[0].mxu0
      %v1622 = vpop.f32.mrb[0].mxu0
      %v1623 = vadd.f32 %v343, %v1622
      %v1624 = vpop.f32.mrb[0].mxu0
      %1625 = vdwg.mxu0
      %v1626 = vmax.f32 %v1116, 0.0
      %v1627 = vmax.f32 %v1119, 0.0
      %v1628 = vmax.f32 %v1124, 0.0
      %v1629 = vmax.f32 %v1127, 0.0
      %v1630 = vmax.f32 %v1132, 0.0
      %v1631 = vmax.f32 %v1135, 0.0
      %v1632 = vmax.f32 %v1140, 0.0
      %v1633 = vmax.f32 %v1143, 0.0
      %v1634 = vmax.f32 %v1148, 0.0
      %v1635 = vmax.f32 %v1151, 0.0
      %v1636 = vmax.f32 %v1156, 0.0
      %v1637 = vmax.f32 %v1159, 0.0
      %v1638 = vmax.f32 %v1164, 0.0
      %v1639 = vmax.f32 %v1167, 0.0
      %v1640 = vmax.f32 %v1172, 0.0
      %v1641 = vmax.f32 %v1175, 0.0
      %v1642 = vmax.f32 %v1180, 0.0
      %v1643 = vmax.f32 %v1183, 0.0
      %v1644 = vmax.f32 %v1188, 0.0
      %v1645 = vmax.f32 %v1191, 0.0
      %v1646 = vmax.f32 %v1196, 0.0
      %v1647 = vmax.f32 %v1199, 0.0
      %v1648 = vmax.f32 %v1204, 0.0
      %v1649 = vmax.f32 %v1207, 0.0
      %v1650 = vmax.f32 %v1212, 0.0
      %v1651 = vmax.f32 %v1215, 0.0
      %v1652 = vmax.f32 %v1220, 0.0
      %v1653 = vmax.f32 %v1223, 0.0
      %v1654 = vmax.f32 %v1228, 0.0
      %v1655 = vmax.f32 %v1231, 0.0
      %v1656 = vmax.f32 %v1236, 0.0
      %v1657 = vmax.f32 %v1239, 0.0
      %v1658 = vmax.f32 %v1244, 0.0
      %v1659 = vmax.f32 %v1247, 0.0
      %v1660 = vmax.f32 %v1252, 0.0
      %v1661 = vmax.f32 %v1255, 0.0
      %v1662 = vmax.f32 %v1260, 0.0
      %v1663 = vmax.f32 %v1263, 0.0
      %v1664 = vmax.f32 %v1268, 0.0
      %v1665 = vmax.f32 %v1271, 0.0
      %v1666 = vmax.f32 %v1276, 0.0
      %v1667 = vmax.f32 %v1279, 0.0
      %v1668 = vmax.f32 %v1284, 0.0
      %v1669 = vmax.f32 %v1287, 0.0
      %v1670 = vmax.f32 %v1292, 0.0
      %v1671 = vmax.f32 %v1295, 0.0
      %v1672 = vmax.f32 %v1300, 0.0
      %v1673 = vmax.f32 %v1303, 0.0
      %v1674 = vmax.f32 %v1308, 0.0
      %v1675 = vmax.f32 %v1311, 0.0
      %v1676 = vmax.f32 %v1316, 0.0
      %v1677 = vmax.f32 %v1319, 0.0
      %v1678 = vmax.f32 %v1324, 0.0
      %v1679 = vmax.f32 %v1327, 0.0
      %v1680 = vmax.f32 %v1332, 0.0
      %v1681 = vmax.f32 %v1335, 0.0
      %v1682 = vmax.f32 %v1340, 0.0
      %v1683 = vmax.f32 %v1343, 0.0
      %v1684 = vmax.f32 %v1348, 0.0
      %v1685 = vmax.f32 %v1351, 0.0
      %v1686 = vmax.f32 %v1356, 0.0
      %v1687 = vmax.f32 %v1359, 0.0
      %v1688 = vmax.f32 %v1364, 0.0
      %v1689 = vmax.f32 %v1367, 0.0
      %v1690 = vmax.f32 %v1372, 0.0
      %v1691 = vmax.f32 %v1375, 0.0
      %v1692 = vmax.f32 %v1380, 0.0
      %v1693 = vmax.f32 %v1383, 0.0
      %v1694 = vmax.f32 %v1388, 0.0
      %v1695 = vmax.f32 %v1391, 0.0
      %v1696 = vmax.f32 %v1396, 0.0
      %v1697 = vmax.f32 %v1399, 0.0
      %v1698 = vmax.f32 %v1404, 0.0
      %v1699 = vmax.f32 %v1407, 0.0
      %v1700 = vmax.f32 %v1412, 0.0
      %v1701 = vmax.f32 %v1415, 0.0
      %v1702 = vmax.f32 %v1420, 0.0
      %v1703 = vmax.f32 %v1423, 0.0
      %v1704 = vmax.f32 %v1428, 0.0
      %v1705 = vmax.f32 %v1431, 0.0
      %v1706 = vmax.f32 %v1436, 0.0
      %v1707 = vmax.f32 %v1439, 0.0
      %v1708 = vmax.f32 %v1444, 0.0
      %v1709 = vmax.f32 %v1447, 0.0
      %v1710 = vmax.f32 %v1452, 0.0
      %v1711 = vmax.f32 %v1455, 0.0
      %v1712 = vmax.f32 %v1460, 0.0
      %v1713 = vmax.f32 %v1463, 0.0
      %v1714 = vmax.f32 %v1468, 0.0
      %v1715 = vmax.f32 %v1471, 0.0
      %v1716 = vmax.f32 %v1476, 0.0
      %v1717 = vmax.f32 %v1479, 0.0
      %v1718 = vmax.f32 %v1484, 0.0
      %v1719 = vmax.f32 %v1487, 0.0
      %v1720 = vmax.f32 %v1492, 0.0
      %v1721 = vmax.f32 %v1495, 0.0
      %v1722 = vmax.f32 %v1500, 0.0
      %v1723 = vmax.f32 %v1503, 0.0
      %v1724 = vmax.f32 %v1508, 0.0
      %v1725 = vmax.f32 %v1511, 0.0
      %v1726 = vmax.f32 %v1516, 0.0
      %v1727 = vmax.f32 %v1519, 0.0
      %v1728 = vmax.f32 %v1524, 0.0
      %v1729 = vmax.f32 %v1527, 0.0
      %v1730 = vmax.f32 %v1532, 0.0
      %v1731 = vmax.f32 %v1535, 0.0
      %v1732 = vmax.f32 %v1540, 0.0
      %v1733 = vmax.f32 %v1543, 0.0
      %v1734 = vmax.f32 %v1548, 0.0
      %v1735 = vmax.f32 %v1551, 0.0
      %v1736 = vmax.f32 %v1556, 0.0
      %v1737 = vmax.f32 %v1559, 0.0
      %v1738 = vmax.f32 %v1564, 0.0
      %v1739 = vmax.f32 %v1567, 0.0
      %v1740 = vmax.f32 %v1572, 0.0
      %v1741 = vmax.f32 %v1575, 0.0
      %v1742 = vmax.f32 %v1580, 0.0
      %v1743 = vmax.f32 %v1583, 0.0
      %v1744 = vmax.f32 %v1588, 0.0
      %v1745 = vmax.f32 %v1591, 0.0
      %v1746 = vmax.f32 %v1596, 0.0
      %v1747 = vmax.f32 %v1599, 0.0
      %v1748 = vmax.f32 %v1604, 0.0
      %v1749 = vmax.f32 %v1607, 0.0
      %v1750 = vmax.f32 %v1612, 0.0
      %v1751 = vmax.f32 %v1615, 0.0
      %v1752 = vmax.f32 %v1620, 0.0
      %v1753 = vmax.f32 %v1623, 0.0
      %v1754 = vpack.c.bf16 %v1627, %v1626
      %v1755 = vpack.c.bf16 %v1629, %v1628
      %v1756 = vpack.c.bf16 %v1631, %v1630
      %v1757 = vpack.c.bf16 %v1633, %v1632
      %v1758 = vpack.c.bf16 %v1635, %v1634
      %v1759 = vpack.c.bf16 %v1637, %v1636
      %v1760 = vpack.c.bf16 %v1639, %v1638
      %v1761 = vpack.c.bf16 %v1641, %v1640
      %v1762 = vpack.c.bf16 %v1643, %v1642
      %v1763 = vpack.c.bf16 %v1645, %v1644
      %v1764 = vpack.c.bf16 %v1647, %v1646
      %v1765 = vpack.c.bf16 %v1649, %v1648
      %v1766 = vpack.c.bf16 %v1651, %v1650
      %v1767 = vpack.c.bf16 %v1653, %v1652
      %v1768 = vpack.c.bf16 %v1655, %v1654
      %v1769 = vpack.c.bf16 %v1657, %v1656
      %v1770 = vpack.c.bf16 %v1659, %v1658
      %v1771 = vpack.c.bf16 %v1661, %v1660
      %v1772 = vpack.c.bf16 %v1663, %v1662
      %v1773 = vpack.c.bf16 %v1665, %v1664
      %v1774 = vpack.c.bf16 %v1667, %v1666
      %v1775 = vpack.c.bf16 %v1669, %v1668
      %v1776 = vpack.c.bf16 %v1671, %v1670
      %v1777 = vpack.c.bf16 %v1673, %v1672
      %v1778 = vpack.c.bf16 %v1675, %v1674
      %v1779 = vpack.c.bf16 %v1677, %v1676
      %v1780 = vpack.c.bf16 %v1679, %v1678
      %v1781 = vpack.c.bf16 %v1681, %v1680
      %v1782 = vpack.c.bf16 %v1683, %v1682
      %v1783 = vpack.c.bf16 %v1685, %v1684
      %v1784 = vpack.c.bf16 %v1687, %v1686
      %v1785 = vpack.c.bf16 %v1689, %v1688
      %v1786 = vpack.c.bf16 %v1691, %v1690
      %v1787 = vpack.c.bf16 %v1693, %v1692
      %v1788 = vpack.c.bf16 %v1695, %v1694
      %v1789 = vpack.c.bf16 %v1697, %v1696
      %v1790 = vpack.c.bf16 %v1699, %v1698
      %v1791 = vpack.c.bf16 %v1701, %v1700
      %v1792 = vpack.c.bf16 %v1703, %v1702
      %v1793 = vpack.c.bf16 %v1705, %v1704
      %v1794 = vpack.c.bf16 %v1707, %v1706
      %v1795 = vpack.c.bf16 %v1709, %v1708
      %v1796 = vpack.c.bf16 %v1711, %v1710
      %v1797 = vpack.c.bf16 %v1713, %v1712
      %v1798 = vpack.c.bf16 %v1715, %v1714
      %v1799 = vpack.c.bf16 %v1717, %v1716
      %v1800 = vpack.c.bf16 %v1719, %v1718
      %v1801 = vpack.c.bf16 %v1721, %v1720
      %v1802 = vpack.c.bf16 %v1723, %v1722
      %v1803 = vpack.c.bf16 %v1725, %v1724
      %v1804 = vpack.c.bf16 %v1727, %v1726
      %v1805 = vpack.c.bf16 %v1729, %v1728
      %v1806 = vpack.c.bf16 %v1731, %v1730
      %v1807 = vpack.c.bf16 %v1733, %v1732
      %v1808 = vpack.c.bf16 %v1735, %v1734
      %v1809 = vpack.c.bf16 %v1737, %v1736
      %v1810 = vpack.c.bf16 %v1739, %v1738
      %v1811 = vpack.c.bf16 %v1741, %v1740
      %v1812 = vpack.c.bf16 %v1743, %v1742
      %v1813 = vpack.c.bf16 %v1745, %v1744
      %v1814 = vpack.c.bf16 %v1747, %v1746
      %v1815 = vpack.c.bf16 %v1749, %v1748
      %v1816 = vpack.c.bf16 %v1751, %v1750
      %v1817 = vpack.c.bf16 %v1753, %v1752
      %v1882 = vunpack.c.l.b16 %v1754
      %v1883 = vunpack.c.h.b16 %v1754
      %v1884 = vunpack.c.l.b16 %v1755
      %v1885 = vunpack.c.h.b16 %v1755
      %v1886 = vunpack.c.l.b16 %v1756
      %v1887 = vunpack.c.h.b16 %v1756
      %v1888 = vunpack.c.l.b16 %v1757
      %v1889 = vunpack.c.h.b16 %v1757
      %v1890 = vunpack.c.l.b16 %v1758
      %v1891 = vunpack.c.h.b16 %v1758
      %v1892 = vunpack.c.l.b16 %v1759
      %v1893 = vunpack.c.h.b16 %v1759
      %v1894 = vunpack.c.l.b16 %v1760
      %v1895 = vunpack.c.h.b16 %v1760
      %v1896 = vunpack.c.l.b16 %v1761
      %v1897 = vunpack.c.h.b16 %v1761
      %v1898 = vunpack.c.l.b16 %v1762
      %v1899 = vunpack.c.h.b16 %v1762
      %v1900 = vunpack.c.l.b16 %v1763
      %v1901 = vunpack.c.h.b16 %v1763
      %v1902 = vunpack.c.l.b16 %v1764
      %v1903 = vunpack.c.h.b16 %v1764
      %v1904 = vunpack.c.l.b16 %v1765
      %v1905 = vunpack.c.h.b16 %v1765
      %v1906 = vunpack.c.l.b16 %v1766
      %v1907 = vunpack.c.h.b16 %v1766
      %v1908 = vunpack.c.l.b16 %v1767
      %v1909 = vunpack.c.h.b16 %v1767
      %v1910 = vunpack.c.l.b16 %v1768
      %v1911 = vunpack.c.h.b16 %v1768
      %v1912 = vunpack.c.l.b16 %v1769
      %v1913 = vunpack.c.h.b16 %v1769
      %v1914 = vunpack.c.l.b16 %v1770
      %v1915 = vunpack.c.h.b16 %v1770
      %v1916 = vunpack.c.l.b16 %v1771
      %v1917 = vunpack.c.h.b16 %v1771
      %v1918 = vunpack.c.l.b16 %v1772
      %v1919 = vunpack.c.h.b16 %v1772
      %v1920 = vunpack.c.l.b16 %v1773
      %v1921 = vunpack.c.h.b16 %v1773
      %v1922 = vunpack.c.l.b16 %v1774
      %v1923 = vunpack.c.h.b16 %v1774
      %v1924 = vunpack.c.l.b16 %v1775
      %v1925 = vunpack.c.h.b16 %v1775
      %v1926 = vunpack.c.l.b16 %v1776
      %v1927 = vunpack.c.h.b16 %v1776
      %v1928 = vunpack.c.l.b16 %v1777
      %v1929 = vunpack.c.h.b16 %v1777
      %v1930 = vunpack.c.l.b16 %v1778
      %v1931 = vunpack.c.h.b16 %v1778
      %v1932 = vunpack.c.l.b16 %v1779
      %v1933 = vunpack.c.h.b16 %v1779
      %v1934 = vunpack.c.l.b16 %v1780
      %v1935 = vunpack.c.h.b16 %v1780
      %v1936 = vunpack.c.l.b16 %v1781
      %v1937 = vunpack.c.h.b16 %v1781
      %v1938 = vunpack.c.l.b16 %v1782
      %v1939 = vunpack.c.h.b16 %v1782
      %v1940 = vunpack.c.l.b16 %v1783
      %v1941 = vunpack.c.h.b16 %v1783
      %v1942 = vunpack.c.l.b16 %v1784
      %v1943 = vunpack.c.h.b16 %v1784
      %v1944 = vunpack.c.l.b16 %v1785
      %v1945 = vunpack.c.h.b16 %v1785
      %v1946 = vunpack.c.l.b16 %v1786
      %v1947 = vunpack.c.h.b16 %v1786
      %v1948 = vunpack.c.l.b16 %v1787
      %v1949 = vunpack.c.h.b16 %v1787
      %v1950 = vunpack.c.l.b16 %v1788
      %v1951 = vunpack.c.h.b16 %v1788
      %v1952 = vunpack.c.l.b16 %v1789
      %v1953 = vunpack.c.h.b16 %v1789
      %v1954 = vunpack.c.l.b16 %v1790
      %v1955 = vunpack.c.h.b16 %v1790
      %v1956 = vunpack.c.l.b16 %v1791
      %v1957 = vunpack.c.h.b16 %v1791
      %v1958 = vunpack.c.l.b16 %v1792
      %v1959 = vunpack.c.h.b16 %v1792
      %v1960 = vunpack.c.l.b16 %v1793
      %v1961 = vunpack.c.h.b16 %v1793
      %v1962 = vunpack.c.l.b16 %v1794
      %v1963 = vunpack.c.h.b16 %v1794
      %v1964 = vunpack.c.l.b16 %v1795
      %v1965 = vunpack.c.h.b16 %v1795
      %v1966 = vunpack.c.l.b16 %v1796
      %v1967 = vunpack.c.h.b16 %v1796
      %v1968 = vunpack.c.l.b16 %v1797
      %v1969 = vunpack.c.h.b16 %v1797
      %v1970 = vunpack.c.l.b16 %v1798
      %v1971 = vunpack.c.h.b16 %v1798
      %v1972 = vunpack.c.l.b16 %v1799
      %v1973 = vunpack.c.h.b16 %v1799
      %v1974 = vunpack.c.l.b16 %v1800
      %v1975 = vunpack.c.h.b16 %v1800
      %v1976 = vunpack.c.l.b16 %v1801
      %v1977 = vunpack.c.h.b16 %v1801
      %v1978 = vunpack.c.l.b16 %v1802
      %v1979 = vunpack.c.h.b16 %v1802
      %v1980 = vunpack.c.l.b16 %v1803
      %v1981 = vunpack.c.h.b16 %v1803
      %v1982 = vunpack.c.l.b16 %v1804
      %v1983 = vunpack.c.h.b16 %v1804
      %v1984 = vunpack.c.l.b16 %v1805
      %v1985 = vunpack.c.h.b16 %v1805
      %v1986 = vunpack.c.l.b16 %v1806
      %v1987 = vunpack.c.h.b16 %v1806
      %v1988 = vunpack.c.l.b16 %v1807
      %v1989 = vunpack.c.h.b16 %v1807
      %v1990 = vunpack.c.l.b16 %v1808
      %v1991 = vunpack.c.h.b16 %v1808
      %v1992 = vunpack.c.l.b16 %v1809
      %v1993 = vunpack.c.h.b16 %v1809
      %v1994 = vunpack.c.l.b16 %v1810
      %v1995 = vunpack.c.h.b16 %v1810
      %v1996 = vunpack.c.l.b16 %v1811
      %v1997 = vunpack.c.h.b16 %v1811
      %v1998 = vunpack.c.l.b16 %v1812
      %v1999 = vunpack.c.h.b16 %v1812
      %v2000 = vunpack.c.l.b16 %v1813
      %v2001 = vunpack.c.h.b16 %v1813
      %v2002 = vunpack.c.l.b16 %v1814
      %v2003 = vunpack.c.h.b16 %v1814
      %v2004 = vunpack.c.l.b16 %v1815
      %v2005 = vunpack.c.h.b16 %v1815
      %v2006 = vunpack.c.l.b16 %v1816
      %v2007 = vunpack.c.h.b16 %v1816
      %v2008 = vunpack.c.l.b16 %v1817
      %v2009 = vunpack.c.h.b16 %v1817
      %v2010 = vpack.c.b16 %v1882, %v1882
      %v2011 = vpack.c.b16 %v1883, %v1883
      %v2012 = vpack.c.b16 %v1884, %v1884
      %v2013 = vpack.c.b16 %v1885, %v1885
      %v2014 = vpack.c.b16 %v1886, %v1886
      %v2015 = vpack.c.b16 %v1887, %v1887
      %v2016 = vpack.c.b16 %v1888, %v1888
      %v2017 = vpack.c.b16 %v1889, %v1889
      %v2018 = vpack.c.b16 %v1890, %v1890
      %v2019 = vpack.c.b16 %v1891, %v1891
      %v2020 = vpack.c.b16 %v1892, %v1892
      %v2021 = vpack.c.b16 %v1893, %v1893
      %v2022 = vpack.c.b16 %v1894, %v1894
      %v2023 = vpack.c.b16 %v1895, %v1895
      %v2024 = vpack.c.b16 %v1896, %v1896
      %v2025 = vpack.c.b16 %v1897, %v1897
      %v2026 = vpack.c.b16 %v1898, %v1898
      %v2027 = vpack.c.b16 %v1899, %v1899
      %v2028 = vpack.c.b16 %v1900, %v1900
      %v2029 = vpack.c.b16 %v1901, %v1901
      %v2030 = vpack.c.b16 %v1902, %v1902
      %v2031 = vpack.c.b16 %v1903, %v1903
      %v2032 = vpack.c.b16 %v1904, %v1904
      %v2033 = vpack.c.b16 %v1905, %v1905
      %v2034 = vpack.c.b16 %v1906, %v1906
      %v2035 = vpack.c.b16 %v1907, %v1907
      %v2036 = vpack.c.b16 %v1908, %v1908
      %v2037 = vpack.c.b16 %v1909, %v1909
      %v2038 = vpack.c.b16 %v1910, %v1910
      %v2039 = vpack.c.b16 %v1911, %v1911
      %v2040 = vpack.c.b16 %v1912, %v1912
      %v2041 = vpack.c.b16 %v1913, %v1913
      %v2042 = vpack.c.b16 %v1914, %v1914
      %v2043 = vpack.c.b16 %v1915, %v1915
      %v2044 = vpack.c.b16 %v1916, %v1916
      %v2045 = vpack.c.b16 %v1917, %v1917
      %v2046 = vpack.c.b16 %v1918, %v1918
      %v2047 = vpack.c.b16 %v1919, %v1919
      %v2048 = vpack.c.b16 %v1920, %v1920
      %v2049 = vpack.c.b16 %v1921, %v1921
      %v2050 = vpack.c.b16 %v1922, %v1922
      %v2051 = vpack.c.b16 %v1923, %v1923
      %v2052 = vpack.c.b16 %v1924, %v1924
      %v2053 = vpack.c.b16 %v1925, %v1925
      %v2054 = vpack.c.b16 %v1926, %v1926
      %v2055 = vpack.c.b16 %v1927, %v1927
      %v2056 = vpack.c.b16 %v1928, %v1928
      %v2057 = vpack.c.b16 %v1929, %v1929
      %v2058 = vpack.c.b16 %v1930, %v1930
      %v2059 = vpack.c.b16 %v1931, %v1931
      %v2060 = vpack.c.b16 %v1932, %v1932
      %v2061 = vpack.c.b16 %v1933, %v1933
      %v2062 = vpack.c.b16 %v1934, %v1934
      %v2063 = vpack.c.b16 %v1935, %v1935
      %v2064 = vpack.c.b16 %v1936, %v1936
      %v2065 = vpack.c.b16 %v1937, %v1937
      %v2066 = vpack.c.b16 %v1938, %v1938
      %v2067 = vpack.c.b16 %v1939, %v1939
      %v2068 = vpack.c.b16 %v1940, %v1940
      %v2069 = vpack.c.b16 %v1941, %v1941
      %v2070 = vpack.c.b16 %v1942, %v1942
      %v2071 = vpack.c.b16 %v1943, %v1943
      %v2072 = vpack.c.b16 %v1944, %v1944
      %v2073 = vpack.c.b16 %v1945, %v1945
      %v2074 = vpack.c.b16 %v1946, %v1946
      %v2075 = vpack.c.b16 %v1947, %v1947
      %v2076 = vpack.c.b16 %v1948, %v1948
      %v2077 = vpack.c.b16 %v1949, %v1949
      %v2078 = vpack.c.b16 %v1950, %v1950
      %v2079 = vpack.c.b16 %v1951, %v1951
      %v2080 = vpack.c.b16 %v1952, %v1952
      %v2081 = vpack.c.b16 %v1953, %v1953
      %v2082 = vpack.c.b16 %v1954, %v1954
      %v2083 = vpack.c.b16 %v1955, %v1955
      %v2084 = vpack.c.b16 %v1956, %v1956
      %v2085 = vpack.c.b16 %v1957, %v1957
      %v2086 = vpack.c.b16 %v1958, %v1958
      %v2087 = vpack.c.b16 %v1959, %v1959
      %v2088 = vpack.c.b16 %v1960, %v1960
      %v2089 = vpack.c.b16 %v1961, %v1961
      %v2090 = vpack.c.b16 %v1962, %v1962
      %v2091 = vpack.c.b16 %v1963, %v1963
      %v2092 = vpack.c.b16 %v1964, %v1964
      %v2093 = vpack.c.b16 %v1965, %v1965
      %v2094 = vpack.c.b16 %v1966, %v1966
      %v2095 = vpack.c.b16 %v1967, %v1967
      %v2096 = vpack.c.b16 %v1968, %v1968
      %v2097 = vpack.c.b16 %v1969, %v1969
      %v2098 = vpack.c.b16 %v1970, %v1970
      %v2099 = vpack.c.b16 %v1971, %v1971
      %v2100 = vpack.c.b16 %v1972, %v1972
      %v2101 = vpack.c.b16 %v1973, %v1973
      %v2102 = vpack.c.b16 %v1974, %v1974
      %v2103 = vpack.c.b16 %v1975, %v1975
      %v2104 = vpack.c.b16 %v1976, %v1976
      %v2105 = vpack.c.b16 %v1977, %v1977
      %v2106 = vpack.c.b16 %v1978, %v1978
      %v2107 = vpack.c.b16 %v1979, %v1979
      %v2108 = vpack.c.b16 %v1980, %v1980
      %v2109 = vpack.c.b16 %v1981, %v1981
      %v2110 = vpack.c.b16 %v1982, %v1982
      %v2111 = vpack.c.b16 %v1983, %v1983
      %v2112 = vpack.c.b16 %v1984, %v1984
      %v2113 = vpack.c.b16 %v1985, %v1985
      %v2114 = vpack.c.b16 %v1986, %v1986
      %v2115 = vpack.c.b16 %v1987, %v1987
      %v2116 = vpack.c.b16 %v1988, %v1988
      %v2117 = vpack.c.b16 %v1989, %v1989
      %v2118 = vpack.c.b16 %v1990, %v1990
      %v2119 = vpack.c.b16 %v1991, %v1991
      %v2120 = vpack.c.b16 %v1992, %v1992
      %v2121 = vpack.c.b16 %v1993, %v1993
      %v2122 = vpack.c.b16 %v1994, %v1994
      %v2123 = vpack.c.b16 %v1995, %v1995
      %v2124 = vpack.c.b16 %v1996, %v1996
      %v2125 = vpack.c.b16 %v1997, %v1997
      %v2126 = vpack.c.b16 %v1998, %v1998
      %v2127 = vpack.c.b16 %v1999, %v1999
      %v2128 = vpack.c.b16 %v2000, %v2000
      %v2129 = vpack.c.b16 %v2001, %v2001
      %v2130 = vpack.c.b16 %v2002, %v2002
      %v2131 = vpack.c.b16 %v2003, %v2003
      %v2132 = vpack.c.b16 %v2004, %v2004
      %v2133 = vpack.c.b16 %v2005, %v2005
      %v2134 = vpack.c.b16 %v2006, %v2006
      %v2135 = vpack.c.b16 %v2007, %v2007
      %v2136 = vpack.c.b16 %v2008, %v2008
      %v2137 = vpack.c.b16 %v2009, %v2009
      %2266 = vst [vmem:[%s175] sm:$0xf] %v2010
      %2267 = vst [vmem:[%s175 + $0x4] sm:$0xf] %v2011
      %2268 = vst [vmem:[%s175 + $0x8] sm:$0xf] %v2012
      %2269 = vst [vmem:[%s175 + $0xc] sm:$0xf] %v2013
      %2270 = vst [vmem:[%s175 + $0x10] sm:$0xf] %v2014
      %2271 = vst [vmem:[%s175 + $0x14] sm:$0xf] %v2015
      %2272 = vst [vmem:[%s175 + $0x18] sm:$0xf] %v2016
      %2273 = vst [vmem:[%s175 + $0x1c] sm:$0xf] %v2017
      %2274 = vst [vmem:[%s175 + $0x20] sm:$0xf] %v2018
      %2275 = vst [vmem:[%s175 + $0x24] sm:$0xf] %v2019
      %2276 = vst [vmem:[%s175 + $0x28] sm:$0xf] %v2020
      %2277 = vst [vmem:[%s175 + $0x2c] sm:$0xf] %v2021
      %2278 = vst [vmem:[%s175 + $0x30] sm:$0xf] %v2022
      %2279 = vst [vmem:[%s175 + $0x34] sm:$0xf] %v2023
      %2280 = vst [vmem:[%s175 + $0x38] sm:$0xf] %v2024
      %2281 = vst [vmem:[%s175 + $0x3c] sm:$0xf] %v2025
      %2282 = vst [vmem:[%s175 + $0x40] sm:$0xf] %v2026
      %2283 = vst [vmem:[%s175 + $0x44] sm:$0xf] %v2027
      %2284 = vst [vmem:[%s175 + $0x48] sm:$0xf] %v2028
      %2285 = vst [vmem:[%s175 + $0x4c] sm:$0xf] %v2029
      %2286 = vst [vmem:[%s175 + $0x50] sm:$0xf] %v2030
      %2287 = vst [vmem:[%s175 + $0x54] sm:$0xf] %v2031
      %2288 = vst [vmem:[%s175 + $0x58] sm:$0xf] %v2032
      %2289 = vst [vmem:[%s175 + $0x5c] sm:$0xf] %v2033
      %2290 = vst [vmem:[%s175 + $0x60] sm:$0xf] %v2034
      %2291 = vst [vmem:[%s175 + $0x64] sm:$0xf] %v2035
      %2292 = vst [vmem:[%s175 + $0x68] sm:$0xf] %v2036
      %2293 = vst [vmem:[%s175 + $0x6c] sm:$0xf] %v2037
      %2294 = vst [vmem:[%s175 + $0x70] sm:$0xf] %v2038
      %2295 = vst [vmem:[%s175 + $0x74] sm:$0xf] %v2039
      %2296 = vst [vmem:[%s175 + $0x78] sm:$0xf] %v2040
      %2297 = vst [vmem:[%s175 + $0x7c] sm:$0xf] %v2041
      %2298 = vst [vmem:[%s175 + $0x80] sm:$0xf] %v2042
      %2299 = vst [vmem:[%s175 + $0x84] sm:$0xf] %v2043
      %2300 = vst [vmem:[%s175 + $0x88] sm:$0xf] %v2044
      %2301 = vst [vmem:[%s175 + $0x8c] sm:$0xf] %v2045
      %2302 = vst [vmem:[%s175 + $0x90] sm:$0xf] %v2046
      %2303 = vst [vmem:[%s175 + $0x94] sm:$0xf] %v2047
      %2304 = vst [vmem:[%s175 + $0x98] sm:$0xf] %v2048
      %2305 = vst [vmem:[%s175 + $0x9c] sm:$0xf] %v2049
      %2306 = vst [vmem:[%s175 + $0xa0] sm:$0xf] %v2050
      %2307 = vst [vmem:[%s175 + $0xa4] sm:$0xf] %v2051
      %2308 = vst [vmem:[%s175 + $0xa8] sm:$0xf] %v2052
      %2309 = vst [vmem:[%s175 + $0xac] sm:$0xf] %v2053
      %2310 = vst [vmem:[%s175 + $0xb0] sm:$0xf] %v2054
      %2311 = vst [vmem:[%s175 + $0xb4] sm:$0xf] %v2055
      %2312 = vst [vmem:[%s175 + $0xb8] sm:$0xf] %v2056
      %2313 = vst [vmem:[%s175 + $0xbc] sm:$0xf] %v2057
      %2314 = vst [vmem:[%s175 + $0xc0] sm:$0xf] %v2058
      %2315 = vst [vmem:[%s175 + $0xc4] sm:$0xf] %v2059
      %2316 = vst [vmem:[%s175 + $0xc8] sm:$0xf] %v2060
      %2317 = vst [vmem:[%s175 + $0xcc] sm:$0xf] %v2061
      %2318 = vst [vmem:[%s175 + $0xd0] sm:$0xf] %v2062
      %2319 = vst [vmem:[%s175 + $0xd4] sm:$0xf] %v2063
      %2320 = vst [vmem:[%s175 + $0xd8] sm:$0xf] %v2064
      %2321 = vst [vmem:[%s175 + $0xdc] sm:$0xf] %v2065
      %2322 = vst [vmem:[%s175 + $0xe0] sm:$0xf] %v2066
      %2323 = vst [vmem:[%s175 + $0xe4] sm:$0xf] %v2067
      %2324 = vst [vmem:[%s175 + $0xe8] sm:$0xf] %v2068
      %2325 = vst [vmem:[%s175 + $0xec] sm:$0xf] %v2069
      %2326 = vst [vmem:[%s175 + $0xf0] sm:$0xf] %v2070
      %2327 = vst [vmem:[%s175 + $0xf4] sm:$0xf] %v2071
      %2328 = vst [vmem:[%s175 + $0xf8] sm:$0xf] %v2072
      %2329 = vst [vmem:[%s175 + $0xfc] sm:$0xf] %v2073
      %2330 = vst [vmem:[%s175 + $0x100] sm:$0xf] %v2074
      %2331 = vst [vmem:[%s175 + $0x104] sm:$0xf] %v2075
      %2332 = vst [vmem:[%s175 + $0x108] sm:$0xf] %v2076
      %2333 = vst [vmem:[%s175 + $0x10c] sm:$0xf] %v2077
      %2334 = vst [vmem:[%s175 + $0x110] sm:$0xf] %v2078
      %2335 = vst [vmem:[%s175 + $0x114] sm:$0xf] %v2079
      %2336 = vst [vmem:[%s175 + $0x118] sm:$0xf] %v2080
      %2337 = vst [vmem:[%s175 + $0x11c] sm:$0xf] %v2081
      %2338 = vst [vmem:[%s175 + $0x120] sm:$0xf] %v2082
      %2339 = vst [vmem:[%s175 + $0x124] sm:$0xf] %v2083
      %2340 = vst [vmem:[%s175 + $0x128] sm:$0xf] %v2084
      %2341 = vst [vmem:[%s175 + $0x12c] sm:$0xf] %v2085
      %2342 = vst [vmem:[%s175 + $0x130] sm:$0xf] %v2086
      %2343 = vst [vmem:[%s175 + $0x134] sm:$0xf] %v2087
      %2344 = vst [vmem:[%s175 + $0x138] sm:$0xf] %v2088
      %2345 = vst [vmem:[%s175 + $0x13c] sm:$0xf] %v2089
      %2346 = vst [vmem:[%s175 + $0x140] sm:$0xf] %v2090
      %2347 = vst [vmem:[%s175 + $0x144] sm:$0xf] %v2091
      %2348 = vst [vmem:[%s175 + $0x148] sm:$0xf] %v2092
      %2349 = vst [vmem:[%s175 + $0x14c] sm:$0xf] %v2093
      %2350 = vst [vmem:[%s175 + $0x150] sm:$0xf] %v2094
      %2351 = vst [vmem:[%s175 + $0x154] sm:$0xf] %v2095
      %2352 = vst [vmem:[%s175 + $0x158] sm:$0xf] %v2096
      %2353 = vst [vmem:[%s175 + $0x15c] sm:$0xf] %v2097
      %2354 = vst [vmem:[%s175 + $0x160] sm:$0xf] %v2098
      %2355 = vst [vmem:[%s175 + $0x164] sm:$0xf] %v2099
      %2356 = vst [vmem:[%s175 + $0x168] sm:$0xf] %v2100
      %2357 = vst [vmem:[%s175 + $0x16c] sm:$0xf] %v2101
      %2358 = vst [vmem:[%s175 + $0x170] sm:$0xf] %v2102
      %2359 = vst [vmem:[%s175 + $0x174] sm:$0xf] %v2103
      %2360 = vst [vmem:[%s175 + $0x178] sm:$0xf] %v2104
      %2361 = vst [vmem:[%s175 + $0x17c] sm:$0xf] %v2105
      %2362 = vst [vmem:[%s175 + $0x180] sm:$0xf] %v2106
      %2363 = vst [vmem:[%s175 + $0x184] sm:$0xf] %v2107
      %2364 = vst [vmem:[%s175 + $0x188] sm:$0xf] %v2108
      %2365 = vst [vmem:[%s175 + $0x18c] sm:$0xf] %v2109
      %2366 = vst [vmem:[%s175 + $0x190] sm:$0xf] %v2110
      %2367 = vst [vmem:[%s175 + $0x194] sm:$0xf] %v2111
      %2368 = vst [vmem:[%s175 + $0x198] sm:$0xf] %v2112
      %2369 = vst [vmem:[%s175 + $0x19c] sm:$0xf] %v2113
      %2370 = vst [vmem:[%s175 + $0x1a0] sm:$0xf] %v2114
      %2371 = vst [vmem:[%s175 + $0x1a4] sm:$0xf] %v2115
      %2372 = vst [vmem:[%s175 + $0x1a8] sm:$0xf] %v2116
      %2373 = vst [vmem:[%s175 + $0x1ac] sm:$0xf] %v2117
      %2374 = vst [vmem:[%s175 + $0x1b0] sm:$0xf] %v2118
      %2375 = vst [vmem:[%s175 + $0x1b4] sm:$0xf] %v2119
      %2376 = vst [vmem:[%s175 + $0x1b8] sm:$0xf] %v2120
      %2377 = vst [vmem:[%s175 + $0x1bc] sm:$0xf] %v2121
      %2378 = vst [vmem:[%s175 + $0x1c0] sm:$0xf] %v2122
      %2379 = vst [vmem:[%s175 + $0x1c4] sm:$0xf] %v2123
      %2380 = vst [vmem:[%s175 + $0x1c8] sm:$0xf] %v2124
      %2381 = vst [vmem:[%s175 + $0x1cc] sm:$0xf] %v2125
      %2382 = vst [vmem:[%s175 + $0x1d0] sm:$0xf] %v2126
      %2383 = vst [vmem:[%s175 + $0x1d4] sm:$0xf] %v2127
      %2384 = vst [vmem:[%s175 + $0x1d8] sm:$0xf] %v2128
      %2385 = vst [vmem:[%s175 + $0x1dc] sm:$0xf] %v2129
      %2386 = vst [vmem:[%s175 + $0x1e0] sm:$0xf] %v2130
      %2387 = vst [vmem:[%s175 + $0x1e4] sm:$0xf] %v2131
      %2388 = vst [vmem:[%s175 + $0x1e8] sm:$0xf] %v2132
      %2389 = vst [vmem:[%s175 + $0x1ec] sm:$0xf] %v2133
      %2390 = vst [vmem:[%s175 + $0x1f0] sm:$0xf] %v2134
      %2391 = vst [vmem:[%s175 + $0x1f4] sm:$0xf] %v2135
      %2392 = vst [vmem:[%s175 + $0x1f8] sm:$0xf] %v2136
      %2393 = vst [vmem:[%s175 + $0x1fc] sm:$0xf] %v2137
      %s2394 = smul.u32 128, %s14
      %p2395 = scmp.lt.s32.totalorder %s2394, 255
      %s2396 = scalar_select %p2395, %s2394, 255
      %s2397 = smul.addr %s2396, 4
      %s2398 = scalar_lea.vmem %s3, %s2397
      // Predicated region
      $region33: #{fwd.9} parent=31 // pred_check
        %p2399 = pneg %p100
      $region34: #{fwd.9} parent=31 // pred_check_branch
        %2401 = sbr.rel (%p2399) target = $region36
      $region35: #{fwd.9} parent=31 // pred_region
        %s2402 = smul.u32 128, %s14
      $region36: #{fwd.9} parent=31 // pred_fallthru
        _
    $region32: #{fwd.9} parent=5 // pred_fallthru
      _
    %p2403 = scmp.le.s32.totalorder 2, %s9
    // Predicated region
    $region37: #{fwd.9} parent=5 // pred_check
      %p2404 = pneg %p2403
    $region38: #{fwd.9} parent=5 // pred_check_branch
      %2406 = sbr.rel (%p2404) target = $region40
    $region39: #{fwd.9} parent=5 // pred_region
      %s2407 = ssub.s32 %s9, 2
      // Predicated region
      $region41: #{fwd.9} parent=39 // pred_check
        %p2408 = pneg %p106
      $region42: #{fwd.9} parent=39 // pred_check_branch
        %2410 = sbr.rel (%p2408) target = $region44
      $region43: #{fwd.9} parent=39 // pred_region
        %s2411 = smul.u32 128, %s15
        %p2412 = scmp.lt.s32.totalorder %s2411, 255
        %s2413 = scalar_select %p2412, %s2411, 255
        %s2414 = smul.addr %s2413, 4
        %s2415 = scalar_lea.vmem %s3, %s2414
      $region44: #{fwd.9} parent=39 // pred_fallthru
        _
    $region40: #{fwd.9} parent=5 // pred_fallthru
      _
  $region6: #{fwd.9} parent=0 // loop_footer
    %s13 = sadd.s32 1, %s9
  $region7: #{fwd.9} parent=0 // loop_footer_branch
    %8 = sbr.rel target = $region3
  $region8: #{fwd.9} parent=0 // loop_exit
    _

// kernel: fwd.10
$region0: #{fwd.10}
  #allocation0 [shape = 'u32[]', space=smem, size = 0x4, offset = 0x4, fixed_abs, tag = 'smem constant byte address 0x4 - core index']
  #allocation1 [shape = 'u32[144,128]{1,0:T(1,128)}', space=vmem, size = 0x12000, scoped, tag = 'internal scratch']
  %s0 = inlined_call_operand.vmem [shape: bf16[2048,256], index: 0, kind: input, shape index: {}]
  %s1 = inlined_call_operand.vmem [shape: bf16[256,128], index: 1, kind: input, shape index: {}]
  %s2 = inlined_call_operand.vmem [shape: f32[1,128], index: 2, kind: input, shape index: {}]
  %s3 = inlined_call_operand.vmem [shape: bf16[2048,128], index: 3, kind: input, shape index: {}]
  %s4 = inlined_call_operand.vmem [shape: bf16[2048,128], index: 4, kind: output, shape index: {}]
  %s5 = sld [smem:[#allocation0]]
  $region49: #{fwd.10} parent=0
    _
  %s7 = ssub.s32 1, %s5
  %s8 = scalar_select 0, %s7, %s5
  loop: start=0, step=1, limit=4
  $region2: #{fwd.10} parent=0 // loop_pre_header
    _
  $region3: #{fwd.10} parent=0 // loop_header
    %s10 = sphi 0, %s14
    %p11 = scmp.ge.s32.totalorder %s10, 4
    %s20 = sphi 0, %s22
    %s23 = sphi 0, %s20
    %s24 = sphi 0, %s23
    %s40 = sphi 0, %s24
    %s44 = sphi 0, %s44
    %s46 = sphi 0, %s44
    %s47 = sphi 0, %s46
    %s61 = sphi 0, %s47
    %s65 = sphi 0, %s65
    %s67 = sphi 0, %s65
    %s68 = sphi 0, %s67
    %s82 = sphi 0, %s68
    %s88 = sphi 0, %s90
    %s91 = sphi 0, %s88
    %s92 = sphi 0, %s91
    %s108 = sphi 0, %s92
    %s114 = sphi 0, %s116
    %s117 = sphi 0, %s114
    %s118 = sphi 0, %s117
    %s134 = sphi 0, %s118
  $region4: #{fwd.10} parent=0 // loop_header_branch
    %13 = sbr.rel (%p11) target = $region8
  $region5: #{fwd.10} parent=0 // loop_body
    %s15 = ssub.s32 %s10, 1
    %s16 = ssub.s32 %s10, 2
    %s17 = sadd.s32 %s10, 1
    %s18 = ssub.s32 %s10, %s17
    %p19 = scmp.eq.s32.totalorder %s18, 0
    %s21 = sadd.s32 %s20, 1
    %s22 = scalar_select %p19, %s20, %s21
    %p25 = pneg %p19
    %p26 = scmp.eq.s32.totalorder %s10, 1
    %p27 = por %p25, %p26
    %p28 = scmp.ne.s32.totalorder %s20, %s23
    %p29 = scmp.eq.s32.totalorder %s10, 0
    %p30 = por %p28, %p29
    %p31 = scmp.ne.s32.totalorder %s20, %s23
    %p32 = scmp.eq.s32.totalorder %s15, 1
    %p33 = por %p31, %p32
    %p34 = scmp.ne.s32.totalorder %s23, %s24
    %p35 = scmp.eq.s32.totalorder %s15, 0
    %p36 = por %p34, %p35
    %p37 = scmp.ne.s32.totalorder %s23, %s24
    %p38 = scmp.eq.s32.totalorder %s16, 1
    %p39 = por %p37, %p38
    %p41 = scmp.ne.s32.totalorder %s24, %s40
    %p42 = scmp.eq.s32.totalorder %s16, 0
    %p43 = por %p41, %p42
    %s45 = sadd.s32 %s44, 1
    %p48 = scmp.eq.s32.totalorder %s10, 1
    %p49 = scmp.ne.s32.totalorder %s44, %s46
    %p50 = scmp.eq.s32.totalorder %s10, 0
    %p51 = por %p49, %p50
    %p52 = scmp.ne.s32.totalorder %s44, %s46
    %p53 = scmp.eq.s32.totalorder %s15, 1
    %p54 = por %p52, %p53
    %p55 = scmp.ne.s32.totalorder %s46, %s47
    %p56 = scmp.eq.s32.totalorder %s15, 0
    %p57 = por %p55, %p56
    %p58 = scmp.ne.s32.totalorder %s46, %s47
    %p59 = scmp.eq.s32.totalorder %s16, 1
    %p60 = por %p58, %p59
    %p62 = scmp.ne.s32.totalorder %s47, %s61
    %p63 = scmp.eq.s32.totalorder %s16, 0
    %p64 = por %p62, %p63
    %s66 = sadd.s32 %s65, 1
    %p69 = scmp.eq.s32.totalorder %s10, 1
    %p70 = scmp.ne.s32.totalorder %s65, %s67
    %p71 = scmp.eq.s32.totalorder %s10, 0
    %p72 = por %p70, %p71
    %p73 = scmp.ne.s32.totalorder %s65, %s67
    %p74 = scmp.eq.s32.totalorder %s15, 1
    %p75 = por %p73, %p74
    %p76 = scmp.ne.s32.totalorder %s67, %s68
    %p77 = scmp.eq.s32.totalorder %s15, 0
    %p78 = por %p76, %p77
    %p79 = scmp.ne.s32.totalorder %s67, %s68
    %p80 = scmp.eq.s32.totalorder %s16, 1
    %p81 = por %p79, %p80
    %p83 = scmp.ne.s32.totalorder %s68, %s82
    %p84 = scmp.eq.s32.totalorder %s16, 0
    %p85 = por %p83, %p84
    %s86 = ssub.s32 %s10, %s17
    %p87 = scmp.eq.s32.totalorder %s86, 0
    %s89 = sadd.s32 %s88, 1
    %s90 = scalar_select %p87, %s88, %s89
    %p93 = pneg %p87
    %p94 = scmp.eq.s32.totalorder %s10, 1
    %p95 = por %p93, %p94
    %p96 = scmp.ne.s32.totalorder %s88, %s91
    %p97 = scmp.eq.s32.totalorder %s10, 0
    %p98 = por %p96, %p97
    %p99 = scmp.ne.s32.totalorder %s88, %s91
    %p100 = scmp.eq.s32.totalorder %s15, 1
    %p101 = por %p99, %p100
    %p102 = scmp.ne.s32.totalorder %s91, %s92
    %p103 = scmp.eq.s32.totalorder %s15, 0
    %p104 = por %p102, %p103
    %p105 = scmp.ne.s32.totalorder %s91, %s92
    %p106 = scmp.eq.s32.totalorder %s16, 1
    %p107 = por %p105, %p106
    %p109 = scmp.ne.s32.totalorder %s92, %s108
    %p110 = scmp.eq.s32.totalorder %s16, 0
    %p111 = por %p109, %p110
    %s112 = ssub.s32 %s10, %s17
    %p113 = scmp.eq.s32.totalorder %s112, 0
    %s115 = sadd.s32 %s114, 1
    %s116 = scalar_select %p113, %s114, %s115
    %p119 = pneg %p113
    %p120 = scmp.eq.s32.totalorder %s10, 1
    %p121 = por %p119, %p120
    %p122 = scmp.ne.s32.totalorder %s114, %s117
    %p123 = scmp.eq.s32.totalorder %s10, 0
    %p124 = por %p122, %p123
    %p125 = scmp.ne.s32.totalorder %s114, %s117
    %p126 = scmp.eq.s32.totalorder %s15, 1
    %p127 = por %p125, %p126
    %p128 = scmp.ne.s32.totalorder %s117, %s118
    %p129 = scmp.eq.s32.totalorder %s15, 0
    %p130 = por %p128, %p129
    %p131 = scmp.ne.s32.totalorder %s117, %s118
    %p132 = scmp.eq.s32.totalorder %s16, 1
    %p133 = por %p131, %p132
    %p135 = scmp.ne.s32.totalorder %s118, %s134
    %p136 = scmp.eq.s32.totalorder %s16, 0
    %p137 = por %p135, %p136
    %p138 = scmp.le.s32.totalorder 1, %s10
    %p139 = scmp.lt.s32.totalorder %s10, 3
    %p140 = pnand %p138, %p139
    %p141 = pneg %p140
    // Predicated region
    $region9: #{fwd.10} parent=5 // pred_check
      _
    $region10: #{fwd.10} parent=5 // pred_check_branch
      %143 = sbr.rel (%p140) target = $region12
    $region11: #{fwd.10} parent=5 // pred_region
      %s144 = ssub.s32 %s10, 1
      // Predicated region
      $region13: #{fwd.10} parent=11 // pred_check
        %p145 = pneg %p57
      $region14: #{fwd.10} parent=11 // pred_check_branch
        %147 = sbr.rel (%p145) target = $region16
      $region15: #{fwd.10} parent=11 // pred_region
        _
      $region16: #{fwd.10} parent=11 // pred_fallthru
        _
      // Predicated region
      $region17: #{fwd.10} parent=11 // pred_check
        %p148 = pneg %p78
      $region18: #{fwd.10} parent=11 // pred_check_branch
        %150 = sbr.rel (%p148) target = $region20
      $region19: #{fwd.10} parent=11 // pred_region
        _
      $region20: #{fwd.10} parent=11 // pred_fallthru
        _
    $region12: #{fwd.10} parent=5 // pred_fallthru
      _
    %p151 = scmp.lt.s32.totalorder %s10, 2
    // Predicated region
    $region21: #{fwd.10} parent=5 // pred_check
      %p152 = pneg %p151
    $region22: #{fwd.10} parent=5 // pred_check_branch
      %154 = sbr.rel (%p152) target = $region24
    $region23: #{fwd.10} parent=5 // pred_region
      // Predicated region
      $region25: #{fwd.10} parent=23 // pred_check
        %p155 = pneg %p30
      $region26: #{fwd.10} parent=23 // pred_check_branch
        %157 = sbr.rel (%p155) target = $region28
      $region27: #{fwd.10} parent=23 // pred_region
        %s158 = smul.u32 128, %s10
        %p159 = scmp.lt.s32.totalorder %s158, 255
        %s160 = scalar_select %p159, %s158, 255
        %s161 = smul.addr %s160, 2
        %s162 = smul.addr %s161, 4
        %s163 = scalar_lea.vmem %s0, %s162
        %s164 = smul.u32 128, %s10
      $region28: #{fwd.10} parent=23 // pred_fallthru
        _
      // Predicated region
      $region29: #{fwd.10} parent=23 // pred_check
        %p165 = pneg %p98
      $region30: #{fwd.10} parent=23 // pred_check_branch
        %167 = sbr.rel (%p165) target = $region32
      $region31: #{fwd.10} parent=23 // pred_region
        %s168 = smul.u32 128, %s10
        %p169 = scmp.lt.s32.totalorder %s168, 255
        %s170 = scalar_select %p169, %s168, 255
        %s171 = smul.addr %s170, 4
        %s172 = scalar_lea.vmem %s3, %s171
        %s173 = smul.u32 128, %s10
      $region32: #{fwd.10} parent=23 // pred_fallthru
        _
    $region24: #{fwd.10} parent=5 // pred_fallthru
      _
    %p174 = scmp.le.s32.totalorder 1, %s10
    %p175 = scmp.lt.s32.totalorder %s10, 3
    %p176 = pnand %p174, %p175
    %p177 = pneg %p176
    // Predicated region
    $region33: #{fwd.10} parent=5 // pred_check
      _
    $region34: #{fwd.10} parent=5 // pred_check_branch
      %179 = sbr.rel (%p176) target = $region36
    $region35: #{fwd.10} parent=5 // pred_region
      %s180 = ssub.s32 %s10, 1
      %s181 = smul.u32 128, %s15
      %p182 = scmp.lt.s32.totalorder %s181, 255
      %s183 = scalar_select %p182, %s181, 255
      %s184 = smul.addr %s183, 2
      %s185 = smul.addr %s184, 4
      %s186 = scalar_lea.vmem %s0, %s185
      %p187 = pneg %p36
      %p188 = pneg %p33
      %p189 = pneg %p57
      %p190 = pneg %p54
      %p191 = pneg %p78
      %p192 = pneg %p75
      %s193 = smul.u32 128, %s15
      %p194 = scmp.lt.s32.totalorder %s193, 255
      %s195 = scalar_select %p194, %s193, 255
      %s196 = smul.addr %s195, 4
      %s197 = scalar_lea.vmem %s3, %s196
      %p198 = pneg %p104
      %p199 = pneg %p101
      %p200 = pneg %p130
      %p201 = pneg %p127
      %s202 = smul.u32 128, %s15
      %p203 = scmp.lt.s32.totalorder %s202, 255
      %s204 = scalar_select %p203, %s202, 255
      %s205 = smul.addr %s204, 4
      %s206 = scalar_lea.vmem %s4, %s205
      %s207 = smul.u32 128, %s15
      %p208 = scmp.lt.s32.totalorder %s207, 255
      %s209 = scalar_select %p208, %s207, 255
      %s210 = smul.addr %s209, 2
      %s211 = smul.addr %s210, 4
      %s212 = scalar_lea.vmem %s0, %s211
      %s213 = smul.u32 128, %s15
      %s214 = smul.u32 128, %s15
      %p215 = scmp.lt.s32.totalorder %s214, 255
      %s216 = scalar_select %p215, %s214, 255
      %s217 = smul.addr %s216, 4
      %s218 = scalar_lea.vmem %s3, %s217
      %s219 = smul.u32 128, %s15
      %s220 = smul.u32 128, %s15
      %p221 = scmp.lt.s32.totalorder %s220, 255
      %s222 = scalar_select %p221, %s220, 255
      %s223 = smul.addr %s222, 4
      %s224 = scalar_lea.vmem %s4, %s223
      %s225 = smul.u32 128, %s15
      %v227 = vld [vmem:[%s212] sm:$0xff]
      %v228 = vld [vmem:[%s212 + $0x8] sm:$0xff]
      %v229 = vld [vmem:[%s212 + $0x10] sm:$0xff]
      %v230 = vld [vmem:[%s212 + $0x18] sm:$0xff]
      %v231 = vld [vmem:[%s212 + $0x20] sm:$0xff]
      %v232 = vld [vmem:[%s212 + $0x28] sm:$0xff]
      %v233 = vld [vmem:[%s212 + $0x30] sm:$0xff]
      %v234 = vld [vmem:[%s212 + $0x38] sm:$0xff]
      %v235 = vld [vmem:[%s212 + $0x40] sm:$0xff]
      %v236 = vld [vmem:[%s212 + $0x48] sm:$0xff]
      %v237 = vld [vmem:[%s212 + $0x50] sm:$0xff]
      %v238 = vld [vmem:[%s212 + $0x58] sm:$0xff]
      %v239 = vld [vmem:[%s212 + $0x60] sm:$0xff]
      %v240 = vld [vmem:[%s212 + $0x68] sm:$0xff]
      %v241 = vld [vmem:[%s212 + $0x70] sm:$0xff]
      %v242 = vld [vmem:[%s212 + $0x78] sm:$0xff]
      %v243 = vld [vmem:[%s212 + $0x80] sm:$0xff]
      %v244 = vld [vmem:[%s212 + $0x88] sm:$0xff]
      %v245 = vld [vmem:[%s212 + $0x90] sm:$0xff]
      %v246 = vld [vmem:[%s212 + $0x98] sm:$0xff]
      %v247 = vld [vmem:[%s212 + $0xa0] sm:$0xff]
      %v248 = vld [vmem:[%s212 + $0xa8] sm:$0xff]
      %v249 = vld [vmem:[%s212 + $0xb0] sm:$0xff]
      %v250 = vld [vmem:[%s212 + $0xb8] sm:$0xff]
      %v251 = vld [vmem:[%s212 + $0xc0] sm:$0xff]
      %v252 = vld [vmem:[%s212 + $0xc8] sm:$0xff]
      %v253 = vld [vmem:[%s212 + $0xd0] sm:$0xff]
      %v254 = vld [vmem:[%s212 + $0xd8] sm:$0xff]
      %v255 = vld [vmem:[%s212 + $0xe0] sm:$0xff]
      %v256 = vld [vmem:[%s212 + $0xe8] sm:$0xff]
      %v257 = vld [vmem:[%s212 + $0xf0] sm:$0xff]
      %v258 = vld [vmem:[%s212 + $0xf8] sm:$0xff]
      %v259 = vld [vmem:[%s212 + $0x100] sm:$0xff]
      %v260 = vld [vmem:[%s212 + $0x108] sm:$0xff]
      %v261 = vld [vmem:[%s212 + $0x110] sm:$0xff]
      %v262 = vld [vmem:[%s212 + $0x118] sm:$0xff]
      %v263 = vld [vmem:[%s212 + $0x120] sm:$0xff]
      %v264 = vld [vmem:[%s212 + $0x128] sm:$0xff]
      %v265 = vld [vmem:[%s212 + $0x130] sm:$0xff]
      %v266 = vld [vmem:[%s212 + $0x138] sm:$0xff]
      %v267 = vld [vmem:[%s212 + $0x140] sm:$0xff]
      %v268 = vld [vmem:[%s212 + $0x148] sm:$0xff]
      %v269 = vld [vmem:[%s212 + $0x150] sm:$0xff]
      %v270 = vld [vmem:[%s212 + $0x158] sm:$0xff]
      %v271 = vld [vmem:[%s212 + $0x160] sm:$0xff]
      %v272 = vld [vmem:[%s212 + $0x168] sm:$0xff]
      %v273 = vld [vmem:[%s212 + $0x170] sm:$0xff]
      %v274 = vld [vmem:[%s212 + $0x178] sm:$0xff]
      %v275 = vld [vmem:[%s212 + $0x180] sm:$0xff]
      %v276 = vld [vmem:[%s212 + $0x188] sm:$0xff]
      %v277 = vld [vmem:[%s212 + $0x190] sm:$0xff]
      %v278 = vld [vmem:[%s212 + $0x198] sm:$0xff]
      %v279 = vld [vmem:[%s212 + $0x1a0] sm:$0xff]
      %v280 = vld [vmem:[%s212 + $0x1a8] sm:$0xff]
      %v281 = vld [vmem:[%s212 + $0x1b0] sm:$0xff]
      %v282 = vld [vmem:[%s212 + $0x1b8] sm:$0xff]
      %v283 = vld [vmem:[%s212 + $0x1c0] sm:$0xff]
      %v284 = vld [vmem:[%s212 + $0x1c8] sm:$0xff]
      %v285 = vld [vmem:[%s212 + $0x1d0] sm:$0xff]
      %v286 = vld [vmem:[%s212 + $0x1d8] sm:$0xff]
      %v287 = vld [vmem:[%s212 + $0x1e0] sm:$0xff]
      %v288 = vld [vmem:[%s212 + $0x1e8] sm:$0xff]
      %v289 = vld [vmem:[%s212 + $0x1f0] sm:$0xff]
      %v290 = vld [vmem:[%s212 + $0x1f8] sm:$0xff]
      %v291 = vld [vmem:[%s212 + $0x200] sm:$0xff]
      %v292 = vld [vmem:[%s212 + $0x208] sm:$0xff]
      %v293 = vld [vmem:[%s212 + $0x210] sm:$0xff]
      %v294 = vld [vmem:[%s212 + $0x218] sm:$0xff]
      %v295 = vld [vmem:[%s212 + $0x220] sm:$0xff]
      %v296 = vld [vmem:[%s212 + $0x228] sm:$0xff]
      %v297 = vld [vmem:[%s212 + $0x230] sm:$0xff]
      %v298 = vld [vmem:[%s212 + $0x238] sm:$0xff]
      %v299 = vld [vmem:[%s212 + $0x240] sm:$0xff]
      %v300 = vld [vmem:[%s212 + $0x248] sm:$0xff]
      %v301 = vld [vmem:[%s212 + $0x250] sm:$0xff]
      %v302 = vld [vmem:[%s212 + $0x258] sm:$0xff]
      %v303 = vld [vmem:[%s212 + $0x260] sm:$0xff]
      %v304 = vld [vmem:[%s212 + $0x268] sm:$0xff]
      %v305 = vld [vmem:[%s212 + $0x270] sm:$0xff]
      %v306 = vld [vmem:[%s212 + $0x278] sm:$0xff]
      %v307 = vld [vmem:[%s212 + $0x280] sm:$0xff]
      %v308 = vld [vmem:[%s212 + $0x288] sm:$0xff]
      %v309 = vld [vmem:[%s212 + $0x290] sm:$0xff]
      %v310 = vld [vmem:[%s212 + $0x298] sm:$0xff]
      %v311 = vld [vmem:[%s212 + $0x2a0] sm:$0xff]
      %v312 = vld [vmem:[%s212 + $0x2a8] sm:$0xff]
      %v313 = vld [vmem:[%s212 + $0x2b0] sm:$0xff]
      %v314 = vld [vmem:[%s212 + $0x2b8] sm:$0xff]
      %v315 = vld [vmem:[%s212 + $0x2c0] sm:$0xff]
      %v316 = vld [vmem:[%s212 + $0x2c8] sm:$0xff]
      %v317 = vld [vmem:[%s212 + $0x2d0] sm:$0xff]
      %v318 = vld [vmem:[%s212 + $0x2d8] sm:$0xff]
      %v319 = vld [vmem:[%s212 + $0x2e0] sm:$0xff]
      %v320 = vld [vmem:[%s212 + $0x2e8] sm:$0xff]
      %v321 = vld [vmem:[%s212 + $0x2f0] sm:$0xff]
      %v322 = vld [vmem:[%s212 + $0x2f8] sm:$0xff]
      %v323 = vld [vmem:[%s212 + $0x300] sm:$0xff]
      %v324 = vld [vmem:[%s212 + $0x308] sm:$0xff]
      %v325 = vld [vmem:[%s212 + $0x310] sm:$0xff]
      %v326 = vld [vmem:[%s212 + $0x318] sm:$0xff]
      %v327 = vld [vmem:[%s212 + $0x320] sm:$0xff]
      %v328 = vld [vmem:[%s212 + $0x328] sm:$0xff]
      %v329 = vld [vmem:[%s212 + $0x330] sm:$0xff]
      %v330 = vld [vmem:[%s212 + $0x338] sm:$0xff]
      %v331 = vld [vmem:[%s212 + $0x340] sm:$0xff]
      %v332 = vld [vmem:[%s212 + $0x348] sm:$0xff]
      %v333 = vld [vmem:[%s212 + $0x350] sm:$0xff]
      %v334 = vld [vmem:[%s212 + $0x358] sm:$0xff]
      %v335 = vld [vmem:[%s212 + $0x360] sm:$0xff]
      %v336 = vld [vmem:[%s212 + $0x368] sm:$0xff]
      %v337 = vld [vmem:[%s212 + $0x370] sm:$0xff]
      %v338 = vld [vmem:[%s212 + $0x378] sm:$0xff]
      %v339 = vld [vmem:[%s212 + $0x380] sm:$0xff]
      %v340 = vld [vmem:[%s212 + $0x388] sm:$0xff]
      %v341 = vld [vmem:[%s212 + $0x390] sm:$0xff]
      %v342 = vld [vmem:[%s212 + $0x398] sm:$0xff]
      %v343 = vld [vmem:[%s212 + $0x3a0] sm:$0xff]
      %v344 = vld [vmem:[%s212 + $0x3a8] sm:$0xff]
      %v345 = vld [vmem:[%s212 + $0x3b0] sm:$0xff]
      %v346 = vld [vmem:[%s212 + $0x3b8] sm:$0xff]
      %v347 = vld [vmem:[%s212 + $0x3c0] sm:$0xff]
      %v348 = vld [vmem:[%s212 + $0x3c8] sm:$0xff]
      %v349 = vld [vmem:[%s212 + $0x3d0] sm:$0xff]
      %v350 = vld [vmem:[%s212 + $0x3d8] sm:$0xff]
      %v351 = vld [vmem:[%s212 + $0x3e0] sm:$0xff]
      %v352 = vld [vmem:[%s212 + $0x3e8] sm:$0xff]
      %v353 = vld [vmem:[%s212 + $0x3f0] sm:$0xff]
      %v354 = vld [vmem:[%s212 + $0x3f8] sm:$0xff]
      %v355 = vld [vmem:[%s1] sm:$0xf]
      %v356 = vld [vmem:[%s1 + $0x4] sm:$0xf]
      %v357 = vld [vmem:[%s1 + $0x8] sm:$0xf]
      %v358 = vld [vmem:[%s1 + $0xc] sm:$0xf]
      %v359 = vld [vmem:[%s1 + $0x10] sm:$0xf]
      %v360 = vld [vmem:[%s1 + $0x14] sm:$0xf]
      %v361 = vld [vmem:[%s1 + $0x18] sm:$0xf]
      %v362 = vld [vmem:[%s1 + $0x1c] sm:$0xf]
      %v363 = vld [vmem:[%s1 + $0x20] sm:$0xf]
      %v364 = vld [vmem:[%s1 + $0x24] sm:$0xf]
      %v365 = vld [vmem:[%s1 + $0x28] sm:$0xf]
      %v366 = vld [vmem:[%s1 + $0x2c] sm:$0xf]
      %v367 = vld [vmem:[%s1 + $0x30] sm:$0xf]
      %v368 = vld [vmem:[%s1 + $0x34] sm:$0xf]
      %v369 = vld [vmem:[%s1 + $0x38] sm:$0xf]
      %v370 = vld [vmem:[%s1 + $0x3c] sm:$0xf]
      %v371 = vld [vmem:[%s1 + $0x40] sm:$0xf]
      %v372 = vld [vmem:[%s1 + $0x44] sm:$0xf]
      %v373 = vld [vmem:[%s1 + $0x48] sm:$0xf]
      %v374 = vld [vmem:[%s1 + $0x4c] sm:$0xf]
      %v375 = vld [vmem:[%s1 + $0x50] sm:$0xf]
      %v376 = vld [vmem:[%s1 + $0x54] sm:$0xf]
      %v377 = vld [vmem:[%s1 + $0x58] sm:$0xf]
      %v378 = vld [vmem:[%s1 + $0x5c] sm:$0xf]
      %v379 = vld [vmem:[%s1 + $0x60] sm:$0xf]
      %v380 = vld [vmem:[%s1 + $0x64] sm:$0xf]
      %v381 = vld [vmem:[%s1 + $0x68] sm:$0xf]
      %v382 = vld [vmem:[%s1 + $0x6c] sm:$0xf]
      %v383 = vld [vmem:[%s1 + $0x70] sm:$0xf]
      %v384 = vld [vmem:[%s1 + $0x74] sm:$0xf]
      %v385 = vld [vmem:[%s1 + $0x78] sm:$0xf]
      %v386 = vld [vmem:[%s1 + $0x7c] sm:$0xf]
      %v387 = vld [vmem:[%s2] sm:$0x1]
      %v389 = vlaneseq
      %v390 = vshrl.u32 %v389, 7
      %v391 = vsub.s32 0, %v390
      %v392 = vrot.slane %v387, %v391
      %v522 = vunpack.c.l.b16 %v227
      %v523 = vunpack.c.h.b16 %v227
      %v524 = vunpack.c.l.b16 %v228
      %v525 = vunpack.c.h.b16 %v228
      %v526 = vunpack.c.l.b16 %v229
      %v527 = vunpack.c.h.b16 %v229
      %v528 = vunpack.c.l.b16 %v230
      %v529 = vunpack.c.h.b16 %v230
      %v530 = vunpack.c.l.b16 %v231
      %v531 = vunpack.c.h.b16 %v231
      %v532 = vunpack.c.l.b16 %v232
      %v533 = vunpack.c.h.b16 %v232
      %v534 = vunpack.c.l.b16 %v233
      %v535 = vunpack.c.h.b16 %v233
      %v536 = vunpack.c.l.b16 %v234
      %v537 = vunpack.c.h.b16 %v234
      %v538 = vunpack.c.l.b16 %v235
      %v539 = vunpack.c.h.b16 %v235
      %v540 = vunpack.c.l.b16 %v236
      %v541 = vunpack.c.h.b16 %v236
      %v542 = vunpack.c.l.b16 %v237
      %v543 = vunpack.c.h.b16 %v237
      %v544 = vunpack.c.l.b16 %v238
      %v545 = vunpack.c.h.b16 %v238
      %v546 = vunpack.c.l.b16 %v239
      %v547 = vunpack.c.h.b16 %v239
      %v548 = vunpack.c.l.b16 %v240
      %v549 = vunpack.c.h.b16 %v240
      %v550 = vunpack.c.l.b16 %v241
      %v551 = vunpack.c.h.b16 %v241
      %v552 = vunpack.c.l.b16 %v242
      %v553 = vunpack.c.h.b16 %v242
      %v554 = vunpack.c.l.b16 %v243
      %v555 = vunpack.c.h.b16 %v243
      %v556 = vunpack.c.l.b16 %v244
      %v557 = vunpack.c.h.b16 %v244
      %v558 = vunpack.c.l.b16 %v245
      %v559 = vunpack.c.h.b16 %v245
      %v560 = vunpack.c.l.b16 %v246
      %v561 = vunpack.c.h.b16 %v246
      %v562 = vunpack.c.l.b16 %v247
      %v563 = vunpack.c.h.b16 %v247
      %v564 = vunpack.c.l.b16 %v248
      %v565 = vunpack.c.h.b16 %v248
      %v566 = vunpack.c.l.b16 %v249
      %v567 = vunpack.c.h.b16 %v249
      %v568 = vunpack.c.l.b16 %v250
      %v569 = vunpack.c.h.b16 %v250
      %v570 = vunpack.c.l.b16 %v251
      %v571 = vunpack.c.h.b16 %v251
      %v572 = vunpack.c.l.b16 %v252
      %v573 = vunpack.c.h.b16 %v252
      %v574 = vunpack.c.l.b16 %v253
      %v575 = vunpack.c.h.b16 %v253
      %v576 = vunpack.c.l.b16 %v254
      %v577 = vunpack.c.h.b16 %v254
      %v578 = vunpack.c.l.b16 %v255
      %v579 = vunpack.c.h.b16 %v255
      %v580 = vunpack.c.l.b16 %v256
      %v581 = vunpack.c.h.b16 %v256
      %v582 = vunpack.c.l.b16 %v257
      %v583 = vunpack.c.h.b16 %v257
      %v584 = vunpack.c.l.b16 %v258
      %v585 = vunpack.c.h.b16 %v258
      %v586 = vunpack.c.l.b16 %v259
      %v587 = vunpack.c.h.b16 %v259
      %v588 = vunpack.c.l.b16 %v260
      %v589 = vunpack.c.h.b16 %v260
      %v590 = vunpack.c.l.b16 %v261
      %v591 = vunpack.c.h.b16 %v261
      %v592 = vunpack.c.l.b16 %v262
      %v593 = vunpack.c.h.b16 %v262
      %v594 = vunpack.c.l.b16 %v263
      %v595 = vunpack.c.h.b16 %v263
      %v596 = vunpack.c.l.b16 %v264
      %v597 = vunpack.c.h.b16 %v264
      %v598 = vunpack.c.l.b16 %v265
      %v599 = vunpack.c.h.b16 %v265
      %v600 = vunpack.c.l.b16 %v266
      %v601 = vunpack.c.h.b16 %v266
      %v602 = vunpack.c.l.b16 %v267
      %v603 = vunpack.c.h.b16 %v267
      %v604 = vunpack.c.l.b16 %v268
      %v605 = vunpack.c.h.b16 %v268
      %v606 = vunpack.c.l.b16 %v269
      %v607 = vunpack.c.h.b16 %v269
      %v608 = vunpack.c.l.b16 %v270
      %v609 = vunpack.c.h.b16 %v270
      %v610 = vunpack.c.l.b16 %v271
      %v611 = vunpack.c.h.b16 %v271
      %v612 = vunpack.c.l.b16 %v272
      %v613 = vunpack.c.h.b16 %v272
      %v614 = vunpack.c.l.b16 %v273
      %v615 = vunpack.c.h.b16 %v273
      %v616 = vunpack.c.l.b16 %v274
      %v617 = vunpack.c.h.b16 %v274
      %v618 = vunpack.c.l.b16 %v275
      %v619 = vunpack.c.h.b16 %v275
      %v620 = vunpack.c.l.b16 %v276
      %v621 = vunpack.c.h.b16 %v276
      %v622 = vunpack.c.l.b16 %v277
      %v623 = vunpack.c.h.b16 %v277
      %v624 = vunpack.c.l.b16 %v278
      %v625 = vunpack.c.h.b16 %v278
      %v626 = vunpack.c.l.b16 %v279
      %v627 = vunpack.c.h.b16 %v279
      %v628 = vunpack.c.l.b16 %v280
      %v629 = vunpack.c.h.b16 %v280
      %v630 = vunpack.c.l.b16 %v281
      %v631 = vunpack.c.h.b16 %v281
      %v632 = vunpack.c.l.b16 %v282
      %v633 = vunpack.c.h.b16 %v282
      %v634 = vunpack.c.l.b16 %v283
      %v635 = vunpack.c.h.b16 %v283
      %v636 = vunpack.c.l.b16 %v284
      %v637 = vunpack.c.h.b16 %v284
      %v638 = vunpack.c.l.b16 %v285
      %v639 = vunpack.c.h.b16 %v285
      %v640 = vunpack.c.l.b16 %v286
      %v641 = vunpack.c.h.b16 %v286
      %v642 = vunpack.c.l.b16 %v287
      %v643 = vunpack.c.h.b16 %v287
      %v644 = vunpack.c.l.b16 %v288
      %v645 = vunpack.c.h.b16 %v288
      %v646 = vunpack.c.l.b16 %v289
      %v647 = vunpack.c.h.b16 %v289
      %v648 = vunpack.c.l.b16 %v290
      %v649 = vunpack.c.h.b16 %v290
      %v650 = vunpack.c.l.b16 %v291
      %v651 = vunpack.c.h.b16 %v291
      %v652 = vunpack.c.l.b16 %v292
      %v653 = vunpack.c.h.b16 %v292
      %v654 = vunpack.c.l.b16 %v293
      %v655 = vunpack.c.h.b16 %v293
      %v656 = vunpack.c.l.b16 %v294
      %v657 = vunpack.c.h.b16 %v294
      %v658 = vunpack.c.l.b16 %v295
      %v659 = vunpack.c.h.b16 %v295
      %v660 = vunpack.c.l.b16 %v296
      %v661 = vunpack.c.h.b16 %v296
      %v662 = vunpack.c.l.b16 %v297
      %v663 = vunpack.c.h.b16 %v297
      %v664 = vunpack.c.l.b16 %v298
      %v665 = vunpack.c.h.b16 %v298
      %v666 = vunpack.c.l.b16 %v299
      %v667 = vunpack.c.h.b16 %v299
      %v668 = vunpack.c.l.b16 %v300
      %v669 = vunpack.c.h.b16 %v300
      %v670 = vunpack.c.l.b16 %v301
      %v671 = vunpack.c.h.b16 %v301
      %v672 = vunpack.c.l.b16 %v302
      %v673 = vunpack.c.h.b16 %v302
      %v674 = vunpack.c.l.b16 %v303
      %v675 = vunpack.c.h.b16 %v303
      %v676 = vunpack.c.l.b16 %v304
      %v677 = vunpack.c.h.b16 %v304
      %v678 = vunpack.c.l.b16 %v305
      %v679 = vunpack.c.h.b16 %v305
      %v680 = vunpack.c.l.b16 %v306
      %v681 = vunpack.c.h.b16 %v306
      %v682 = vunpack.c.l.b16 %v307
      %v683 = vunpack.c.h.b16 %v307
      %v684 = vunpack.c.l.b16 %v308
      %v685 = vunpack.c.h.b16 %v308
      %v686 = vunpack.c.l.b16 %v309
      %v687 = vunpack.c.h.b16 %v309
      %v688 = vunpack.c.l.b16 %v310
      %v689 = vunpack.c.h.b16 %v310
      %v690 = vunpack.c.l.b16 %v311
      %v691 = vunpack.c.h.b16 %v311
      %v692 = vunpack.c.l.b16 %v312
      %v693 = vunpack.c.h.b16 %v312
      %v694 = vunpack.c.l.b16 %v313
      %v695 = vunpack.c.h.b16 %v313
      %v696 = vunpack.c.l.b16 %v314
      %v697 = vunpack.c.h.b16 %v314
      %v698 = vunpack.c.l.b16 %v315
      %v699 = vunpack.c.h.b16 %v315
      %v700 = vunpack.c.l.b16 %v316
      %v701 = vunpack.c.h.b16 %v316
      %v702 = vunpack.c.l.b16 %v317
      %v703 = vunpack.c.h.b16 %v317
      %v704 = vunpack.c.l.b16 %v318
      %v705 = vunpack.c.h.b16 %v318
      %v706 = vunpack.c.l.b16 %v319
      %v707 = vunpack.c.h.b16 %v319
      %v708 = vunpack.c.l.b16 %v320
      %v709 = vunpack.c.h.b16 %v320
      %v710 = vunpack.c.l.b16 %v321
      %v711 = vunpack.c.h.b16 %v321
      %v712 = vunpack.c.l.b16 %v322
      %v713 = vunpack.c.h.b16 %v322
      %v714 = vunpack.c.l.b16 %v323
      %v715 = vunpack.c.h.b16 %v323
      %v716 = vunpack.c.l.b16 %v324
      %v717 = vunpack.c.h.b16 %v324
      %v718 = vunpack.c.l.b16 %v325
      %v719 = vunpack.c.h.b16 %v325
      %v720 = vunpack.c.l.b16 %v326
      %v721 = vunpack.c.h.b16 %v326
      %v722 = vunpack.c.l.b16 %v327
      %v723 = vunpack.c.h.b16 %v327
      %v724 = vunpack.c.l.b16 %v328
      %v725 = vunpack.c.h.b16 %v328
      %v726 = vunpack.c.l.b16 %v329
      %v727 = vunpack.c.h.b16 %v329
      %v728 = vunpack.c.l.b16 %v330
      %v729 = vunpack.c.h.b16 %v330
      %v730 = vunpack.c.l.b16 %v331
      %v731 = vunpack.c.h.b16 %v331
      %v732 = vunpack.c.l.b16 %v332
      %v733 = vunpack.c.h.b16 %v332
      %v734 = vunpack.c.l.b16 %v333
      %v735 = vunpack.c.h.b16 %v333
      %v736 = vunpack.c.l.b16 %v334
      %v737 = vunpack.c.h.b16 %v334
      %v738 = vunpack.c.l.b16 %v335
      %v739 = vunpack.c.h.b16 %v335
      %v740 = vunpack.c.l.b16 %v336
      %v741 = vunpack.c.h.b16 %v336
      %v742 = vunpack.c.l.b16 %v337
      %v743 = vunpack.c.h.b16 %v337
      %v744 = vunpack.c.l.b16 %v338
      %v745 = vunpack.c.h.b16 %v338
      %v746 = vunpack.c.l.b16 %v339
      %v747 = vunpack.c.h.b16 %v339
      %v748 = vunpack.c.l.b16 %v340
      %v749 = vunpack.c.h.b16 %v340
      %v750 = vunpack.c.l.b16 %v341
      %v751 = vunpack.c.h.b16 %v341
      %v752 = vunpack.c.l.b16 %v342
      %v753 = vunpack.c.h.b16 %v342
      %v754 = vunpack.c.l.b16 %v343
      %v755 = vunpack.c.h.b16 %v343
      %v756 = vunpack.c.l.b16 %v344
      %v757 = vunpack.c.h.b16 %v344
      %v758 = vunpack.c.l.b16 %v345
      %v759 = vunpack.c.h.b16 %v345
      %v760 = vunpack.c.l.b16 %v346
      %v761 = vunpack.c.h.b16 %v346
      %v762 = vunpack.c.l.b16 %v347
      %v763 = vunpack.c.h.b16 %v347
      %v764 = vunpack.c.l.b16 %v348
      %v765 = vunpack.c.h.b16 %v348
      %v766 = vunpack.c.l.b16 %v349
      %v767 = vunpack.c.h.b16 %v349
      %v768 = vunpack.c.l.b16 %v350
      %v769 = vunpack.c.h.b16 %v350
      %v770 = vunpack.c.l.b16 %v351
      %v771 = vunpack.c.h.b16 %v351
      %v772 = vunpack.c.l.b16 %v352
      %v773 = vunpack.c.h.b16 %v352
      %v774 = vunpack.c.l.b16 %v353
      %v775 = vunpack.c.h.b16 %v353
      %v776 = vunpack.c.l.b16 %v354
      %v777 = vunpack.c.h.b16 %v354
      %v778 = vpack.c.b16 %v524, %v522
      %v779 = vpack.c.b16 %v525, %v523
      %v780 = vpack.c.b16 %v528, %v526
      %v781 = vpack.c.b16 %v529, %v527
      %v782 = vpack.c.b16 %v532, %v530
      %v783 = vpack.c.b16 %v533, %v531
      %v784 = vpack.c.b16 %v536, %v534
      %v785 = vpack.c.b16 %v537, %v535
      %v786 = vpack.c.b16 %v540, %v538
      %v787 = vpack.c.b16 %v541, %v539
      %v788 = vpack.c.b16 %v544, %v542
      %v789 = vpack.c.b16 %v545, %v543
      %v790 = vpack.c.b16 %v548, %v546
      %v791 = vpack.c.b16 %v549, %v547
      %v792 = vpack.c.b16 %v552, %v550
      %v793 = vpack.c.b16 %v553, %v551
      %v794 = vpack.c.b16 %v556, %v554
      %v795 = vpack.c.b16 %v557, %v555
      %v796 = vpack.c.b16 %v560, %v558
      %v797 = vpack.c.b16 %v561, %v559
      %v798 = vpack.c.b16 %v564, %v562
      %v799 = vpack.c.b16 %v565, %v563
      %v800 = vpack.c.b16 %v568, %v566
      %v801 = vpack.c.b16 %v569, %v567
      %v802 = vpack.c.b16 %v572, %v570
      %v803 = vpack.c.b16 %v573, %v571
      %v804 = vpack.c.b16 %v576, %v574
      %v805 = vpack.c.b16 %v577, %v575
      %v806 = vpack.c.b16 %v580, %v578
      %v807 = vpack.c.b16 %v581, %v579
      %v808 = vpack.c.b16 %v584, %v582
      %v809 = vpack.c.b16 %v585, %v583
      %v810 = vpack.c.b16 %v588, %v586
      %v811 = vpack.c.b16 %v589, %v587
      %v812 = vpack.c.b16 %v592, %v590
      %v813 = vpack.c.b16 %v593, %v591
      %v814 = vpack.c.b16 %v596, %v594
      %v815 = vpack.c.b16 %v597, %v595
      %v816 = vpack.c.b16 %v600, %v598
      %v817 = vpack.c.b16 %v601, %v599
      %v818 = vpack.c.b16 %v604, %v602
      %v819 = vpack.c.b16 %v605, %v603
      %v820 = vpack.c.b16 %v608, %v606
      %v821 = vpack.c.b16 %v609, %v607
      %v822 = vpack.c.b16 %v612, %v610
      %v823 = vpack.c.b16 %v613, %v611
      %v824 = vpack.c.b16 %v616, %v614
      %v825 = vpack.c.b16 %v617, %v615
      %v826 = vpack.c.b16 %v620, %v618
      %v827 = vpack.c.b16 %v621, %v619
      %v828 = vpack.c.b16 %v624, %v622
      %v829 = vpack.c.b16 %v625, %v623
      %v830 = vpack.c.b16 %v628, %v626
      %v831 = vpack.c.b16 %v629, %v627
      %v832 = vpack.c.b16 %v632, %v630
      %v833 = vpack.c.b16 %v633, %v631
      %v834 = vpack.c.b16 %v636, %v634
      %v835 = vpack.c.b16 %v637, %v635
      %v836 = vpack.c.b16 %v640, %v638
      %v837 = vpack.c.b16 %v641, %v639
      %v838 = vpack.c.b16 %v644, %v642
      %v839 = vpack.c.b16 %v645, %v643
      %v840 = vpack.c.b16 %v648, %v646
      %v841 = vpack.c.b16 %v649, %v647
      %v842 = vpack.c.b16 %v652, %v650
      %v843 = vpack.c.b16 %v653, %v651
      %v844 = vpack.c.b16 %v656, %v654
      %v845 = vpack.c.b16 %v657, %v655
      %v846 = vpack.c.b16 %v660, %v658
      %v847 = vpack.c.b16 %v661, %v659
      %v848 = vpack.c.b16 %v664, %v662
      %v849 = vpack.c.b16 %v665, %v663
      %v850 = vpack.c.b16 %v668, %v666
      %v851 = vpack.c.b16 %v669, %v667
      %v852 = vpack.c.b16 %v672, %v670
      %v853 = vpack.c.b16 %v673, %v671
      %v854 = vpack.c.b16 %v676, %v674
      %v855 = vpack.c.b16 %v677, %v675
      %v856 = vpack.c.b16 %v680, %v678
      %v857 = vpack.c.b16 %v681, %v679
      %v858 = vpack.c.b16 %v684, %v682
      %v859 = vpack.c.b16 %v685, %v683
      %v860 = vpack.c.b16 %v688, %v686
      %v861 = vpack.c.b16 %v689, %v687
      %v862 = vpack.c.b16 %v692, %v690
      %v863 = vpack.c.b16 %v693, %v691
      %v864 = vpack.c.b16 %v696, %v694
      %v865 = vpack.c.b16 %v697, %v695
      %v866 = vpack.c.b16 %v700, %v698
      %v867 = vpack.c.b16 %v701, %v699
      %v868 = vpack.c.b16 %v704, %v702
      %v869 = vpack.c.b16 %v705, %v703
      %v870 = vpack.c.b16 %v708, %v706
      %v871 = vpack.c.b16 %v709, %v707
      %v872 = vpack.c.b16 %v712, %v710
      %v873 = vpack.c.b16 %v713, %v711
      %v874 = vpack.c.b16 %v716, %v714
      %v875 = vpack.c.b16 %v717, %v715
      %v876 = vpack.c.b16 %v720, %v718
      %v877 = vpack.c.b16 %v721, %v719
      %v878 = vpack.c.b16 %v724, %v722
      %v879 = vpack.c.b16 %v725, %v723
      %v880 = vpack.c.b16 %v728, %v726
      %v881 = vpack.c.b16 %v729, %v727
      %v882 = vpack.c.b16 %v732, %v730
      %v883 = vpack.c.b16 %v733, %v731
      %v884 = vpack.c.b16 %v736, %v734
      %v885 = vpack.c.b16 %v737, %v735
      %v886 = vpack.c.b16 %v740, %v738
      %v887 = vpack.c.b16 %v741, %v739
      %v888 = vpack.c.b16 %v744, %v742
      %v889 = vpack.c.b16 %v745, %v743
      %v890 = vpack.c.b16 %v748, %v746
      %v891 = vpack.c.b16 %v749, %v747
      %v892 = vpack.c.b16 %v752, %v750
      %v893 = vpack.c.b16 %v753, %v751
      %v894 = vpack.c.b16 %v756, %v754
      %v895 = vpack.c.b16 %v757, %v755
      %v896 = vpack.c.b16 %v760, %v758
      %v897 = vpack.c.b16 %v761, %v759
      %v898 = vpack.c.b16 %v764, %v762
      %v899 = vpack.c.b16 %v765, %v763
      %v900 = vpack.c.b16 %v768, %v766
      %v901 = vpack.c.b16 %v769, %v767
      %v902 = vpack.c.b16 %v772, %v770
      %v903 = vpack.c.b16 %v773, %v771
      %v904 = vpack.c.b16 %v776, %v774
      %v905 = vpack.c.b16 %v777, %v775
      %v1066 = vunpack.c.l.b16 %v355
      %v1067 = vunpack.c.l.b16 %v356
      %v1068 = vunpack.c.l.b16 %v357
      %v1069 = vunpack.c.l.b16 %v358
      %v1070 = vunpack.c.l.b16 %v359
      %v1071 = vunpack.c.l.b16 %v360
      %v1072 = vunpack.c.l.b16 %v361
      %v1073 = vunpack.c.l.b16 %v362
      %v1074 = vunpack.c.l.b16 %v363
      %v1075 = vunpack.c.l.b16 %v364
      %v1076 = vunpack.c.l.b16 %v365
      %v1077 = vunpack.c.l.b16 %v366
      %v1078 = vunpack.c.l.b16 %v367
      %v1079 = vunpack.c.l.b16 %v368
      %v1080 = vunpack.c.l.b16 %v369
      %v1081 = vunpack.c.l.b16 %v370
      %v1082 = vunpack.c.l.b16 %v371
      %v1083 = vunpack.c.l.b16 %v372
      %v1084 = vunpack.c.l.b16 %v373
      %v1085 = vunpack.c.l.b16 %v374
      %v1086 = vunpack.c.l.b16 %v375
      %v1087 = vunpack.c.l.b16 %v376
      %v1088 = vunpack.c.l.b16 %v377
      %v1089 = vunpack.c.l.b16 %v378
      %v1090 = vunpack.c.l.b16 %v379
      %v1091 = vunpack.c.l.b16 %v380
      %v1092 = vunpack.c.l.b16 %v381
      %v1093 = vunpack.c.l.b16 %v382
      %v1094 = vunpack.c.l.b16 %v383
      %v1095 = vunpack.c.l.b16 %v384
      %v1096 = vunpack.c.l.b16 %v385
      %v1097 = vunpack.c.l.b16 %v386
      %v1098 = vpack.c.b16 %v1067, %v1066
      %v1099 = vpack.c.b16 %v1069, %v1068
      %v1100 = vpack.c.b16 %v1071, %v1070
      %v1101 = vpack.c.b16 %v1073, %v1072
      %v1102 = vpack.c.b16 %v1075, %v1074
      %v1103 = vpack.c.b16 %v1077, %v1076
      %v1104 = vpack.c.b16 %v1079, %v1078
      %v1105 = vpack.c.b16 %v1081, %v1080
      %v1106 = vpack.c.b16 %v1083, %v1082
      %v1107 = vpack.c.b16 %v1085, %v1084
      %v1108 = vpack.c.b16 %v1087, %v1086
      %v1109 = vpack.c.b16 %v1089, %v1088
      %v1110 = vpack.c.b16 %v1091, %v1090
      %v1111 = vpack.c.b16 %v1093, %v1092
      %v1112 = vpack.c.b16 %v1095, %v1094
      %v1113 = vpack.c.b16 %v1097, %v1096
      %1130 = vmatprep.subr.bf16.mxu0 0
      %1131 = vmatpush1.bf16.msra.mxu0 %v1098
      %1132 = vmatprep.subr.bf16.mxu0 0
      %1133 = vmatpush1.bf16.msra.mxu0 %v1099
      %1134 = vmatprep.subr.bf16.mxu0 0
      %1135 = vmatpush1.bf16.msra.mxu0 %v1100
      %1136 = vmatprep.subr.bf16.mxu0 0
      %1137 = vmatpush1.bf16.msra.mxu0 %v1101
      %1138 = vmatprep.subr.bf16.mxu0 0
      %1139 = vmatpush1.bf16.msra.mxu0 %v1102
      %1140 = vmatprep.subr.bf16.mxu0 0
      %1141 = vmatpush1.bf16.msra.mxu0 %v1103
      %1142 = vmatprep.subr.bf16.mxu0 0
      %1143 = vmatpush1.bf16.msra.mxu0 %v1104
      %1144 = vmatprep.subr.bf16.mxu0 0
      %1145 = vmatpush1.bf16.msra.mxu0 %v1105
      %1146 = vmatprep.subr.bf16.mxu0 0
      %1147 = vmatpush1.bf16.msra.mxu0 %v1106
      %1148 = vmatprep.subr.bf16.mxu0 0
      %1149 = vmatpush1.bf16.msra.mxu0 %v1107
      %1150 = vmatprep.subr.bf16.mxu0 0
      %1151 = vmatpush1.bf16.msra.mxu0 %v1108
      %1152 = vmatprep.subr.bf16.mxu0 0
      %1153 = vmatpush1.bf16.msra.mxu0 %v1109
      %1154 = vmatprep.subr.bf16.mxu0 0
      %1155 = vmatpush1.bf16.msra.mxu0 %v1110
      %1156 = vmatprep.subr.bf16.mxu0 0
      %1157 = vmatpush1.bf16.msra.mxu0 %v1111
      %1158 = vmatprep.subr.bf16.mxu0 0
      %1159 = vmatpush1.bf16.msra.mxu0 %v1112
      %1160 = vmatprep.subr.bf16.mxu0 0
      %1161 = vmatpush1.bf16.msra.mxu0 %v1113
      %1162 = vmatprep.mubr.bf16.mxu0 %v779
      %1163 = vmatmul.mubr.bf16.gmra.mrb[0].mxu0 %v778
      %v1164 = vpop.f32.mrb[0].mxu0
      %v1165 = vadd.f32 %v392, %v1164
      %v1166 = vpop.f32.mrb[0].mxu0
      %v1167 = vpop.f32.mrb[0].mxu0
      %v1168 = vadd.f32 %v392, %v1167
      %v1169 = vpop.f32.mrb[0].mxu0
      %1170 = vmatprep.mubr.bf16.mxu0 %v781
      %1171 = vmatmul.mubr.bf16.gmra.mrb[0].mxu0 %v780
      %v1172 = vpop.f32.mrb[0].mxu0
      %v1173 = vadd.f32 %v392, %v1172
      %v1174 = vpop.f32.mrb[0].mxu0
      %v1175 = vpop.f32.mrb[0].mxu0
      %v1176 = vadd.f32 %v392, %v1175
      %v1177 = vpop.f32.mrb[0].mxu0
      %1178 = vmatprep.mubr.bf16.mxu0 %v783
      %1179 = vmatmul.mubr.bf16.gmra.mrb[0].mxu0 %v782
      %v1180 = vpop.f32.mrb[0].mxu0
      %v1181 = vadd.f32 %v392, %v1180
      %v1182 = vpop.f32.mrb[0].mxu0
      %v1183 = vpop.f32.mrb[0].mxu0
      %v1184 = vadd.f32 %v392, %v1183
      %v1185 = vpop.f32.mrb[0].mxu0
      %1186 = vmatprep.mubr.bf16.mxu0 %v785
      %1187 = vmatmul.mubr.bf16.gmra.mrb[0].mxu0 %v784
      %v1188 = vpop.f32.mrb[0].mxu0
      %v1189 = vadd.f32 %v392, %v1188
      %v1190 = vpop.f32.mrb[0].mxu0
      %v1191 = vpop.f32.mrb[0].mxu0
      %v1192 = vadd.f32 %v392, %v1191
      %v1193 = vpop.f32.mrb[0].mxu0
      %1194 = vmatprep.mubr.bf16.mxu0 %v787
      %1195 = vmatmul.mubr.bf16.gmra.mrb[0].mxu0 %v786
      %v1196 = vpop.f32.mrb[0].mxu0
      %v1197 = vadd.f32 %v392, %v1196
      %v1198 = vpop.f32.mrb[0].mxu0
      %v1199 = vpop.f32.mrb[0].mxu0
      %v1200 = vadd.f32 %v392, %v1199
      %v1201 = vpop.f32.mrb[0].mxu0
      %1202 = vmatprep.mubr.bf16.mxu0 %v789
      %1203 = vmatmul.mubr.bf16.gmra.mrb[0].mxu0 %v788
      %v1204 = vpop.f32.mrb[0].mxu0
      %v1205 = vadd.f32 %v392, %v1204
      %v1206 = vpop.f32.mrb[0].mxu0
      %v1207 = vpop.f32.mrb[0].mxu0
      %v1208 = vadd.f32 %v392, %v1207
      %v1209 = vpop.f32.mrb[0].mxu0
      %1210 = vmatprep.mubr.bf16.mxu0 %v791
      %1211 = vmatmul.mubr.bf16.gmra.mrb[0].mxu0 %v790
      %v1212 = vpop.f32.mrb[0].mxu0
      %v1213 = vadd.f32 %v392, %v1212
      %v1214 = vpop.f32.mrb[0].mxu0
      %v1215 = vpop.f32.mrb[0].mxu0
      %v1216 = vadd.f32 %v392, %v1215
      %v1217 = vpop.f32.mrb[0].mxu0
      %1218 = vmatprep.mubr.bf16.mxu0 %v793
      %1219 = vmatmul.mubr.bf16.gmra.mrb[0].mxu0 %v792
      %v1220 = vpop.f32.mrb[0].mxu0
      %v1221 = vadd.f32 %v392, %v1220
      %v1222 = vpop.f32.mrb[0].mxu0
      %v1223 = vpop.f32.mrb[0].mxu0
      %v1224 = vadd.f32 %v392, %v1223
      %v1225 = vpop.f32.mrb[0].mxu0
      %1226 = vmatprep.mubr.bf16.mxu0 %v795
      %1227 = vmatmul.mubr.bf16.gmra.mrb[0].mxu0 %v794
      %v1228 = vpop.f32.mrb[0].mxu0
      %v1229 = vadd.f32 %v392, %v1228
      %v1230 = vpop.f32.mrb[0].mxu0
      %v1231 = vpop.f32.mrb[0].mxu0
      %v1232 = vadd.f32 %v392, %v1231
      %v1233 = vpop.f32.mrb[0].mxu0
      %1234 = vmatprep.mubr.bf16.mxu0 %v797
      %1235 = vmatmul.mubr.bf16.gmra.mrb[0].mxu0 %v796
      %v1236 = vpop.f32.mrb[0].mxu0
      %v1237 = vadd.f32 %v392, %v1236
      %v1238 = vpop.f32.mrb[0].mxu0
      %v1239 = vpop.f32.mrb[0].mxu0
      %v1240 = vadd.f32 %v392, %v1239
      %v1241 = vpop.f32.mrb[0].mxu0
      %1242 = vmatprep.mubr.bf16.mxu0 %v799
      %1243 = vmatmul.mubr.bf16.gmra.mrb[0].mxu0 %v798
      %v1244 = vpop.f32.mrb[0].mxu0
      %v1245 = vadd.f32 %v392, %v1244
      %v1246 = vpop.f32.mrb[0].mxu0
      %v1247 = vpop.f32.mrb[0].mxu0
      %v1248 = vadd.f32 %v392, %v1247
      %v1249 = vpop.f32.mrb[0].mxu0
      %1250 = vmatprep.mubr.bf16.mxu0 %v801
      %1251 = vmatmul.mubr.bf16.gmra.mrb[0].mxu0 %v800
      %v1252 = vpop.f32.mrb[0].mxu0
      %v1253 = vadd.f32 %v392, %v1252
      %v1254 = vpop.f32.mrb[0].mxu0
      %v1255 = vpop.f32.mrb[0].mxu0
      %v1256 = vadd.f32 %v392, %v1255
      %v1257 = vpop.f32.mrb[0].mxu0
      %1258 = vmatprep.mubr.bf16.mxu0 %v803
      %1259 = vmatmul.mubr.bf16.gmra.mrb[0].mxu0 %v802
      %v1260 = vpop.f32.mrb[0].mxu0
      %v1261 = vadd.f32 %v392, %v1260
      %v1262 = vpop.f32.mrb[0].mxu0
      %v1263 = vpop.f32.mrb[0].mxu0
      %v1264 = vadd.f32 %v392, %v1263
      %v1265 = vpop.f32.mrb[0].mxu0
      %1266 = vmatprep.mubr.bf16.mxu0 %v805
      %1267 = vmatmul.mubr.bf16.gmra.mrb[0].mxu0 %v804
      %v1268 = vpop.f32.mrb[0].mxu0
      %v1269 = vadd.f32 %v392, %v1268
      %v1270 = vpop.f32.mrb[0].mxu0
      %v1271 = vpop.f32.mrb[0].mxu0
      %v1272 = vadd.f32 %v392, %v1271
      %v1273 = vpop.f32.mrb[0].mxu0
      %1274 = vmatprep.mubr.bf16.mxu0 %v807
      %1275 = vmatmul.mubr.bf16.gmra.mrb[0].mxu0 %v806
      %v1276 = vpop.f32.mrb[0].mxu0
      %v1277 = vadd.f32 %v392, %v1276
      %v1278 = vpop.f32.mrb[0].mxu0
      %v1279 = vpop.f32.mrb[0].mxu0
      %v1280 = vadd.f32 %v392, %v1279
      %v1281 = vpop.f32.mrb[0].mxu0
      %1282 = vmatprep.mubr.bf16.mxu0 %v809
      %1283 = vmatmul.mubr.bf16.gmra.mrb[0].mxu0 %v808
      %v1284 = vpop.f32.mrb[0].mxu0
      %v1285 = vadd.f32 %v392, %v1284
      %v1286 = vpop.f32.mrb[0].mxu0
      %v1287 = vpop.f32.mrb[0].mxu0
      %v1288 = vadd.f32 %v392, %v1287
      %v1289 = vpop.f32.mrb[0].mxu0
      %1290 = vmatprep.mubr.bf16.mxu0 %v811
      %1291 = vmatmul.mubr.bf16.gmra.mrb[0].mxu0 %v810
      %v1292 = vpop.f32.mrb[0].mxu0
      %v1293 = vadd.f32 %v392, %v1292
      %v1294 = vpop.f32.mrb[0].mxu0
      %v1295 = vpop.f32.mrb[0].mxu0
      %v1296 = vadd.f32 %v392, %v1295
      %v1297 = vpop.f32.mrb[0].mxu0
      %1298 = vmatprep.mubr.bf16.mxu0 %v813
      %1299 = vmatmul.mubr.bf16.gmra.mrb[0].mxu0 %v812
      %v1300 = vpop.f32.mrb[0].mxu0
      %v1301 = vadd.f32 %v392, %v1300
      %v1302 = vpop.f32.mrb[0].mxu0
      %v1303 = vpop.f32.mrb[0].mxu0
      %v1304 = vadd.f32 %v392, %v1303
      %v1305 = vpop.f32.mrb[0].mxu0
      %1306 = vmatprep.mubr.bf16.mxu0 %v815
      %1307 = vmatmul.mubr.bf16.gmra.mrb[0].mxu0 %v814
      %v1308 = vpop.f32.mrb[0].mxu0
      %v1309 = vadd.f32 %v392, %v1308
      %v1310 = vpop.f32.mrb[0].mxu0
      %v1311 = vpop.f32.mrb[0].mxu0
      %v1312 = vadd.f32 %v392, %v1311
      %v1313 = vpop.f32.mrb[0].mxu0
      %1314 = vmatprep.mubr.bf16.mxu0 %v817
      %1315 = vmatmul.mubr.bf16.gmra.mrb[0].mxu0 %v816
      %v1316 = vpop.f32.mrb[0].mxu0
      %v1317 = vadd.f32 %v392, %v1316
      %v1318 = vpop.f32.mrb[0].mxu0
      %v1319 = vpop.f32.mrb[0].mxu0
      %v1320 = vadd.f32 %v392, %v1319
      %v1321 = vpop.f32.mrb[0].mxu0
      %1322 = vmatprep.mubr.bf16.mxu0 %v819
      %1323 = vmatmul.mubr.bf16.gmra.mrb[0].mxu0 %v818
      %v1324 = vpop.f32.mrb[0].mxu0
      %v1325 = vadd.f32 %v392, %v1324
      %v1326 = vpop.f32.mrb[0].mxu0
      %v1327 = vpop.f32.mrb[0].mxu0
      %v1328 = vadd.f32 %v392, %v1327
      %v1329 = vpop.f32.mrb[0].mxu0
      %1330 = vmatprep.mubr.bf16.mxu0 %v821
      %1331 = vmatmul.mubr.bf16.gmra.mrb[0].mxu0 %v820
      %v1332 = vpop.f32.mrb[0].mxu0
      %v1333 = vadd.f32 %v392, %v1332
      %v1334 = vpop.f32.mrb[0].mxu0
      %v1335 = vpop.f32.mrb[0].mxu0
      %v1336 = vadd.f32 %v392, %v1335
      %v1337 = vpop.f32.mrb[0].mxu0
      %1338 = vmatprep.mubr.bf16.mxu0 %v823
      %1339 = vmatmul.mubr.bf16.gmra.mrb[0].mxu0 %v822
      %v1340 = vpop.f32.mrb[0].mxu0
      %v1341 = vadd.f32 %v392, %v1340
      %v1342 = vpop.f32.mrb[0].mxu0
      %v1343 = vpop.f32.mrb[0].mxu0
      %v1344 = vadd.f32 %v392, %v1343
      %v1345 = vpop.f32.mrb[0].mxu0
      %1346 = vmatprep.mubr.bf16.mxu0 %v825
      %1347 = vmatmul.mubr.bf16.gmra.mrb[0].mxu0 %v824
      %v1348 = vpop.f32.mrb[0].mxu0
      %v1349 = vadd.f32 %v392, %v1348
      %v1350 = vpop.f32.mrb[0].mxu0
      %v1351 = vpop.f32.mrb[0].mxu0
      %v1352 = vadd.f32 %v392, %v1351
      %v1353 = vpop.f32.mrb[0].mxu0
      %1354 = vmatprep.mubr.bf16.mxu0 %v827
      %1355 = vmatmul.mubr.bf16.gmra.mrb[0].mxu0 %v826
      %v1356 = vpop.f32.mrb[0].mxu0
      %v1357 = vadd.f32 %v392, %v1356
      %v1358 = vpop.f32.mrb[0].mxu0
      %v1359 = vpop.f32.mrb[0].mxu0
      %v1360 = vadd.f32 %v392, %v1359
      %v1361 = vpop.f32.mrb[0].mxu0
      %1362 = vmatprep.mubr.bf16.mxu0 %v829
      %1363 = vmatmul.mubr.bf16.gmra.mrb[0].mxu0 %v828
      %v1364 = vpop.f32.mrb[0].mxu0
      %v1365 = vadd.f32 %v392, %v1364
      %v1366 = vpop.f32.mrb[0].mxu0
      %v1367 = vpop.f32.mrb[0].mxu0
      %v1368 = vadd.f32 %v392, %v1367
      %v1369 = vpop.f32.mrb[0].mxu0
      %1370 = vmatprep.mubr.bf16.mxu0 %v831
      %1371 = vmatmul.mubr.bf16.gmra.mrb[0].mxu0 %v830
      %v1372 = vpop.f32.mrb[0].mxu0
      %v1373 = vadd.f32 %v392, %v1372
      %v1374 = vpop.f32.mrb[0].mxu0
      %v1375 = vpop.f32.mrb[0].mxu0
      %v1376 = vadd.f32 %v392, %v1375
      %v1377 = vpop.f32.mrb[0].mxu0
      %1378 = vmatprep.mubr.bf16.mxu0 %v833
      %1379 = vmatmul.mubr.bf16.gmra.mrb[0].mxu0 %v832
      %v1380 = vpop.f32.mrb[0].mxu0
      %v1381 = vadd.f32 %v392, %v1380
      %v1382 = vpop.f32.mrb[0].mxu0
      %v1383 = vpop.f32.mrb[0].mxu0
      %v1384 = vadd.f32 %v392, %v1383
      %v1385 = vpop.f32.mrb[0].mxu0
      %1386 = vmatprep.mubr.bf16.mxu0 %v835
      %1387 = vmatmul.mubr.bf16.gmra.mrb[0].mxu0 %v834
      %v1388 = vpop.f32.mrb[0].mxu0
      %v1389 = vadd.f32 %v392, %v1388
      %v1390 = vpop.f32.mrb[0].mxu0
      %v1391 = vpop.f32.mrb[0].mxu0
      %v1392 = vadd.f32 %v392, %v1391
      %v1393 = vpop.f32.mrb[0].mxu0
      %1394 = vmatprep.mubr.bf16.mxu0 %v837
      %1395 = vmatmul.mubr.bf16.gmra.mrb[0].mxu0 %v836
      %v1396 = vpop.f32.mrb[0].mxu0
      %v1397 = vadd.f32 %v392, %v1396
      %v1398 = vpop.f32.mrb[0].mxu0
      %v1399 = vpop.f32.mrb[0].mxu0
      %v1400 = vadd.f32 %v392, %v1399
      %v1401 = vpop.f32.mrb[0].mxu0
      %1402 = vmatprep.mubr.bf16.mxu0 %v839
      %1403 = vmatmul.mubr.bf16.gmra.mrb[0].mxu0 %v838
      %v1404 = vpop.f32.mrb[0].mxu0
      %v1405 = vadd.f32 %v392, %v1404
      %v1406 = vpop.f32.mrb[0].mxu0
      %v1407 = vpop.f32.mrb[0].mxu0
      %v1408 = vadd.f32 %v392, %v1407
      %v1409 = vpop.f32.mrb[0].mxu0
      %1410 = vmatprep.mubr.bf16.mxu0 %v841
      %1411 = vmatmul.mubr.bf16.gmra.mrb[0].mxu0 %v840
      %v1412 = vpop.f32.mrb[0].mxu0
      %v1413 = vadd.f32 %v392, %v1412
      %v1414 = vpop.f32.mrb[0].mxu0
      %v1415 = vpop.f32.mrb[0].mxu0
      %v1416 = vadd.f32 %v392, %v1415
      %v1417 = vpop.f32.mrb[0].mxu0
      %1418 = vmatprep.mubr.bf16.mxu0 %v843
      %1419 = vmatmul.mubr.bf16.gmra.mrb[0].mxu0 %v842
      %v1420 = vpop.f32.mrb[0].mxu0
      %v1421 = vadd.f32 %v392, %v1420
      %v1422 = vpop.f32.mrb[0].mxu0
      %v1423 = vpop.f32.mrb[0].mxu0
      %v1424 = vadd.f32 %v392, %v1423
      %v1425 = vpop.f32.mrb[0].mxu0
      %1426 = vmatprep.mubr.bf16.mxu0 %v845
      %1427 = vmatmul.mubr.bf16.gmra.mrb[0].mxu0 %v844
      %v1428 = vpop.f32.mrb[0].mxu0
      %v1429 = vadd.f32 %v392, %v1428
      %v1430 = vpop.f32.mrb[0].mxu0
      %v1431 = vpop.f32.mrb[0].mxu0
      %v1432 = vadd.f32 %v392, %v1431
      %v1433 = vpop.f32.mrb[0].mxu0
      %1434 = vmatprep.mubr.bf16.mxu0 %v847
      %1435 = vmatmul.mubr.bf16.gmra.mrb[0].mxu0 %v846
      %v1436 = vpop.f32.mrb[0].mxu0
      %v1437 = vadd.f32 %v392, %v1436
      %v1438 = vpop.f32.mrb[0].mxu0
      %v1439 = vpop.f32.mrb[0].mxu0
      %v1440 = vadd.f32 %v392, %v1439
      %v1441 = vpop.f32.mrb[0].mxu0
      %1442 = vmatprep.mubr.bf16.mxu0 %v849
      %1443 = vmatmul.mubr.bf16.gmra.mrb[0].mxu0 %v848
      %v1444 = vpop.f32.mrb[0].mxu0
      %v1445 = vadd.f32 %v392, %v1444
      %v1446 = vpop.f32.mrb[0].mxu0
      %v1447 = vpop.f32.mrb[0].mxu0
      %v1448 = vadd.f32 %v392, %v1447
      %v1449 = vpop.f32.mrb[0].mxu0
      %1450 = vmatprep.mubr.bf16.mxu0 %v851
      %1451 = vmatmul.mubr.bf16.gmra.mrb[0].mxu0 %v850
      %v1452 = vpop.f32.mrb[0].mxu0
      %v1453 = vadd.f32 %v392, %v1452
      %v1454 = vpop.f32.mrb[0].mxu0
      %v1455 = vpop.f32.mrb[0].mxu0
      %v1456 = vadd.f32 %v392, %v1455
      %v1457 = vpop.f32.mrb[0].mxu0
      %1458 = vmatprep.mubr.bf16.mxu0 %v853
      %1459 = vmatmul.mubr.bf16.gmra.mrb[0].mxu0 %v852
      %v1460 = vpop.f32.mrb[0].mxu0
      %v1461 = vadd.f32 %v392, %v1460
      %v1462 = vpop.f32.mrb[0].mxu0
      %v1463 = vpop.f32.mrb[0].mxu0
      %v1464 = vadd.f32 %v392, %v1463
      %v1465 = vpop.f32.mrb[0].mxu0
      %1466 = vmatprep.mubr.bf16.mxu0 %v855
      %1467 = vmatmul.mubr.bf16.gmra.mrb[0].mxu0 %v854
      %v1468 = vpop.f32.mrb[0].mxu0
      %v1469 = vadd.f32 %v392, %v1468
      %v1470 = vpop.f32.mrb[0].mxu0
      %v1471 = vpop.f32.mrb[0].mxu0
      %v1472 = vadd.f32 %v392, %v1471
      %v1473 = vpop.f32.mrb[0].mxu0
      %1474 = vmatprep.mubr.bf16.mxu0 %v857
      %1475 = vmatmul.mubr.bf16.gmra.mrb[0].mxu0 %v856
      %v1476 = vpop.f32.mrb[0].mxu0
      %v1477 = vadd.f32 %v392, %v1476
      %v1478 = vpop.f32.mrb[0].mxu0
      %v1479 = vpop.f32.mrb[0].mxu0
      %v1480 = vadd.f32 %v392, %v1479
      %v1481 = vpop.f32.mrb[0].mxu0
      %1482 = vmatprep.mubr.bf16.mxu0 %v859
      %1483 = vmatmul.mubr.bf16.gmra.mrb[0].mxu0 %v858
      %v1484 = vpop.f32.mrb[0].mxu0
      %v1485 = vadd.f32 %v392, %v1484
      %v1486 = vpop.f32.mrb[0].mxu0
      %v1487 = vpop.f32.mrb[0].mxu0
      %v1488 = vadd.f32 %v392, %v1487
      %v1489 = vpop.f32.mrb[0].mxu0
      %1490 = vmatprep.mubr.bf16.mxu0 %v861
      %1491 = vmatmul.mubr.bf16.gmra.mrb[0].mxu0 %v860
      %v1492 = vpop.f32.mrb[0].mxu0
      %v1493 = vadd.f32 %v392, %v1492
      %v1494 = vpop.f32.mrb[0].mxu0
      %v1495 = vpop.f32.mrb[0].mxu0
      %v1496 = vadd.f32 %v392, %v1495
      %v1497 = vpop.f32.mrb[0].mxu0
      %1498 = vmatprep.mubr.bf16.mxu0 %v863
      %1499 = vmatmul.mubr.bf16.gmra.mrb[0].mxu0 %v862
      %v1500 = vpop.f32.mrb[0].mxu0
      %v1501 = vadd.f32 %v392, %v1500
      %v1502 = vpop.f32.mrb[0].mxu0
      %v1503 = vpop.f32.mrb[0].mxu0
      %v1504 = vadd.f32 %v392, %v1503
      %v1505 = vpop.f32.mrb[0].mxu0
      %1506 = vmatprep.mubr.bf16.mxu0 %v865
      %1507 = vmatmul.mubr.bf16.gmra.mrb[0].mxu0 %v864
      %v1508 = vpop.f32.mrb[0].mxu0
      %v1509 = vadd.f32 %v392, %v1508
      %v1510 = vpop.f32.mrb[0].mxu0
      %v1511 = vpop.f32.mrb[0].mxu0
      %v1512 = vadd.f32 %v392, %v1511
      %v1513 = vpop.f32.mrb[0].mxu0
      %1514 = vmatprep.mubr.bf16.mxu0 %v867
      %1515 = vmatmul.mubr.bf16.gmra.mrb[0].mxu0 %v866
      %v1516 = vpop.f32.mrb[0].mxu0
      %v1517 = vadd.f32 %v392, %v1516
      %v1518 = vpop.f32.mrb[0].mxu0
      %v1519 = vpop.f32.mrb[0].mxu0
      %v1520 = vadd.f32 %v392, %v1519
      %v1521 = vpop.f32.mrb[0].mxu0
      %1522 = vmatprep.mubr.bf16.mxu0 %v869
      %1523 = vmatmul.mubr.bf16.gmra.mrb[0].mxu0 %v868
      %v1524 = vpop.f32.mrb[0].mxu0
      %v1525 = vadd.f32 %v392, %v1524
      %v1526 = vpop.f32.mrb[0].mxu0
      %v1527 = vpop.f32.mrb[0].mxu0
      %v1528 = vadd.f32 %v392, %v1527
      %v1529 = vpop.f32.mrb[0].mxu0
      %1530 = vmatprep.mubr.bf16.mxu0 %v871
      %1531 = vmatmul.mubr.bf16.gmra.mrb[0].mxu0 %v870
      %v1532 = vpop.f32.mrb[0].mxu0
      %v1533 = vadd.f32 %v392, %v1532
      %v1534 = vpop.f32.mrb[0].mxu0
      %v1535 = vpop.f32.mrb[0].mxu0
      %v1536 = vadd.f32 %v392, %v1535
      %v1537 = vpop.f32.mrb[0].mxu0
      %1538 = vmatprep.mubr.bf16.mxu0 %v873
      %1539 = vmatmul.mubr.bf16.gmra.mrb[0].mxu0 %v872
      %v1540 = vpop.f32.mrb[0].mxu0
      %v1541 = vadd.f32 %v392, %v1540
      %v1542 = vpop.f32.mrb[0].mxu0
      %v1543 = vpop.f32.mrb[0].mxu0
      %v1544 = vadd.f32 %v392, %v1543
      %v1545 = vpop.f32.mrb[0].mxu0
      %1546 = vmatprep.mubr.bf16.mxu0 %v875
      %1547 = vmatmul.mubr.bf16.gmra.mrb[0].mxu0 %v874
      %v1548 = vpop.f32.mrb[0].mxu0
      %v1549 = vadd.f32 %v392, %v1548
      %v1550 = vpop.f32.mrb[0].mxu0
      %v1551 = vpop.f32.mrb[0].mxu0
      %v1552 = vadd.f32 %v392, %v1551
      %v1553 = vpop.f32.mrb[0].mxu0
      %1554 = vmatprep.mubr.bf16.mxu0 %v877
      %1555 = vmatmul.mubr.bf16.gmra.mrb[0].mxu0 %v876
      %v1556 = vpop.f32.mrb[0].mxu0
      %v1557 = vadd.f32 %v392, %v1556
      %v1558 = vpop.f32.mrb[0].mxu0
      %v1559 = vpop.f32.mrb[0].mxu0
      %v1560 = vadd.f32 %v392, %v1559
      %v1561 = vpop.f32.mrb[0].mxu0
      %1562 = vmatprep.mubr.bf16.mxu0 %v879
      %1563 = vmatmul.mubr.bf16.gmra.mrb[0].mxu0 %v878
      %v1564 = vpop.f32.mrb[0].mxu0
      %v1565 = vadd.f32 %v392, %v1564
      %v1566 = vpop.f32.mrb[0].mxu0
      %v1567 = vpop.f32.mrb[0].mxu0
      %v1568 = vadd.f32 %v392, %v1567
      %v1569 = vpop.f32.mrb[0].mxu0
      %1570 = vmatprep.mubr.bf16.mxu0 %v881
      %1571 = vmatmul.mubr.bf16.gmra.mrb[0].mxu0 %v880
      %v1572 = vpop.f32.mrb[0].mxu0
      %v1573 = vadd.f32 %v392, %v1572
      %v1574 = vpop.f32.mrb[0].mxu0
      %v1575 = vpop.f32.mrb[0].mxu0
      %v1576 = vadd.f32 %v392, %v1575
      %v1577 = vpop.f32.mrb[0].mxu0
      %1578 = vmatprep.mubr.bf16.mxu0 %v883
      %1579 = vmatmul.mubr.bf16.gmra.mrb[0].mxu0 %v882
      %v1580 = vpop.f32.mrb[0].mxu0
      %v1581 = vadd.f32 %v392, %v1580
      %v1582 = vpop.f32.mrb[0].mxu0
      %v1583 = vpop.f32.mrb[0].mxu0
      %v1584 = vadd.f32 %v392, %v1583
      %v1585 = vpop.f32.mrb[0].mxu0
      %1586 = vmatprep.mubr.bf16.mxu0 %v885
      %1587 = vmatmul.mubr.bf16.gmra.mrb[0].mxu0 %v884
      %v1588 = vpop.f32.mrb[0].mxu0
      %v1589 = vadd.f32 %v392, %v1588
      %v1590 = vpop.f32.mrb[0].mxu0
      %v1591 = vpop.f32.mrb[0].mxu0
      %v1592 = vadd.f32 %v392, %v1591
      %v1593 = vpop.f32.mrb[0].mxu0
      %1594 = vmatprep.mubr.bf16.mxu0 %v887
      %1595 = vmatmul.mubr.bf16.gmra.mrb[0].mxu0 %v886
      %v1596 = vpop.f32.mrb[0].mxu0
      %v1597 = vadd.f32 %v392, %v1596
      %v1598 = vpop.f32.mrb[0].mxu0
      %v1599 = vpop.f32.mrb[0].mxu0
      %v1600 = vadd.f32 %v392, %v1599
      %v1601 = vpop.f32.mrb[0].mxu0
      %1602 = vmatprep.mubr.bf16.mxu0 %v889
      %1603 = vmatmul.mubr.bf16.gmra.mrb[0].mxu0 %v888
      %v1604 = vpop.f32.mrb[0].mxu0
      %v1605 = vadd.f32 %v392, %v1604
      %v1606 = vpop.f32.mrb[0].mxu0
      %v1607 = vpop.f32.mrb[0].mxu0
      %v1608 = vadd.f32 %v392, %v1607
      %v1609 = vpop.f32.mrb[0].mxu0
      %1610 = vmatprep.mubr.bf16.mxu0 %v891
      %1611 = vmatmul.mubr.bf16.gmra.mrb[0].mxu0 %v890
      %v1612 = vpop.f32.mrb[0].mxu0
      %v1613 = vadd.f32 %v392, %v1612
      %v1614 = vpop.f32.mrb[0].mxu0
      %v1615 = vpop.f32.mrb[0].mxu0
      %v1616 = vadd.f32 %v392, %v1615
      %v1617 = vpop.f32.mrb[0].mxu0
      %1618 = vmatprep.mubr.bf16.mxu0 %v893
      %1619 = vmatmul.mubr.bf16.gmra.mrb[0].mxu0 %v892
      %v1620 = vpop.f32.mrb[0].mxu0
      %v1621 = vadd.f32 %v392, %v1620
      %v1622 = vpop.f32.mrb[0].mxu0
      %v1623 = vpop.f32.mrb[0].mxu0
      %v1624 = vadd.f32 %v392, %v1623
      %v1625 = vpop.f32.mrb[0].mxu0
      %1626 = vmatprep.mubr.bf16.mxu0 %v895
      %1627 = vmatmul.mubr.bf16.gmra.mrb[0].mxu0 %v894
      %v1628 = vpop.f32.mrb[0].mxu0
      %v1629 = vadd.f32 %v392, %v1628
      %v1630 = vpop.f32.mrb[0].mxu0
      %v1631 = vpop.f32.mrb[0].mxu0
      %v1632 = vadd.f32 %v392, %v1631
      %v1633 = vpop.f32.mrb[0].mxu0
      %1634 = vmatprep.mubr.bf16.mxu0 %v897
      %1635 = vmatmul.mubr.bf16.gmra.mrb[0].mxu0 %v896
      %v1636 = vpop.f32.mrb[0].mxu0
      %v1637 = vadd.f32 %v392, %v1636
      %v1638 = vpop.f32.mrb[0].mxu0
      %v1639 = vpop.f32.mrb[0].mxu0
      %v1640 = vadd.f32 %v392, %v1639
      %v1641 = vpop.f32.mrb[0].mxu0
      %1642 = vmatprep.mubr.bf16.mxu0 %v899
      %1643 = vmatmul.mubr.bf16.gmra.mrb[0].mxu0 %v898
      %v1644 = vpop.f32.mrb[0].mxu0
      %v1645 = vadd.f32 %v392, %v1644
      %v1646 = vpop.f32.mrb[0].mxu0
      %v1647 = vpop.f32.mrb[0].mxu0
      %v1648 = vadd.f32 %v392, %v1647
      %v1649 = vpop.f32.mrb[0].mxu0
      %1650 = vmatprep.mubr.bf16.mxu0 %v901
      %1651 = vmatmul.mubr.bf16.gmra.mrb[0].mxu0 %v900
      %v1652 = vpop.f32.mrb[0].mxu0
      %v1653 = vadd.f32 %v392, %v1652
      %v1654 = vpop.f32.mrb[0].mxu0
      %v1655 = vpop.f32.mrb[0].mxu0
      %v1656 = vadd.f32 %v392, %v1655
      %v1657 = vpop.f32.mrb[0].mxu0
      %1658 = vmatprep.mubr.bf16.mxu0 %v903
      %1659 = vmatmul.mubr.bf16.gmra.mrb[0].mxu0 %v902
      %v1660 = vpop.f32.mrb[0].mxu0
      %v1661 = vadd.f32 %v392, %v1660
      %v1662 = vpop.f32.mrb[0].mxu0
      %v1663 = vpop.f32.mrb[0].mxu0
      %v1664 = vadd.f32 %v392, %v1663
      %v1665 = vpop.f32.mrb[0].mxu0
      %1666 = vmatprep.mubr.bf16.mxu0 %v905
      %1667 = vmatmul.mubr.bf16.gmra.mrb[0].mxu0 %v904
      %v1668 = vpop.f32.mrb[0].mxu0
      %v1669 = vadd.f32 %v392, %v1668
      %v1670 = vpop.f32.mrb[0].mxu0
      %v1671 = vpop.f32.mrb[0].mxu0
      %v1672 = vadd.f32 %v392, %v1671
      %v1673 = vpop.f32.mrb[0].mxu0
      %1674 = vdwg.mxu0
      %v1675 = vld [vmem:[%s218] sm:$0xf]
      %v1676 = vld [vmem:[%s218 + $0x4] sm:$0xf]
      %v1677 = vld [vmem:[%s218 + $0x8] sm:$0xf]
      %v1678 = vld [vmem:[%s218 + $0xc] sm:$0xf]
      %v1679 = vld [vmem:[%s218 + $0x10] sm:$0xf]
      %v1680 = vld [vmem:[%s218 + $0x14] sm:$0xf]
      %v1681 = vld [vmem:[%s218 + $0x18] sm:$0xf]
      %v1682 = vld [vmem:[%s218 + $0x1c] sm:$0xf]
      %v1683 = vld [vmem:[%s218 + $0x20] sm:$0xf]
      %v1684 = vld [vmem:[%s218 + $0x24] sm:$0xf]
      %v1685 = vld [vmem:[%s218 + $0x28] sm:$0xf]
      %v1686 = vld [vmem:[%s218 + $0x2c] sm:$0xf]
      %v1687 = vld [vmem:[%s218 + $0x30] sm:$0xf]
      %v1688 = vld [vmem:[%s218 + $0x34] sm:$0xf]
      %v1689 = vld [vmem:[%s218 + $0x38] sm:$0xf]
      %v1690 = vld [vmem:[%s218 + $0x3c] sm:$0xf]
      %v1691 = vld [vmem:[%s218 + $0x40] sm:$0xf]
      %v1692 = vld [vmem:[%s218 + $0x44] sm:$0xf]
      %v1693 = vld [vmem:[%s218 + $0x48] sm:$0xf]
      %v1694 = vld [vmem:[%s218 + $0x4c] sm:$0xf]
      %v1695 = vld [vmem:[%s218 + $0x50] sm:$0xf]
      %v1696 = vld [vmem:[%s218 + $0x54] sm:$0xf]
      %v1697 = vld [vmem:[%s218 + $0x58] sm:$0xf]
      %v1698 = vld [vmem:[%s218 + $0x5c] sm:$0xf]
      %v1699 = vld [vmem:[%s218 + $0x60] sm:$0xf]
      %v1700 = vld [vmem:[%s218 + $0x64] sm:$0xf]
      %v1701 = vld [vmem:[%s218 + $0x68] sm:$0xf]
      %v1702 = vld [vmem:[%s218 + $0x6c] sm:$0xf]
      %v1703 = vld [vmem:[%s218 + $0x70] sm:$0xf]
      %v1704 = vld [vmem:[%s218 + $0x74] sm:$0xf]
      %v1705 = vld [vmem:[%s218 + $0x78] sm:$0xf]
      %v1706 = vld [vmem:[%s218 + $0x7c] sm:$0xf]
      %v1707 = vld [vmem:[%s218 + $0x80] sm:$0xf]
      %v1708 = vld [vmem:[%s218 + $0x84] sm:$0xf]
      %v1709 = vld [vmem:[%s218 + $0x88] sm:$0xf]
      %v1710 = vld [vmem:[%s218 + $0x8c] sm:$0xf]
      %v1711 = vld [vmem:[%s218 + $0x90] sm:$0xf]
      %v1712 = vld [vmem:[%s218 + $0x94] sm:$0xf]
      %v1713 = vld [vmem:[%s218 + $0x98] sm:$0xf]
      %v1714 = vld [vmem:[%s218 + $0x9c] sm:$0xf]
      %v1715 = vld [vmem:[%s218 + $0xa0] sm:$0xf]
      %v1716 = vld [vmem:[%s218 + $0xa4] sm:$0xf]
      %v1717 = vld [vmem:[%s218 + $0xa8] sm:$0xf]
      %v1718 = vld [vmem:[%s218 + $0xac] sm:$0xf]
      %v1719 = vld [vmem:[%s218 + $0xb0] sm:$0xf]
      %v1720 = vld [vmem:[%s218 + $0xb4] sm:$0xf]
      %v1721 = vld [vmem:[%s218 + $0xb8] sm:$0xf]
      %v1722 = vld [vmem:[%s218 + $0xbc] sm:$0xf]
      %v1723 = vld [vmem:[%s218 + $0xc0] sm:$0xf]
      %v1724 = vld [vmem:[%s218 + $0xc4] sm:$0xf]
      %v1725 = vld [vmem:[%s218 + $0xc8] sm:$0xf]
      %v1726 = vld [vmem:[%s218 + $0xcc] sm:$0xf]
      %v1727 = vld [vmem:[%s218 + $0xd0] sm:$0xf]
      %v1728 = vld [vmem:[%s218 + $0xd4] sm:$0xf]
      %v1729 = vld [vmem:[%s218 + $0xd8] sm:$0xf]
      %v1730 = vld [vmem:[%s218 + $0xdc] sm:$0xf]
      %v1731 = vld [vmem:[%s218 + $0xe0] sm:$0xf]
      %v1732 = vld [vmem:[%s218 + $0xe4] sm:$0xf]
      %v1733 = vld [vmem:[%s218 + $0xe8] sm:$0xf]
      %v1734 = vld [vmem:[%s218 + $0xec] sm:$0xf]
      %v1735 = vld [vmem:[%s218 + $0xf0] sm:$0xf]
      %v1736 = vld [vmem:[%s218 + $0xf4] sm:$0xf]
      %v1737 = vld [vmem:[%s218 + $0xf8] sm:$0xf]
      %v1738 = vld [vmem:[%s218 + $0xfc] sm:$0xf]
      %v1739 = vld [vmem:[%s218 + $0x100] sm:$0xf]
      %v1740 = vld [vmem:[%s218 + $0x104] sm:$0xf]
      %v1741 = vld [vmem:[%s218 + $0x108] sm:$0xf]
      %v1742 = vld [vmem:[%s218 + $0x10c] sm:$0xf]
      %v1743 = vld [vmem:[%s218 + $0x110] sm:$0xf]
      %v1744 = vld [vmem:[%s218 + $0x114] sm:$0xf]
      %v1745 = vld [vmem:[%s218 + $0x118] sm:$0xf]
      %v1746 = vld [vmem:[%s218 + $0x11c] sm:$0xf]
      %v1747 = vld [vmem:[%s218 + $0x120] sm:$0xf]
      %v1748 = vld [vmem:[%s218 + $0x124] sm:$0xf]
      %v1749 = vld [vmem:[%s218 + $0x128] sm:$0xf]
      %v1750 = vld [vmem:[%s218 + $0x12c] sm:$0xf]
      %v1751 = vld [vmem:[%s218 + $0x130] sm:$0xf]
      %v1752 = vld [vmem:[%s218 + $0x134] sm:$0xf]
      %v1753 = vld [vmem:[%s218 + $0x138] sm:$0xf]
      %v1754 = vld [vmem:[%s218 + $0x13c] sm:$0xf]
      %v1755 = vld [vmem:[%s218 + $0x140] sm:$0xf]
      %v1756 = vld [vmem:[%s218 + $0x144] sm:$0xf]
      %v1757 = vld [vmem:[%s218 + $0x148] sm:$0xf]
      %v1758 = vld [vmem:[%s218 + $0x14c] sm:$0xf]
      %v1759 = vld [vmem:[%s218 + $0x150] sm:$0xf]
      %v1760 = vld [vmem:[%s218 + $0x154] sm:$0xf]
      %v1761 = vld [vmem:[%s218 + $0x158] sm:$0xf]
      %v1762 = vld [vmem:[%s218 + $0x15c] sm:$0xf]
      %v1763 = vld [vmem:[%s218 + $0x160] sm:$0xf]
      %v1764 = vld [vmem:[%s218 + $0x164] sm:$0xf]
      %v1765 = vld [vmem:[%s218 + $0x168] sm:$0xf]
      %v1766 = vld [vmem:[%s218 + $0x16c] sm:$0xf]
      %v1767 = vld [vmem:[%s218 + $0x170] sm:$0xf]
      %v1768 = vld [vmem:[%s218 + $0x174] sm:$0xf]
      %v1769 = vld [vmem:[%s218 + $0x178] sm:$0xf]
      %v1770 = vld [vmem:[%s218 + $0x17c] sm:$0xf]
      %v1771 = vld [vmem:[%s218 + $0x180] sm:$0xf]
      %v1772 = vld [vmem:[%s218 + $0x184] sm:$0xf]
      %v1773 = vld [vmem:[%s218 + $0x188] sm:$0xf]
      %v1774 = vld [vmem:[%s218 + $0x18c] sm:$0xf]
      %v1775 = vld [vmem:[%s218 + $0x190] sm:$0xf]
      %v1776 = vld [vmem:[%s218 + $0x194] sm:$0xf]
      %v1777 = vld [vmem:[%s218 + $0x198] sm:$0xf]
      %v1778 = vld [vmem:[%s218 + $0x19c] sm:$0xf]
      %v1779 = vld [vmem:[%s218 + $0x1a0] sm:$0xf]
      %v1780 = vld [vmem:[%s218 + $0x1a4] sm:$0xf]
      %v1781 = vld [vmem:[%s218 + $0x1a8] sm:$0xf]
      %v1782 = vld [vmem:[%s218 + $0x1ac] sm:$0xf]
      %v1783 = vld [vmem:[%s218 + $0x1b0] sm:$0xf]
      %v1784 = vld [vmem:[%s218 + $0x1b4] sm:$0xf]
      %v1785 = vld [vmem:[%s218 + $0x1b8] sm:$0xf]
      %v1786 = vld [vmem:[%s218 + $0x1bc] sm:$0xf]
      %v1787 = vld [vmem:[%s218 + $0x1c0] sm:$0xf]
      %v1788 = vld [vmem:[%s218 + $0x1c4] sm:$0xf]
      %v1789 = vld [vmem:[%s218 + $0x1c8] sm:$0xf]
      %v1790 = vld [vmem:[%s218 + $0x1cc] sm:$0xf]
      %v1791 = vld [vmem:[%s218 + $0x1d0] sm:$0xf]
      %v1792 = vld [vmem:[%s218 + $0x1d4] sm:$0xf]
      %v1793 = vld [vmem:[%s218 + $0x1d8] sm:$0xf]
      %v1794 = vld [vmem:[%s218 + $0x1dc] sm:$0xf]
      %v1795 = vld [vmem:[%s218 + $0x1e0] sm:$0xf]
      %v1796 = vld [vmem:[%s218 + $0x1e4] sm:$0xf]
      %v1797 = vld [vmem:[%s218 + $0x1e8] sm:$0xf]
      %v1798 = vld [vmem:[%s218 + $0x1ec] sm:$0xf]
      %v1799 = vld [vmem:[%s218 + $0x1f0] sm:$0xf]
      %v1800 = vld [vmem:[%s218 + $0x1f4] sm:$0xf]
      %v1801 = vld [vmem:[%s218 + $0x1f8] sm:$0xf]
      %v1802 = vld [vmem:[%s218 + $0x1fc] sm:$0xf]
      %v1803 = vunpack.c.l.bf16 %v1675
      %v1804 = vunpack.c.l.bf16 %v1676
      %v1805 = vunpack.c.l.bf16 %v1677
      %v1806 = vunpack.c.l.bf16 %v1678
      %v1807 = vunpack.c.l.bf16 %v1679
      %v1808 = vunpack.c.l.bf16 %v1680
      %v1809 = vunpack.c.l.bf16 %v1681
      %v1810 = vunpack.c.l.bf16 %v1682
      %v1811 = vunpack.c.l.bf16 %v1683
      %v1812 = vunpack.c.l.bf16 %v1684
      %v1813 = vunpack.c.l.bf16 %v1685
      %v1814 = vunpack.c.l.bf16 %v1686
      %v1815 = vunpack.c.l.bf16 %v1687
      %v1816 = vunpack.c.l.bf16 %v1688
      %v1817 = vunpack.c.l.bf16 %v1689
      %v1818 = vunpack.c.l.bf16 %v1690
      %v1819 = vunpack.c.l.bf16 %v1691
      %v1820 = vunpack.c.l.bf16 %v1692
      %v1821 = vunpack.c.l.bf16 %v1693
      %v1822 = vunpack.c.l.bf16 %v1694
      %v1823 = vunpack.c.l.bf16 %v1695
      %v1824 = vunpack.c.l.bf16 %v1696
      %v1825 = vunpack.c.l.bf16 %v1697
      %v1826 = vunpack.c.l.bf16 %v1698
      %v1827 = vunpack.c.l.bf16 %v1699
      %v1828 = vunpack.c.l.bf16 %v1700
      %v1829 = vunpack.c.l.bf16 %v1701
      %v1830 = vunpack.c.l.bf16 %v1702
      %v1831 = vunpack.c.l.bf16 %v1703
      %v1832 = vunpack.c.l.bf16 %v1704
      %v1833 = vunpack.c.l.bf16 %v1705
      %v1834 = vunpack.c.l.bf16 %v1706
      %v1835 = vunpack.c.l.bf16 %v1707
      %v1836 = vunpack.c.l.bf16 %v1708
      %v1837 = vunpack.c.l.bf16 %v1709
      %v1838 = vunpack.c.l.bf16 %v1710
      %v1839 = vunpack.c.l.bf16 %v1711
      %v1840 = vunpack.c.l.bf16 %v1712
      %v1841 = vunpack.c.l.bf16 %v1713
      %v1842 = vunpack.c.l.bf16 %v1714
      %v1843 = vunpack.c.l.bf16 %v1715
      %v1844 = vunpack.c.l.bf16 %v1716
      %v1845 = vunpack.c.l.bf16 %v1717
      %v1846 = vunpack.c.l.bf16 %v1718
      %v1847 = vunpack.c.l.bf16 %v1719
      %v1848 = vunpack.c.l.bf16 %v1720
      %v1849 = vunpack.c.l.bf16 %v1721
      %v1850 = vunpack.c.l.bf16 %v1722
      %v1851 = vunpack.c.l.bf16 %v1723
      %v1852 = vunpack.c.l.bf16 %v1724
      %v1853 = vunpack.c.l.bf16 %v1725
      %v1854 = vunpack.c.l.bf16 %v1726
      %v1855 = vunpack.c.l.bf16 %v1727
      %v1856 = vunpack.c.l.bf16 %v1728
      %v1857 = vunpack.c.l.bf16 %v1729
      %v1858 = vunpack.c.l.bf16 %v1730
      %v1859 = vunpack.c.l.bf16 %v1731
      %v1860 = vunpack.c.l.bf16 %v1732
      %v1861 = vunpack.c.l.bf16 %v1733
      %v1862 = vunpack.c.l.bf16 %v1734
      %v1863 = vunpack.c.l.bf16 %v1735
      %v1864 = vunpack.c.l.bf16 %v1736
      %v1865 = vunpack.c.l.bf16 %v1737
      %v1866 = vunpack.c.l.bf16 %v1738
      %v1867 = vunpack.c.l.bf16 %v1739
      %v1868 = vunpack.c.l.bf16 %v1740
      %v1869 = vunpack.c.l.bf16 %v1741
      %v1870 = vunpack.c.l.bf16 %v1742
      %v1871 = vunpack.c.l.bf16 %v1743
      %v1872 = vunpack.c.l.bf16 %v1744
      %v1873 = vunpack.c.l.bf16 %v1745
      %v1874 = vunpack.c.l.bf16 %v1746
      %v1875 = vunpack.c.l.bf16 %v1747
      %v1876 = vunpack.c.l.bf16 %v1748
      %v1877 = vunpack.c.l.bf16 %v1749
      %v1878 = vunpack.c.l.bf16 %v1750
      %v1879 = vunpack.c.l.bf16 %v1751
      %v1880 = vunpack.c.l.bf16 %v1752
      %v1881 = vunpack.c.l.bf16 %v1753
      %v1882 = vunpack.c.l.bf16 %v1754
      %v1883 = vunpack.c.l.bf16 %v1755
      %v1884 = vunpack.c.l.bf16 %v1756
      %v1885 = vunpack.c.l.bf16 %v1757
      %v1886 = vunpack.c.l.bf16 %v1758
      %v1887 = vunpack.c.l.bf16 %v1759
      %v1888 = vunpack.c.l.bf16 %v1760
      %v1889 = vunpack.c.l.bf16 %v1761
      %v1890 = vunpack.c.l.bf16 %v1762
      %v1891 = vunpack.c.l.bf16 %v1763
      %v1892 = vunpack.c.l.bf16 %v1764
      %v1893 = vunpack.c.l.bf16 %v1765
      %v1894 = vunpack.c.l.bf16 %v1766
      %v1895 = vunpack.c.l.bf16 %v1767
      %v1896 = vunpack.c.l.bf16 %v1768
      %v1897 = vunpack.c.l.bf16 %v1769
      %v1898 = vunpack.c.l.bf16 %v1770
      %v1899 = vunpack.c.l.bf16 %v1771
      %v1900 = vunpack.c.l.bf16 %v1772
      %v1901 = vunpack.c.l.bf16 %v1773
      %v1902 = vunpack.c.l.bf16 %v1774
      %v1903 = vunpack.c.l.bf16 %v1775
      %v1904 = vunpack.c.l.bf16 %v1776
      %v1905 = vunpack.c.l.bf16 %v1777
      %v1906 = vunpack.c.l.bf16 %v1778
      %v1907 = vunpack.c.l.bf16 %v1779
      %v1908 = vunpack.c.l.bf16 %v1780
      %v1909 = vunpack.c.l.bf16 %v1781
      %v1910 = vunpack.c.l.bf16 %v1782
      %v1911 = vunpack.c.l.bf16 %v1783
      %v1912 = vunpack.c.l.bf16 %v1784
      %v1913 = vunpack.c.l.bf16 %v1785
      %v1914 = vunpack.c.l.bf16 %v1786
      %v1915 = vunpack.c.l.bf16 %v1787
      %v1916 = vunpack.c.l.bf16 %v1788
      %v1917 = vunpack.c.l.bf16 %v1789
      %v1918 = vunpack.c.l.bf16 %v1790
      %v1919 = vunpack.c.l.bf16 %v1791
      %v1920 = vunpack.c.l.bf16 %v1792
      %v1921 = vunpack.c.l.bf16 %v1793
      %v1922 = vunpack.c.l.bf16 %v1794
      %v1923 = vunpack.c.l.bf16 %v1795
      %v1924 = vunpack.c.l.bf16 %v1796
      %v1925 = vunpack.c.l.bf16 %v1797
      %v1926 = vunpack.c.l.bf16 %v1798
      %v1927 = vunpack.c.l.bf16 %v1799
      %v1928 = vunpack.c.l.bf16 %v1800
      %v1929 = vunpack.c.l.bf16 %v1801
      %v1930 = vunpack.c.l.bf16 %v1802
      %v1931 = vadd.f32 %v1165, %v1803
      %v1932 = vadd.f32 %v1168, %v1804
      %v1933 = vadd.f32 %v1173, %v1805
      %v1934 = vadd.f32 %v1176, %v1806
      %v1935 = vadd.f32 %v1181, %v1807
      %v1936 = vadd.f32 %v1184, %v1808
      %v1937 = vadd.f32 %v1189, %v1809
      %v1938 = vadd.f32 %v1192, %v1810
      %v1939 = vadd.f32 %v1197, %v1811
      %v1940 = vadd.f32 %v1200, %v1812
      %v1941 = vadd.f32 %v1205, %v1813
      %v1942 = vadd.f32 %v1208, %v1814
      %v1943 = vadd.f32 %v1213, %v1815
      %v1944 = vadd.f32 %v1216, %v1816
      %v1945 = vadd.f32 %v1221, %v1817
      %v1946 = vadd.f32 %v1224, %v1818
      %v1947 = vadd.f32 %v1229, %v1819
      %v1948 = vadd.f32 %v1232, %v1820
      %v1949 = vadd.f32 %v1237, %v1821
      %v1950 = vadd.f32 %v1240, %v1822
      %v1951 = vadd.f32 %v1245, %v1823
      %v1952 = vadd.f32 %v1248, %v1824
      %v1953 = vadd.f32 %v1253, %v1825
      %v1954 = vadd.f32 %v1256, %v1826
      %v1955 = vadd.f32 %v1261, %v1827
      %v1956 = vadd.f32 %v1264, %v1828
      %v1957 = vadd.f32 %v1269, %v1829
      %v1958 = vadd.f32 %v1272, %v1830
      %v1959 = vadd.f32 %v1277, %v1831
      %v1960 = vadd.f32 %v1280, %v1832
      %v1961 = vadd.f32 %v1285, %v1833
      %v1962 = vadd.f32 %v1288, %v1834
      %v1963 = vadd.f32 %v1293, %v1835
      %v1964 = vadd.f32 %v1296, %v1836
      %v1965 = vadd.f32 %v1301, %v1837
      %v1966 = vadd.f32 %v1304, %v1838
      %v1967 = vadd.f32 %v1309, %v1839
      %v1968 = vadd.f32 %v1312, %v1840
      %v1969 = vadd.f32 %v1317, %v1841
      %v1970 = vadd.f32 %v1320, %v1842
      %v1971 = vadd.f32 %v1325, %v1843
      %v1972 = vadd.f32 %v1328, %v1844
      %v1973 = vadd.f32 %v1333, %v1845
      %v1974 = vadd.f32 %v1336, %v1846
      %v1975 = vadd.f32 %v1341, %v1847
      %v1976 = vadd.f32 %v1344, %v1848
      %v1977 = vadd.f32 %v1349, %v1849
      %v1978 = vadd.f32 %v1352, %v1850
      %v1979 = vadd.f32 %v1357, %v1851
      %v1980 = vadd.f32 %v1360, %v1852
      %v1981 = vadd.f32 %v1365, %v1853
      %v1982 = vadd.f32 %v1368, %v1854
      %v1983 = vadd.f32 %v1373, %v1855
      %v1984 = vadd.f32 %v1376, %v1856
      %v1985 = vadd.f32 %v1381, %v1857
      %v1986 = vadd.f32 %v1384, %v1858
      %v1987 = vadd.f32 %v1389, %v1859
      %v1988 = vadd.f32 %v1392, %v1860
      %v1989 = vadd.f32 %v1397, %v1861
      %v1990 = vadd.f32 %v1400, %v1862
      %v1991 = vadd.f32 %v1405, %v1863
      %v1992 = vadd.f32 %v1408, %v1864
      %v1993 = vadd.f32 %v1413, %v1865
      %v1994 = vadd.f32 %v1416, %v1866
      %v1995 = vadd.f32 %v1421, %v1867
      %v1996 = vadd.f32 %v1424, %v1868
      %v1997 = vadd.f32 %v1429, %v1869
      %v1998 = vadd.f32 %v1432, %v1870
      %v1999 = vadd.f32 %v1437, %v1871
      %v2000 = vadd.f32 %v1440, %v1872
      %v2001 = vadd.f32 %v1445, %v1873
      %v2002 = vadd.f32 %v1448, %v1874
      %v2003 = vadd.f32 %v1453, %v1875
      %v2004 = vadd.f32 %v1456, %v1876
      %v2005 = vadd.f32 %v1461, %v1877
      %v2006 = vadd.f32 %v1464, %v1878
      %v2007 = vadd.f32 %v1469, %v1879
      %v2008 = vadd.f32 %v1472, %v1880
      %v2009 = vadd.f32 %v1477, %v1881
      %v2010 = vadd.f32 %v1480, %v1882
      %v2011 = vadd.f32 %v1485, %v1883
      %v2012 = vadd.f32 %v1488, %v1884
      %v2013 = vadd.f32 %v1493, %v1885
      %v2014 = vadd.f32 %v1496, %v1886
      %v2015 = vadd.f32 %v1501, %v1887
      %v2016 = vadd.f32 %v1504, %v1888
      %v2017 = vadd.f32 %v1509, %v1889
      %v2018 = vadd.f32 %v1512, %v1890
      %v2019 = vadd.f32 %v1517, %v1891
      %v2020 = vadd.f32 %v1520, %v1892
      %v2021 = vadd.f32 %v1525, %v1893
      %v2022 = vadd.f32 %v1528, %v1894
      %v2023 = vadd.f32 %v1533, %v1895
      %v2024 = vadd.f32 %v1536, %v1896
      %v2025 = vadd.f32 %v1541, %v1897
      %v2026 = vadd.f32 %v1544, %v1898
      %v2027 = vadd.f32 %v1549, %v1899
      %v2028 = vadd.f32 %v1552, %v1900
      %v2029 = vadd.f32 %v1557, %v1901
      %v2030 = vadd.f32 %v1560, %v1902
      %v2031 = vadd.f32 %v1565, %v1903
      %v2032 = vadd.f32 %v1568, %v1904
      %v2033 = vadd.f32 %v1573, %v1905
      %v2034 = vadd.f32 %v1576, %v1906
      %v2035 = vadd.f32 %v1581, %v1907
      %v2036 = vadd.f32 %v1584, %v1908
      %v2037 = vadd.f32 %v1589, %v1909
      %v2038 = vadd.f32 %v1592, %v1910
      %v2039 = vadd.f32 %v1597, %v1911
      %v2040 = vadd.f32 %v1600, %v1912
      %v2041 = vadd.f32 %v1605, %v1913
      %v2042 = vadd.f32 %v1608, %v1914
      %v2043 = vadd.f32 %v1613, %v1915
      %v2044 = vadd.f32 %v1616, %v1916
      %v2045 = vadd.f32 %v1621, %v1917
      %v2046 = vadd.f32 %v1624, %v1918
      %v2047 = vadd.f32 %v1629, %v1919
      %v2048 = vadd.f32 %v1632, %v1920
      %v2049 = vadd.f32 %v1637, %v1921
      %v2050 = vadd.f32 %v1640, %v1922
      %v2051 = vadd.f32 %v1645, %v1923
      %v2052 = vadd.f32 %v1648, %v1924
      %v2053 = vadd.f32 %v1653, %v1925
      %v2054 = vadd.f32 %v1656, %v1926
      %v2055 = vadd.f32 %v1661, %v1927
      %v2056 = vadd.f32 %v1664, %v1928
      %v2057 = vadd.f32 %v1669, %v1929
      %v2058 = vadd.f32 %v1672, %v1930
      %v2059 = vmax.f32 %v1931, 0.0
      %v2060 = vmax.f32 %v1932, 0.0
      %v2061 = vmax.f32 %v1933, 0.0
      %v2062 = vmax.f32 %v1934, 0.0
      %v2063 = vmax.f32 %v1935, 0.0
      %v2064 = vmax.f32 %v1936, 0.0
      %v2065 = vmax.f32 %v1937, 0.0
      %v2066 = vmax.f32 %v1938, 0.0
      %v2067 = vmax.f32 %v1939, 0.0
      %v2068 = vmax.f32 %v1940, 0.0
      %v2069 = vmax.f32 %v1941, 0.0
      %v2070 = vmax.f32 %v1942, 0.0
      %v2071 = vmax.f32 %v1943, 0.0
      %v2072 = vmax.f32 %v1944, 0.0
      %v2073 = vmax.f32 %v1945, 0.0
      %v2074 = vmax.f32 %v1946, 0.0
      %v2075 = vmax.f32 %v1947, 0.0
      %v2076 = vmax.f32 %v1948, 0.0
      %v2077 = vmax.f32 %v1949, 0.0
      %v2078 = vmax.f32 %v1950, 0.0
      %v2079 = vmax.f32 %v1951, 0.0
      %v2080 = vmax.f32 %v1952, 0.0
      %v2081 = vmax.f32 %v1953, 0.0
      %v2082 = vmax.f32 %v1954, 0.0
      %v2083 = vmax.f32 %v1955, 0.0
      %v2084 = vmax.f32 %v1956, 0.0
      %v2085 = vmax.f32 %v1957, 0.0
      %v2086 = vmax.f32 %v1958, 0.0
      %v2087 = vmax.f32 %v1959, 0.0
      %v2088 = vmax.f32 %v1960, 0.0
      %v2089 = vmax.f32 %v1961, 0.0
      %v2090 = vmax.f32 %v1962, 0.0
      %v2091 = vmax.f32 %v1963, 0.0
      %v2092 = vmax.f32 %v1964, 0.0
      %v2093 = vmax.f32 %v1965, 0.0
      %v2094 = vmax.f32 %v1966, 0.0
      %v2095 = vmax.f32 %v1967, 0.0
      %v2096 = vmax.f32 %v1968, 0.0
      %v2097 = vmax.f32 %v1969, 0.0
      %v2098 = vmax.f32 %v1970, 0.0
      %v2099 = vmax.f32 %v1971, 0.0
      %v2100 = vmax.f32 %v1972, 0.0
      %v2101 = vmax.f32 %v1973, 0.0
      %v2102 = vmax.f32 %v1974, 0.0
      %v2103 = vmax.f32 %v1975, 0.0
      %v2104 = vmax.f32 %v1976, 0.0
      %v2105 = vmax.f32 %v1977, 0.0
      %v2106 = vmax.f32 %v1978, 0.0
      %v2107 = vmax.f32 %v1979, 0.0
      %v2108 = vmax.f32 %v1980, 0.0
      %v2109 = vmax.f32 %v1981, 0.0
      %v2110 = vmax.f32 %v1982, 0.0
      %v2111 = vmax.f32 %v1983, 0.0
      %v2112 = vmax.f32 %v1984, 0.0
      %v2113 = vmax.f32 %v1985, 0.0
      %v2114 = vmax.f32 %v1986, 0.0
      %v2115 = vmax.f32 %v1987, 0.0
      %v2116 = vmax.f32 %v1988, 0.0
      %v2117 = vmax.f32 %v1989, 0.0
      %v2118 = vmax.f32 %v1990, 0.0
      %v2119 = vmax.f32 %v1991, 0.0
      %v2120 = vmax.f32 %v1992, 0.0
      %v2121 = vmax.f32 %v1993, 0.0
      %v2122 = vmax.f32 %v1994, 0.0
      %v2123 = vmax.f32 %v1995, 0.0
      %v2124 = vmax.f32 %v1996, 0.0
      %v2125 = vmax.f32 %v1997, 0.0
      %v2126 = vmax.f32 %v1998, 0.0
      %v2127 = vmax.f32 %v1999, 0.0
      %v2128 = vmax.f32 %v2000, 0.0
      %v2129 = vmax.f32 %v2001, 0.0
      %v2130 = vmax.f32 %v2002, 0.0
      %v2131 = vmax.f32 %v2003, 0.0
      %v2132 = vmax.f32 %v2004, 0.0
      %v2133 = vmax.f32 %v2005, 0.0
      %v2134 = vmax.f32 %v2006, 0.0
      %v2135 = vmax.f32 %v2007, 0.0
      %v2136 = vmax.f32 %v2008, 0.0
      %v2137 = vmax.f32 %v2009, 0.0
      %v2138 = vmax.f32 %v2010, 0.0
      %v2139 = vmax.f32 %v2011, 0.0
      %v2140 = vmax.f32 %v2012, 0.0
      %v2141 = vmax.f32 %v2013, 0.0
      %v2142 = vmax.f32 %v2014, 0.0
      %v2143 = vmax.f32 %v2015, 0.0
      %v2144 = vmax.f32 %v2016, 0.0
      %v2145 = vmax.f32 %v2017, 0.0
      %v2146 = vmax.f32 %v2018, 0.0
      %v2147 = vmax.f32 %v2019, 0.0
      %v2148 = vmax.f32 %v2020, 0.0
      %v2149 = vmax.f32 %v2021, 0.0
      %v2150 = vmax.f32 %v2022, 0.0
      %v2151 = vmax.f32 %v2023, 0.0
      %v2152 = vmax.f32 %v2024, 0.0
      %v2153 = vmax.f32 %v2025, 0.0
      %v2154 = vmax.f32 %v2026, 0.0
      %v2155 = vmax.f32 %v2027, 0.0
      %v2156 = vmax.f32 %v2028, 0.0
      %v2157 = vmax.f32 %v2029, 0.0
      %v2158 = vmax.f32 %v2030, 0.0
      %v2159 = vmax.f32 %v2031, 0.0
      %v2160 = vmax.f32 %v2032, 0.0
      %v2161 = vmax.f32 %v2033, 0.0
      %v2162 = vmax.f32 %v2034, 0.0
      %v2163 = vmax.f32 %v2035, 0.0
      %v2164 = vmax.f32 %v2036, 0.0
      %v2165 = vmax.f32 %v2037, 0.0
      %v2166 = vmax.f32 %v2038, 0.0
      %v2167 = vmax.f32 %v2039, 0.0
      %v2168 = vmax.f32 %v2040, 0.0
      %v2169 = vmax.f32 %v2041, 0.0
      %v2170 = vmax.f32 %v2042, 0.0
      %v2171 = vmax.f32 %v2043, 0.0
      %v2172 = vmax.f32 %v2044, 0.0
      %v2173 = vmax.f32 %v2045, 0.0
      %v2174 = vmax.f32 %v2046, 0.0
      %v2175 = vmax.f32 %v2047, 0.0
      %v2176 = vmax.f32 %v2048, 0.0
      %v2177 = vmax.f32 %v2049, 0.0
      %v2178 = vmax.f32 %v2050, 0.0
      %v2179 = vmax.f32 %v2051, 0.0
      %v2180 = vmax.f32 %v2052, 0.0
      %v2181 = vmax.f32 %v2053, 0.0
      %v2182 = vmax.f32 %v2054, 0.0
      %v2183 = vmax.f32 %v2055, 0.0
      %v2184 = vmax.f32 %v2056, 0.0
      %v2185 = vmax.f32 %v2057, 0.0
      %v2186 = vmax.f32 %v2058, 0.0
      %v2187 = vpack.c.bf16 %v2060, %v2059
      %v2188 = vpack.c.bf16 %v2062, %v2061
      %v2189 = vpack.c.bf16 %v2064, %v2063
      %v2190 = vpack.c.bf16 %v2066, %v2065
      %v2191 = vpack.c.bf16 %v2068, %v2067
      %v2192 = vpack.c.bf16 %v2070, %v2069
      %v2193 = vpack.c.bf16 %v2072, %v2071
      %v2194 = vpack.c.bf16 %v2074, %v2073
      %v2195 = vpack.c.bf16 %v2076, %v2075
      %v2196 = vpack.c.bf16 %v2078, %v2077
      %v2197 = vpack.c.bf16 %v2080, %v2079
      %v2198 = vpack.c.bf16 %v2082, %v2081
      %v2199 = vpack.c.bf16 %v2084, %v2083
      %v2200 = vpack.c.bf16 %v2086, %v2085
      %v2201 = vpack.c.bf16 %v2088, %v2087
      %v2202 = vpack.c.bf16 %v2090, %v2089
      %v2203 = vpack.c.bf16 %v2092, %v2091
      %v2204 = vpack.c.bf16 %v2094, %v2093
      %v2205 = vpack.c.bf16 %v2096, %v2095
      %v2206 = vpack.c.bf16 %v2098, %v2097
      %v2207 = vpack.c.bf16 %v2100, %v2099
      %v2208 = vpack.c.bf16 %v2102, %v2101
      %v2209 = vpack.c.bf16 %v2104, %v2103
      %v2210 = vpack.c.bf16 %v2106, %v2105
      %v2211 = vpack.c.bf16 %v2108, %v2107
      %v2212 = vpack.c.bf16 %v2110, %v2109
      %v2213 = vpack.c.bf16 %v2112, %v2111
      %v2214 = vpack.c.bf16 %v2114, %v2113
      %v2215 = vpack.c.bf16 %v2116, %v2115
      %v2216 = vpack.c.bf16 %v2118, %v2117
      %v2217 = vpack.c.bf16 %v2120, %v2119
      %v2218 = vpack.c.bf16 %v2122, %v2121
      %v2219 = vpack.c.bf16 %v2124, %v2123
      %v2220 = vpack.c.bf16 %v2126, %v2125
      %v2221 = vpack.c.bf16 %v2128, %v2127
      %v2222 = vpack.c.bf16 %v2130, %v2129
      %v2223 = vpack.c.bf16 %v2132, %v2131
      %v2224 = vpack.c.bf16 %v2134, %v2133
      %v2225 = vpack.c.bf16 %v2136, %v2135
      %v2226 = vpack.c.bf16 %v2138, %v2137
      %v2227 = vpack.c.bf16 %v2140, %v2139
      %v2228 = vpack.c.bf16 %v2142, %v2141
      %v2229 = vpack.c.bf16 %v2144, %v2143
      %v2230 = vpack.c.bf16 %v2146, %v2145
      %v2231 = vpack.c.bf16 %v2148, %v2147
      %v2232 = vpack.c.bf16 %v2150, %v2149
      %v2233 = vpack.c.bf16 %v2152, %v2151
      %v2234 = vpack.c.bf16 %v2154, %v2153
      %v2235 = vpack.c.bf16 %v2156, %v2155
      %v2236 = vpack.c.bf16 %v2158, %v2157
      %v2237 = vpack.c.bf16 %v2160, %v2159
      %v2238 = vpack.c.bf16 %v2162, %v2161
      %v2239 = vpack.c.bf16 %v2164, %v2163
      %v2240 = vpack.c.bf16 %v2166, %v2165
      %v2241 = vpack.c.bf16 %v2168, %v2167
      %v2242 = vpack.c.bf16 %v2170, %v2169
      %v2243 = vpack.c.bf16 %v2172, %v2171
      %v2244 = vpack.c.bf16 %v2174, %v2173
      %v2245 = vpack.c.bf16 %v2176, %v2175
      %v2246 = vpack.c.bf16 %v2178, %v2177
      %v2247 = vpack.c.bf16 %v2180, %v2179
      %v2248 = vpack.c.bf16 %v2182, %v2181
      %v2249 = vpack.c.bf16 %v2184, %v2183
      %v2250 = vpack.c.bf16 %v2186, %v2185
      %v2315 = vunpack.c.l.b16 %v2187
      %v2316 = vunpack.c.h.b16 %v2187
      %v2317 = vunpack.c.l.b16 %v2188
      %v2318 = vunpack.c.h.b16 %v2188
      %v2319 = vunpack.c.l.b16 %v2189
      %v2320 = vunpack.c.h.b16 %v2189
      %v2321 = vunpack.c.l.b16 %v2190
      %v2322 = vunpack.c.h.b16 %v2190
      %v2323 = vunpack.c.l.b16 %v2191
      %v2324 = vunpack.c.h.b16 %v2191
      %v2325 = vunpack.c.l.b16 %v2192
      %v2326 = vunpack.c.h.b16 %v2192
      %v2327 = vunpack.c.l.b16 %v2193
      %v2328 = vunpack.c.h.b16 %v2193
      %v2329 = vunpack.c.l.b16 %v2194
      %v2330 = vunpack.c.h.b16 %v2194
      %v2331 = vunpack.c.l.b16 %v2195
      %v2332 = vunpack.c.h.b16 %v2195
      %v2333 = vunpack.c.l.b16 %v2196
      %v2334 = vunpack.c.h.b16 %v2196
      %v2335 = vunpack.c.l.b16 %v2197
      %v2336 = vunpack.c.h.b16 %v2197
      %v2337 = vunpack.c.l.b16 %v2198
      %v2338 = vunpack.c.h.b16 %v2198
      %v2339 = vunpack.c.l.b16 %v2199
      %v2340 = vunpack.c.h.b16 %v2199
      %v2341 = vunpack.c.l.b16 %v2200
      %v2342 = vunpack.c.h.b16 %v2200
      %v2343 = vunpack.c.l.b16 %v2201
      %v2344 = vunpack.c.h.b16 %v2201
      %v2345 = vunpack.c.l.b16 %v2202
      %v2346 = vunpack.c.h.b16 %v2202
      %v2347 = vunpack.c.l.b16 %v2203
      %v2348 = vunpack.c.h.b16 %v2203
      %v2349 = vunpack.c.l.b16 %v2204
      %v2350 = vunpack.c.h.b16 %v2204
      %v2351 = vunpack.c.l.b16 %v2205
      %v2352 = vunpack.c.h.b16 %v2205
      %v2353 = vunpack.c.l.b16 %v2206
      %v2354 = vunpack.c.h.b16 %v2206
      %v2355 = vunpack.c.l.b16 %v2207
      %v2356 = vunpack.c.h.b16 %v2207
      %v2357 = vunpack.c.l.b16 %v2208
      %v2358 = vunpack.c.h.b16 %v2208
      %v2359 = vunpack.c.l.b16 %v2209
      %v2360 = vunpack.c.h.b16 %v2209
      %v2361 = vunpack.c.l.b16 %v2210
      %v2362 = vunpack.c.h.b16 %v2210
      %v2363 = vunpack.c.l.b16 %v2211
      %v2364 = vunpack.c.h.b16 %v2211
      %v2365 = vunpack.c.l.b16 %v2212
      %v2366 = vunpack.c.h.b16 %v2212
      %v2367 = vunpack.c.l.b16 %v2213
      %v2368 = vunpack.c.h.b16 %v2213
      %v2369 = vunpack.c.l.b16 %v2214
      %v2370 = vunpack.c.h.b16 %v2214
      %v2371 = vunpack.c.l.b16 %v2215
      %v2372 = vunpack.c.h.b16 %v2215
      %v2373 = vunpack.c.l.b16 %v2216
      %v2374 = vunpack.c.h.b16 %v2216
      %v2375 = vunpack.c.l.b16 %v2217
      %v2376 = vunpack.c.h.b16 %v2217
      %v2377 = vunpack.c.l.b16 %v2218
      %v2378 = vunpack.c.h.b16 %v2218
      %v2379 = vunpack.c.l.b16 %v2219
      %v2380 = vunpack.c.h.b16 %v2219
      %v2381 = vunpack.c.l.b16 %v2220
      %v2382 = vunpack.c.h.b16 %v2220
      %v2383 = vunpack.c.l.b16 %v2221
      %v2384 = vunpack.c.h.b16 %v2221
      %v2385 = vunpack.c.l.b16 %v2222
      %v2386 = vunpack.c.h.b16 %v2222
      %v2387 = vunpack.c.l.b16 %v2223
      %v2388 = vunpack.c.h.b16 %v2223
      %v2389 = vunpack.c.l.b16 %v2224
      %v2390 = vunpack.c.h.b16 %v2224
      %v2391 = vunpack.c.l.b16 %v2225
      %v2392 = vunpack.c.h.b16 %v2225
      %v2393 = vunpack.c.l.b16 %v2226
      %v2394 = vunpack.c.h.b16 %v2226
      %v2395 = vunpack.c.l.b16 %v2227
      %v2396 = vunpack.c.h.b16 %v2227
      %v2397 = vunpack.c.l.b16 %v2228
      %v2398 = vunpack.c.h.b16 %v2228
      %v2399 = vunpack.c.l.b16 %v2229
      %v2400 = vunpack.c.h.b16 %v2229
      %v2401 = vunpack.c.l.b16 %v2230
      %v2402 = vunpack.c.h.b16 %v2230
      %v2403 = vunpack.c.l.b16 %v2231
      %v2404 = vunpack.c.h.b16 %v2231
      %v2405 = vunpack.c.l.b16 %v2232
      %v2406 = vunpack.c.h.b16 %v2232
      %v2407 = vunpack.c.l.b16 %v2233
      %v2408 = vunpack.c.h.b16 %v2233
      %v2409 = vunpack.c.l.b16 %v2234
      %v2410 = vunpack.c.h.b16 %v2234
      %v2411 = vunpack.c.l.b16 %v2235
      %v2412 = vunpack.c.h.b16 %v2235
      %v2413 = vunpack.c.l.b16 %v2236
      %v2414 = vunpack.c.h.b16 %v2236
      %v2415 = vunpack.c.l.b16 %v2237
      %v2416 = vunpack.c.h.b16 %v2237
      %v2417 = vunpack.c.l.b16 %v2238
      %v2418 = vunpack.c.h.b16 %v2238
      %v2419 = vunpack.c.l.b16 %v2239
      %v2420 = vunpack.c.h.b16 %v2239
      %v2421 = vunpack.c.l.b16 %v2240
      %v2422 = vunpack.c.h.b16 %v2240
      %v2423 = vunpack.c.l.b16 %v2241
      %v2424 = vunpack.c.h.b16 %v2241
      %v2425 = vunpack.c.l.b16 %v2242
      %v2426 = vunpack.c.h.b16 %v2242
      %v2427 = vunpack.c.l.b16 %v2243
      %v2428 = vunpack.c.h.b16 %v2243
      %v2429 = vunpack.c.l.b16 %v2244
      %v2430 = vunpack.c.h.b16 %v2244
      %v2431 = vunpack.c.l.b16 %v2245
      %v2432 = vunpack.c.h.b16 %v2245
      %v2433 = vunpack.c.l.b16 %v2246
      %v2434 = vunpack.c.h.b16 %v2246
      %v2435 = vunpack.c.l.b16 %v2247
      %v2436 = vunpack.c.h.b16 %v2247
      %v2437 = vunpack.c.l.b16 %v2248
      %v2438 = vunpack.c.h.b16 %v2248
      %v2439 = vunpack.c.l.b16 %v2249
      %v2440 = vunpack.c.h.b16 %v2249
      %v2441 = vunpack.c.l.b16 %v2250
      %v2442 = vunpack.c.h.b16 %v2250
      %v2443 = vpack.c.b16 %v2315, %v2315
      %v2444 = vpack.c.b16 %v2316, %v2316
      %v2445 = vpack.c.b16 %v2317, %v2317
      %v2446 = vpack.c.b16 %v2318, %v2318
      %v2447 = vpack.c.b16 %v2319, %v2319
      %v2448 = vpack.c.b16 %v2320, %v2320
      %v2449 = vpack.c.b16 %v2321, %v2321
      %v2450 = vpack.c.b16 %v2322, %v2322
      %v2451 = vpack.c.b16 %v2323, %v2323
      %v2452 = vpack.c.b16 %v2324, %v2324
      %v2453 = vpack.c.b16 %v2325, %v2325
      %v2454 = vpack.c.b16 %v2326, %v2326
      %v2455 = vpack.c.b16 %v2327, %v2327
      %v2456 = vpack.c.b16 %v2328, %v2328
      %v2457 = vpack.c.b16 %v2329, %v2329
      %v2458 = vpack.c.b16 %v2330, %v2330
      %v2459 = vpack.c.b16 %v2331, %v2331
      %v2460 = vpack.c.b16 %v2332, %v2332
      %v2461 = vpack.c.b16 %v2333, %v2333
      %v2462 = vpack.c.b16 %v2334, %v2334
      %v2463 = vpack.c.b16 %v2335, %v2335
      %v2464 = vpack.c.b16 %v2336, %v2336
      %v2465 = vpack.c.b16 %v2337, %v2337
      %v2466 = vpack.c.b16 %v2338, %v2338
      %v2467 = vpack.c.b16 %v2339, %v2339
      %v2468 = vpack.c.b16 %v2340, %v2340
      %v2469 = vpack.c.b16 %v2341, %v2341
      %v2470 = vpack.c.b16 %v2342, %v2342
      %v2471 = vpack.c.b16 %v2343, %v2343
      %v2472 = vpack.c.b16 %v2344, %v2344
      %v2473 = vpack.c.b16 %v2345, %v2345
      %v2474 = vpack.c.b16 %v2346, %v2346
      %v2475 = vpack.c.b16 %v2347, %v2347
      %v2476 = vpack.c.b16 %v2348, %v2348
      %v2477 = vpack.c.b16 %v2349, %v2349
      %v2478 = vpack.c.b16 %v2350, %v2350
      %v2479 = vpack.c.b16 %v2351, %v2351
      %v2480 = vpack.c.b16 %v2352, %v2352
      %v2481 = vpack.c.b16 %v2353, %v2353
      %v2482 = vpack.c.b16 %v2354, %v2354
      %v2483 = vpack.c.b16 %v2355, %v2355
      %v2484 = vpack.c.b16 %v2356, %v2356
      %v2485 = vpack.c.b16 %v2357, %v2357
      %v2486 = vpack.c.b16 %v2358, %v2358
      %v2487 = vpack.c.b16 %v2359, %v2359
      %v2488 = vpack.c.b16 %v2360, %v2360
      %v2489 = vpack.c.b16 %v2361, %v2361
      %v2490 = vpack.c.b16 %v2362, %v2362
      %v2491 = vpack.c.b16 %v2363, %v2363
      %v2492 = vpack.c.b16 %v2364, %v2364
      %v2493 = vpack.c.b16 %v2365, %v2365
      %v2494 = vpack.c.b16 %v2366, %v2366
      %v2495 = vpack.c.b16 %v2367, %v2367
      %v2496 = vpack.c.b16 %v2368, %v2368
      %v2497 = vpack.c.b16 %v2369, %v2369
      %v2498 = vpack.c.b16 %v2370, %v2370
      %v2499 = vpack.c.b16 %v2371, %v2371
      %v2500 = vpack.c.b16 %v2372, %v2372
      %v2501 = vpack.c.b16 %v2373, %v2373
      %v2502 = vpack.c.b16 %v2374, %v2374
      %v2503 = vpack.c.b16 %v2375, %v2375
      %v2504 = vpack.c.b16 %v2376, %v2376
      %v2505 = vpack.c.b16 %v2377, %v2377
      %v2506 = vpack.c.b16 %v2378, %v2378
      %v2507 = vpack.c.b16 %v2379, %v2379
      %v2508 = vpack.c.b16 %v2380, %v2380
      %v2509 = vpack.c.b16 %v2381, %v2381
      %v2510 = vpack.c.b16 %v2382, %v2382
      %v2511 = vpack.c.b16 %v2383, %v2383
      %v2512 = vpack.c.b16 %v2384, %v2384
      %v2513 = vpack.c.b16 %v2385, %v2385
      %v2514 = vpack.c.b16 %v2386, %v2386
      %v2515 = vpack.c.b16 %v2387, %v2387
      %v2516 = vpack.c.b16 %v2388, %v2388
      %v2517 = vpack.c.b16 %v2389, %v2389
      %v2518 = vpack.c.b16 %v2390, %v2390
      %v2519 = vpack.c.b16 %v2391, %v2391
      %v2520 = vpack.c.b16 %v2392, %v2392
      %v2521 = vpack.c.b16 %v2393, %v2393
      %v2522 = vpack.c.b16 %v2394, %v2394
      %v2523 = vpack.c.b16 %v2395, %v2395
      %v2524 = vpack.c.b16 %v2396, %v2396
      %v2525 = vpack.c.b16 %v2397, %v2397
      %v2526 = vpack.c.b16 %v2398, %v2398
      %v2527 = vpack.c.b16 %v2399, %v2399
      %v2528 = vpack.c.b16 %v2400, %v2400
      %v2529 = vpack.c.b16 %v2401, %v2401
      %v2530 = vpack.c.b16 %v2402, %v2402
      %v2531 = vpack.c.b16 %v2403, %v2403
      %v2532 = vpack.c.b16 %v2404, %v2404
      %v2533 = vpack.c.b16 %v2405, %v2405
      %v2534 = vpack.c.b16 %v2406, %v2406
      %v2535 = vpack.c.b16 %v2407, %v2407
      %v2536 = vpack.c.b16 %v2408, %v2408
      %v2537 = vpack.c.b16 %v2409, %v2409
      %v2538 = vpack.c.b16 %v2410, %v2410
      %v2539 = vpack.c.b16 %v2411, %v2411
      %v2540 = vpack.c.b16 %v2412, %v2412
      %v2541 = vpack.c.b16 %v2413, %v2413
      %v2542 = vpack.c.b16 %v2414, %v2414
      %v2543 = vpack.c.b16 %v2415, %v2415
      %v2544 = vpack.c.b16 %v2416, %v2416
      %v2545 = vpack.c.b16 %v2417, %v2417
      %v2546 = vpack.c.b16 %v2418, %v2418
      %v2547 = vpack.c.b16 %v2419, %v2419
      %v2548 = vpack.c.b16 %v2420, %v2420
      %v2549 = vpack.c.b16 %v2421, %v2421
      %v2550 = vpack.c.b16 %v2422, %v2422
      %v2551 = vpack.c.b16 %v2423, %v2423
      %v2552 = vpack.c.b16 %v2424, %v2424
      %v2553 = vpack.c.b16 %v2425, %v2425
      %v2554 = vpack.c.b16 %v2426, %v2426
      %v2555 = vpack.c.b16 %v2427, %v2427
      %v2556 = vpack.c.b16 %v2428, %v2428
      %v2557 = vpack.c.b16 %v2429, %v2429
      %v2558 = vpack.c.b16 %v2430, %v2430
      %v2559 = vpack.c.b16 %v2431, %v2431
      %v2560 = vpack.c.b16 %v2432, %v2432
      %v2561 = vpack.c.b16 %v2433, %v2433
      %v2562 = vpack.c.b16 %v2434, %v2434
      %v2563 = vpack.c.b16 %v2435, %v2435
      %v2564 = vpack.c.b16 %v2436, %v2436
      %v2565 = vpack.c.b16 %v2437, %v2437
      %v2566 = vpack.c.b16 %v2438, %v2438
      %v2567 = vpack.c.b16 %v2439, %v2439
      %v2568 = vpack.c.b16 %v2440, %v2440
      %v2569 = vpack.c.b16 %v2441, %v2441
      %v2570 = vpack.c.b16 %v2442, %v2442
      %2699 = vst [vmem:[%s224] sm:$0xf] %v2443
      %2700 = vst [vmem:[%s224 + $0x4] sm:$0xf] %v2444
      %2701 = vst [vmem:[%s224 + $0x8] sm:$0xf] %v2445
      %2702 = vst [vmem:[%s224 + $0xc] sm:$0xf] %v2446
      %2703 = vst [vmem:[%s224 + $0x10] sm:$0xf] %v2447
      %2704 = vst [vmem:[%s224 + $0x14] sm:$0xf] %v2448
      %2705 = vst [vmem:[%s224 + $0x18] sm:$0xf] %v2449
      %2706 = vst [vmem:[%s224 + $0x1c] sm:$0xf] %v2450
      %2707 = vst [vmem:[%s224 + $0x20] sm:$0xf] %v2451
      %2708 = vst [vmem:[%s224 + $0x24] sm:$0xf] %v2452
      %2709 = vst [vmem:[%s224 + $0x28] sm:$0xf] %v2453
      %2710 = vst [vmem:[%s224 + $0x2c] sm:$0xf] %v2454
      %2711 = vst [vmem:[%s224 + $0x30] sm:$0xf] %v2455
      %2712 = vst [vmem:[%s224 + $0x34] sm:$0xf] %v2456
      %2713 = vst [vmem:[%s224 + $0x38] sm:$0xf] %v2457
      %2714 = vst [vmem:[%s224 + $0x3c] sm:$0xf] %v2458
      %2715 = vst [vmem:[%s224 + $0x40] sm:$0xf] %v2459
      %2716 = vst [vmem:[%s224 + $0x44] sm:$0xf] %v2460
      %2717 = vst [vmem:[%s224 + $0x48] sm:$0xf] %v2461
      %2718 = vst [vmem:[%s224 + $0x4c] sm:$0xf] %v2462
      %2719 = vst [vmem:[%s224 + $0x50] sm:$0xf] %v2463
      %2720 = vst [vmem:[%s224 + $0x54] sm:$0xf] %v2464
      %2721 = vst [vmem:[%s224 + $0x58] sm:$0xf] %v2465
      %2722 = vst [vmem:[%s224 + $0x5c] sm:$0xf] %v2466
      %2723 = vst [vmem:[%s224 + $0x60] sm:$0xf] %v2467
      %2724 = vst [vmem:[%s224 + $0x64] sm:$0xf] %v2468
      %2725 = vst [vmem:[%s224 + $0x68] sm:$0xf] %v2469
      %2726 = vst [vmem:[%s224 + $0x6c] sm:$0xf] %v2470
      %2727 = vst [vmem:[%s224 + $0x70] sm:$0xf] %v2471
      %2728 = vst [vmem:[%s224 + $0x74] sm:$0xf] %v2472
      %2729 = vst [vmem:[%s224 + $0x78] sm:$0xf] %v2473
      %2730 = vst [vmem:[%s224 + $0x7c] sm:$0xf] %v2474
      %2731 = vst [vmem:[%s224 + $0x80] sm:$0xf] %v2475
      %2732 = vst [vmem:[%s224 + $0x84] sm:$0xf] %v2476
      %2733 = vst [vmem:[%s224 + $0x88] sm:$0xf] %v2477
      %2734 = vst [vmem:[%s224 + $0x8c] sm:$0xf] %v2478
      %2735 = vst [vmem:[%s224 + $0x90] sm:$0xf] %v2479
      %2736 = vst [vmem:[%s224 + $0x94] sm:$0xf] %v2480
      %2737 = vst [vmem:[%s224 + $0x98] sm:$0xf] %v2481
      %2738 = vst [vmem:[%s224 + $0x9c] sm:$0xf] %v2482
      %2739 = vst [vmem:[%s224 + $0xa0] sm:$0xf] %v2483
      %2740 = vst [vmem:[%s224 + $0xa4] sm:$0xf] %v2484
      %2741 = vst [vmem:[%s224 + $0xa8] sm:$0xf] %v2485
      %2742 = vst [vmem:[%s224 + $0xac] sm:$0xf] %v2486
      %2743 = vst [vmem:[%s224 + $0xb0] sm:$0xf] %v2487
      %2744 = vst [vmem:[%s224 + $0xb4] sm:$0xf] %v2488
      %2745 = vst [vmem:[%s224 + $0xb8] sm:$0xf] %v2489
      %2746 = vst [vmem:[%s224 + $0xbc] sm:$0xf] %v2490
      %2747 = vst [vmem:[%s224 + $0xc0] sm:$0xf] %v2491
      %2748 = vst [vmem:[%s224 + $0xc4] sm:$0xf] %v2492
      %2749 = vst [vmem:[%s224 + $0xc8] sm:$0xf] %v2493
      %2750 = vst [vmem:[%s224 + $0xcc] sm:$0xf] %v2494
      %2751 = vst [vmem:[%s224 + $0xd0] sm:$0xf] %v2495
      %2752 = vst [vmem:[%s224 + $0xd4] sm:$0xf] %v2496
      %2753 = vst [vmem:[%s224 + $0xd8] sm:$0xf] %v2497
      %2754 = vst [vmem:[%s224 + $0xdc] sm:$0xf] %v2498
      %2755 = vst [vmem:[%s224 + $0xe0] sm:$0xf] %v2499
      %2756 = vst [vmem:[%s224 + $0xe4] sm:$0xf] %v2500
      %2757 = vst [vmem:[%s224 + $0xe8] sm:$0xf] %v2501
      %2758 = vst [vmem:[%s224 + $0xec] sm:$0xf] %v2502
      %2759 = vst [vmem:[%s224 + $0xf0] sm:$0xf] %v2503
      %2760 = vst [vmem:[%s224 + $0xf4] sm:$0xf] %v2504
      %2761 = vst [vmem:[%s224 + $0xf8] sm:$0xf] %v2505
      %2762 = vst [vmem:[%s224 + $0xfc] sm:$0xf] %v2506
      %2763 = vst [vmem:[%s224 + $0x100] sm:$0xf] %v2507
      %2764 = vst [vmem:[%s224 + $0x104] sm:$0xf] %v2508
      %2765 = vst [vmem:[%s224 + $0x108] sm:$0xf] %v2509
      %2766 = vst [vmem:[%s224 + $0x10c] sm:$0xf] %v2510
      %2767 = vst [vmem:[%s224 + $0x110] sm:$0xf] %v2511
      %2768 = vst [vmem:[%s224 + $0x114] sm:$0xf] %v2512
      %2769 = vst [vmem:[%s224 + $0x118] sm:$0xf] %v2513
      %2770 = vst [vmem:[%s224 + $0x11c] sm:$0xf] %v2514
      %2771 = vst [vmem:[%s224 + $0x120] sm:$0xf] %v2515
      %2772 = vst [vmem:[%s224 + $0x124] sm:$0xf] %v2516
      %2773 = vst [vmem:[%s224 + $0x128] sm:$0xf] %v2517
      %2774 = vst [vmem:[%s224 + $0x12c] sm:$0xf] %v2518
      %2775 = vst [vmem:[%s224 + $0x130] sm:$0xf] %v2519
      %2776 = vst [vmem:[%s224 + $0x134] sm:$0xf] %v2520
      %2777 = vst [vmem:[%s224 + $0x138] sm:$0xf] %v2521
      %2778 = vst [vmem:[%s224 + $0x13c] sm:$0xf] %v2522
      %2779 = vst [vmem:[%s224 + $0x140] sm:$0xf] %v2523
      %2780 = vst [vmem:[%s224 + $0x144] sm:$0xf] %v2524
      %2781 = vst [vmem:[%s224 + $0x148] sm:$0xf] %v2525
      %2782 = vst [vmem:[%s224 + $0x14c] sm:$0xf] %v2526
      %2783 = vst [vmem:[%s224 + $0x150] sm:$0xf] %v2527
      %2784 = vst [vmem:[%s224 + $0x154] sm:$0xf] %v2528
      %2785 = vst [vmem:[%s224 + $0x158] sm:$0xf] %v2529
      %2786 = vst [vmem:[%s224 + $0x15c] sm:$0xf] %v2530
      %2787 = vst [vmem:[%s224 + $0x160] sm:$0xf] %v2531
      %2788 = vst [vmem:[%s224 + $0x164] sm:$0xf] %v2532
      %2789 = vst [vmem:[%s224 + $0x168] sm:$0xf] %v2533
      %2790 = vst [vmem:[%s224 + $0x16c] sm:$0xf] %v2534
      %2791 = vst [vmem:[%s224 + $0x170] sm:$0xf] %v2535
      %2792 = vst [vmem:[%s224 + $0x174] sm:$0xf] %v2536
      %2793 = vst [vmem:[%s224 + $0x178] sm:$0xf] %v2537
      %2794 = vst [vmem:[%s224 + $0x17c] sm:$0xf] %v2538
      %2795 = vst [vmem:[%s224 + $0x180] sm:$0xf] %v2539
      %2796 = vst [vmem:[%s224 + $0x184] sm:$0xf] %v2540
      %2797 = vst [vmem:[%s224 + $0x188] sm:$0xf] %v2541
      %2798 = vst [vmem:[%s224 + $0x18c] sm:$0xf] %v2542
      %2799 = vst [vmem:[%s224 + $0x190] sm:$0xf] %v2543
      %2800 = vst [vmem:[%s224 + $0x194] sm:$0xf] %v2544
      %2801 = vst [vmem:[%s224 + $0x198] sm:$0xf] %v2545
      %2802 = vst [vmem:[%s224 + $0x19c] sm:$0xf] %v2546
      %2803 = vst [vmem:[%s224 + $0x1a0] sm:$0xf] %v2547
      %2804 = vst [vmem:[%s224 + $0x1a4] sm:$0xf] %v2548
      %2805 = vst [vmem:[%s224 + $0x1a8] sm:$0xf] %v2549
      %2806 = vst [vmem:[%s224 + $0x1ac] sm:$0xf] %v2550
      %2807 = vst [vmem:[%s224 + $0x1b0] sm:$0xf] %v2551
      %2808 = vst [vmem:[%s224 + $0x1b4] sm:$0xf] %v2552
      %2809 = vst [vmem:[%s224 + $0x1b8] sm:$0xf] %v2553
      %2810 = vst [vmem:[%s224 + $0x1bc] sm:$0xf] %v2554
      %2811 = vst [vmem:[%s224 + $0x1c0] sm:$0xf] %v2555
      %2812 = vst [vmem:[%s224 + $0x1c4] sm:$0xf] %v2556
      %2813 = vst [vmem:[%s224 + $0x1c8] sm:$0xf] %v2557
      %2814 = vst [vmem:[%s224 + $0x1cc] sm:$0xf] %v2558
      %2815 = vst [vmem:[%s224 + $0x1d0] sm:$0xf] %v2559
      %2816 = vst [vmem:[%s224 + $0x1d4] sm:$0xf] %v2560
      %2817 = vst [vmem:[%s224 + $0x1d8] sm:$0xf] %v2561
      %2818 = vst [vmem:[%s224 + $0x1dc] sm:$0xf] %v2562
      %2819 = vst [vmem:[%s224 + $0x1e0] sm:$0xf] %v2563
      %2820 = vst [vmem:[%s224 + $0x1e4] sm:$0xf] %v2564
      %2821 = vst [vmem:[%s224 + $0x1e8] sm:$0xf] %v2565
      %2822 = vst [vmem:[%s224 + $0x1ec] sm:$0xf] %v2566
      %2823 = vst [vmem:[%s224 + $0x1f0] sm:$0xf] %v2567
      %2824 = vst [vmem:[%s224 + $0x1f4] sm:$0xf] %v2568
      %2825 = vst [vmem:[%s224 + $0x1f8] sm:$0xf] %v2569
      %2826 = vst [vmem:[%s224 + $0x1fc] sm:$0xf] %v2570
      %s2827 = smul.u32 128, %s15
      %p2828 = scmp.lt.s32.totalorder %s2827, 255
      %s2829 = scalar_select %p2828, %s2827, 255
      %s2830 = smul.addr %s2829, 4
      %s2831 = scalar_lea.vmem %s4, %s2830
      // Predicated region
      $region37: #{fwd.10} parent=35 // pred_check
        %p2832 = pneg %p127
      $region38: #{fwd.10} parent=35 // pred_check_branch
        %2834 = sbr.rel (%p2832) target = $region40
      $region39: #{fwd.10} parent=35 // pred_region
        %s2835 = smul.u32 128, %s15
      $region40: #{fwd.10} parent=35 // pred_fallthru
        _
    $region36: #{fwd.10} parent=5 // pred_fallthru
      _
    %p2836 = scmp.le.s32.totalorder 2, %s10
    // Predicated region
    $region41: #{fwd.10} parent=5 // pred_check
      %p2837 = pneg %p2836
    $region42: #{fwd.10} parent=5 // pred_check_branch
      %2839 = sbr.rel (%p2837) target = $region44
    $region43: #{fwd.10} parent=5 // pred_region
      %s2840 = ssub.s32 %s10, 2
      // Predicated region
      $region45: #{fwd.10} parent=43 // pred_check
        %p2841 = pneg %p133
      $region46: #{fwd.10} parent=43 // pred_check_branch
        %2843 = sbr.rel (%p2841) target = $region48
      $region47: #{fwd.10} parent=43 // pred_region
        %s2844 = smul.u32 128, %s16
        %p2845 = scmp.lt.s32.totalorder %s2844, 255
        %s2846 = scalar_select %p2845, %s2844, 255
        %s2847 = smul.addr %s2846, 4
        %s2848 = scalar_lea.vmem %s4, %s2847
      $region48: #{fwd.10} parent=43 // pred_fallthru
        _
    $region44: #{fwd.10} parent=5 // pred_fallthru
      _
  $region6: #{fwd.10} parent=0 // loop_footer
    %s14 = sadd.s32 1, %s10
  $region7: #{fwd.10} parent=0 // loop_footer_branch
    %9 = sbr.rel target = $region3
  $region8: #{fwd.10} parent=0 // loop_exit
    _

// kernel: fwd.11
$region0: #{fwd.11}
  #allocation0 [shape = 'u32[]', space=smem, size = 0x4, offset = 0x4, fixed_abs, tag = 'smem constant byte address 0x4 - core index']
  #allocation1 [shape = 'u32[144,128]{1,0:T(1,128)}', space=vmem, size = 0x12000, scoped, tag = 'internal scratch']
  %s0 = inlined_call_operand.vmem [shape: bf16[512,256], index: 0, kind: input, shape index: {}]
  %s1 = inlined_call_operand.vmem [shape: bf16[256,128], index: 1, kind: input, shape index: {}]
  %s2 = inlined_call_operand.vmem [shape: f32[1,128], index: 2, kind: input, shape index: {}]
  %s3 = inlined_call_operand.vmem [shape: bf16[512,128], index: 3, kind: output, shape index: {}]
  %s4 = sld [smem:[#allocation0]]
  $region45: #{fwd.11} parent=0
    _
  %s6 = ssub.s32 1, %s4
  %s7 = scalar_select 0, %s6, %s4
  loop: start=0, step=1, limit=4
  $region2: #{fwd.11} parent=0 // loop_pre_header
    _
  $region3: #{fwd.11} parent=0 // loop_header
    %s9 = sphi 0, %s13
    %p10 = scmp.ge.s32.totalorder %s9, 4
    %s19 = sphi 0, %s21
    %s22 = sphi 0, %s19
    %s23 = sphi 0, %s22
    %s39 = sphi 0, %s23
    %s43 = sphi 0, %s43
    %s45 = sphi 0, %s43
    %s46 = sphi 0, %s45
    %s60 = sphi 0, %s46
    %s64 = sphi 0, %s64
    %s66 = sphi 0, %s64
    %s67 = sphi 0, %s66
    %s81 = sphi 0, %s67
    %s87 = sphi 0, %s89
    %s90 = sphi 0, %s87
    %s91 = sphi 0, %s90
    %s107 = sphi 0, %s91
  $region4: #{fwd.11} parent=0 // loop_header_branch
    %12 = sbr.rel (%p10) target = $region8
  $region5: #{fwd.11} parent=0 // loop_body
    %s14 = ssub.s32 %s9, 1
    %s15 = ssub.s32 %s9, 2
    %s16 = sadd.s32 %s9, 1
    %s17 = ssub.s32 %s9, %s16
    %p18 = scmp.eq.s32.totalorder %s17, 0
    %s20 = sadd.s32 %s19, 1
    %s21 = scalar_select %p18, %s19, %s20
    %p24 = pneg %p18
    %p25 = scmp.eq.s32.totalorder %s9, 1
    %p26 = por %p24, %p25
    %p27 = scmp.ne.s32.totalorder %s19, %s22
    %p28 = scmp.eq.s32.totalorder %s9, 0
    %p29 = por %p27, %p28
    %p30 = scmp.ne.s32.totalorder %s19, %s22
    %p31 = scmp.eq.s32.totalorder %s14, 1
    %p32 = por %p30, %p31
    %p33 = scmp.ne.s32.totalorder %s22, %s23
    %p34 = scmp.eq.s32.totalorder %s14, 0
    %p35 = por %p33, %p34
    %p36 = scmp.ne.s32.totalorder %s22, %s23
    %p37 = scmp.eq.s32.totalorder %s15, 1
    %p38 = por %p36, %p37
    %p40 = scmp.ne.s32.totalorder %s23, %s39
    %p41 = scmp.eq.s32.totalorder %s15, 0
    %p42 = por %p40, %p41
    %s44 = sadd.s32 %s43, 1
    %p47 = scmp.eq.s32.totalorder %s9, 1
    %p48 = scmp.ne.s32.totalorder %s43, %s45
    %p49 = scmp.eq.s32.totalorder %s9, 0
    %p50 = por %p48, %p49
    %p51 = scmp.ne.s32.totalorder %s43, %s45
    %p52 = scmp.eq.s32.totalorder %s14, 1
    %p53 = por %p51, %p52
    %p54 = scmp.ne.s32.totalorder %s45, %s46
    %p55 = scmp.eq.s32.totalorder %s14, 0
    %p56 = por %p54, %p55
    %p57 = scmp.ne.s32.totalorder %s45, %s46
    %p58 = scmp.eq.s32.totalorder %s15, 1
    %p59 = por %p57, %p58
    %p61 = scmp.ne.s32.totalorder %s46, %s60
    %p62 = scmp.eq.s32.totalorder %s15, 0
    %p63 = por %p61, %p62
    %s65 = sadd.s32 %s64, 1
    %p68 = scmp.eq.s32.totalorder %s9, 1
    %p69 = scmp.ne.s32.totalorder %s64, %s66
    %p70 = scmp.eq.s32.totalorder %s9, 0
    %p71 = por %p69, %p70
    %p72 = scmp.ne.s32.totalorder %s64, %s66
    %p73 = scmp.eq.s32.totalorder %s14, 1
    %p74 = por %p72, %p73
    %p75 = scmp.ne.s32.totalorder %s66, %s67
    %p76 = scmp.eq.s32.totalorder %s14, 0
    %p77 = por %p75, %p76
    %p78 = scmp.ne.s32.totalorder %s66, %s67
    %p79 = scmp.eq.s32.totalorder %s15, 1
    %p80 = por %p78, %p79
    %p82 = scmp.ne.s32.totalorder %s67, %s81
    %p83 = scmp.eq.s32.totalorder %s15, 0
    %p84 = por %p82, %p83
    %s85 = ssub.s32 %s9, %s16
    %p86 = scmp.eq.s32.totalorder %s85, 0
    %s88 = sadd.s32 %s87, 1
    %s89 = scalar_select %p86, %s87, %s88
    %p92 = pneg %p86
    %p93 = scmp.eq.s32.totalorder %s9, 1
    %p94 = por %p92, %p93
    %p95 = scmp.ne.s32.totalorder %s87, %s90
    %p96 = scmp.eq.s32.totalorder %s9, 0
    %p97 = por %p95, %p96
    %p98 = scmp.ne.s32.totalorder %s87, %s90
    %p99 = scmp.eq.s32.totalorder %s14, 1
    %p100 = por %p98, %p99
    %p101 = scmp.ne.s32.totalorder %s90, %s91
    %p102 = scmp.eq.s32.totalorder %s14, 0
    %p103 = por %p101, %p102
    %p104 = scmp.ne.s32.totalorder %s90, %s91
    %p105 = scmp.eq.s32.totalorder %s15, 1
    %p106 = por %p104, %p105
    %p108 = scmp.ne.s32.totalorder %s91, %s107
    %p109 = scmp.eq.s32.totalorder %s15, 0
    %p110 = por %p108, %p109
    %p111 = scmp.le.s32.totalorder 1, %s9
    %p112 = scmp.lt.s32.totalorder %s9, 3
    %p113 = pnand %p111, %p112
    %p114 = pneg %p113
    // Predicated region
    $region9: #{fwd.11} parent=5 // pred_check
      _
    $region10: #{fwd.11} parent=5 // pred_check_branch
      %116 = sbr.rel (%p113) target = $region12
    $region11: #{fwd.11} parent=5 // pred_region
      %s117 = ssub.s32 %s9, 1
      // Predicated region
      $region13: #{fwd.11} parent=11 // pred_check
        %p118 = pneg %p56
      $region14: #{fwd.11} parent=11 // pred_check_branch
        %120 = sbr.rel (%p118) target = $region16
      $region15: #{fwd.11} parent=11 // pred_region
        _
      $region16: #{fwd.11} parent=11 // pred_fallthru
        _
      // Predicated region
      $region17: #{fwd.11} parent=11 // pred_check
        %p121 = pneg %p77
      $region18: #{fwd.11} parent=11 // pred_check_branch
        %123 = sbr.rel (%p121) target = $region20
      $region19: #{fwd.11} parent=11 // pred_region
        _
      $region20: #{fwd.11} parent=11 // pred_fallthru
        _
    $region12: #{fwd.11} parent=5 // pred_fallthru
      _
    %p124 = scmp.lt.s32.totalorder %s9, 2
    // Predicated region
    $region21: #{fwd.11} parent=5 // pred_check
      %p125 = pneg %p124
    $region22: #{fwd.11} parent=5 // pred_check_branch
      %127 = sbr.rel (%p125) target = $region24
    $region23: #{fwd.11} parent=5 // pred_region
      // Predicated region
      $region25: #{fwd.11} parent=23 // pred_check
        %p128 = pneg %p29
      $region26: #{fwd.11} parent=23 // pred_check_branch
        %130 = sbr.rel (%p128) target = $region28
      $region27: #{fwd.11} parent=23 // pred_region
        %s131 = smul.u32 32, %s9
        %p132 = scmp.lt.s32.totalorder %s131, 63
        %s133 = scalar_select %p132, %s131, 63
        %s134 = smul.addr %s133, 2
        %s135 = smul.addr %s134, 4
        %s136 = scalar_lea.vmem %s0, %s135
        %s137 = smul.u32 32, %s9
      $region28: #{fwd.11} parent=23 // pred_fallthru
        _
    $region24: #{fwd.11} parent=5 // pred_fallthru
      _
    %p138 = scmp.le.s32.totalorder 1, %s9
    %p139 = scmp.lt.s32.totalorder %s9, 3
    %p140 = pnand %p138, %p139
    %p141 = pneg %p140
    // Predicated region
    $region29: #{fwd.11} parent=5 // pred_check
      _
    $region30: #{fwd.11} parent=5 // pred_check_branch
      %143 = sbr.rel (%p140) target = $region32
    $region31: #{fwd.11} parent=5 // pred_region
      %s144 = ssub.s32 %s9, 1
      %s145 = smul.u32 32, %s14
      %p146 = scmp.lt.s32.totalorder %s145, 63
      %s147 = scalar_select %p146, %s145, 63
      %s148 = smul.addr %s147, 2
      %s149 = smul.addr %s148, 4
      %s150 = scalar_lea.vmem %s0, %s149
      %p151 = pneg %p35
      %p152 = pneg %p32
      %p153 = pneg %p56
      %p154 = pneg %p53
      %p155 = pneg %p77
      %p156 = pneg %p74
      %p157 = pneg %p103
      %p158 = pneg %p100
      %s159 = smul.u32 32, %s14
      %p160 = scmp.lt.s32.totalorder %s159, 63
      %s161 = scalar_select %p160, %s159, 63
      %s162 = smul.addr %s161, 4
      %s163 = scalar_lea.vmem %s3, %s162
      %s164 = smul.u32 32, %s14
      %p165 = scmp.lt.s32.totalorder %s164, 63
      %s166 = scalar_select %p165, %s164, 63
      %s167 = smul.addr %s166, 2
      %s168 = smul.addr %s167, 4
      %s169 = scalar_lea.vmem %s0, %s168
      %s170 = smul.u32 32, %s14
      %s171 = smul.u32 32, %s14
      %p172 = scmp.lt.s32.totalorder %s171, 63
      %s173 = scalar_select %p172, %s171, 63
      %s174 = smul.addr %s173, 4
      %s175 = scalar_lea.vmem %s3, %s174
      %s176 = smul.u32 32, %s14
      %v178 = vld [vmem:[%s169] sm:$0xff]
      %v179 = vld [vmem:[%s169 + $0x8] sm:$0xff]
      %v180 = vld [vmem:[%s169 + $0x10] sm:$0xff]
      %v181 = vld [vmem:[%s169 + $0x18] sm:$0xff]
      %v182 = vld [vmem:[%s169 + $0x20] sm:$0xff]
      %v183 = vld [vmem:[%s169 + $0x28] sm:$0xff]
      %v184 = vld [vmem:[%s169 + $0x30] sm:$0xff]
      %v185 = vld [vmem:[%s169 + $0x38] sm:$0xff]
      %v186 = vld [vmem:[%s169 + $0x40] sm:$0xff]
      %v187 = vld [vmem:[%s169 + $0x48] sm:$0xff]
      %v188 = vld [vmem:[%s169 + $0x50] sm:$0xff]
      %v189 = vld [vmem:[%s169 + $0x58] sm:$0xff]
      %v190 = vld [vmem:[%s169 + $0x60] sm:$0xff]
      %v191 = vld [vmem:[%s169 + $0x68] sm:$0xff]
      %v192 = vld [vmem:[%s169 + $0x70] sm:$0xff]
      %v193 = vld [vmem:[%s169 + $0x78] sm:$0xff]
      %v194 = vld [vmem:[%s169 + $0x80] sm:$0xff]
      %v195 = vld [vmem:[%s169 + $0x88] sm:$0xff]
      %v196 = vld [vmem:[%s169 + $0x90] sm:$0xff]
      %v197 = vld [vmem:[%s169 + $0x98] sm:$0xff]
      %v198 = vld [vmem:[%s169 + $0xa0] sm:$0xff]
      %v199 = vld [vmem:[%s169 + $0xa8] sm:$0xff]
      %v200 = vld [vmem:[%s169 + $0xb0] sm:$0xff]
      %v201 = vld [vmem:[%s169 + $0xb8] sm:$0xff]
      %v202 = vld [vmem:[%s169 + $0xc0] sm:$0xff]
      %v203 = vld [vmem:[%s169 + $0xc8] sm:$0xff]
      %v204 = vld [vmem:[%s169 + $0xd0] sm:$0xff]
      %v205 = vld [vmem:[%s169 + $0xd8] sm:$0xff]
      %v206 = vld [vmem:[%s169 + $0xe0] sm:$0xff]
      %v207 = vld [vmem:[%s169 + $0xe8] sm:$0xff]
      %v208 = vld [vmem:[%s169 + $0xf0] sm:$0xff]
      %v209 = vld [vmem:[%s169 + $0xf8] sm:$0xff]
      %v210 = vld [vmem:[%s1] sm:$0xf]
      %v211 = vld [vmem:[%s1 + $0x4] sm:$0xf]
      %v212 = vld [vmem:[%s1 + $0x8] sm:$0xf]
      %v213 = vld [vmem:[%s1 + $0xc] sm:$0xf]
      %v214 = vld [vmem:[%s1 + $0x10] sm:$0xf]
      %v215 = vld [vmem:[%s1 + $0x14] sm:$0xf]
      %v216 = vld [vmem:[%s1 + $0x18] sm:$0xf]
      %v217 = vld [vmem:[%s1 + $0x1c] sm:$0xf]
      %v218 = vld [vmem:[%s1 + $0x20] sm:$0xf]
      %v219 = vld [vmem:[%s1 + $0x24] sm:$0xf]
      %v220 = vld [vmem:[%s1 + $0x28] sm:$0xf]
      %v221 = vld [vmem:[%s1 + $0x2c] sm:$0xf]
      %v222 = vld [vmem:[%s1 + $0x30] sm:$0xf]
      %v223 = vld [vmem:[%s1 + $0x34] sm:$0xf]
      %v224 = vld [vmem:[%s1 + $0x38] sm:$0xf]
      %v225 = vld [vmem:[%s1 + $0x3c] sm:$0xf]
      %v226 = vld [vmem:[%s1 + $0x40] sm:$0xf]
      %v227 = vld [vmem:[%s1 + $0x44] sm:$0xf]
      %v228 = vld [vmem:[%s1 + $0x48] sm:$0xf]
      %v229 = vld [vmem:[%s1 + $0x4c] sm:$0xf]
      %v230 = vld [vmem:[%s1 + $0x50] sm:$0xf]
      %v231 = vld [vmem:[%s1 + $0x54] sm:$0xf]
      %v232 = vld [vmem:[%s1 + $0x58] sm:$0xf]
      %v233 = vld [vmem:[%s1 + $0x5c] sm:$0xf]
      %v234 = vld [vmem:[%s1 + $0x60] sm:$0xf]
      %v235 = vld [vmem:[%s1 + $0x64] sm:$0xf]
      %v236 = vld [vmem:[%s1 + $0x68] sm:$0xf]
      %v237 = vld [vmem:[%s1 + $0x6c] sm:$0xf]
      %v238 = vld [vmem:[%s1 + $0x70] sm:$0xf]
      %v239 = vld [vmem:[%s1 + $0x74] sm:$0xf]
      %v240 = vld [vmem:[%s1 + $0x78] sm:$0xf]
      %v241 = vld [vmem:[%s1 + $0x7c] sm:$0xf]
      %v242 = vld [vmem:[%s2] sm:$0x1]
      %v244 = vlaneseq
      %v245 = vshrl.u32 %v244, 7
      %v246 = vsub.s32 0, %v245
      %v247 = vrot.slane %v242, %v246
      %v281 = vunpack.c.l.b16 %v178
      %v282 = vunpack.c.h.b16 %v178
      %v283 = vunpack.c.l.b16 %v179
      %v284 = vunpack.c.h.b16 %v179
      %v285 = vunpack.c.l.b16 %v180
      %v286 = vunpack.c.h.b16 %v180
      %v287 = vunpack.c.l.b16 %v181
      %v288 = vunpack.c.h.b16 %v181
      %v289 = vunpack.c.l.b16 %v182
      %v290 = vunpack.c.h.b16 %v182
      %v291 = vunpack.c.l.b16 %v183
      %v292 = vunpack.c.h.b16 %v183
      %v293 = vunpack.c.l.b16 %v184
      %v294 = vunpack.c.h.b16 %v184
      %v295 = vunpack.c.l.b16 %v185
      %v296 = vunpack.c.h.b16 %v185
      %v297 = vunpack.c.l.b16 %v186
      %v298 = vunpack.c.h.b16 %v186
      %v299 = vunpack.c.l.b16 %v187
      %v300 = vunpack.c.h.b16 %v187
      %v301 = vunpack.c.l.b16 %v188
      %v302 = vunpack.c.h.b16 %v188
      %v303 = vunpack.c.l.b16 %v189
      %v304 = vunpack.c.h.b16 %v189
      %v305 = vunpack.c.l.b16 %v190
      %v306 = vunpack.c.h.b16 %v190
      %v307 = vunpack.c.l.b16 %v191
      %v308 = vunpack.c.h.b16 %v191
      %v309 = vunpack.c.l.b16 %v192
      %v310 = vunpack.c.h.b16 %v192
      %v311 = vunpack.c.l.b16 %v193
      %v312 = vunpack.c.h.b16 %v193
      %v313 = vunpack.c.l.b16 %v194
      %v314 = vunpack.c.h.b16 %v194
      %v315 = vunpack.c.l.b16 %v195
      %v316 = vunpack.c.h.b16 %v195
      %v317 = vunpack.c.l.b16 %v196
      %v318 = vunpack.c.h.b16 %v196
      %v319 = vunpack.c.l.b16 %v197
      %v320 = vunpack.c.h.b16 %v197
      %v321 = vunpack.c.l.b16 %v198
      %v322 = vunpack.c.h.b16 %v198
      %v323 = vunpack.c.l.b16 %v199
      %v324 = vunpack.c.h.b16 %v199
      %v325 = vunpack.c.l.b16 %v200
      %v326 = vunpack.c.h.b16 %v200
      %v327 = vunpack.c.l.b16 %v201
      %v328 = vunpack.c.h.b16 %v201
      %v329 = vunpack.c.l.b16 %v202
      %v330 = vunpack.c.h.b16 %v202
      %v331 = vunpack.c.l.b16 %v203
      %v332 = vunpack.c.h.b16 %v203
      %v333 = vunpack.c.l.b16 %v204
      %v334 = vunpack.c.h.b16 %v204
      %v335 = vunpack.c.l.b16 %v205
      %v336 = vunpack.c.h.b16 %v205
      %v337 = vunpack.c.l.b16 %v206
      %v338 = vunpack.c.h.b16 %v206
      %v339 = vunpack.c.l.b16 %v207
      %v340 = vunpack.c.h.b16 %v207
      %v341 = vunpack.c.l.b16 %v208
      %v342 = vunpack.c.h.b16 %v208
      %v343 = vunpack.c.l.b16 %v209
      %v344 = vunpack.c.h.b16 %v209
      %v345 = vpack.c.b16 %v283, %v281
      %v346 = vpack.c.b16 %v284, %v282
      %v347 = vpack.c.b16 %v287, %v285
      %v348 = vpack.c.b16 %v288, %v286
      %v349 = vpack.c.b16 %v291, %v289
      %v350 = vpack.c.b16 %v292, %v290
      %v351 = vpack.c.b16 %v295, %v293
      %v352 = vpack.c.b16 %v296, %v294
      %v353 = vpack.c.b16 %v299, %v297
      %v354 = vpack.c.b16 %v300, %v298
      %v355 = vpack.c.b16 %v303, %v301
      %v356 = vpack.c.b16 %v304, %v302
      %v357 = vpack.c.b16 %v307, %v305
      %v358 = vpack.c.b16 %v308, %v306
      %v359 = vpack.c.b16 %v311, %v309
      %v360 = vpack.c.b16 %v312, %v310
      %v361 = vpack.c.b16 %v315, %v313
      %v362 = vpack.c.b16 %v316, %v314
      %v363 = vpack.c.b16 %v319, %v317
      %v364 = vpack.c.b16 %v320, %v318
      %v365 = vpack.c.b16 %v323, %v321
      %v366 = vpack.c.b16 %v324, %v322
      %v367 = vpack.c.b16 %v327, %v325
      %v368 = vpack.c.b16 %v328, %v326
      %v369 = vpack.c.b16 %v331, %v329
      %v370 = vpack.c.b16 %v332, %v330
      %v371 = vpack.c.b16 %v335, %v333
      %v372 = vpack.c.b16 %v336, %v334
      %v373 = vpack.c.b16 %v339, %v337
      %v374 = vpack.c.b16 %v340, %v338
      %v375 = vpack.c.b16 %v343, %v341
      %v376 = vpack.c.b16 %v344, %v342
      %v441 = vunpack.c.l.b16 %v210
      %v442 = vunpack.c.l.b16 %v211
      %v443 = vunpack.c.l.b16 %v212
      %v444 = vunpack.c.l.b16 %v213
      %v445 = vunpack.c.l.b16 %v214
      %v446 = vunpack.c.l.b16 %v215
      %v447 = vunpack.c.l.b16 %v216
      %v448 = vunpack.c.l.b16 %v217
      %v449 = vunpack.c.l.b16 %v218
      %v450 = vunpack.c.l.b16 %v219
      %v451 = vunpack.c.l.b16 %v220
      %v452 = vunpack.c.l.b16 %v221
      %v453 = vunpack.c.l.b16 %v222
      %v454 = vunpack.c.l.b16 %v223
      %v455 = vunpack.c.l.b16 %v224
      %v456 = vunpack.c.l.b16 %v225
      %v457 = vunpack.c.l.b16 %v226
      %v458 = vunpack.c.l.b16 %v227
      %v459 = vunpack.c.l.b16 %v228
      %v460 = vunpack.c.l.b16 %v229
      %v461 = vunpack.c.l.b16 %v230
      %v462 = vunpack.c.l.b16 %v231
      %v463 = vunpack.c.l.b16 %v232
      %v464 = vunpack.c.l.b16 %v233
      %v465 = vunpack.c.l.b16 %v234
      %v466 = vunpack.c.l.b16 %v235
      %v467 = vunpack.c.l.b16 %v236
      %v468 = vunpack.c.l.b16 %v237
      %v469 = vunpack.c.l.b16 %v238
      %v470 = vunpack.c.l.b16 %v239
      %v471 = vunpack.c.l.b16 %v240
      %v472 = vunpack.c.l.b16 %v241
      %v473 = vpack.c.b16 %v442, %v441
      %v474 = vpack.c.b16 %v444, %v443
      %v475 = vpack.c.b16 %v446, %v445
      %v476 = vpack.c.b16 %v448, %v447
      %v477 = vpack.c.b16 %v450, %v449
      %v478 = vpack.c.b16 %v452, %v451
      %v479 = vpack.c.b16 %v454, %v453
      %v480 = vpack.c.b16 %v456, %v455
      %v481 = vpack.c.b16 %v458, %v457
      %v482 = vpack.c.b16 %v460, %v459
      %v483 = vpack.c.b16 %v462, %v461
      %v484 = vpack.c.b16 %v464, %v463
      %v485 = vpack.c.b16 %v466, %v465
      %v486 = vpack.c.b16 %v468, %v467
      %v487 = vpack.c.b16 %v470, %v469
      %v488 = vpack.c.b16 %v472, %v471
      %505 = vmatprep.subr.bf16.mxu0 0
      %506 = vmatpush1.bf16.msra.mxu0 %v473
      %507 = vmatprep.subr.bf16.mxu0 0
      %508 = vmatpush1.bf16.msra.mxu0 %v474
      %509 = vmatprep.subr.bf16.mxu0 0
      %510 = vmatpush1.bf16.msra.mxu0 %v475
      %511 = vmatprep.subr.bf16.mxu0 0
      %512 = vmatpush1.bf16.msra.mxu0 %v476
      %513 = vmatprep.subr.bf16.mxu0 0
      %514 = vmatpush1.bf16.msra.mxu0 %v477
      %515 = vmatprep.subr.bf16.mxu0 0
      %516 = vmatpush1.bf16.msra.mxu0 %v478
      %517 = vmatprep.subr.bf16.mxu0 0
      %518 = vmatpush1.bf16.msra.mxu0 %v479
      %519 = vmatprep.subr.bf16.mxu0 0
      %520 = vmatpush1.bf16.msra.mxu0 %v480
      %521 = vmatprep.subr.bf16.mxu0 0
      %522 = vmatpush1.bf16.msra.mxu0 %v481
      %523 = vmatprep.subr.bf16.mxu0 0
      %524 = vmatpush1.bf16.msra.mxu0 %v482
      %525 = vmatprep.subr.bf16.mxu0 0
      %526 = vmatpush1.bf16.msra.mxu0 %v483
      %527 = vmatprep.subr.bf16.mxu0 0
      %528 = vmatpush1.bf16.msra.mxu0 %v484
      %529 = vmatprep.subr.bf16.mxu0 0
      %530 = vmatpush1.bf16.msra.mxu0 %v485
      %531 = vmatprep.subr.bf16.mxu0 0
      %532 = vmatpush1.bf16.msra.mxu0 %v486
      %533 = vmatprep.subr.bf16.mxu0 0
      %534 = vmatpush1.bf16.msra.mxu0 %v487
      %535 = vmatprep.subr.bf16.mxu0 0
      %536 = vmatpush1.bf16.msra.mxu0 %v488
      %537 = vmatprep.mubr.bf16.mxu0 %v346
      %538 = vmatmul.mubr.bf16.gmra.mrb[0].mxu0 %v345
      %v539 = vpop.f32.mrb[0].mxu0
      %v540 = vadd.f32 %v247, %v539
      %v541 = vpop.f32.mrb[0].mxu0
      %v542 = vpop.f32.mrb[0].mxu0
      %v543 = vadd.f32 %v247, %v542
      %v544 = vpop.f32.mrb[0].mxu0
      %545 = vmatprep.mubr.bf16.mxu0 %v348
      %546 = vmatmul.mubr.bf16.gmra.mrb[0].mxu0 %v347
      %v547 = vpop.f32.mrb[0].mxu0
      %v548 = vadd.f32 %v247, %v547
      %v549 = vpop.f32.mrb[0].mxu0
      %v550 = vpop.f32.mrb[0].mxu0
      %v551 = vadd.f32 %v247, %v550
      %v552 = vpop.f32.mrb[0].mxu0
      %553 = vmatprep.mubr.bf16.mxu0 %v350
      %554 = vmatmul.mubr.bf16.gmra.mrb[0].mxu0 %v349
      %v555 = vpop.f32.mrb[0].mxu0
      %v556 = vadd.f32 %v247, %v555
      %v557 = vpop.f32.mrb[0].mxu0
      %v558 = vpop.f32.mrb[0].mxu0
      %v559 = vadd.f32 %v247, %v558
      %v560 = vpop.f32.mrb[0].mxu0
      %561 = vmatprep.mubr.bf16.mxu0 %v352
      %562 = vmatmul.mubr.bf16.gmra.mrb[0].mxu0 %v351
      %v563 = vpop.f32.mrb[0].mxu0
      %v564 = vadd.f32 %v247, %v563
      %v565 = vpop.f32.mrb[0].mxu0
      %v566 = vpop.f32.mrb[0].mxu0
      %v567 = vadd.f32 %v247, %v566
      %v568 = vpop.f32.mrb[0].mxu0
      %569 = vmatprep.mubr.bf16.mxu0 %v354
      %570 = vmatmul.mubr.bf16.gmra.mrb[0].mxu0 %v353
      %v571 = vpop.f32.mrb[0].mxu0
      %v572 = vadd.f32 %v247, %v571
      %v573 = vpop.f32.mrb[0].mxu0
      %v574 = vpop.f32.mrb[0].mxu0
      %v575 = vadd.f32 %v247, %v574
      %v576 = vpop.f32.mrb[0].mxu0
      %577 = vmatprep.mubr.bf16.mxu0 %v356
      %578 = vmatmul.mubr.bf16.gmra.mrb[0].mxu0 %v355
      %v579 = vpop.f32.mrb[0].mxu0
      %v580 = vadd.f32 %v247, %v579
      %v581 = vpop.f32.mrb[0].mxu0
      %v582 = vpop.f32.mrb[0].mxu0
      %v583 = vadd.f32 %v247, %v582
      %v584 = vpop.f32.mrb[0].mxu0
      %585 = vmatprep.mubr.bf16.mxu0 %v358
      %586 = vmatmul.mubr.bf16.gmra.mrb[0].mxu0 %v357
      %v587 = vpop.f32.mrb[0].mxu0
      %v588 = vadd.f32 %v247, %v587
      %v589 = vpop.f32.mrb[0].mxu0
      %v590 = vpop.f32.mrb[0].mxu0
      %v591 = vadd.f32 %v247, %v590
      %v592 = vpop.f32.mrb[0].mxu0
      %593 = vmatprep.mubr.bf16.mxu0 %v360
      %594 = vmatmul.mubr.bf16.gmra.mrb[0].mxu0 %v359
      %v595 = vpop.f32.mrb[0].mxu0
      %v596 = vadd.f32 %v247, %v595
      %v597 = vpop.f32.mrb[0].mxu0
      %v598 = vpop.f32.mrb[0].mxu0
      %v599 = vadd.f32 %v247, %v598
      %v600 = vpop.f32.mrb[0].mxu0
      %601 = vmatprep.mubr.bf16.mxu0 %v362
      %602 = vmatmul.mubr.bf16.gmra.mrb[0].mxu0 %v361
      %v603 = vpop.f32.mrb[0].mxu0
      %v604 = vadd.f32 %v247, %v603
      %v605 = vpop.f32.mrb[0].mxu0
      %v606 = vpop.f32.mrb[0].mxu0
      %v607 = vadd.f32 %v247, %v606
      %v608 = vpop.f32.mrb[0].mxu0
      %609 = vmatprep.mubr.bf16.mxu0 %v364
      %610 = vmatmul.mubr.bf16.gmra.mrb[0].mxu0 %v363
      %v611 = vpop.f32.mrb[0].mxu0
      %v612 = vadd.f32 %v247, %v611
      %v613 = vpop.f32.mrb[0].mxu0
      %v614 = vpop.f32.mrb[0].mxu0
      %v615 = vadd.f32 %v247, %v614
      %v616 = vpop.f32.mrb[0].mxu0
      %617 = vmatprep.mubr.bf16.mxu0 %v366
      %618 = vmatmul.mubr.bf16.gmra.mrb[0].mxu0 %v365
      %v619 = vpop.f32.mrb[0].mxu0
      %v620 = vadd.f32 %v247, %v619
      %v621 = vpop.f32.mrb[0].mxu0
      %v622 = vpop.f32.mrb[0].mxu0
      %v623 = vadd.f32 %v247, %v622
      %v624 = vpop.f32.mrb[0].mxu0
      %625 = vmatprep.mubr.bf16.mxu0 %v368
      %626 = vmatmul.mubr.bf16.gmra.mrb[0].mxu0 %v367
      %v627 = vpop.f32.mrb[0].mxu0
      %v628 = vadd.f32 %v247, %v627
      %v629 = vpop.f32.mrb[0].mxu0
      %v630 = vpop.f32.mrb[0].mxu0
      %v631 = vadd.f32 %v247, %v630
      %v632 = vpop.f32.mrb[0].mxu0
      %633 = vmatprep.mubr.bf16.mxu0 %v370
      %634 = vmatmul.mubr.bf16.gmra.mrb[0].mxu0 %v369
      %v635 = vpop.f32.mrb[0].mxu0
      %v636 = vadd.f32 %v247, %v635
      %v637 = vpop.f32.mrb[0].mxu0
      %v638 = vpop.f32.mrb[0].mxu0
      %v639 = vadd.f32 %v247, %v638
      %v640 = vpop.f32.mrb[0].mxu0
      %641 = vmatprep.mubr.bf16.mxu0 %v372
      %642 = vmatmul.mubr.bf16.gmra.mrb[0].mxu0 %v371
      %v643 = vpop.f32.mrb[0].mxu0
      %v644 = vadd.f32 %v247, %v643
      %v645 = vpop.f32.mrb[0].mxu0
      %v646 = vpop.f32.mrb[0].mxu0
      %v647 = vadd.f32 %v247, %v646
      %v648 = vpop.f32.mrb[0].mxu0
      %649 = vmatprep.mubr.bf16.mxu0 %v374
      %650 = vmatmul.mubr.bf16.gmra.mrb[0].mxu0 %v373
      %v651 = vpop.f32.mrb[0].mxu0
      %v652 = vadd.f32 %v247, %v651
      %v653 = vpop.f32.mrb[0].mxu0
      %v654 = vpop.f32.mrb[0].mxu0
      %v655 = vadd.f32 %v247, %v654
      %v656 = vpop.f32.mrb[0].mxu0
      %657 = vmatprep.mubr.bf16.mxu0 %v376
      %658 = vmatmul.mubr.bf16.gmra.mrb[0].mxu0 %v375
      %v659 = vpop.f32.mrb[0].mxu0
      %v660 = vadd.f32 %v247, %v659
      %v661 = vpop.f32.mrb[0].mxu0
      %v662 = vpop.f32.mrb[0].mxu0
      %v663 = vadd.f32 %v247, %v662
      %v664 = vpop.f32.mrb[0].mxu0
      %665 = vdwg.mxu0
      %v666 = vmax.f32 %v540, 0.0
      %v667 = vmax.f32 %v543, 0.0
      %v668 = vmax.f32 %v548, 0.0
      %v669 = vmax.f32 %v551, 0.0
      %v670 = vmax.f32 %v556, 0.0
      %v671 = vmax.f32 %v559, 0.0
      %v672 = vmax.f32 %v564, 0.0
      %v673 = vmax.f32 %v567, 0.0
      %v674 = vmax.f32 %v572, 0.0
      %v675 = vmax.f32 %v575, 0.0
      %v676 = vmax.f32 %v580, 0.0
      %v677 = vmax.f32 %v583, 0.0
      %v678 = vmax.f32 %v588, 0.0
      %v679 = vmax.f32 %v591, 0.0
      %v680 = vmax.f32 %v596, 0.0
      %v681 = vmax.f32 %v599, 0.0
      %v682 = vmax.f32 %v604, 0.0
      %v683 = vmax.f32 %v607, 0.0
      %v684 = vmax.f32 %v612, 0.0
      %v685 = vmax.f32 %v615, 0.0
      %v686 = vmax.f32 %v620, 0.0
      %v687 = vmax.f32 %v623, 0.0
      %v688 = vmax.f32 %v628, 0.0
      %v689 = vmax.f32 %v631, 0.0
      %v690 = vmax.f32 %v636, 0.0
      %v691 = vmax.f32 %v639, 0.0
      %v692 = vmax.f32 %v644, 0.0
      %v693 = vmax.f32 %v647, 0.0
      %v694 = vmax.f32 %v652, 0.0
      %v695 = vmax.f32 %v655, 0.0
      %v696 = vmax.f32 %v660, 0.0
      %v697 = vmax.f32 %v663, 0.0
      %v698 = vpack.c.bf16 %v667, %v666
      %v699 = vpack.c.bf16 %v669, %v668
      %v700 = vpack.c.bf16 %v671, %v670
      %v701 = vpack.c.bf16 %v673, %v672
      %v702 = vpack.c.bf16 %v675, %v674
      %v703 = vpack.c.bf16 %v677, %v676
      %v704 = vpack.c.bf16 %v679, %v678
      %v705 = vpack.c.bf16 %v681, %v680
      %v706 = vpack.c.bf16 %v683, %v682
      %v707 = vpack.c.bf16 %v685, %v684
      %v708 = vpack.c.bf16 %v687, %v686
      %v709 = vpack.c.bf16 %v689, %v688
      %v710 = vpack.c.bf16 %v691, %v690
      %v711 = vpack.c.bf16 %v693, %v692
      %v712 = vpack.c.bf16 %v695, %v694
      %v713 = vpack.c.bf16 %v697, %v696
      %v730 = vunpack.c.l.b16 %v698
      %v731 = vunpack.c.h.b16 %v698
      %v732 = vunpack.c.l.b16 %v699
      %v733 = vunpack.c.h.b16 %v699
      %v734 = vunpack.c.l.b16 %v700
      %v735 = vunpack.c.h.b16 %v700
      %v736 = vunpack.c.l.b16 %v701
      %v737 = vunpack.c.h.b16 %v701
      %v738 = vunpack.c.l.b16 %v702
      %v739 = vunpack.c.h.b16 %v702
      %v740 = vunpack.c.l.b16 %v703
      %v741 = vunpack.c.h.b16 %v703
      %v742 = vunpack.c.l.b16 %v704
      %v743 = vunpack.c.h.b16 %v704
      %v744 = vunpack.c.l.b16 %v705
      %v745 = vunpack.c.h.b16 %v705
      %v746 = vunpack.c.l.b16 %v706
      %v747 = vunpack.c.h.b16 %v706
      %v748 = vunpack.c.l.b16 %v707
      %v749 = vunpack.c.h.b16 %v707
      %v750 = vunpack.c.l.b16 %v708
      %v751 = vunpack.c.h.b16 %v708
      %v752 = vunpack.c.l.b16 %v709
      %v753 = vunpack.c.h.b16 %v709
      %v754 = vunpack.c.l.b16 %v710
      %v755 = vunpack.c.h.b16 %v710
      %v756 = vunpack.c.l.b16 %v711
      %v757 = vunpack.c.h.b16 %v711
      %v758 = vunpack.c.l.b16 %v712
      %v759 = vunpack.c.h.b16 %v712
      %v760 = vunpack.c.l.b16 %v713
      %v761 = vunpack.c.h.b16 %v713
      %v762 = vpack.c.b16 %v730, %v730
      %v763 = vpack.c.b16 %v731, %v731
      %v764 = vpack.c.b16 %v732, %v732
      %v765 = vpack.c.b16 %v733, %v733
      %v766 = vpack.c.b16 %v734, %v734
      %v767 = vpack.c.b16 %v735, %v735
      %v768 = vpack.c.b16 %v736, %v736
      %v769 = vpack.c.b16 %v737, %v737
      %v770 = vpack.c.b16 %v738, %v738
      %v771 = vpack.c.b16 %v739, %v739
      %v772 = vpack.c.b16 %v740, %v740
      %v773 = vpack.c.b16 %v741, %v741
      %v774 = vpack.c.b16 %v742, %v742
      %v775 = vpack.c.b16 %v743, %v743
      %v776 = vpack.c.b16 %v744, %v744
      %v777 = vpack.c.b16 %v745, %v745
      %v778 = vpack.c.b16 %v746, %v746
      %v779 = vpack.c.b16 %v747, %v747
      %v780 = vpack.c.b16 %v748, %v748
      %v781 = vpack.c.b16 %v749, %v749
      %v782 = vpack.c.b16 %v750, %v750
      %v783 = vpack.c.b16 %v751, %v751
      %v784 = vpack.c.b16 %v752, %v752
      %v785 = vpack.c.b16 %v753, %v753
      %v786 = vpack.c.b16 %v754, %v754
      %v787 = vpack.c.b16 %v755, %v755
      %v788 = vpack.c.b16 %v756, %v756
      %v789 = vpack.c.b16 %v757, %v757
      %v790 = vpack.c.b16 %v758, %v758
      %v791 = vpack.c.b16 %v759, %v759
      %v792 = vpack.c.b16 %v760, %v760
      %v793 = vpack.c.b16 %v761, %v761
      %826 = vst [vmem:[%s175] sm:$0xf] %v762
      %827 = vst [vmem:[%s175 + $0x4] sm:$0xf] %v763
      %828 = vst [vmem:[%s175 + $0x8] sm:$0xf] %v764
      %829 = vst [vmem:[%s175 + $0xc] sm:$0xf] %v765
      %830 = vst [vmem:[%s175 + $0x10] sm:$0xf] %v766
      %831 = vst [vmem:[%s175 + $0x14] sm:$0xf] %v767
      %832 = vst [vmem:[%s175 + $0x18] sm:$0xf] %v768
      %833 = vst [vmem:[%s175 + $0x1c] sm:$0xf] %v769
      %834 = vst [vmem:[%s175 + $0x20] sm:$0xf] %v770
      %835 = vst [vmem:[%s175 + $0x24] sm:$0xf] %v771
      %836 = vst [vmem:[%s175 + $0x28] sm:$0xf] %v772
      %837 = vst [vmem:[%s175 + $0x2c] sm:$0xf] %v773
      %838 = vst [vmem:[%s175 + $0x30] sm:$0xf] %v774
      %839 = vst [vmem:[%s175 + $0x34] sm:$0xf] %v775
      %840 = vst [vmem:[%s175 + $0x38] sm:$0xf] %v776
      %841 = vst [vmem:[%s175 + $0x3c] sm:$0xf] %v777
      %842 = vst [vmem:[%s175 + $0x40] sm:$0xf] %v778
      %843 = vst [vmem:[%s175 + $0x44] sm:$0xf] %v779
      %844 = vst [vmem:[%s175 + $0x48] sm:$0xf] %v780
      %845 = vst [vmem:[%s175 + $0x4c] sm:$0xf] %v781
      %846 = vst [vmem:[%s175 + $0x50] sm:$0xf] %v782
      %847 = vst [vmem:[%s175 + $0x54] sm:$0xf] %v783
      %848 = vst [vmem:[%s175 + $0x58] sm:$0xf] %v784
      %849 = vst [vmem:[%s175 + $0x5c] sm:$0xf] %v785
      %850 = vst [vmem:[%s175 + $0x60] sm:$0xf] %v786
      %851 = vst [vmem:[%s175 + $0x64] sm:$0xf] %v787
      %852 = vst [vmem:[%s175 + $0x68] sm:$0xf] %v788
      %853 = vst [vmem:[%s175 + $0x6c] sm:$0xf] %v789
      %854 = vst [vmem:[%s175 + $0x70] sm:$0xf] %v790
      %855 = vst [vmem:[%s175 + $0x74] sm:$0xf] %v791
      %856 = vst [vmem:[%s175 + $0x78] sm:$0xf] %v792
      %857 = vst [vmem:[%s175 + $0x7c] sm:$0xf] %v793
      %s858 = smul.u32 32, %s14
      %p859 = scmp.lt.s32.totalorder %s858, 63
      %s860 = scalar_select %p859, %s858, 63
      %s861 = smul.addr %s860, 4
      %s862 = scalar_lea.vmem %s3, %s861
      // Predicated region
      $region33: #{fwd.11} parent=31 // pred_check
        %p863 = pneg %p100
      $region34: #{fwd.11} parent=31 // pred_check_branch
        %865 = sbr.rel (%p863) target = $region36
      $region35: #{fwd.11} parent=31 // pred_region
        %s866 = smul.u32 32, %s14
      $region36: #{fwd.11} parent=31 // pred_fallthru
        _
    $region32: #{fwd.11} parent=5 // pred_fallthru
      _
    %p867 = scmp.le.s32.totalorder 2, %s9
    // Predicated region
    $region37: #{fwd.11} parent=5 // pred_check
      %p868 = pneg %p867
    $region38: #{fwd.11} parent=5 // pred_check_branch
      %870 = sbr.rel (%p868) target = $region40
    $region39: #{fwd.11} parent=5 // pred_region
      %s871 = ssub.s32 %s9, 2
      // Predicated region
      $region41: #{fwd.11} parent=39 // pred_check
        %p872 = pneg %p106
      $region42: #{fwd.11} parent=39 // pred_check_branch
        %874 = sbr.rel (%p872) target = $region44
      $region43: #{fwd.11} parent=39 // pred_region
        %s875 = smul.u32 32, %s15
        %p876 = scmp.lt.s32.totalorder %s875, 63
        %s877 = scalar_select %p876, %s875, 63
        %s878 = smul.addr %s877, 4
        %s879 = scalar_lea.vmem %s3, %s878
      $region44: #{fwd.11} parent=39 // pred_fallthru
        _
    $region40: #{fwd.11} parent=5 // pred_fallthru
      _
  $region6: #{fwd.11} parent=0 // loop_footer
    %s13 = sadd.s32 1, %s9
  $region7: #{fwd.11} parent=0 // loop_footer_branch
    %8 = sbr.rel target = $region3
  $region8: #{fwd.11} parent=0 // loop_exit
    _

// kernel: fwd.12
$region0: #{fwd.12}
  #allocation0 [shape = 'u32[]', space=smem, size = 0x4, offset = 0x4, fixed_abs, tag = 'smem constant byte address 0x4 - core index']
  #allocation1 [shape = 'u32[144,128]{1,0:T(1,128)}', space=vmem, size = 0x12000, scoped, tag = 'internal scratch']
  %s0 = inlined_call_operand.vmem [shape: bf16[512,384], index: 0, kind: input, shape index: {}]
  %s1 = inlined_call_operand.vmem [shape: bf16[384,128], index: 1, kind: input, shape index: {}]
  %s2 = inlined_call_operand.vmem [shape: f32[1,128], index: 2, kind: input, shape index: {}]
  %s3 = inlined_call_operand.vmem [shape: bf16[512,128], index: 3, kind: output, shape index: {}]
  %s4 = sld [smem:[#allocation0]]
  $region45: #{fwd.12} parent=0
    _
  %s6 = ssub.s32 1, %s4
  %s7 = scalar_select 0, %s6, %s4
  loop: start=0, step=1, limit=4
  $region2: #{fwd.12} parent=0 // loop_pre_header
    _
  $region3: #{fwd.12} parent=0 // loop_header
    %s9 = sphi 0, %s13
    %p10 = scmp.ge.s32.totalorder %s9, 4
    %s19 = sphi 0, %s21
    %s22 = sphi 0, %s19
    %s23 = sphi 0, %s22
    %s39 = sphi 0, %s23
    %s43 = sphi 0, %s43
    %s45 = sphi 0, %s43
    %s46 = sphi 0, %s45
    %s60 = sphi 0, %s46
    %s64 = sphi 0, %s64
    %s66 = sphi 0, %s64
    %s67 = sphi 0, %s66
    %s81 = sphi 0, %s67
    %s87 = sphi 0, %s89
    %s90 = sphi 0, %s87
    %s91 = sphi 0, %s90
    %s107 = sphi 0, %s91
  $region4: #{fwd.12} parent=0 // loop_header_branch
    %12 = sbr.rel (%p10) target = $region8
  $region5: #{fwd.12} parent=0 // loop_body
    %s14 = ssub.s32 %s9, 1
    %s15 = ssub.s32 %s9, 2
    %s16 = sadd.s32 %s9, 1
    %s17 = ssub.s32 %s9, %s16
    %p18 = scmp.eq.s32.totalorder %s17, 0
    %s20 = sadd.s32 %s19, 1
    %s21 = scalar_select %p18, %s19, %s20
    %p24 = pneg %p18
    %p25 = scmp.eq.s32.totalorder %s9, 1
    %p26 = por %p24, %p25
    %p27 = scmp.ne.s32.totalorder %s19, %s22
    %p28 = scmp.eq.s32.totalorder %s9, 0
    %p29 = por %p27, %p28
    %p30 = scmp.ne.s32.totalorder %s19, %s22
    %p31 = scmp.eq.s32.totalorder %s14, 1
    %p32 = por %p30, %p31
    %p33 = scmp.ne.s32.totalorder %s22, %s23
    %p34 = scmp.eq.s32.totalorder %s14, 0
    %p35 = por %p33, %p34
    %p36 = scmp.ne.s32.totalorder %s22, %s23
    %p37 = scmp.eq.s32.totalorder %s15, 1
    %p38 = por %p36, %p37
    %p40 = scmp.ne.s32.totalorder %s23, %s39
    %p41 = scmp.eq.s32.totalorder %s15, 0
    %p42 = por %p40, %p41
    %s44 = sadd.s32 %s43, 1
    %p47 = scmp.eq.s32.totalorder %s9, 1
    %p48 = scmp.ne.s32.totalorder %s43, %s45
    %p49 = scmp.eq.s32.totalorder %s9, 0
    %p50 = por %p48, %p49
    %p51 = scmp.ne.s32.totalorder %s43, %s45
    %p52 = scmp.eq.s32.totalorder %s14, 1
    %p53 = por %p51, %p52
    %p54 = scmp.ne.s32.totalorder %s45, %s46
    %p55 = scmp.eq.s32.totalorder %s14, 0
    %p56 = por %p54, %p55
    %p57 = scmp.ne.s32.totalorder %s45, %s46
    %p58 = scmp.eq.s32.totalorder %s15, 1
    %p59 = por %p57, %p58
    %p61 = scmp.ne.s32.totalorder %s46, %s60
    %p62 = scmp.eq.s32.totalorder %s15, 0
    %p63 = por %p61, %p62
    %s65 = sadd.s32 %s64, 1
    %p68 = scmp.eq.s32.totalorder %s9, 1
    %p69 = scmp.ne.s32.totalorder %s64, %s66
    %p70 = scmp.eq.s32.totalorder %s9, 0
    %p71 = por %p69, %p70
    %p72 = scmp.ne.s32.totalorder %s64, %s66
    %p73 = scmp.eq.s32.totalorder %s14, 1
    %p74 = por %p72, %p73
    %p75 = scmp.ne.s32.totalorder %s66, %s67
    %p76 = scmp.eq.s32.totalorder %s14, 0
    %p77 = por %p75, %p76
    %p78 = scmp.ne.s32.totalorder %s66, %s67
    %p79 = scmp.eq.s32.totalorder %s15, 1
    %p80 = por %p78, %p79
    %p82 = scmp.ne.s32.totalorder %s67, %s81
    %p83 = scmp.eq.s32.totalorder %s15, 0
    %p84 = por %p82, %p83
    %s85 = ssub.s32 %s9, %s16
    %p86 = scmp.eq.s32.totalorder %s85, 0
    %s88 = sadd.s32 %s87, 1
    %s89 = scalar_select %p86, %s87, %s88
    %p92 = pneg %p86
    %p93 = scmp.eq.s32.totalorder %s9, 1
    %p94 = por %p92, %p93
    %p95 = scmp.ne.s32.totalorder %s87, %s90
    %p96 = scmp.eq.s32.totalorder %s9, 0
    %p97 = por %p95, %p96
    %p98 = scmp.ne.s32.totalorder %s87, %s90
    %p99 = scmp.eq.s32.totalorder %s14, 1
    %p100 = por %p98, %p99
    %p101 = scmp.ne.s32.totalorder %s90, %s91
    %p102 = scmp.eq.s32.totalorder %s14, 0
    %p103 = por %p101, %p102
    %p104 = scmp.ne.s32.totalorder %s90, %s91
    %p105 = scmp.eq.s32.totalorder %s15, 1
    %p106 = por %p104, %p105
    %p108 = scmp.ne.s32.totalorder %s91, %s107
    %p109 = scmp.eq.s32.totalorder %s15, 0
    %p110 = por %p108, %p109
    %p111 = scmp.le.s32.totalorder 1, %s9
    %p112 = scmp.lt.s32.totalorder %s9, 3
    %p113 = pnand %p111, %p112
    %p114 = pneg %p113
    // Predicated region
    $region9: #{fwd.12} parent=5 // pred_check
      _
    $region10: #{fwd.12} parent=5 // pred_check_branch
      %116 = sbr.rel (%p113) target = $region12
    $region11: #{fwd.12} parent=5 // pred_region
      %s117 = ssub.s32 %s9, 1
      // Predicated region
      $region13: #{fwd.12} parent=11 // pred_check
        %p118 = pneg %p56
      $region14: #{fwd.12} parent=11 // pred_check_branch
        %120 = sbr.rel (%p118) target = $region16
      $region15: #{fwd.12} parent=11 // pred_region
        _
      $region16: #{fwd.12} parent=11 // pred_fallthru
        _
      // Predicated region
      $region17: #{fwd.12} parent=11 // pred_check
        %p121 = pneg %p77
      $region18: #{fwd.12} parent=11 // pred_check_branch
        %123 = sbr.rel (%p121) target = $region20
      $region19: #{fwd.12} parent=11 // pred_region
        _
      $region20: #{fwd.12} parent=11 // pred_fallthru
        _
    $region12: #{fwd.12} parent=5 // pred_fallthru
      _
    %p124 = scmp.lt.s32.totalorder %s9, 2
    // Predicated region
    $region21: #{fwd.12} parent=5 // pred_check
      %p125 = pneg %p124
    $region22: #{fwd.12} parent=5 // pred_check_branch
      %127 = sbr.rel (%p125) target = $region24
    $region23: #{fwd.12} parent=5 // pred_region
      // Predicated region
      $region25: #{fwd.12} parent=23 // pred_check
        %p128 = pneg %p29
      $region26: #{fwd.12} parent=23 // pred_check_branch
        %130 = sbr.rel (%p128) target = $region28
      $region27: #{fwd.12} parent=23 // pred_region
        %s131 = smul.u32 32, %s9
        %p132 = scmp.lt.s32.totalorder %s131, 63
        %s133 = scalar_select %p132, %s131, 63
        %s134 = smul.addr %s133, 3
        %s135 = smul.addr %s134, 4
        %s136 = scalar_lea.vmem %s0, %s135
        %s137 = smul.u32 32, %s9
      $region28: #{fwd.12} parent=23 // pred_fallthru
        _
    $region24: #{fwd.12} parent=5 // pred_fallthru
      _
    %p138 = scmp.le.s32.totalorder 1, %s9
    %p139 = scmp.lt.s32.totalorder %s9, 3
    %p140 = pnand %p138, %p139
    %p141 = pneg %p140
    // Predicated region
    $region29: #{fwd.12} parent=5 // pred_check
      _
    $region30: #{fwd.12} parent=5 // pred_check_branch
      %143 = sbr.rel (%p140) target = $region32
    $region31: #{fwd.12} parent=5 // pred_region
      %s144 = ssub.s32 %s9, 1
      %s145 = smul.u32 32, %s14
      %p146 = scmp.lt.s32.totalorder %s145, 63
      %s147 = scalar_select %p146, %s145, 63
      %s148 = smul.addr %s147, 3
      %s149 = smul.addr %s148, 4
      %s150 = scalar_lea.vmem %s0, %s149
      %p151 = pneg %p35
      %p152 = pneg %p32
      %p153 = pneg %p56
      %p154 = pneg %p53
      %p155 = pneg %p77
      %p156 = pneg %p74
      %p157 = pneg %p103
      %p158 = pneg %p100
      %s159 = smul.u32 32, %s14
      %p160 = scmp.lt.s32.totalorder %s159, 63
      %s161 = scalar_select %p160, %s159, 63
      %s162 = smul.addr %s161, 4
      %s163 = scalar_lea.vmem %s3, %s162
      %s164 = smul.u32 32, %s14
      %p165 = scmp.lt.s32.totalorder %s164, 63
      %s166 = scalar_select %p165, %s164, 63
      %s167 = smul.addr %s166, 3
      %s168 = smul.addr %s167, 4
      %s169 = scalar_lea.vmem %s0, %s168
      %s170 = smul.u32 32, %s14
      %s171 = smul.u32 32, %s14
      %p172 = scmp.lt.s32.totalorder %s171, 63
      %s173 = scalar_select %p172, %s171, 63
      %s174 = smul.addr %s173, 4
      %s175 = scalar_lea.vmem %s3, %s174
      %s176 = smul.u32 32, %s14
      %v178 = vld [vmem:[%s169] sm:$0xff]
      %v179 = vld [vmem:[%s169 + $0x8] sm:$0xf]
      %v180 = vld [vmem:[%s169 + $0xc] sm:$0xff]
      %v181 = vld [vmem:[%s169 + $0x14] sm:$0xf]
      %v182 = vld [vmem:[%s169 + $0x18] sm:$0xff]
      %v183 = vld [vmem:[%s169 + $0x20] sm:$0xf]
      %v184 = vld [vmem:[%s169 + $0x24] sm:$0xff]
      %v185 = vld [vmem:[%s169 + $0x2c] sm:$0xf]
      %v186 = vld [vmem:[%s169 + $0x30] sm:$0xff]
      %v187 = vld [vmem:[%s169 + $0x38] sm:$0xf]
      %v188 = vld [vmem:[%s169 + $0x3c] sm:$0xff]
      %v189 = vld [vmem:[%s169 + $0x44] sm:$0xf]
      %v190 = vld [vmem:[%s169 + $0x48] sm:$0xff]
      %v191 = vld [vmem:[%s169 + $0x50] sm:$0xf]
      %v192 = vld [vmem:[%s169 + $0x54] sm:$0xff]
      %v193 = vld [vmem:[%s169 + $0x5c] sm:$0xf]
      %v194 = vld [vmem:[%s169 + $0x60] sm:$0xff]
      %v195 = vld [vmem:[%s169 + $0x68] sm:$0xf]
      %v196 = vld [vmem:[%s169 + $0x6c] sm:$0xff]
      %v197 = vld [vmem:[%s169 + $0x74] sm:$0xf]
      %v198 = vld [vmem:[%s169 + $0x78] sm:$0xff]
      %v199 = vld [vmem:[%s169 + $0x80] sm:$0xf]
      %v200 = vld [vmem:[%s169 + $0x84] sm:$0xff]
      %v201 = vld [vmem:[%s169 + $0x8c] sm:$0xf]
      %v202 = vld [vmem:[%s169 + $0x90] sm:$0xff]
      %v203 = vld [vmem:[%s169 + $0x98] sm:$0xf]
      %v204 = vld [vmem:[%s169 + $0x9c] sm:$0xff]
      %v205 = vld [vmem:[%s169 + $0xa4] sm:$0xf]
      %v206 = vld [vmem:[%s169 + $0xa8] sm:$0xff]
      %v207 = vld [vmem:[%s169 + $0xb0] sm:$0xf]
      %v208 = vld [vmem:[%s169 + $0xb4] sm:$0xff]
      %v209 = vld [vmem:[%s169 + $0xbc] sm:$0xf]
      %v210 = vld [vmem:[%s169 + $0xc0] sm:$0xff]
      %v211 = vld [vmem:[%s169 + $0xc8] sm:$0xf]
      %v212 = vld [vmem:[%s169 + $0xcc] sm:$0xff]
      %v213 = vld [vmem:[%s169 + $0xd4] sm:$0xf]
      %v214 = vld [vmem:[%s169 + $0xd8] sm:$0xff]
      %v215 = vld [vmem:[%s169 + $0xe0] sm:$0xf]
      %v216 = vld [vmem:[%s169 + $0xe4] sm:$0xff]
      %v217 = vld [vmem:[%s169 + $0xec] sm:$0xf]
      %v218 = vld [vmem:[%s169 + $0xf0] sm:$0xff]
      %v219 = vld [vmem:[%s169 + $0xf8] sm:$0xf]
      %v220 = vld [vmem:[%s169 + $0xfc] sm:$0xff]
      %v221 = vld [vmem:[%s169 + $0x104] sm:$0xf]
      %v222 = vld [vmem:[%s169 + $0x108] sm:$0xff]
      %v223 = vld [vmem:[%s169 + $0x110] sm:$0xf]
      %v224 = vld [vmem:[%s169 + $0x114] sm:$0xff]
      %v225 = vld [vmem:[%s169 + $0x11c] sm:$0xf]
      %v226 = vld [vmem:[%s169 + $0x120] sm:$0xff]
      %v227 = vld [vmem:[%s169 + $0x128] sm:$0xf]
      %v228 = vld [vmem:[%s169 + $0x12c] sm:$0xff]
      %v229 = vld [vmem:[%s169 + $0x134] sm:$0xf]
      %v230 = vld [vmem:[%s169 + $0x138] sm:$0xff]
      %v231 = vld [vmem:[%s169 + $0x140] sm:$0xf]
      %v232 = vld [vmem:[%s169 + $0x144] sm:$0xff]
      %v233 = vld [vmem:[%s169 + $0x14c] sm:$0xf]
      %v234 = vld [vmem:[%s169 + $0x150] sm:$0xff]
      %v235 = vld [vmem:[%s169 + $0x158] sm:$0xf]
      %v236 = vld [vmem:[%s169 + $0x15c] sm:$0xff]
      %v237 = vld [vmem:[%s169 + $0x164] sm:$0xf]
      %v238 = vld [vmem:[%s169 + $0x168] sm:$0xff]
      %v239 = vld [vmem:[%s169 + $0x170] sm:$0xf]
      %v240 = vld [vmem:[%s169 + $0x174] sm:$0xff]
      %v241 = vld [vmem:[%s169 + $0x17c] sm:$0xf]
      %v242 = vld [vmem:[%s1] sm:$0xf]
      %v243 = vld [vmem:[%s1 + $0x4] sm:$0xf]
      %v244 = vld [vmem:[%s1 + $0x8] sm:$0xf]
      %v245 = vld [vmem:[%s1 + $0xc] sm:$0xf]
      %v246 = vld [vmem:[%s1 + $0x10] sm:$0xf]
      %v247 = vld [vmem:[%s1 + $0x14] sm:$0xf]
      %v248 = vld [vmem:[%s1 + $0x18] sm:$0xf]
      %v249 = vld [vmem:[%s1 + $0x1c] sm:$0xf]
      %v250 = vld [vmem:[%s1 + $0x20] sm:$0xf]
      %v251 = vld [vmem:[%s1 + $0x24] sm:$0xf]
      %v252 = vld [vmem:[%s1 + $0x28] sm:$0xf]
      %v253 = vld [vmem:[%s1 + $0x2c] sm:$0xf]
      %v254 = vld [vmem:[%s1 + $0x30] sm:$0xf]
      %v255 = vld [vmem:[%s1 + $0x34] sm:$0xf]
      %v256 = vld [vmem:[%s1 + $0x38] sm:$0xf]
      %v257 = vld [vmem:[%s1 + $0x3c] sm:$0xf]
      %v258 = vld [vmem:[%s1 + $0x40] sm:$0xf]
      %v259 = vld [vmem:[%s1 + $0x44] sm:$0xf]
      %v260 = vld [vmem:[%s1 + $0x48] sm:$0xf]
      %v261 = vld [vmem:[%s1 + $0x4c] sm:$0xf]
      %v262 = vld [vmem:[%s1 + $0x50] sm:$0xf]
      %v263 = vld [vmem:[%s1 + $0x54] sm:$0xf]
      %v264 = vld [vmem:[%s1 + $0x58] sm:$0xf]
      %v265 = vld [vmem:[%s1 + $0x5c] sm:$0xf]
      %v266 = vld [vmem:[%s1 + $0x60] sm:$0xf]
      %v267 = vld [vmem:[%s1 + $0x64] sm:$0xf]
      %v268 = vld [vmem:[%s1 + $0x68] sm:$0xf]
      %v269 = vld [vmem:[%s1 + $0x6c] sm:$0xf]
      %v270 = vld [vmem:[%s1 + $0x70] sm:$0xf]
      %v271 = vld [vmem:[%s1 + $0x74] sm:$0xf]
      %v272 = vld [vmem:[%s1 + $0x78] sm:$0xf]
      %v273 = vld [vmem:[%s1 + $0x7c] sm:$0xf]
      %v274 = vld [vmem:[%s1 + $0x80] sm:$0xf]
      %v275 = vld [vmem:[%s1 + $0x84] sm:$0xf]
      %v276 = vld [vmem:[%s1 + $0x88] sm:$0xf]
      %v277 = vld [vmem:[%s1 + $0x8c] sm:$0xf]
      %v278 = vld [vmem:[%s1 + $0x90] sm:$0xf]
      %v279 = vld [vmem:[%s1 + $0x94] sm:$0xf]
      %v280 = vld [vmem:[%s1 + $0x98] sm:$0xf]
      %v281 = vld [vmem:[%s1 + $0x9c] sm:$0xf]
      %v282 = vld [vmem:[%s1 + $0xa0] sm:$0xf]
      %v283 = vld [vmem:[%s1 + $0xa4] sm:$0xf]
      %v284 = vld [vmem:[%s1 + $0xa8] sm:$0xf]
      %v285 = vld [vmem:[%s1 + $0xac] sm:$0xf]
      %v286 = vld [vmem:[%s1 + $0xb0] sm:$0xf]
      %v287 = vld [vmem:[%s1 + $0xb4] sm:$0xf]
      %v288 = vld [vmem:[%s1 + $0xb8] sm:$0xf]
      %v289 = vld [vmem:[%s1 + $0xbc] sm:$0xf]
      %v290 = vld [vmem:[%s2] sm:$0x1]
      %v292 = vlaneseq
      %v293 = vshrl.u32 %v292, 7
      %v294 = vsub.s32 0, %v293
      %v295 = vrot.slane %v290, %v294
      %v361 = vunpack.c.l.b16 %v178
      %v362 = vunpack.c.h.b16 %v178
      %v363 = vunpack.c.l.b16 %v179
      %v364 = vunpack.c.l.b16 %v180
      %v365 = vunpack.c.h.b16 %v180
      %v366 = vunpack.c.l.b16 %v181
      %v367 = vunpack.c.l.b16 %v182
      %v368 = vunpack.c.h.b16 %v182
      %v369 = vunpack.c.l.b16 %v183
      %v370 = vunpack.c.l.b16 %v184
      %v371 = vunpack.c.h.b16 %v184
      %v372 = vunpack.c.l.b16 %v185
      %v373 = vunpack.c.l.b16 %v186
      %v374 = vunpack.c.h.b16 %v186
      %v375 = vunpack.c.l.b16 %v187
      %v376 = vunpack.c.l.b16 %v188
      %v377 = vunpack.c.h.b16 %v188
      %v378 = vunpack.c.l.b16 %v189
      %v379 = vunpack.c.l.b16 %v190
      %v380 = vunpack.c.h.b16 %v190
      %v381 = vunpack.c.l.b16 %v191
      %v382 = vunpack.c.l.b16 %v192
      %v383 = vunpack.c.h.b16 %v192
      %v384 = vunpack.c.l.b16 %v193
      %v385 = vunpack.c.l.b16 %v194
      %v386 = vunpack.c.h.b16 %v194
      %v387 = vunpack.c.l.b16 %v195
      %v388 = vunpack.c.l.b16 %v196
      %v389 = vunpack.c.h.b16 %v196
      %v390 = vunpack.c.l.b16 %v197
      %v391 = vunpack.c.l.b16 %v198
      %v392 = vunpack.c.h.b16 %v198
      %v393 = vunpack.c.l.b16 %v199
      %v394 = vunpack.c.l.b16 %v200
      %v395 = vunpack.c.h.b16 %v200
      %v396 = vunpack.c.l.b16 %v201
      %v397 = vunpack.c.l.b16 %v202
      %v398 = vunpack.c.h.b16 %v202
      %v399 = vunpack.c.l.b16 %v203
      %v400 = vunpack.c.l.b16 %v204
      %v401 = vunpack.c.h.b16 %v204
      %v402 = vunpack.c.l.b16 %v205
      %v403 = vunpack.c.l.b16 %v206
      %v404 = vunpack.c.h.b16 %v206
      %v405 = vunpack.c.l.b16 %v207
      %v406 = vunpack.c.l.b16 %v208
      %v407 = vunpack.c.h.b16 %v208
      %v408 = vunpack.c.l.b16 %v209
      %v409 = vunpack.c.l.b16 %v210
      %v410 = vunpack.c.h.b16 %v210
      %v411 = vunpack.c.l.b16 %v211
      %v412 = vunpack.c.l.b16 %v212
      %v413 = vunpack.c.h.b16 %v212
      %v414 = vunpack.c.l.b16 %v213
      %v415 = vunpack.c.l.b16 %v214
      %v416 = vunpack.c.h.b16 %v214
      %v417 = vunpack.c.l.b16 %v215
      %v418 = vunpack.c.l.b16 %v216
      %v419 = vunpack.c.h.b16 %v216
      %v420 = vunpack.c.l.b16 %v217
      %v421 = vunpack.c.l.b16 %v218
      %v422 = vunpack.c.h.b16 %v218
      %v423 = vunpack.c.l.b16 %v219
      %v424 = vunpack.c.l.b16 %v220
      %v425 = vunpack.c.h.b16 %v220
      %v426 = vunpack.c.l.b16 %v221
      %v427 = vunpack.c.l.b16 %v222
      %v428 = vunpack.c.h.b16 %v222
      %v429 = vunpack.c.l.b16 %v223
      %v430 = vunpack.c.l.b16 %v224
      %v431 = vunpack.c.h.b16 %v224
      %v432 = vunpack.c.l.b16 %v225
      %v433 = vunpack.c.l.b16 %v226
      %v434 = vunpack.c.h.b16 %v226
      %v435 = vunpack.c.l.b16 %v227
      %v436 = vunpack.c.l.b16 %v228
      %v437 = vunpack.c.h.b16 %v228
      %v438 = vunpack.c.l.b16 %v229
      %v439 = vunpack.c.l.b16 %v230
      %v440 = vunpack.c.h.b16 %v230
      %v441 = vunpack.c.l.b16 %v231
      %v442 = vunpack.c.l.b16 %v232
      %v443 = vunpack.c.h.b16 %v232
      %v444 = vunpack.c.l.b16 %v233
      %v445 = vunpack.c.l.b16 %v234
      %v446 = vunpack.c.h.b16 %v234
      %v447 = vunpack.c.l.b16 %v235
      %v448 = vunpack.c.l.b16 %v236
      %v449 = vunpack.c.h.b16 %v236
      %v450 = vunpack.c.l.b16 %v237
      %v451 = vunpack.c.l.b16 %v238
      %v452 = vunpack.c.h.b16 %v238
      %v453 = vunpack.c.l.b16 %v239
      %v454 = vunpack.c.l.b16 %v240
      %v455 = vunpack.c.h.b16 %v240
      %v456 = vunpack.c.l.b16 %v241
      %v457 = vpack.c.b16 %v364, %v361
      %v458 = vpack.c.b16 %v365, %v362
      %v459 = vpack.c.b16 %v366, %v363
      %v460 = vpack.c.b16 %v370, %v367
      %v461 = vpack.c.b16 %v371, %v368
      %v462 = vpack.c.b16 %v372, %v369
      %v463 = vpack.c.b16 %v376, %v373
      %v464 = vpack.c.b16 %v377, %v374
      %v465 = vpack.c.b16 %v378, %v375
      %v466 = vpack.c.b16 %v382, %v379
      %v467 = vpack.c.b16 %v383, %v380
      %v468 = vpack.c.b16 %v384, %v381
      %v469 = vpack.c.b16 %v388, %v385
      %v470 = vpack.c.b16 %v389, %v386
      %v471 = vpack.c.b16 %v390, %v387
      %v472 = vpack.c.b16 %v394, %v391
      %v473 = vpack.c.b16 %v395, %v392
      %v474 = vpack.c.b16 %v396, %v393
      %v475 = vpack.c.b16 %v400, %v397
      %v476 = vpack.c.b16 %v401, %v398
      %v477 = vpack.c.b16 %v402, %v399
      %v478 = vpack.c.b16 %v406, %v403
      %v479 = vpack.c.b16 %v407, %v404
      %v480 = vpack.c.b16 %v408, %v405
      %v481 = vpack.c.b16 %v412, %v409
      %v482 = vpack.c.b16 %v413, %v410
      %v483 = vpack.c.b16 %v414, %v411
      %v484 = vpack.c.b16 %v418, %v415
      %v485 = vpack.c.b16 %v419, %v416
      %v486 = vpack.c.b16 %v420, %v417
      %v487 = vpack.c.b16 %v424, %v421
      %v488 = vpack.c.b16 %v425, %v422
      %v489 = vpack.c.b16 %v426, %v423
      %v490 = vpack.c.b16 %v430, %v427
      %v491 = vpack.c.b16 %v431, %v428
      %v492 = vpack.c.b16 %v432, %v429
      %v493 = vpack.c.b16 %v436, %v433
      %v494 = vpack.c.b16 %v437, %v434
      %v495 = vpack.c.b16 %v438, %v435
      %v496 = vpack.c.b16 %v442, %v439
      %v497 = vpack.c.b16 %v443, %v440
      %v498 = vpack.c.b16 %v444, %v441
      %v499 = vpack.c.b16 %v448, %v445
      %v500 = vpack.c.b16 %v449, %v446
      %v501 = vpack.c.b16 %v450, %v447
      %v502 = vpack.c.b16 %v454, %v451
      %v503 = vpack.c.b16 %v455, %v452
      %v504 = vpack.c.b16 %v456, %v453
      %v601 = vunpack.c.l.b16 %v242
      %v602 = vunpack.c.l.b16 %v243
      %v603 = vunpack.c.l.b16 %v244
      %v604 = vunpack.c.l.b16 %v245
      %v605 = vunpack.c.l.b16 %v246
      %v606 = vunpack.c.l.b16 %v247
      %v607 = vunpack.c.l.b16 %v248
      %v608 = vunpack.c.l.b16 %v249
      %v609 = vunpack.c.l.b16 %v250
      %v610 = vunpack.c.l.b16 %v251
      %v611 = vunpack.c.l.b16 %v252
      %v612 = vunpack.c.l.b16 %v253
      %v613 = vunpack.c.l.b16 %v254
      %v614 = vunpack.c.l.b16 %v255
      %v615 = vunpack.c.l.b16 %v256
      %v616 = vunpack.c.l.b16 %v257
      %v617 = vunpack.c.l.b16 %v258
      %v618 = vunpack.c.l.b16 %v259
      %v619 = vunpack.c.l.b16 %v260
      %v620 = vunpack.c.l.b16 %v261
      %v621 = vunpack.c.l.b16 %v262
      %v622 = vunpack.c.l.b16 %v263
      %v623 = vunpack.c.l.b16 %v264
      %v624 = vunpack.c.l.b16 %v265
      %v625 = vunpack.c.l.b16 %v266
      %v626 = vunpack.c.l.b16 %v267
      %v627 = vunpack.c.l.b16 %v268
      %v628 = vunpack.c.l.b16 %v269
      %v629 = vunpack.c.l.b16 %v270
      %v630 = vunpack.c.l.b16 %v271
      %v631 = vunpack.c.l.b16 %v272
      %v632 = vunpack.c.l.b16 %v273
      %v633 = vunpack.c.l.b16 %v274
      %v634 = vunpack.c.l.b16 %v275
      %v635 = vunpack.c.l.b16 %v276
      %v636 = vunpack.c.l.b16 %v277
      %v637 = vunpack.c.l.b16 %v278
      %v638 = vunpack.c.l.b16 %v279
      %v639 = vunpack.c.l.b16 %v280
      %v640 = vunpack.c.l.b16 %v281
      %v641 = vunpack.c.l.b16 %v282
      %v642 = vunpack.c.l.b16 %v283
      %v643 = vunpack.c.l.b16 %v284
      %v644 = vunpack.c.l.b16 %v285
      %v645 = vunpack.c.l.b16 %v286
      %v646 = vunpack.c.l.b16 %v287
      %v647 = vunpack.c.l.b16 %v288
      %v648 = vunpack.c.l.b16 %v289
      %v649 = vpack.c.b16 %v602, %v601
      %v650 = vpack.c.b16 %v604, %v603
      %v651 = vpack.c.b16 %v606, %v605
      %v652 = vpack.c.b16 %v608, %v607
      %v653 = vpack.c.b16 %v610, %v609
      %v654 = vpack.c.b16 %v612, %v611
      %v655 = vpack.c.b16 %v614, %v613
      %v656 = vpack.c.b16 %v616, %v615
      %v657 = vpack.c.b16 %v618, %v617
      %v658 = vpack.c.b16 %v620, %v619
      %v659 = vpack.c.b16 %v622, %v621
      %v660 = vpack.c.b16 %v624, %v623
      %v661 = vpack.c.b16 %v626, %v625
      %v662 = vpack.c.b16 %v628, %v627
      %v663 = vpack.c.b16 %v630, %v629
      %v664 = vpack.c.b16 %v632, %v631
      %v665 = vpack.c.b16 %v634, %v633
      %v666 = vpack.c.b16 %v636, %v635
      %v667 = vpack.c.b16 %v638, %v637
      %v668 = vpack.c.b16 %v640, %v639
      %v669 = vpack.c.b16 %v642, %v641
      %v670 = vpack.c.b16 %v644, %v643
      %v671 = vpack.c.b16 %v646, %v645
      %v672 = vpack.c.b16 %v648, %v647
      %697 = vmatprep.subr.bf16.mxu0 0
      %698 = vmatpush1.bf16.msra.mxu0 %v649
      %699 = vmatprep.subr.bf16.mxu0 0
      %700 = vmatpush1.bf16.msra.mxu0 %v650
      %701 = vmatprep.subr.bf16.mxu0 0
      %702 = vmatpush1.bf16.msra.mxu0 %v651
      %703 = vmatprep.subr.bf16.mxu0 0
      %704 = vmatpush1.bf16.msra.mxu0 %v652
      %705 = vmatprep.subr.bf16.mxu0 0
      %706 = vmatpush1.bf16.msra.mxu0 %v653
      %707 = vmatprep.subr.bf16.mxu0 0
      %708 = vmatpush1.bf16.msra.mxu0 %v654
      %709 = vmatprep.subr.bf16.mxu0 0
      %710 = vmatpush1.bf16.msra.mxu0 %v655
      %711 = vmatprep.subr.bf16.mxu0 0
      %712 = vmatpush1.bf16.msra.mxu0 %v656
      %713 = vmatprep.subr.bf16.mxu0 0
      %714 = vmatpush1.bf16.msra.mxu0 %v657
      %715 = vmatprep.subr.bf16.mxu0 0
      %716 = vmatpush1.bf16.msra.mxu0 %v658
      %717 = vmatprep.subr.bf16.mxu0 0
      %718 = vmatpush1.bf16.msra.mxu0 %v659
      %719 = vmatprep.subr.bf16.mxu0 0
      %720 = vmatpush1.bf16.msra.mxu0 %v660
      %721 = vmatprep.subr.bf16.mxu0 0
      %722 = vmatpush1.bf16.msra.mxu0 %v661
      %723 = vmatprep.subr.bf16.mxu0 0
      %724 = vmatpush1.bf16.msra.mxu0 %v662
      %725 = vmatprep.subr.bf16.mxu0 0
      %726 = vmatpush1.bf16.msra.mxu0 %v663
      %727 = vmatprep.subr.bf16.mxu0 0
      %728 = vmatpush1.bf16.msra.mxu0 %v664
      %729 = vmatprep.mubr.bf16.mxu0 %v458
      %730 = vmatmul.mubr.bf16.gmra.mrb[0].mxu0 %v457
      %v731 = vpop.f32.mrb[0].mxu0
      %v732 = vadd.f32 %v295, %v731
      %v733 = vpop.f32.mrb[0].mxu0
      %v734 = vpop.f32.mrb[0].mxu0
      %v735 = vadd.f32 %v295, %v734
      %v736 = vpop.f32.mrb[0].mxu0
      %737 = vmatprep.mubr.bf16.mxu0 %v461
      %738 = vmatmul.mubr.bf16.gmra.mrb[0].mxu0 %v460
      %v739 = vpop.f32.mrb[0].mxu0
      %v740 = vadd.f32 %v295, %v739
      %v741 = vpop.f32.mrb[0].mxu0
      %v742 = vpop.f32.mrb[0].mxu0
      %v743 = vadd.f32 %v295, %v742
      %v744 = vpop.f32.mrb[0].mxu0
      %745 = vmatprep.mubr.bf16.mxu0 %v464
      %746 = vmatmul.mubr.bf16.gmra.mrb[0].mxu0 %v463
      %v747 = vpop.f32.mrb[0].mxu0
      %v748 = vadd.f32 %v295, %v747
      %v749 = vpop.f32.mrb[0].mxu0
      %v750 = vpop.f32.mrb[0].mxu0
      %v751 = vadd.f32 %v295, %v750
      %v752 = vpop.f32.mrb[0].mxu0
      %753 = vmatprep.mubr.bf16.mxu0 %v467
      %754 = vmatmul.mubr.bf16.gmra.mrb[0].mxu0 %v466
      %v755 = vpop.f32.mrb[0].mxu0
      %v756 = vadd.f32 %v295, %v755
      %v757 = vpop.f32.mrb[0].mxu0
      %v758 = vpop.f32.mrb[0].mxu0
      %v759 = vadd.f32 %v295, %v758
      %v760 = vpop.f32.mrb[0].mxu0
      %761 = vmatprep.mubr.bf16.mxu0 %v470
      %762 = vmatmul.mubr.bf16.gmra.mrb[0].mxu0 %v469
      %v763 = vpop.f32.mrb[0].mxu0
      %v764 = vadd.f32 %v295, %v763
      %v765 = vpop.f32.mrb[0].mxu0
      %v766 = vpop.f32.mrb[0].mxu0
      %v767 = vadd.f32 %v295, %v766
      %v768 = vpop.f32.mrb[0].mxu0
      %769 = vmatprep.mubr.bf16.mxu0 %v473
      %770 = vmatmul.mubr.bf16.gmra.mrb[0].mxu0 %v472
      %v771 = vpop.f32.mrb[0].mxu0
      %v772 = vadd.f32 %v295, %v771
      %v773 = vpop.f32.mrb[0].mxu0
      %v774 = vpop.f32.mrb[0].mxu0
      %v775 = vadd.f32 %v295, %v774
      %v776 = vpop.f32.mrb[0].mxu0
      %777 = vmatprep.mubr.bf16.mxu0 %v476
      %778 = vmatmul.mubr.bf16.gmra.mrb[0].mxu0 %v475
      %v779 = vpop.f32.mrb[0].mxu0
      %v780 = vadd.f32 %v295, %v779
      %v781 = vpop.f32.mrb[0].mxu0
      %v782 = vpop.f32.mrb[0].mxu0
      %v783 = vadd.f32 %v295, %v782
      %v784 = vpop.f32.mrb[0].mxu0
      %785 = vmatprep.mubr.bf16.mxu0 %v479
      %786 = vmatmul.mubr.bf16.gmra.mrb[0].mxu0 %v478
      %v787 = vpop.f32.mrb[0].mxu0
      %v788 = vadd.f32 %v295, %v787
      %v789 = vpop.f32.mrb[0].mxu0
      %v790 = vpop.f32.mrb[0].mxu0
      %v791 = vadd.f32 %v295, %v790
      %v792 = vpop.f32.mrb[0].mxu0
      %793 = vmatprep.mubr.bf16.mxu0 %v482
      %794 = vmatmul.mubr.bf16.gmra.mrb[0].mxu0 %v481
      %v795 = vpop.f32.mrb[0].mxu0
      %v796 = vadd.f32 %v295, %v795
      %v797 = vpop.f32.mrb[0].mxu0
      %v798 = vpop.f32.mrb[0].mxu0
      %v799 = vadd.f32 %v295, %v798
      %v800 = vpop.f32.mrb[0].mxu0
      %801 = vmatprep.mubr.bf16.mxu0 %v485
      %802 = vmatmul.mubr.bf16.gmra.mrb[0].mxu0 %v484
      %v803 = vpop.f32.mrb[0].mxu0
      %v804 = vadd.f32 %v295, %v803
      %v805 = vpop.f32.mrb[0].mxu0
      %v806 = vpop.f32.mrb[0].mxu0
      %v807 = vadd.f32 %v295, %v806
      %v808 = vpop.f32.mrb[0].mxu0
      %809 = vmatprep.mubr.bf16.mxu0 %v488
      %810 = vmatmul.mubr.bf16.gmra.mrb[0].mxu0 %v487
      %v811 = vpop.f32.mrb[0].mxu0
      %v812 = vadd.f32 %v295, %v811
      %v813 = vpop.f32.mrb[0].mxu0
      %v814 = vpop.f32.mrb[0].mxu0
      %v815 = vadd.f32 %v295, %v814
      %v816 = vpop.f32.mrb[0].mxu0
      %817 = vmatprep.mubr.bf16.mxu0 %v491
      %818 = vmatmul.mubr.bf16.gmra.mrb[0].mxu0 %v490
      %v819 = vpop.f32.mrb[0].mxu0
      %v820 = vadd.f32 %v295, %v819
      %v821 = vpop.f32.mrb[0].mxu0
      %v822 = vpop.f32.mrb[0].mxu0
      %v823 = vadd.f32 %v295, %v822
      %v824 = vpop.f32.mrb[0].mxu0
      %825 = vmatprep.mubr.bf16.mxu0 %v494
      %826 = vmatmul.mubr.bf16.gmra.mrb[0].mxu0 %v493
      %v827 = vpop.f32.mrb[0].mxu0
      %v828 = vadd.f32 %v295, %v827
      %v829 = vpop.f32.mrb[0].mxu0
      %v830 = vpop.f32.mrb[0].mxu0
      %v831 = vadd.f32 %v295, %v830
      %v832 = vpop.f32.mrb[0].mxu0
      %833 = vmatprep.mubr.bf16.mxu0 %v497
      %834 = vmatmul.mubr.bf16.gmra.mrb[0].mxu0 %v496
      %v835 = vpop.f32.mrb[0].mxu0
      %v836 = vadd.f32 %v295, %v835
      %v837 = vpop.f32.mrb[0].mxu0
      %v838 = vpop.f32.mrb[0].mxu0
      %v839 = vadd.f32 %v295, %v838
      %v840 = vpop.f32.mrb[0].mxu0
      %841 = vmatprep.mubr.bf16.mxu0 %v500
      %842 = vmatmul.mubr.bf16.gmra.mrb[0].mxu0 %v499
      %v843 = vpop.f32.mrb[0].mxu0
      %v844 = vadd.f32 %v295, %v843
      %v845 = vpop.f32.mrb[0].mxu0
      %v846 = vpop.f32.mrb[0].mxu0
      %v847 = vadd.f32 %v295, %v846
      %v848 = vpop.f32.mrb[0].mxu0
      %849 = vmatprep.mubr.bf16.mxu0 %v503
      %850 = vmatmul.mubr.bf16.gmra.mrb[0].mxu0 %v502
      %v851 = vpop.f32.mrb[0].mxu0
      %v852 = vadd.f32 %v295, %v851
      %v853 = vpop.f32.mrb[0].mxu0
      %v854 = vpop.f32.mrb[0].mxu0
      %v855 = vadd.f32 %v295, %v854
      %v856 = vpop.f32.mrb[0].mxu0
      %857 = vdwg.mxu0
      %858 = vmatprep.subr.bf16.mxu0 0
      %859 = vmatpush1.bf16.msra.mxu0 %v665
      %860 = vmatprep.subr.bf16.mxu0 0
      %861 = vmatpush1.bf16.msra.mxu0 %v666
      %862 = vmatprep.subr.bf16.mxu0 0
      %863 = vmatpush1.bf16.msra.mxu0 %v667
      %864 = vmatprep.subr.bf16.mxu0 0
      %865 = vmatpush1.bf16.msra.mxu0 %v668
      %866 = vmatprep.subr.bf16.mxu0 0
      %867 = vmatpush1.bf16.msra.mxu0 %v669
      %868 = vmatprep.subr.bf16.mxu0 0
      %869 = vmatpush1.bf16.msra.mxu0 %v670
      %870 = vmatprep.subr.bf16.mxu0 0
      %871 = vmatpush1.bf16.msra.mxu0 %v671
      %872 = vmatprep.subr.bf16.mxu0 0
      %873 = vmatpush1.bf16.msra.mxu0 %v672
      %874 = vmatprep.subr.bf16.mxu0 0
      %875 = vmatpush1.bf16.msra.mxu0 0
      %876 = vmatprep.subr.bf16.mxu0 0
      %877 = vmatpush1.bf16.msra.mxu0 0
      %878 = vmatprep.subr.bf16.mxu0 0
      %879 = vmatpush1.bf16.msra.mxu0 0
      %880 = vmatprep.subr.bf16.mxu0 0
      %881 = vmatpush1.bf16.msra.mxu0 0
      %882 = vmatprep.subr.bf16.mxu0 0
      %883 = vmatpush1.bf16.msra.mxu0 0
      %884 = vmatprep.subr.bf16.mxu0 0
      %885 = vmatpush1.bf16.msra.mxu0 0
      %886 = vmatprep.subr.bf16.mxu0 0
      %887 = vmatpush1.bf16.msra.mxu0 0
      %888 = vmatprep.subr.bf16.mxu0 0
      %889 = vmatpush1.bf16.msra.mxu0 0
      %890 = vmatprep.mubr.bf16.mxu0 0
      %891 = vmatmul.mubr.bf16.gmra.mrb[0].mxu0 %v459
      %v892 = vpop.f32.mrb[0].mxu0
      %v893 = vadd.f32 %v732, %v892
      %v894 = vpop.f32.mrb[0].mxu0
      %v895 = vpop.f32.mrb[0].mxu0
      %v896 = vadd.f32 %v735, %v895
      %v897 = vpop.f32.mrb[0].mxu0
      %898 = vmatprep.mubr.bf16.mxu0 0
      %899 = vmatmul.mubr.bf16.gmra.mrb[0].mxu0 %v462
      %v900 = vpop.f32.mrb[0].mxu0
      %v901 = vadd.f32 %v740, %v900
      %v902 = vpop.f32.mrb[0].mxu0
      %v903 = vpop.f32.mrb[0].mxu0
      %v904 = vadd.f32 %v743, %v903
      %v905 = vpop.f32.mrb[0].mxu0
      %906 = vmatprep.mubr.bf16.mxu0 0
      %907 = vmatmul.mubr.bf16.gmra.mrb[0].mxu0 %v465
      %v908 = vpop.f32.mrb[0].mxu0
      %v909 = vadd.f32 %v748, %v908
      %v910 = vpop.f32.mrb[0].mxu0
      %v911 = vpop.f32.mrb[0].mxu0
      %v912 = vadd.f32 %v751, %v911
      %v913 = vpop.f32.mrb[0].mxu0
      %914 = vmatprep.mubr.bf16.mxu0 0
      %915 = vmatmul.mubr.bf16.gmra.mrb[0].mxu0 %v468
      %v916 = vpop.f32.mrb[0].mxu0
      %v917 = vadd.f32 %v756, %v916
      %v918 = vpop.f32.mrb[0].mxu0
      %v919 = vpop.f32.mrb[0].mxu0
      %v920 = vadd.f32 %v759, %v919
      %v921 = vpop.f32.mrb[0].mxu0
      %922 = vmatprep.mubr.bf16.mxu0 0
      %923 = vmatmul.mubr.bf16.gmra.mrb[0].mxu0 %v471
      %v924 = vpop.f32.mrb[0].mxu0
      %v925 = vadd.f32 %v764, %v924
      %v926 = vpop.f32.mrb[0].mxu0
      %v927 = vpop.f32.mrb[0].mxu0
      %v928 = vadd.f32 %v767, %v927
      %v929 = vpop.f32.mrb[0].mxu0
      %930 = vmatprep.mubr.bf16.mxu0 0
      %931 = vmatmul.mubr.bf16.gmra.mrb[0].mxu0 %v474
      %v932 = vpop.f32.mrb[0].mxu0
      %v933 = vadd.f32 %v772, %v932
      %v934 = vpop.f32.mrb[0].mxu0
      %v935 = vpop.f32.mrb[0].mxu0
      %v936 = vadd.f32 %v775, %v935
      %v937 = vpop.f32.mrb[0].mxu0
      %938 = vmatprep.mubr.bf16.mxu0 0
      %939 = vmatmul.mubr.bf16.gmra.mrb[0].mxu0 %v477
      %v940 = vpop.f32.mrb[0].mxu0
      %v941 = vadd.f32 %v780, %v940
      %v942 = vpop.f32.mrb[0].mxu0
      %v943 = vpop.f32.mrb[0].mxu0
      %v944 = vadd.f32 %v783, %v943
      %v945 = vpop.f32.mrb[0].mxu0
      %946 = vmatprep.mubr.bf16.mxu0 0
      %947 = vmatmul.mubr.bf16.gmra.mrb[0].mxu0 %v480
      %v948 = vpop.f32.mrb[0].mxu0
      %v949 = vadd.f32 %v788, %v948
      %v950 = vpop.f32.mrb[0].mxu0
      %v951 = vpop.f32.mrb[0].mxu0
      %v952 = vadd.f32 %v791, %v951
      %v953 = vpop.f32.mrb[0].mxu0
      %954 = vmatprep.mubr.bf16.mxu0 0
      %955 = vmatmul.mubr.bf16.gmra.mrb[0].mxu0 %v483
      %v956 = vpop.f32.mrb[0].mxu0
      %v957 = vadd.f32 %v796, %v956
      %v958 = vpop.f32.mrb[0].mxu0
      %v959 = vpop.f32.mrb[0].mxu0
      %v960 = vadd.f32 %v799, %v959
      %v961 = vpop.f32.mrb[0].mxu0
      %962 = vmatprep.mubr.bf16.mxu0 0
      %963 = vmatmul.mubr.bf16.gmra.mrb[0].mxu0 %v486
      %v964 = vpop.f32.mrb[0].mxu0
      %v965 = vadd.f32 %v804, %v964
      %v966 = vpop.f32.mrb[0].mxu0
      %v967 = vpop.f32.mrb[0].mxu0
      %v968 = vadd.f32 %v807, %v967
      %v969 = vpop.f32.mrb[0].mxu0
      %970 = vmatprep.mubr.bf16.mxu0 0
      %971 = vmatmul.mubr.bf16.gmra.mrb[0].mxu0 %v489
      %v972 = vpop.f32.mrb[0].mxu0
      %v973 = vadd.f32 %v812, %v972
      %v974 = vpop.f32.mrb[0].mxu0
      %v975 = vpop.f32.mrb[0].mxu0
      %v976 = vadd.f32 %v815, %v975
      %v977 = vpop.f32.mrb[0].mxu0
      %978 = vmatprep.mubr.bf16.mxu0 0
      %979 = vmatmul.mubr.bf16.gmra.mrb[0].mxu0 %v492
      %v980 = vpop.f32.mrb[0].mxu0
      %v981 = vadd.f32 %v820, %v980
      %v982 = vpop.f32.mrb[0].mxu0
      %v983 = vpop.f32.mrb[0].mxu0
      %v984 = vadd.f32 %v823, %v983
      %v985 = vpop.f32.mrb[0].mxu0
      %986 = vmatprep.mubr.bf16.mxu0 0
      %987 = vmatmul.mubr.bf16.gmra.mrb[0].mxu0 %v495
      %v988 = vpop.f32.mrb[0].mxu0
      %v989 = vadd.f32 %v828, %v988
      %v990 = vpop.f32.mrb[0].mxu0
      %v991 = vpop.f32.mrb[0].mxu0
      %v992 = vadd.f32 %v831, %v991
      %v993 = vpop.f32.mrb[0].mxu0
      %994 = vmatprep.mubr.bf16.mxu0 0
      %995 = vmatmul.mubr.bf16.gmra.mrb[0].mxu0 %v498
      %v996 = vpop.f32.mrb[0].mxu0
      %v997 = vadd.f32 %v836, %v996
      %v998 = vpop.f32.mrb[0].mxu0
      %v999 = vpop.f32.mrb[0].mxu0
      %v1000 = vadd.f32 %v839, %v999
      %v1001 = vpop.f32.mrb[0].mxu0
      %1002 = vmatprep.mubr.bf16.mxu0 0
      %1003 = vmatmul.mubr.bf16.gmra.mrb[0].mxu0 %v501
      %v1004 = vpop.f32.mrb[0].mxu0
      %v1005 = vadd.f32 %v844, %v1004
      %v1006 = vpop.f32.mrb[0].mxu0
      %v1007 = vpop.f32.mrb[0].mxu0
      %v1008 = vadd.f32 %v847, %v1007
      %v1009 = vpop.f32.mrb[0].mxu0
      %1010 = vmatprep.mubr.bf16.mxu0 0
      %1011 = vmatmul.mubr.bf16.gmra.mrb[0].mxu0 %v504
      %v1012 = vpop.f32.mrb[0].mxu0
      %v1013 = vadd.f32 %v852, %v1012
      %v1014 = vpop.f32.mrb[0].mxu0
      %v1015 = vpop.f32.mrb[0].mxu0
      %v1016 = vadd.f32 %v855, %v1015
      %v1017 = vpop.f32.mrb[0].mxu0
      %1018 = vdwg.mxu0
      %v1019 = vmax.f32 %v893, 0.0
      %v1020 = vmax.f32 %v896, 0.0
      %v1021 = vmax.f32 %v901, 0.0
      %v1022 = vmax.f32 %v904, 0.0
      %v1023 = vmax.f32 %v909, 0.0
      %v1024 = vmax.f32 %v912, 0.0
      %v1025 = vmax.f32 %v917, 0.0
      %v1026 = vmax.f32 %v920, 0.0
      %v1027 = vmax.f32 %v925, 0.0
      %v1028 = vmax.f32 %v928, 0.0
      %v1029 = vmax.f32 %v933, 0.0
      %v1030 = vmax.f32 %v936, 0.0
      %v1031 = vmax.f32 %v941, 0.0
      %v1032 = vmax.f32 %v944, 0.0
      %v1033 = vmax.f32 %v949, 0.0
      %v1034 = vmax.f32 %v952, 0.0
      %v1035 = vmax.f32 %v957, 0.0
      %v1036 = vmax.f32 %v960, 0.0
      %v1037 = vmax.f32 %v965, 0.0
      %v1038 = vmax.f32 %v968, 0.0
      %v1039 = vmax.f32 %v973, 0.0
      %v1040 = vmax.f32 %v976, 0.0
      %v1041 = vmax.f32 %v981, 0.0
      %v1042 = vmax.f32 %v984, 0.0
      %v1043 = vmax.f32 %v989, 0.0
      %v1044 = vmax.f32 %v992, 0.0
      %v1045 = vmax.f32 %v997, 0.0
      %v1046 = vmax.f32 %v1000, 0.0
      %v1047 = vmax.f32 %v1005, 0.0
      %v1048 = vmax.f32 %v1008, 0.0
      %v1049 = vmax.f32 %v1013, 0.0
      %v1050 = vmax.f32 %v1016, 0.0
      %v1051 = vpack.c.bf16 %v1020, %v1019
      %v1052 = vpack.c.bf16 %v1022, %v1021
      %v1053 = vpack.c.bf16 %v1024, %v1023
      %v1054 = vpack.c.bf16 %v1026, %v1025
      %v1055 = vpack.c.bf16 %v1028, %v1027
      %v1056 = vpack.c.bf16 %v1030, %v1029
      %v1057 = vpack.c.bf16 %v1032, %v1031
      %v1058 = vpack.c.bf16 %v1034, %v1033
      %v1059 = vpack.c.bf16 %v1036, %v1035
      %v1060 = vpack.c.bf16 %v1038, %v1037
      %v1061 = vpack.c.bf16 %v1040, %v1039
      %v1062 = vpack.c.bf16 %v1042, %v1041
      %v1063 = vpack.c.bf16 %v1044, %v1043
      %v1064 = vpack.c.bf16 %v1046, %v1045
      %v1065 = vpack.c.bf16 %v1048, %v1047
      %v1066 = vpack.c.bf16 %v1050, %v1049
      %v1083 = vunpack.c.l.b16 %v1051
      %v1084 = vunpack.c.h.b16 %v1051
      %v1085 = vunpack.c.l.b16 %v1052
      %v1086 = vunpack.c.h.b16 %v1052
      %v1087 = vunpack.c.l.b16 %v1053
      %v1088 = vunpack.c.h.b16 %v1053
      %v1089 = vunpack.c.l.b16 %v1054
      %v1090 = vunpack.c.h.b16 %v1054
      %v1091 = vunpack.c.l.b16 %v1055
      %v1092 = vunpack.c.h.b16 %v1055
      %v1093 = vunpack.c.l.b16 %v1056
      %v1094 = vunpack.c.h.b16 %v1056
      %v1095 = vunpack.c.l.b16 %v1057
      %v1096 = vunpack.c.h.b16 %v1057
      %v1097 = vunpack.c.l.b16 %v1058
      %v1098 = vunpack.c.h.b16 %v1058
      %v1099 = vunpack.c.l.b16 %v1059
      %v1100 = vunpack.c.h.b16 %v1059
      %v1101 = vunpack.c.l.b16 %v1060
      %v1102 = vunpack.c.h.b16 %v1060
      %v1103 = vunpack.c.l.b16 %v1061
      %v1104 = vunpack.c.h.b16 %v1061
      %v1105 = vunpack.c.l.b16 %v1062
      %v1106 = vunpack.c.h.b16 %v1062
      %v1107 = vunpack.c.l.b16 %v1063
      %v1108 = vunpack.c.h.b16 %v1063
      %v1109 = vunpack.c.l.b16 %v1064
      %v1110 = vunpack.c.h.b16 %v1064
      %v1111 = vunpack.c.l.b16 %v1065
      %v1112 = vunpack.c.h.b16 %v1065
      %v1113 = vunpack.c.l.b16 %v1066
      %v1114 = vunpack.c.h.b16 %v1066
      %v1115 = vpack.c.b16 %v1083, %v1083
      %v1116 = vpack.c.b16 %v1084, %v1084
      %v1117 = vpack.c.b16 %v1085, %v1085
      %v1118 = vpack.c.b16 %v1086, %v1086
      %v1119 = vpack.c.b16 %v1087, %v1087
      %v1120 = vpack.c.b16 %v1088, %v1088
      %v1121 = vpack.c.b16 %v1089, %v1089
      %v1122 = vpack.c.b16 %v1090, %v1090
      %v1123 = vpack.c.b16 %v1091, %v1091
      %v1124 = vpack.c.b16 %v1092, %v1092
      %v1125 = vpack.c.b16 %v1093, %v1093
      %v1126 = vpack.c.b16 %v1094, %v1094
      %v1127 = vpack.c.b16 %v1095, %v1095
      %v1128 = vpack.c.b16 %v1096, %v1096
      %v1129 = vpack.c.b16 %v1097, %v1097
      %v1130 = vpack.c.b16 %v1098, %v1098
      %v1131 = vpack.c.b16 %v1099, %v1099
      %v1132 = vpack.c.b16 %v1100, %v1100
      %v1133 = vpack.c.b16 %v1101, %v1101
      %v1134 = vpack.c.b16 %v1102, %v1102
      %v1135 = vpack.c.b16 %v1103, %v1103
      %v1136 = vpack.c.b16 %v1104, %v1104
      %v1137 = vpack.c.b16 %v1105, %v1105
      %v1138 = vpack.c.b16 %v1106, %v1106
      %v1139 = vpack.c.b16 %v1107, %v1107
      %v1140 = vpack.c.b16 %v1108, %v1108
      %v1141 = vpack.c.b16 %v1109, %v1109
      %v1142 = vpack.c.b16 %v1110, %v1110
      %v1143 = vpack.c.b16 %v1111, %v1111
      %v1144 = vpack.c.b16 %v1112, %v1112
      %v1145 = vpack.c.b16 %v1113, %v1113
      %v1146 = vpack.c.b16 %v1114, %v1114
      %1179 = vst [vmem:[%s175] sm:$0xf] %v1115
      %1180 = vst [vmem:[%s175 + $0x4] sm:$0xf] %v1116
      %1181 = vst [vmem:[%s175 + $0x8] sm:$0xf] %v1117
      %1182 = vst [vmem:[%s175 + $0xc] sm:$0xf] %v1118
      %1183 = vst [vmem:[%s175 + $0x10] sm:$0xf] %v1119
      %1184 = vst [vmem:[%s175 + $0x14] sm:$0xf] %v1120
      %1185 = vst [vmem:[%s175 + $0x18] sm:$0xf] %v1121
      %1186 = vst [vmem:[%s175 + $0x1c] sm:$0xf] %v1122
      %1187 = vst [vmem:[%s175 + $0x20] sm:$0xf] %v1123
      %1188 = vst [vmem:[%s175 + $0x24] sm:$0xf] %v1124
      %1189 = vst [vmem:[%s175 + $0x28] sm:$0xf] %v1125
      %1190 = vst [vmem:[%s175 + $0x2c] sm:$0xf] %v1126
      %1191 = vst [vmem:[%s175 + $0x30] sm:$0xf] %v1127
      %1192 = vst [vmem:[%s175 + $0x34] sm:$0xf] %v1128
      %1193 = vst [vmem:[%s175 + $0x38] sm:$0xf] %v1129
      %1194 = vst [vmem:[%s175 + $0x3c] sm:$0xf] %v1130
      %1195 = vst [vmem:[%s175 + $0x40] sm:$0xf] %v1131
      %1196 = vst [vmem:[%s175 + $0x44] sm:$0xf] %v1132
      %1197 = vst [vmem:[%s175 + $0x48] sm:$0xf] %v1133
      %1198 = vst [vmem:[%s175 + $0x4c] sm:$0xf] %v1134
      %1199 = vst [vmem:[%s175 + $0x50] sm:$0xf] %v1135
      %1200 = vst [vmem:[%s175 + $0x54] sm:$0xf] %v1136
      %1201 = vst [vmem:[%s175 + $0x58] sm:$0xf] %v1137
      %1202 = vst [vmem:[%s175 + $0x5c] sm:$0xf] %v1138
      %1203 = vst [vmem:[%s175 + $0x60] sm:$0xf] %v1139
      %1204 = vst [vmem:[%s175 + $0x64] sm:$0xf] %v1140
      %1205 = vst [vmem:[%s175 + $0x68] sm:$0xf] %v1141
      %1206 = vst [vmem:[%s175 + $0x6c] sm:$0xf] %v1142
      %1207 = vst [vmem:[%s175 + $0x70] sm:$0xf] %v1143
      %1208 = vst [vmem:[%s175 + $0x74] sm:$0xf] %v1144
      %1209 = vst [vmem:[%s175 + $0x78] sm:$0xf] %v1145
      %1210 = vst [vmem:[%s175 + $0x7c] sm:$0xf] %v1146
      %s1211 = smul.u32 32, %s14
      %p1212 = scmp.lt.s32.totalorder %s1211, 63
      %s1213 = scalar_select %p1212, %s1211, 63
      %s1214 = smul.addr %s1213, 4
      %s1215 = scalar_lea.vmem %s3, %s1214
      // Predicated region
      $region33: #{fwd.12} parent=31 // pred_check
        %p1216 = pneg %p100
      $region34: #{fwd.12} parent=31 // pred_check_branch
        %1218 = sbr.rel (%p1216) target = $region36
      $region35: #{fwd.12} parent=31 // pred_region
        %s1219 = smul.u32 32, %s14
      $region36: #{fwd.12} parent=31 // pred_fallthru
        _
    $region32: #{fwd.12} parent=5 // pred_fallthru
      _
    %p1220 = scmp.le.s32.totalorder 2, %s9
    // Predicated region
    $region37: #{fwd.12} parent=5 // pred_check
      %p1221 = pneg %p1220
    $region38: #{fwd.12} parent=5 // pred_check_branch
      %1223 = sbr.rel (%p1221) target = $region40
    $region39: #{fwd.12} parent=5 // pred_region
      %s1224 = ssub.s32 %s9, 2
      // Predicated region
      $region41: #{fwd.12} parent=39 // pred_check
        %p1225 = pneg %p106
      $region42: #{fwd.12} parent=39 // pred_check_branch
        %1227 = sbr.rel (%p1225) target = $region44
      $region43: #{fwd.12} parent=39 // pred_region
        %s1228 = smul.u32 32, %s15
        %p1229 = scmp.lt.s32.totalorder %s1228, 63
        %s1230 = scalar_select %p1229, %s1228, 63
        %s1231 = smul.addr %s1230, 4
        %s1232 = scalar_lea.vmem %s3, %s1231
      $region44: #{fwd.12} parent=39 // pred_fallthru
        _
    $region40: #{fwd.12} parent=5 // pred_fallthru
      _
  $region6: #{fwd.12} parent=0 // loop_footer
    %s13 = sadd.s32 1, %s9
  $region7: #{fwd.12} parent=0 // loop_footer_branch
    %8 = sbr.rel target = $region3
  $region8: #{fwd.12} parent=0 // loop_exit
    _

// kernel: fwd.13
$region0: #{fwd.13}
  #allocation0 [shape = 'u32[]', space=smem, size = 0x4, offset = 0x4, fixed_abs, tag = 'smem constant byte address 0x4 - core index']
  #allocation1 [shape = 'u32[144,128]{1,0:T(1,128)}', space=vmem, size = 0x12000, scoped, tag = 'internal scratch']
  %s0 = inlined_call_operand.vmem [shape: bf16[128,384], index: 0, kind: input, shape index: {}]
  %s1 = inlined_call_operand.vmem [shape: bf16[384,128], index: 1, kind: input, shape index: {}]
  %s2 = inlined_call_operand.vmem [shape: f32[1,128], index: 2, kind: input, shape index: {}]
  %s3 = inlined_call_operand.vmem [shape: bf16[128,128], index: 3, kind: output, shape index: {}]
  %s4 = sld [smem:[#allocation0]]
  $region45: #{fwd.13} parent=0
    _
  %s6 = ssub.s32 1, %s4
  %s7 = scalar_select 0, %s6, %s4
  loop: start=0, step=1, limit=4
  $region2: #{fwd.13} parent=0 // loop_pre_header
    _
  $region3: #{fwd.13} parent=0 // loop_header
    %s9 = sphi 0, %s13
    %p10 = scmp.ge.s32.totalorder %s9, 4
    %s19 = sphi 0, %s21
    %s22 = sphi 0, %s19
    %s23 = sphi 0, %s22
    %s39 = sphi 0, %s23
    %s43 = sphi 0, %s43
    %s45 = sphi 0, %s43
    %s46 = sphi 0, %s45
    %s60 = sphi 0, %s46
    %s64 = sphi 0, %s64
    %s66 = sphi 0, %s64
    %s67 = sphi 0, %s66
    %s81 = sphi 0, %s67
    %s87 = sphi 0, %s89
    %s90 = sphi 0, %s87
    %s91 = sphi 0, %s90
    %s107 = sphi 0, %s91
  $region4: #{fwd.13} parent=0 // loop_header_branch
    %12 = sbr.rel (%p10) target = $region8
  $region5: #{fwd.13} parent=0 // loop_body
    %s14 = ssub.s32 %s9, 1
    %s15 = ssub.s32 %s9, 2
    %s16 = sadd.s32 %s9, 1
    %s17 = ssub.s32 %s9, %s16
    %p18 = scmp.eq.s32.totalorder %s17, 0
    %s20 = sadd.s32 %s19, 1
    %s21 = scalar_select %p18, %s19, %s20
    %p24 = pneg %p18
    %p25 = scmp.eq.s32.totalorder %s9, 1
    %p26 = por %p24, %p25
    %p27 = scmp.ne.s32.totalorder %s19, %s22
    %p28 = scmp.eq.s32.totalorder %s9, 0
    %p29 = por %p27, %p28
    %p30 = scmp.ne.s32.totalorder %s19, %s22
    %p31 = scmp.eq.s32.totalorder %s14, 1
    %p32 = por %p30, %p31
    %p33 = scmp.ne.s32.totalorder %s22, %s23
    %p34 = scmp.eq.s32.totalorder %s14, 0
    %p35 = por %p33, %p34
    %p36 = scmp.ne.s32.totalorder %s22, %s23
    %p37 = scmp.eq.s32.totalorder %s15, 1
    %p38 = por %p36, %p37
    %p40 = scmp.ne.s32.totalorder %s23, %s39
    %p41 = scmp.eq.s32.totalorder %s15, 0
    %p42 = por %p40, %p41
    %s44 = sadd.s32 %s43, 1
    %p47 = scmp.eq.s32.totalorder %s9, 1
    %p48 = scmp.ne.s32.totalorder %s43, %s45
    %p49 = scmp.eq.s32.totalorder %s9, 0
    %p50 = por %p48, %p49
    %p51 = scmp.ne.s32.totalorder %s43, %s45
    %p52 = scmp.eq.s32.totalorder %s14, 1
    %p53 = por %p51, %p52
    %p54 = scmp.ne.s32.totalorder %s45, %s46
    %p55 = scmp.eq.s32.totalorder %s14, 0
    %p56 = por %p54, %p55
    %p57 = scmp.ne.s32.totalorder %s45, %s46
    %p58 = scmp.eq.s32.totalorder %s15, 1
    %p59 = por %p57, %p58
    %p61 = scmp.ne.s32.totalorder %s46, %s60
    %p62 = scmp.eq.s32.totalorder %s15, 0
    %p63 = por %p61, %p62
    %s65 = sadd.s32 %s64, 1
    %p68 = scmp.eq.s32.totalorder %s9, 1
    %p69 = scmp.ne.s32.totalorder %s64, %s66
    %p70 = scmp.eq.s32.totalorder %s9, 0
    %p71 = por %p69, %p70
    %p72 = scmp.ne.s32.totalorder %s64, %s66
    %p73 = scmp.eq.s32.totalorder %s14, 1
    %p74 = por %p72, %p73
    %p75 = scmp.ne.s32.totalorder %s66, %s67
    %p76 = scmp.eq.s32.totalorder %s14, 0
    %p77 = por %p75, %p76
    %p78 = scmp.ne.s32.totalorder %s66, %s67
    %p79 = scmp.eq.s32.totalorder %s15, 1
    %p80 = por %p78, %p79
    %p82 = scmp.ne.s32.totalorder %s67, %s81
    %p83 = scmp.eq.s32.totalorder %s15, 0
    %p84 = por %p82, %p83
    %s85 = ssub.s32 %s9, %s16
    %p86 = scmp.eq.s32.totalorder %s85, 0
    %s88 = sadd.s32 %s87, 1
    %s89 = scalar_select %p86, %s87, %s88
    %p92 = pneg %p86
    %p93 = scmp.eq.s32.totalorder %s9, 1
    %p94 = por %p92, %p93
    %p95 = scmp.ne.s32.totalorder %s87, %s90
    %p96 = scmp.eq.s32.totalorder %s9, 0
    %p97 = por %p95, %p96
    %p98 = scmp.ne.s32.totalorder %s87, %s90
    %p99 = scmp.eq.s32.totalorder %s14, 1
    %p100 = por %p98, %p99
    %p101 = scmp.ne.s32.totalorder %s90, %s91
    %p102 = scmp.eq.s32.totalorder %s14, 0
    %p103 = por %p101, %p102
    %p104 = scmp.ne.s32.totalorder %s90, %s91
    %p105 = scmp.eq.s32.totalorder %s15, 1
    %p106 = por %p104, %p105
    %p108 = scmp.ne.s32.totalorder %s91, %s107
    %p109 = scmp.eq.s32.totalorder %s15, 0
    %p110 = por %p108, %p109
    %p111 = scmp.le.s32.totalorder 1, %s9
    %p112 = scmp.lt.s32.totalorder %s9, 3
    %p113 = pnand %p111, %p112
    %p114 = pneg %p113
    // Predicated region
    $region9: #{fwd.13} parent=5 // pred_check
      _
    $region10: #{fwd.13} parent=5 // pred_check_branch
      %116 = sbr.rel (%p113) target = $region12
    $region11: #{fwd.13} parent=5 // pred_region
      %s117 = ssub.s32 %s9, 1
      // Predicated region
      $region13: #{fwd.13} parent=11 // pred_check
        %p118 = pneg %p56
      $region14: #{fwd.13} parent=11 // pred_check_branch
        %120 = sbr.rel (%p118) target = $region16
      $region15: #{fwd.13} parent=11 // pred_region
        _
      $region16: #{fwd.13} parent=11 // pred_fallthru
        _
      // Predicated region
      $region17: #{fwd.13} parent=11 // pred_check
        %p121 = pneg %p77
      $region18: #{fwd.13} parent=11 // pred_check_branch
        %123 = sbr.rel (%p121) target = $region20
      $region19: #{fwd.13} parent=11 // pred_region
        _
      $region20: #{fwd.13} parent=11 // pred_fallthru
        _
    $region12: #{fwd.13} parent=5 // pred_fallthru
      _
    %p124 = scmp.lt.s32.totalorder %s9, 2
    // Predicated region
    $region21: #{fwd.13} parent=5 // pred_check
      %p125 = pneg %p124
    $region22: #{fwd.13} parent=5 // pred_check_branch
      %127 = sbr.rel (%p125) target = $region24
    $region23: #{fwd.13} parent=5 // pred_region
      // Predicated region
      $region25: #{fwd.13} parent=23 // pred_check
        %p128 = pneg %p29
      $region26: #{fwd.13} parent=23 // pred_check_branch
        %130 = sbr.rel (%p128) target = $region28
      $region27: #{fwd.13} parent=23 // pred_region
        %s131 = smul.u32 8, %s9
        %p132 = scmp.lt.s32.totalorder %s131, 15
        %s133 = scalar_select %p132, %s131, 15
        %s134 = smul.addr %s133, 3
        %s135 = smul.addr %s134, 4
        %s136 = scalar_lea.vmem %s0, %s135
        %s137 = smul.u32 8, %s9
      $region28: #{fwd.13} parent=23 // pred_fallthru
        _
    $region24: #{fwd.13} parent=5 // pred_fallthru
      _
    %p138 = scmp.le.s32.totalorder 1, %s9
    %p139 = scmp.lt.s32.totalorder %s9, 3
    %p140 = pnand %p138, %p139
    %p141 = pneg %p140
    // Predicated region
    $region29: #{fwd.13} parent=5 // pred_check
      _
    $region30: #{fwd.13} parent=5 // pred_check_branch
      %143 = sbr.rel (%p140) target = $region32
    $region31: #{fwd.13} parent=5 // pred_region
      %s144 = ssub.s32 %s9, 1
      %s145 = smul.u32 8, %s14
      %p146 = scmp.lt.s32.totalorder %s145, 15
      %s147 = scalar_select %p146, %s145, 15
      %s148 = smul.addr %s147, 3
      %s149 = smul.addr %s148, 4
      %s150 = scalar_lea.vmem %s0, %s149
      %p151 = pneg %p35
      %p152 = pneg %p32
      %p153 = pneg %p56
      %p154 = pneg %p53
      %p155 = pneg %p77
      %p156 = pneg %p74
      %p157 = pneg %p103
      %p158 = pneg %p100
      %s159 = smul.u32 8, %s14
      %p160 = scmp.lt.s32.totalorder %s159, 15
      %s161 = scalar_select %p160, %s159, 15
      %s162 = smul.addr %s161, 4
      %s163 = scalar_lea.vmem %s3, %s162
      %s164 = smul.u32 8, %s14
      %p165 = scmp.lt.s32.totalorder %s164, 15
      %s166 = scalar_select %p165, %s164, 15
      %s167 = smul.addr %s166, 3
      %s168 = smul.addr %s167, 4
      %s169 = scalar_lea.vmem %s0, %s168
      %s170 = smul.u32 8, %s14
      %s171 = smul.u32 8, %s14
      %p172 = scmp.lt.s32.totalorder %s171, 15
      %s173 = scalar_select %p172, %s171, 15
      %s174 = smul.addr %s173, 4
      %s175 = scalar_lea.vmem %s3, %s174
      %s176 = smul.u32 8, %s14
      %v178 = vld [vmem:[%s169] sm:$0xff]
      %v179 = vld [vmem:[%s169 + $0x8] sm:$0xf]
      %v180 = vld [vmem:[%s169 + $0xc] sm:$0xff]
      %v181 = vld [vmem:[%s169 + $0x14] sm:$0xf]
      %v182 = vld [vmem:[%s169 + $0x18] sm:$0xff]
      %v183 = vld [vmem:[%s169 + $0x20] sm:$0xf]
      %v184 = vld [vmem:[%s169 + $0x24] sm:$0xff]
      %v185 = vld [vmem:[%s169 + $0x2c] sm:$0xf]
      %v186 = vld [vmem:[%s169 + $0x30] sm:$0xff]
      %v187 = vld [vmem:[%s169 + $0x38] sm:$0xf]
      %v188 = vld [vmem:[%s169 + $0x3c] sm:$0xff]
      %v189 = vld [vmem:[%s169 + $0x44] sm:$0xf]
      %v190 = vld [vmem:[%s169 + $0x48] sm:$0xff]
      %v191 = vld [vmem:[%s169 + $0x50] sm:$0xf]
      %v192 = vld [vmem:[%s169 + $0x54] sm:$0xff]
      %v193 = vld [vmem:[%s169 + $0x5c] sm:$0xf]
      %v194 = vld [vmem:[%s1] sm:$0xf]
      %v195 = vld [vmem:[%s1 + $0x4] sm:$0xf]
      %v196 = vld [vmem:[%s1 + $0x8] sm:$0xf]
      %v197 = vld [vmem:[%s1 + $0xc] sm:$0xf]
      %v198 = vld [vmem:[%s1 + $0x10] sm:$0xf]
      %v199 = vld [vmem:[%s1 + $0x14] sm:$0xf]
      %v200 = vld [vmem:[%s1 + $0x18] sm:$0xf]
      %v201 = vld [vmem:[%s1 + $0x1c] sm:$0xf]
      %v202 = vld [vmem:[%s1 + $0x20] sm:$0xf]
      %v203 = vld [vmem:[%s1 + $0x24] sm:$0xf]
      %v204 = vld [vmem:[%s1 + $0x28] sm:$0xf]
      %v205 = vld [vmem:[%s1 + $0x2c] sm:$0xf]
      %v206 = vld [vmem:[%s1 + $0x30] sm:$0xf]
      %v207 = vld [vmem:[%s1 + $0x34] sm:$0xf]
      %v208 = vld [vmem:[%s1 + $0x38] sm:$0xf]
      %v209 = vld [vmem:[%s1 + $0x3c] sm:$0xf]
      %v210 = vld [vmem:[%s1 + $0x40] sm:$0xf]
      %v211 = vld [vmem:[%s1 + $0x44] sm:$0xf]
      %v212 = vld [vmem:[%s1 + $0x48] sm:$0xf]
      %v213 = vld [vmem:[%s1 + $0x4c] sm:$0xf]
      %v214 = vld [vmem:[%s1 + $0x50] sm:$0xf]
      %v215 = vld [vmem:[%s1 + $0x54] sm:$0xf]
      %v216 = vld [vmem:[%s1 + $0x58] sm:$0xf]
      %v217 = vld [vmem:[%s1 + $0x5c] sm:$0xf]
      %v218 = vld [vmem:[%s1 + $0x60] sm:$0xf]
      %v219 = vld [vmem:[%s1 + $0x64] sm:$0xf]
      %v220 = vld [vmem:[%s1 + $0x68] sm:$0xf]
      %v221 = vld [vmem:[%s1 + $0x6c] sm:$0xf]
      %v222 = vld [vmem:[%s1 + $0x70] sm:$0xf]
      %v223 = vld [vmem:[%s1 + $0x74] sm:$0xf]
      %v224 = vld [vmem:[%s1 + $0x78] sm:$0xf]
      %v225 = vld [vmem:[%s1 + $0x7c] sm:$0xf]
      %v226 = vld [vmem:[%s1 + $0x80] sm:$0xf]
      %v227 = vld [vmem:[%s1 + $0x84] sm:$0xf]
      %v228 = vld [vmem:[%s1 + $0x88] sm:$0xf]
      %v229 = vld [vmem:[%s1 + $0x8c] sm:$0xf]
      %v230 = vld [vmem:[%s1 + $0x90] sm:$0xf]
      %v231 = vld [vmem:[%s1 + $0x94] sm:$0xf]
      %v232 = vld [vmem:[%s1 + $0x98] sm:$0xf]
      %v233 = vld [vmem:[%s1 + $0x9c] sm:$0xf]
      %v234 = vld [vmem:[%s1 + $0xa0] sm:$0xf]
      %v235 = vld [vmem:[%s1 + $0xa4] sm:$0xf]
      %v236 = vld [vmem:[%s1 + $0xa8] sm:$0xf]
      %v237 = vld [vmem:[%s1 + $0xac] sm:$0xf]
      %v238 = vld [vmem:[%s1 + $0xb0] sm:$0xf]
      %v239 = vld [vmem:[%s1 + $0xb4] sm:$0xf]
      %v240 = vld [vmem:[%s1 + $0xb8] sm:$0xf]
      %v241 = vld [vmem:[%s1 + $0xbc] sm:$0xf]
      %v242 = vld [vmem:[%s2] sm:$0x1]
      %v244 = vlaneseq
      %v245 = vshrl.u32 %v244, 7
      %v246 = vsub.s32 0, %v245
      %v247 = vrot.slane %v242, %v246
      %v265 = vunpack.c.l.b16 %v178
      %v266 = vunpack.c.h.b16 %v178
      %v267 = vunpack.c.l.b16 %v179
      %v268 = vunpack.c.l.b16 %v180
      %v269 = vunpack.c.h.b16 %v180
      %v270 = vunpack.c.l.b16 %v181
      %v271 = vunpack.c.l.b16 %v182
      %v272 = vunpack.c.h.b16 %v182
      %v273 = vunpack.c.l.b16 %v183
      %v274 = vunpack.c.l.b16 %v184
      %v275 = vunpack.c.h.b16 %v184
      %v276 = vunpack.c.l.b16 %v185
      %v277 = vunpack.c.l.b16 %v186
      %v278 = vunpack.c.h.b16 %v186
      %v279 = vunpack.c.l.b16 %v187
      %v280 = vunpack.c.l.b16 %v188
      %v281 = vunpack.c.h.b16 %v188
      %v282 = vunpack.c.l.b16 %v189
      %v283 = vunpack.c.l.b16 %v190
      %v284 = vunpack.c.h.b16 %v190
      %v285 = vunpack.c.l.b16 %v191
      %v286 = vunpack.c.l.b16 %v192
      %v287 = vunpack.c.h.b16 %v192
      %v288 = vunpack.c.l.b16 %v193
      %v289 = vpack.c.b16 %v268, %v265
      %v290 = vpack.c.b16 %v269, %v266
      %v291 = vpack.c.b16 %v270, %v267
      %v292 = vpack.c.b16 %v274, %v271
      %v293 = vpack.c.b16 %v275, %v272
      %v294 = vpack.c.b16 %v276, %v273
      %v295 = vpack.c.b16 %v280, %v277
      %v296 = vpack.c.b16 %v281, %v278
      %v297 = vpack.c.b16 %v282, %v279
      %v298 = vpack.c.b16 %v286, %v283
      %v299 = vpack.c.b16 %v287, %v284
      %v300 = vpack.c.b16 %v288, %v285
      %v361 = vunpack.c.l.b16 %v194
      %v362 = vunpack.c.l.b16 %v195
      %v363 = vunpack.c.l.b16 %v196
      %v364 = vunpack.c.l.b16 %v197
      %v365 = vunpack.c.l.b16 %v198
      %v366 = vunpack.c.l.b16 %v199
      %v367 = vunpack.c.l.b16 %v200
      %v368 = vunpack.c.l.b16 %v201
      %v369 = vunpack.c.l.b16 %v202
      %v370 = vunpack.c.l.b16 %v203
      %v371 = vunpack.c.l.b16 %v204
      %v372 = vunpack.c.l.b16 %v205
      %v373 = vunpack.c.l.b16 %v206
      %v374 = vunpack.c.l.b16 %v207
      %v375 = vunpack.c.l.b16 %v208
      %v376 = vunpack.c.l.b16 %v209
      %v377 = vunpack.c.l.b16 %v210
      %v378 = vunpack.c.l.b16 %v211
      %v379 = vunpack.c.l.b16 %v212
      %v380 = vunpack.c.l.b16 %v213
      %v381 = vunpack.c.l.b16 %v214
      %v382 = vunpack.c.l.b16 %v215
      %v383 = vunpack.c.l.b16 %v216
      %v384 = vunpack.c.l.b16 %v217
      %v385 = vunpack.c.l.b16 %v218
      %v386 = vunpack.c.l.b16 %v219
      %v387 = vunpack.c.l.b16 %v220
      %v388 = vunpack.c.l.b16 %v221
      %v389 = vunpack.c.l.b16 %v222
      %v390 = vunpack.c.l.b16 %v223
      %v391 = vunpack.c.l.b16 %v224
      %v392 = vunpack.c.l.b16 %v225
      %v393 = vunpack.c.l.b16 %v226
      %v394 = vunpack.c.l.b16 %v227
      %v395 = vunpack.c.l.b16 %v228
      %v396 = vunpack.c.l.b16 %v229
      %v397 = vunpack.c.l.b16 %v230
      %v398 = vunpack.c.l.b16 %v231
      %v399 = vunpack.c.l.b16 %v232
      %v400 = vunpack.c.l.b16 %v233
      %v401 = vunpack.c.l.b16 %v234
      %v402 = vunpack.c.l.b16 %v235
      %v403 = vunpack.c.l.b16 %v236
      %v404 = vunpack.c.l.b16 %v237
      %v405 = vunpack.c.l.b16 %v238
      %v406 = vunpack.c.l.b16 %v239
      %v407 = vunpack.c.l.b16 %v240
      %v408 = vunpack.c.l.b16 %v241
      %v409 = vpack.c.b16 %v362, %v361
      %v410 = vpack.c.b16 %v364, %v363
      %v411 = vpack.c.b16 %v366, %v365
      %v412 = vpack.c.b16 %v368, %v367
      %v413 = vpack.c.b16 %v370, %v369
      %v414 = vpack.c.b16 %v372, %v371
      %v415 = vpack.c.b16 %v374, %v373
      %v416 = vpack.c.b16 %v376, %v375
      %v417 = vpack.c.b16 %v378, %v377
      %v418 = vpack.c.b16 %v380, %v379
      %v419 = vpack.c.b16 %v382, %v381
      %v420 = vpack.c.b16 %v384, %v383
      %v421 = vpack.c.b16 %v386, %v385
      %v422 = vpack.c.b16 %v388, %v387
      %v423 = vpack.c.b16 %v390, %v389
      %v424 = vpack.c.b16 %v392, %v391
      %v425 = vpack.c.b16 %v394, %v393
      %v426 = vpack.c.b16 %v396, %v395
      %v427 = vpack.c.b16 %v398, %v397
      %v428 = vpack.c.b16 %v400, %v399
      %v429 = vpack.c.b16 %v402, %v401
      %v430 = vpack.c.b16 %v404, %v403
      %v431 = vpack.c.b16 %v406, %v405
      %v432 = vpack.c.b16 %v408, %v407
      %457 = vmatprep.subr.bf16.mxu0 0
      %458 = vmatpush1.bf16.msra.mxu0 %v409
      %459 = vmatprep.subr.bf16.mxu0 0
      %460 = vmatpush1.bf16.msra.mxu0 %v410
      %461 = vmatprep.subr.bf16.mxu0 0
      %462 = vmatpush1.bf16.msra.mxu0 %v411
      %463 = vmatprep.subr.bf16.mxu0 0
      %464 = vmatpush1.bf16.msra.mxu0 %v412
      %465 = vmatprep.subr.bf16.mxu0 0
      %466 = vmatpush1.bf16.msra.mxu0 %v413
      %467 = vmatprep.subr.bf16.mxu0 0
      %468 = vmatpush1.bf16.msra.mxu0 %v414
      %469 = vmatprep.subr.bf16.mxu0 0
      %470 = vmatpush1.bf16.msra.mxu0 %v415
      %471 = vmatprep.subr.bf16.mxu0 0
      %472 = vmatpush1.bf16.msra.mxu0 %v416
      %473 = vmatprep.subr.bf16.mxu0 0
      %474 = vmatpush1.bf16.msra.mxu0 %v417
      %475 = vmatprep.subr.bf16.mxu0 0
      %476 = vmatpush1.bf16.msra.mxu0 %v418
      %477 = vmatprep.subr.bf16.mxu0 0
      %478 = vmatpush1.bf16.msra.mxu0 %v419
      %479 = vmatprep.subr.bf16.mxu0 0
      %480 = vmatpush1.bf16.msra.mxu0 %v420
      %481 = vmatprep.subr.bf16.mxu0 0
      %482 = vmatpush1.bf16.msra.mxu0 %v421
      %483 = vmatprep.subr.bf16.mxu0 0
      %484 = vmatpush1.bf16.msra.mxu0 %v422
      %485 = vmatprep.subr.bf16.mxu0 0
      %486 = vmatpush1.bf16.msra.mxu0 %v423
      %487 = vmatprep.subr.bf16.mxu0 0
      %488 = vmatpush1.bf16.msra.mxu0 %v424
      %489 = vmatprep.mubr.bf16.mxu0 %v290
      %490 = vmatmul.mubr.bf16.gmra.mrb[0].mxu0 %v289
      %v491 = vpop.f32.mrb[0].mxu0
      %v492 = vadd.f32 %v247, %v491
      %v493 = vpop.f32.mrb[0].mxu0
      %v494 = vpop.f32.mrb[0].mxu0
      %v495 = vadd.f32 %v247, %v494
      %v496 = vpop.f32.mrb[0].mxu0
      %497 = vmatprep.mubr.bf16.mxu0 %v293
      %498 = vmatmul.mubr.bf16.gmra.mrb[0].mxu0 %v292
      %v499 = vpop.f32.mrb[0].mxu0
      %v500 = vadd.f32 %v247, %v499
      %v501 = vpop.f32.mrb[0].mxu0
      %v502 = vpop.f32.mrb[0].mxu0
      %v503 = vadd.f32 %v247, %v502
      %v504 = vpop.f32.mrb[0].mxu0
      %505 = vmatprep.mubr.bf16.mxu0 %v296
      %506 = vmatmul.mubr.bf16.gmra.mrb[0].mxu0 %v295
      %v507 = vpop.f32.mrb[0].mxu0
      %v508 = vadd.f32 %v247, %v507
      %v509 = vpop.f32.mrb[0].mxu0
      %v510 = vpop.f32.mrb[0].mxu0
      %v511 = vadd.f32 %v247, %v510
      %v512 = vpop.f32.mrb[0].mxu0
      %513 = vmatprep.mubr.bf16.mxu0 %v299
      %514 = vmatmul.mubr.bf16.gmra.mrb[0].mxu0 %v298
      %v515 = vpop.f32.mrb[0].mxu0
      %v516 = vadd.f32 %v247, %v515
      %v517 = vpop.f32.mrb[0].mxu0
      %v518 = vpop.f32.mrb[0].mxu0
      %v519 = vadd.f32 %v247, %v518
      %v520 = vpop.f32.mrb[0].mxu0
      %521 = vdwg.mxu0
      %522 = vmatprep.subr.bf16.mxu0 0
      %523 = vmatpush1.bf16.msra.mxu0 %v425
      %524 = vmatprep.subr.bf16.mxu0 0
      %525 = vmatpush1.bf16.msra.mxu0 %v426
      %526 = vmatprep.subr.bf16.mxu0 0
      %527 = vmatpush1.bf16.msra.mxu0 %v427
      %528 = vmatprep.subr.bf16.mxu0 0
      %529 = vmatpush1.bf16.msra.mxu0 %v428
      %530 = vmatprep.subr.bf16.mxu0 0
      %531 = vmatpush1.bf16.msra.mxu0 %v429
      %532 = vmatprep.subr.bf16.mxu0 0
      %533 = vmatpush1.bf16.msra.mxu0 %v430
      %534 = vmatprep.subr.bf16.mxu0 0
      %535 = vmatpush1.bf16.msra.mxu0 %v431
      %536 = vmatprep.subr.bf16.mxu0 0
      %537 = vmatpush1.bf16.msra.mxu0 %v432
      %538 = vmatprep.subr.bf16.mxu0 0
      %539 = vmatpush1.bf16.msra.mxu0 0
      %540 = vmatprep.subr.bf16.mxu0 0
      %541 = vmatpush1.bf16.msra.mxu0 0
      %542 = vmatprep.subr.bf16.mxu0 0
      %543 = vmatpush1.bf16.msra.mxu0 0
      %544 = vmatprep.subr.bf16.mxu0 0
      %545 = vmatpush1.bf16.msra.mxu0 0
      %546 = vmatprep.subr.bf16.mxu0 0
      %547 = vmatpush1.bf16.msra.mxu0 0
      %548 = vmatprep.subr.bf16.mxu0 0
      %549 = vmatpush1.bf16.msra.mxu0 0
      %550 = vmatprep.subr.bf16.mxu0 0
      %551 = vmatpush1.bf16.msra.mxu0 0
      %552 = vmatprep.subr.bf16.mxu0 0
      %553 = vmatpush1.bf16.msra.mxu0 0
      %554 = vmatprep.mubr.bf16.mxu0 0
      %555 = vmatmul.mubr.bf16.gmra.mrb[0].mxu0 %v291
      %v556 = vpop.f32.mrb[0].mxu0
      %v557 = vadd.f32 %v492, %v556
      %v558 = vpop.f32.mrb[0].mxu0
      %v559 = vpop.f32.mrb[0].mxu0
      %v560 = vadd.f32 %v495, %v559
      %v561 = vpop.f32.mrb[0].mxu0
      %562 = vmatprep.mubr.bf16.mxu0 0
      %563 = vmatmul.mubr.bf16.gmra.mrb[0].mxu0 %v294
      %v564 = vpop.f32.mrb[0].mxu0
      %v565 = vadd.f32 %v500, %v564
      %v566 = vpop.f32.mrb[0].mxu0
      %v567 = vpop.f32.mrb[0].mxu0
      %v568 = vadd.f32 %v503, %v567
      %v569 = vpop.f32.mrb[0].mxu0
      %570 = vmatprep.mubr.bf16.mxu0 0
      %571 = vmatmul.mubr.bf16.gmra.mrb[0].mxu0 %v297
      %v572 = vpop.f32.mrb[0].mxu0
      %v573 = vadd.f32 %v508, %v572
      %v574 = vpop.f32.mrb[0].mxu0
      %v575 = vpop.f32.mrb[0].mxu0
      %v576 = vadd.f32 %v511, %v575
      %v577 = vpop.f32.mrb[0].mxu0
      %578 = vmatprep.mubr.bf16.mxu0 0
      %579 = vmatmul.mubr.bf16.gmra.mrb[0].mxu0 %v300
      %v580 = vpop.f32.mrb[0].mxu0
      %v581 = vadd.f32 %v516, %v580
      %v582 = vpop.f32.mrb[0].mxu0
      %v583 = vpop.f32.mrb[0].mxu0
      %v584 = vadd.f32 %v519, %v583
      %v585 = vpop.f32.mrb[0].mxu0
      %586 = vdwg.mxu0
      %v587 = vmax.f32 %v557, 0.0
      %v588 = vmax.f32 %v560, 0.0
      %v589 = vmax.f32 %v565, 0.0
      %v590 = vmax.f32 %v568, 0.0
      %v591 = vmax.f32 %v573, 0.0
      %v592 = vmax.f32 %v576, 0.0
      %v593 = vmax.f32 %v581, 0.0
      %v594 = vmax.f32 %v584, 0.0
      %v595 = vpack.c.bf16 %v588, %v587
      %v596 = vpack.c.bf16 %v590, %v589
      %v597 = vpack.c.bf16 %v592, %v591
      %v598 = vpack.c.bf16 %v594, %v593
      %v603 = vunpack.c.l.b16 %v595
      %v604 = vunpack.c.h.b16 %v595
      %v605 = vunpack.c.l.b16 %v596
      %v606 = vunpack.c.h.b16 %v596
      %v607 = vunpack.c.l.b16 %v597
      %v608 = vunpack.c.h.b16 %v597
      %v609 = vunpack.c.l.b16 %v598
      %v610 = vunpack.c.h.b16 %v598
      %v611 = vpack.c.b16 %v603, %v603
      %v612 = vpack.c.b16 %v604, %v604
      %v613 = vpack.c.b16 %v605, %v605
      %v614 = vpack.c.b16 %v606, %v606
      %v615 = vpack.c.b16 %v607, %v607
      %v616 = vpack.c.b16 %v608, %v608
      %v617 = vpack.c.b16 %v609, %v609
      %v618 = vpack.c.b16 %v610, %v610
      %627 = vst [vmem:[%s175] sm:$0xf] %v611
      %628 = vst [vmem:[%s175 + $0x4] sm:$0xf] %v612
      %629 = vst [vmem:[%s175 + $0x8] sm:$0xf] %v613
      %630 = vst [vmem:[%s175 + $0xc] sm:$0xf] %v614
      %631 = vst [vmem:[%s175 + $0x10] sm:$0xf] %v615
      %632 = vst [vmem:[%s175 + $0x14] sm:$0xf] %v616
      %633 = vst [vmem:[%s175 + $0x18] sm:$0xf] %v617
      %634 = vst [vmem:[%s175 + $0x1c] sm:$0xf] %v618
      %s635 = smul.u32 8, %s14
      %p636 = scmp.lt.s32.totalorder %s635, 15
      %s637 = scalar_select %p636, %s635, 15
      %s638 = smul.addr %s637, 4
      %s639 = scalar_lea.vmem %s3, %s638
      // Predicated region
      $region33: #{fwd.13} parent=31 // pred_check
        %p640 = pneg %p100
      $region34: #{fwd.13} parent=31 // pred_check_branch
        %642 = sbr.rel (%p640) target = $region36
      $region35: #{fwd.13} parent=31 // pred_region
        %s643 = smul.u32 8, %s14
      $region36: #{fwd.13} parent=31 // pred_fallthru
        _
    $region32: #{fwd.13} parent=5 // pred_fallthru
      _
    %p644 = scmp.le.s32.totalorder 2, %s9
    // Predicated region
    $region37: #{fwd.13} parent=5 // pred_check
      %p645 = pneg %p644
    $region38: #{fwd.13} parent=5 // pred_check_branch
      %647 = sbr.rel (%p645) target = $region40
    $region39: #{fwd.13} parent=5 // pred_region
      %s648 = ssub.s32 %s9, 2
      // Predicated region
      $region41: #{fwd.13} parent=39 // pred_check
        %p649 = pneg %p106
      $region42: #{fwd.13} parent=39 // pred_check_branch
        %651 = sbr.rel (%p649) target = $region44
      $region43: #{fwd.13} parent=39 // pred_region
        %s652 = smul.u32 8, %s15
        %p653 = scmp.lt.s32.totalorder %s652, 15
        %s654 = scalar_select %p653, %s652, 15
        %s655 = smul.addr %s654, 4
        %s656 = scalar_lea.vmem %s3, %s655
      $region44: #{fwd.13} parent=39 // pred_fallthru
        _
    $region40: #{fwd.13} parent=5 // pred_fallthru
      _
  $region6: #{fwd.13} parent=0 // loop_footer
    %s13 = sadd.s32 1, %s9
  $region7: #{fwd.13} parent=0 // loop_footer_branch
    %8 = sbr.rel target = $region3
  $region8: #{fwd.13} parent=0 // loop_exit
    _

// kernel: fwd.14
$region0: #{fwd.14}
  #allocation0 [shape = 'u32[]', space=smem, size = 0x4, offset = 0x4, fixed_abs, tag = 'smem constant byte address 0x4 - core index']
  #allocation1 [shape = 'u32[144,128]{1,0:T(1,128)}', space=vmem, size = 0x12000, scoped, tag = 'internal scratch']
  %s0 = inlined_call_operand.vmem [shape: bf16[128,640], index: 0, kind: input, shape index: {}]
  %s1 = inlined_call_operand.vmem [shape: bf16[640,128], index: 1, kind: input, shape index: {}]
  %s2 = inlined_call_operand.vmem [shape: f32[1,128], index: 2, kind: input, shape index: {}]
  %s3 = inlined_call_operand.vmem [shape: bf16[128,128], index: 3, kind: output, shape index: {}]
  %s4 = sld [smem:[#allocation0]]
  $region45: #{fwd.14} parent=0
    _
  %s6 = ssub.s32 1, %s4
  %s7 = scalar_select 0, %s6, %s4
  loop: start=0, step=1, limit=4
  $region2: #{fwd.14} parent=0 // loop_pre_header
    _
  $region3: #{fwd.14} parent=0 // loop_header
    %s9 = sphi 0, %s13
    %p10 = scmp.ge.s32.totalorder %s9, 4
    %s19 = sphi 0, %s21
    %s22 = sphi 0, %s19
    %s23 = sphi 0, %s22
    %s39 = sphi 0, %s23
    %s43 = sphi 0, %s43
    %s45 = sphi 0, %s43
    %s46 = sphi 0, %s45
    %s60 = sphi 0, %s46
    %s64 = sphi 0, %s64
    %s66 = sphi 0, %s64
    %s67 = sphi 0, %s66
    %s81 = sphi 0, %s67
    %s87 = sphi 0, %s89
    %s90 = sphi 0, %s87
    %s91 = sphi 0, %s90
    %s107 = sphi 0, %s91
  $region4: #{fwd.14} parent=0 // loop_header_branch
    %12 = sbr.rel (%p10) target = $region8
  $region5: #{fwd.14} parent=0 // loop_body
    %s14 = ssub.s32 %s9, 1
    %s15 = ssub.s32 %s9, 2
    %s16 = sadd.s32 %s9, 1
    %s17 = ssub.s32 %s9, %s16
    %p18 = scmp.eq.s32.totalorder %s17, 0
    %s20 = sadd.s32 %s19, 1
    %s21 = scalar_select %p18, %s19, %s20
    %p24 = pneg %p18
    %p25 = scmp.eq.s32.totalorder %s9, 1
    %p26 = por %p24, %p25
    %p27 = scmp.ne.s32.totalorder %s19, %s22
    %p28 = scmp.eq.s32.totalorder %s9, 0
    %p29 = por %p27, %p28
    %p30 = scmp.ne.s32.totalorder %s19, %s22
    %p31 = scmp.eq.s32.totalorder %s14, 1
    %p32 = por %p30, %p31
    %p33 = scmp.ne.s32.totalorder %s22, %s23
    %p34 = scmp.eq.s32.totalorder %s14, 0
    %p35 = por %p33, %p34
    %p36 = scmp.ne.s32.totalorder %s22, %s23
    %p37 = scmp.eq.s32.totalorder %s15, 1
    %p38 = por %p36, %p37
    %p40 = scmp.ne.s32.totalorder %s23, %s39
    %p41 = scmp.eq.s32.totalorder %s15, 0
    %p42 = por %p40, %p41
    %s44 = sadd.s32 %s43, 1
    %p47 = scmp.eq.s32.totalorder %s9, 1
    %p48 = scmp.ne.s32.totalorder %s43, %s45
    %p49 = scmp.eq.s32.totalorder %s9, 0
    %p50 = por %p48, %p49
    %p51 = scmp.ne.s32.totalorder %s43, %s45
    %p52 = scmp.eq.s32.totalorder %s14, 1
    %p53 = por %p51, %p52
    %p54 = scmp.ne.s32.totalorder %s45, %s46
    %p55 = scmp.eq.s32.totalorder %s14, 0
    %p56 = por %p54, %p55
    %p57 = scmp.ne.s32.totalorder %s45, %s46
    %p58 = scmp.eq.s32.totalorder %s15, 1
    %p59 = por %p57, %p58
    %p61 = scmp.ne.s32.totalorder %s46, %s60
    %p62 = scmp.eq.s32.totalorder %s15, 0
    %p63 = por %p61, %p62
    %s65 = sadd.s32 %s64, 1
    %p68 = scmp.eq.s32.totalorder %s9, 1
    %p69 = scmp.ne.s32.totalorder %s64, %s66
    %p70 = scmp.eq.s32.totalorder %s9, 0
    %p71 = por %p69, %p70
    %p72 = scmp.ne.s32.totalorder %s64, %s66
    %p73 = scmp.eq.s32.totalorder %s14, 1
    %p74 = por %p72, %p73
    %p75 = scmp.ne.s32.totalorder %s66, %s67
    %p76 = scmp.eq.s32.totalorder %s14, 0
    %p77 = por %p75, %p76
    %p78 = scmp.ne.s32.totalorder %s66, %s67
    %p79 = scmp.eq.s32.totalorder %s15, 1
    %p80 = por %p78, %p79
    %p82 = scmp.ne.s32.totalorder %s67, %s81
    %p83 = scmp.eq.s32.totalorder %s15, 0
    %p84 = por %p82, %p83
    %s85 = ssub.s32 %s9, %s16
    %p86 = scmp.eq.s32.totalorder %s85, 0
    %s88 = sadd.s32 %s87, 1
    %s89 = scalar_select %p86, %s87, %s88
    %p92 = pneg %p86
    %p93 = scmp.eq.s32.totalorder %s9, 1
    %p94 = por %p92, %p93
    %p95 = scmp.ne.s32.totalorder %s87, %s90
    %p96 = scmp.eq.s32.totalorder %s9, 0
    %p97 = por %p95, %p96
    %p98 = scmp.ne.s32.totalorder %s87, %s90
    %p99 = scmp.eq.s32.totalorder %s14, 1
    %p100 = por %p98, %p99
    %p101 = scmp.ne.s32.totalorder %s90, %s91
    %p102 = scmp.eq.s32.totalorder %s14, 0
    %p103 = por %p101, %p102
    %p104 = scmp.ne.s32.totalorder %s90, %s91
    %p105 = scmp.eq.s32.totalorder %s15, 1
    %p106 = por %p104, %p105
    %p108 = scmp.ne.s32.totalorder %s91, %s107
    %p109 = scmp.eq.s32.totalorder %s15, 0
    %p110 = por %p108, %p109
    %p111 = scmp.le.s32.totalorder 1, %s9
    %p112 = scmp.lt.s32.totalorder %s9, 3
    %p113 = pnand %p111, %p112
    %p114 = pneg %p113
    // Predicated region
    $region9: #{fwd.14} parent=5 // pred_check
      _
    $region10: #{fwd.14} parent=5 // pred_check_branch
      %116 = sbr.rel (%p113) target = $region12
    $region11: #{fwd.14} parent=5 // pred_region
      %s117 = ssub.s32 %s9, 1
      // Predicated region
      $region13: #{fwd.14} parent=11 // pred_check
        %p118 = pneg %p56
      $region14: #{fwd.14} parent=11 // pred_check_branch
        %120 = sbr.rel (%p118) target = $region16
      $region15: #{fwd.14} parent=11 // pred_region
        _
      $region16: #{fwd.14} parent=11 // pred_fallthru
        _
      // Predicated region
      $region17: #{fwd.14} parent=11 // pred_check
        %p121 = pneg %p77
      $region18: #{fwd.14} parent=11 // pred_check_branch
        %123 = sbr.rel (%p121) target = $region20
      $region19: #{fwd.14} parent=11 // pred_region
        _
      $region20: #{fwd.14} parent=11 // pred_fallthru
        _
    $region12: #{fwd.14} parent=5 // pred_fallthru
      _
    %p124 = scmp.lt.s32.totalorder %s9, 2
    // Predicated region
    $region21: #{fwd.14} parent=5 // pred_check
      %p125 = pneg %p124
    $region22: #{fwd.14} parent=5 // pred_check_branch
      %127 = sbr.rel (%p125) target = $region24
    $region23: #{fwd.14} parent=5 // pred_region
      // Predicated region
      $region25: #{fwd.14} parent=23 // pred_check
        %p128 = pneg %p29
      $region26: #{fwd.14} parent=23 // pred_check_branch
        %130 = sbr.rel (%p128) target = $region28
      $region27: #{fwd.14} parent=23 // pred_region
        %s131 = smul.u32 8, %s9
        %p132 = scmp.lt.s32.totalorder %s131, 15
        %s133 = scalar_select %p132, %s131, 15
        %s134 = smul.addr %s133, 5
        %s135 = smul.addr %s134, 4
        %s136 = scalar_lea.vmem %s0, %s135
        %s137 = smul.u32 8, %s9
      $region28: #{fwd.14} parent=23 // pred_fallthru
        _
    $region24: #{fwd.14} parent=5 // pred_fallthru
      _
    %p138 = scmp.le.s32.totalorder 1, %s9
    %p139 = scmp.lt.s32.totalorder %s9, 3
    %p140 = pnand %p138, %p139
    %p141 = pneg %p140
    // Predicated region
    $region29: #{fwd.14} parent=5 // pred_check
      _
    $region30: #{fwd.14} parent=5 // pred_check_branch
      %143 = sbr.rel (%p140) target = $region32
    $region31: #{fwd.14} parent=5 // pred_region
      %s144 = ssub.s32 %s9, 1
      %s145 = smul.u32 8, %s14
      %p146 = scmp.lt.s32.totalorder %s145, 15
      %s147 = scalar_select %p146, %s145, 15
      %s148 = smul.addr %s147, 5
      %s149 = smul.addr %s148, 4
      %s150 = scalar_lea.vmem %s0, %s149
      %p151 = pneg %p35
      %p152 = pneg %p32
      %p153 = pneg %p56
      %p154 = pneg %p53
      %p155 = pneg %p77
      %p156 = pneg %p74
      %p157 = pneg %p103
      %p158 = pneg %p100
      %s159 = smul.u32 8, %s14
      %p160 = scmp.lt.s32.totalorder %s159, 15
      %s161 = scalar_select %p160, %s159, 15
      %s162 = smul.addr %s161, 4
      %s163 = scalar_lea.vmem %s3, %s162
      %s164 = smul.u32 8, %s14
      %p165 = scmp.lt.s32.totalorder %s164, 15
      %s166 = scalar_select %p165, %s164, 15
      %s167 = smul.addr %s166, 5
      %s168 = smul.addr %s167, 4
      %s169 = scalar_lea.vmem %s0, %s168
      %s170 = smul.u32 8, %s14
      %s171 = smul.u32 8, %s14
      %p172 = scmp.lt.s32.totalorder %s171, 15
      %s173 = scalar_select %p172, %s171, 15
      %s174 = smul.addr %s173, 4
      %s175 = scalar_lea.vmem %s3, %s174
      %s176 = smul.u32 8, %s14
      %v178 = vld [vmem:[%s169] sm:$0xff]
      %v179 = vld [vmem:[%s169 + $0x8] sm:$0xff]
      %v180 = vld [vmem:[%s169 + $0x10] sm:$0xf]
      %v181 = vld [vmem:[%s169 + $0x14] sm:$0xff]
      %v182 = vld [vmem:[%s169 + $0x1c] sm:$0xff]
      %v183 = vld [vmem:[%s169 + $0x24] sm:$0xf]
      %v184 = vld [vmem:[%s169 + $0x28] sm:$0xff]
      %v185 = vld [vmem:[%s169 + $0x30] sm:$0xff]
      %v186 = vld [vmem:[%s169 + $0x38] sm:$0xf]
      %v187 = vld [vmem:[%s169 + $0x3c] sm:$0xff]
      %v188 = vld [vmem:[%s169 + $0x44] sm:$0xff]
      %v189 = vld [vmem:[%s169 + $0x4c] sm:$0xf]
      %v190 = vld [vmem:[%s169 + $0x50] sm:$0xff]
      %v191 = vld [vmem:[%s169 + $0x58] sm:$0xff]
      %v192 = vld [vmem:[%s169 + $0x60] sm:$0xf]
      %v193 = vld [vmem:[%s169 + $0x64] sm:$0xff]
      %v194 = vld [vmem:[%s169 + $0x6c] sm:$0xff]
      %v195 = vld [vmem:[%s169 + $0x74] sm:$0xf]
      %v196 = vld [vmem:[%s169 + $0x78] sm:$0xff]
      %v197 = vld [vmem:[%s169 + $0x80] sm:$0xff]
      %v198 = vld [vmem:[%s169 + $0x88] sm:$0xf]
      %v199 = vld [vmem:[%s169 + $0x8c] sm:$0xff]
      %v200 = vld [vmem:[%s169 + $0x94] sm:$0xff]
      %v201 = vld [vmem:[%s169 + $0x9c] sm:$0xf]
      %v202 = vld [vmem:[%s1] sm:$0xf]
      %v203 = vld [vmem:[%s1 + $0x4] sm:$0xf]
      %v204 = vld [vmem:[%s1 + $0x8] sm:$0xf]
      %v205 = vld [vmem:[%s1 + $0xc] sm:$0xf]
      %v206 = vld [vmem:[%s1 + $0x10] sm:$0xf]
      %v207 = vld [vmem:[%s1 + $0x14] sm:$0xf]
      %v208 = vld [vmem:[%s1 + $0x18] sm:$0xf]
      %v209 = vld [vmem:[%s1 + $0x1c] sm:$0xf]
      %v210 = vld [vmem:[%s1 + $0x20] sm:$0xf]
      %v211 = vld [vmem:[%s1 + $0x24] sm:$0xf]
      %v212 = vld [vmem:[%s1 + $0x28] sm:$0xf]
      %v213 = vld [vmem:[%s1 + $0x2c] sm:$0xf]
      %v214 = vld [vmem:[%s1 + $0x30] sm:$0xf]
      %v215 = vld [vmem:[%s1 + $0x34] sm:$0xf]
      %v216 = vld [vmem:[%s1 + $0x38] sm:$0xf]
      %v217 = vld [vmem:[%s1 + $0x3c] sm:$0xf]
      %v218 = vld [vmem:[%s1 + $0x40] sm:$0xf]
      %v219 = vld [vmem:[%s1 + $0x44] sm:$0xf]
      %v220 = vld [vmem:[%s1 + $0x48] sm:$0xf]
      %v221 = vld [vmem:[%s1 + $0x4c] sm:$0xf]
      %v222 = vld [vmem:[%s1 + $0x50] sm:$0xf]
      %v223 = vld [vmem:[%s1 + $0x54] sm:$0xf]
      %v224 = vld [vmem:[%s1 + $0x58] sm:$0xf]
      %v225 = vld [vmem:[%s1 + $0x5c] sm:$0xf]
      %v226 = vld [vmem:[%s1 + $0x60] sm:$0xf]
      %v227 = vld [vmem:[%s1 + $0x64] sm:$0xf]
      %v228 = vld [vmem:[%s1 + $0x68] sm:$0xf]
      %v229 = vld [vmem:[%s1 + $0x6c] sm:$0xf]
      %v230 = vld [vmem:[%s1 + $0x70] sm:$0xf]
      %v231 = vld [vmem:[%s1 + $0x74] sm:$0xf]
      %v232 = vld [vmem:[%s1 + $0x78] sm:$0xf]
      %v233 = vld [vmem:[%s1 + $0x7c] sm:$0xf]
      %v234 = vld [vmem:[%s1 + $0x80] sm:$0xf]
      %v235 = vld [vmem:[%s1 + $0x84] sm:$0xf]
      %v236 = vld [vmem:[%s1 + $0x88] sm:$0xf]
      %v237 = vld [vmem:[%s1 + $0x8c] sm:$0xf]
      %v238 = vld [vmem:[%s1 + $0x90] sm:$0xf]
      %v239 = vld [vmem:[%s1 + $0x94] sm:$0xf]
      %v240 = vld [vmem:[%s1 + $0x98] sm:$0xf]
      %v241 = vld [vmem:[%s1 + $0x9c] sm:$0xf]
      %v242 = vld [vmem:[%s1 + $0xa0] sm:$0xf]
      %v243 = vld [vmem:[%s1 + $0xa4] sm:$0xf]
      %v244 = vld [vmem:[%s1 + $0xa8] sm:$0xf]
      %v245 = vld [vmem:[%s1 + $0xac] sm:$0xf]
      %v246 = vld [vmem:[%s1 + $0xb0] sm:$0xf]
      %v247 = vld [vmem:[%s1 + $0xb4] sm:$0xf]
      %v248 = vld [vmem:[%s1 + $0xb8] sm:$0xf]
      %v249 = vld [vmem:[%s1 + $0xbc] sm:$0xf]
      %v250 = vld [vmem:[%s1 + $0xc0] sm:$0xf]
      %v251 = vld [vmem:[%s1 + $0xc4] sm:$0xf]
      %v252 = vld [vmem:[%s1 + $0xc8] sm:$0xf]
      %v253 = vld [vmem:[%s1 + $0xcc] sm:$0xf]
      %v254 = vld [vmem:[%s1 + $0xd0] sm:$0xf]
      %v255 = vld [vmem:[%s1 + $0xd4] sm:$0xf]
      %v256 = vld [vmem:[%s1 + $0xd8] sm:$0xf]
      %v257 = vld [vmem:[%s1 + $0xdc] sm:$0xf]
      %v258 = vld [vmem:[%s1 + $0xe0] sm:$0xf]
      %v259 = vld [vmem:[%s1 + $0xe4] sm:$0xf]
      %v260 = vld [vmem:[%s1 + $0xe8] sm:$0xf]
      %v261 = vld [vmem:[%s1 + $0xec] sm:$0xf]
      %v262 = vld [vmem:[%s1 + $0xf0] sm:$0xf]
      %v263 = vld [vmem:[%s1 + $0xf4] sm:$0xf]
      %v264 = vld [vmem:[%s1 + $0xf8] sm:$0xf]
      %v265 = vld [vmem:[%s1 + $0xfc] sm:$0xf]
      %v266 = vld [vmem:[%s1 + $0x100] sm:$0xf]
      %v267 = vld [vmem:[%s1 + $0x104] sm:$0xf]
      %v268 = vld [vmem:[%s1 + $0x108] sm:$0xf]
      %v269 = vld [vmem:[%s1 + $0x10c] sm:$0xf]
      %v270 = vld [vmem:[%s1 + $0x110] sm:$0xf]
      %v271 = vld [vmem:[%s1 + $0x114] sm:$0xf]
      %v272 = vld [vmem:[%s1 + $0x118] sm:$0xf]
      %v273 = vld [vmem:[%s1 + $0x11c] sm:$0xf]
      %v274 = vld [vmem:[%s1 + $0x120] sm:$0xf]
      %v275 = vld [vmem:[%s1 + $0x124] sm:$0xf]
      %v276 = vld [vmem:[%s1 + $0x128] sm:$0xf]
      %v277 = vld [vmem:[%s1 + $0x12c] sm:$0xf]
      %v278 = vld [vmem:[%s1 + $0x130] sm:$0xf]
      %v279 = vld [vmem:[%s1 + $0x134] sm:$0xf]
      %v280 = vld [vmem:[%s1 + $0x138] sm:$0xf]
      %v281 = vld [vmem:[%s1 + $0x13c] sm:$0xf]
      %v282 = vld [vmem:[%s2] sm:$0x1]
      %v284 = vlaneseq
      %v285 = vshrl.u32 %v284, 7
      %v286 = vsub.s32 0, %v285
      %v287 = vrot.slane %v282, %v286
      %v313 = vunpack.c.l.b16 %v178
      %v314 = vunpack.c.h.b16 %v178
      %v315 = vunpack.c.l.b16 %v179
      %v316 = vunpack.c.h.b16 %v179
      %v317 = vunpack.c.l.b16 %v180
      %v318 = vunpack.c.l.b16 %v181
      %v319 = vunpack.c.h.b16 %v181
      %v320 = vunpack.c.l.b16 %v182
      %v321 = vunpack.c.h.b16 %v182
      %v322 = vunpack.c.l.b16 %v183
      %v323 = vunpack.c.l.b16 %v184
      %v324 = vunpack.c.h.b16 %v184
      %v325 = vunpack.c.l.b16 %v185
      %v326 = vunpack.c.h.b16 %v185
      %v327 = vunpack.c.l.b16 %v186
      %v328 = vunpack.c.l.b16 %v187
      %v329 = vunpack.c.h.b16 %v187
      %v330 = vunpack.c.l.b16 %v188
      %v331 = vunpack.c.h.b16 %v188
      %v332 = vunpack.c.l.b16 %v189
      %v333 = vunpack.c.l.b16 %v190
      %v334 = vunpack.c.h.b16 %v190
      %v335 = vunpack.c.l.b16 %v191
      %v336 = vunpack.c.h.b16 %v191
      %v337 = vunpack.c.l.b16 %v192
      %v338 = vunpack.c.l.b16 %v193
      %v339 = vunpack.c.h.b16 %v193
      %v340 = vunpack.c.l.b16 %v194
      %v341 = vunpack.c.h.b16 %v194
      %v342 = vunpack.c.l.b16 %v195
      %v343 = vunpack.c.l.b16 %v196
      %v344 = vunpack.c.h.b16 %v196
      %v345 = vunpack.c.l.b16 %v197
      %v346 = vunpack.c.h.b16 %v197
      %v347 = vunpack.c.l.b16 %v198
      %v348 = vunpack.c.l.b16 %v199
      %v349 = vunpack.c.h.b16 %v199
      %v350 = vunpack.c.l.b16 %v200
      %v351 = vunpack.c.h.b16 %v200
      %v352 = vunpack.c.l.b16 %v201
      %v353 = vpack.c.b16 %v318, %v313
      %v354 = vpack.c.b16 %v319, %v314
      %v355 = vpack.c.b16 %v320, %v315
      %v356 = vpack.c.b16 %v321, %v316
      %v357 = vpack.c.b16 %v322, %v317
      %v358 = vpack.c.b16 %v328, %v323
      %v359 = vpack.c.b16 %v329, %v324
      %v360 = vpack.c.b16 %v330, %v325
      %v361 = vpack.c.b16 %v331, %v326
      %v362 = vpack.c.b16 %v332, %v327
      %v363 = vpack.c.b16 %v338, %v333
      %v364 = vpack.c.b16 %v339, %v334
      %v365 = vpack.c.b16 %v340, %v335
      %v366 = vpack.c.b16 %v341, %v336
      %v367 = vpack.c.b16 %v342, %v337
      %v368 = vpack.c.b16 %v348, %v343
      %v369 = vpack.c.b16 %v349, %v344
      %v370 = vpack.c.b16 %v350, %v345
      %v371 = vpack.c.b16 %v351, %v346
      %v372 = vpack.c.b16 %v352, %v347
      %v473 = vunpack.c.l.b16 %v202
      %v474 = vunpack.c.l.b16 %v203
      %v475 = vunpack.c.l.b16 %v204
      %v476 = vunpack.c.l.b16 %v205
      %v477 = vunpack.c.l.b16 %v206
      %v478 = vunpack.c.l.b16 %v207
      %v479 = vunpack.c.l.b16 %v208
      %v480 = vunpack.c.l.b16 %v209
      %v481 = vunpack.c.l.b16 %v210
      %v482 = vunpack.c.l.b16 %v211
      %v483 = vunpack.c.l.b16 %v212
      %v484 = vunpack.c.l.b16 %v213
      %v485 = vunpack.c.l.b16 %v214
      %v486 = vunpack.c.l.b16 %v215
      %v487 = vunpack.c.l.b16 %v216
      %v488 = vunpack.c.l.b16 %v217
      %v489 = vunpack.c.l.b16 %v218
      %v490 = vunpack.c.l.b16 %v219
      %v491 = vunpack.c.l.b16 %v220
      %v492 = vunpack.c.l.b16 %v221
      %v493 = vunpack.c.l.b16 %v222
      %v494 = vunpack.c.l.b16 %v223
      %v495 = vunpack.c.l.b16 %v224
      %v496 = vunpack.c.l.b16 %v225
      %v497 = vunpack.c.l.b16 %v226
      %v498 = vunpack.c.l.b16 %v227
      %v499 = vunpack.c.l.b16 %v228
      %v500 = vunpack.c.l.b16 %v229
      %v501 = vunpack.c.l.b16 %v230
      %v502 = vunpack.c.l.b16 %v231
      %v503 = vunpack.c.l.b16 %v232
      %v504 = vunpack.c.l.b16 %v233
      %v505 = vunpack.c.l.b16 %v234
      %v506 = vunpack.c.l.b16 %v235
      %v507 = vunpack.c.l.b16 %v236
      %v508 = vunpack.c.l.b16 %v237
      %v509 = vunpack.c.l.b16 %v238
      %v510 = vunpack.c.l.b16 %v239
      %v511 = vunpack.c.l.b16 %v240
      %v512 = vunpack.c.l.b16 %v241
      %v513 = vunpack.c.l.b16 %v242
      %v514 = vunpack.c.l.b16 %v243
      %v515 = vunpack.c.l.b16 %v244
      %v516 = vunpack.c.l.b16 %v245
      %v517 = vunpack.c.l.b16 %v246
      %v518 = vunpack.c.l.b16 %v247
      %v519 = vunpack.c.l.b16 %v248
      %v520 = vunpack.c.l.b16 %v249
      %v521 = vunpack.c.l.b16 %v250
      %v522 = vunpack.c.l.b16 %v251
      %v523 = vunpack.c.l.b16 %v252
      %v524 = vunpack.c.l.b16 %v253
      %v525 = vunpack.c.l.b16 %v254
      %v526 = vunpack.c.l.b16 %v255
      %v527 = vunpack.c.l.b16 %v256
      %v528 = vunpack.c.l.b16 %v257
      %v529 = vunpack.c.l.b16 %v258
      %v530 = vunpack.c.l.b16 %v259
      %v531 = vunpack.c.l.b16 %v260
      %v532 = vunpack.c.l.b16 %v261
      %v533 = vunpack.c.l.b16 %v262
      %v534 = vunpack.c.l.b16 %v263
      %v535 = vunpack.c.l.b16 %v264
      %v536 = vunpack.c.l.b16 %v265
      %v537 = vunpack.c.l.b16 %v266
      %v538 = vunpack.c.l.b16 %v267
      %v539 = vunpack.c.l.b16 %v268
      %v540 = vunpack.c.l.b16 %v269
      %v541 = vunpack.c.l.b16 %v270
      %v542 = vunpack.c.l.b16 %v271
      %v543 = vunpack.c.l.b16 %v272
      %v544 = vunpack.c.l.b16 %v273
      %v545 = vunpack.c.l.b16 %v274
      %v546 = vunpack.c.l.b16 %v275
      %v547 = vunpack.c.l.b16 %v276
      %v548 = vunpack.c.l.b16 %v277
      %v549 = vunpack.c.l.b16 %v278
      %v550 = vunpack.c.l.b16 %v279
      %v551 = vunpack.c.l.b16 %v280
      %v552 = vunpack.c.l.b16 %v281
      %v553 = vpack.c.b16 %v474, %v473
      %v554 = vpack.c.b16 %v476, %v475
      %v555 = vpack.c.b16 %v478, %v477
      %v556 = vpack.c.b16 %v480, %v479
      %v557 = vpack.c.b16 %v482, %v481
      %v558 = vpack.c.b16 %v484, %v483
      %v559 = vpack.c.b16 %v486, %v485
      %v560 = vpack.c.b16 %v488, %v487
      %v561 = vpack.c.b16 %v490, %v489
      %v562 = vpack.c.b16 %v492, %v491
      %v563 = vpack.c.b16 %v494, %v493
      %v564 = vpack.c.b16 %v496, %v495
      %v565 = vpack.c.b16 %v498, %v497
      %v566 = vpack.c.b16 %v500, %v499
      %v567 = vpack.c.b16 %v502, %v501
      %v568 = vpack.c.b16 %v504, %v503
      %v569 = vpack.c.b16 %v506, %v505
      %v570 = vpack.c.b16 %v508, %v507
      %v571 = vpack.c.b16 %v510, %v509
      %v572 = vpack.c.b16 %v512, %v511
      %v573 = vpack.c.b16 %v514, %v513
      %v574 = vpack.c.b16 %v516, %v515
      %v575 = vpack.c.b16 %v518, %v517
      %v576 = vpack.c.b16 %v520, %v519
      %v577 = vpack.c.b16 %v522, %v521
      %v578 = vpack.c.b16 %v524, %v523
      %v579 = vpack.c.b16 %v526, %v525
      %v580 = vpack.c.b16 %v528, %v527
      %v581 = vpack.c.b16 %v530, %v529
      %v582 = vpack.c.b16 %v532, %v531
      %v583 = vpack.c.b16 %v534, %v533
      %v584 = vpack.c.b16 %v536, %v535
      %v585 = vpack.c.b16 %v538, %v537
      %v586 = vpack.c.b16 %v540, %v539
      %v587 = vpack.c.b16 %v542, %v541
      %v588 = vpack.c.b16 %v544, %v543
      %v589 = vpack.c.b16 %v546, %v545
      %v590 = vpack.c.b16 %v548, %v547
      %v591 = vpack.c.b16 %v550, %v549
      %v592 = vpack.c.b16 %v552, %v551
      %633 = vmatprep.subr.bf16.mxu0 0
      %634 = vmatpush1.bf16.msra.mxu0 %v553
      %635 = vmatprep.subr.bf16.mxu0 0
      %636 = vmatpush1.bf16.msra.mxu0 %v554
      %637 = vmatprep.subr.bf16.mxu0 0
      %638 = vmatpush1.bf16.msra.mxu0 %v555
      %639 = vmatprep.subr.bf16.mxu0 0
      %640 = vmatpush1.bf16.msra.mxu0 %v556
      %641 = vmatprep.subr.bf16.mxu0 0
      %642 = vmatpush1.bf16.msra.mxu0 %v557
      %643 = vmatprep.subr.bf16.mxu0 0
      %644 = vmatpush1.bf16.msra.mxu0 %v558
      %645 = vmatprep.subr.bf16.mxu0 0
      %646 = vmatpush1.bf16.msra.mxu0 %v559
      %647 = vmatprep.subr.bf16.mxu0 0
      %648 = vmatpush1.bf16.msra.mxu0 %v560
      %649 = vmatprep.subr.bf16.mxu0 0
      %650 = vmatpush1.bf16.msra.mxu0 %v561
      %651 = vmatprep.subr.bf16.mxu0 0
      %652 = vmatpush1.bf16.msra.mxu0 %v562
      %653 = vmatprep.subr.bf16.mxu0 0
      %654 = vmatpush1.bf16.msra.mxu0 %v563
      %655 = vmatprep.subr.bf16.mxu0 0
      %656 = vmatpush1.bf16.msra.mxu0 %v564
      %657 = vmatprep.subr.bf16.mxu0 0
      %658 = vmatpush1.bf16.msra.mxu0 %v565
      %659 = vmatprep.subr.bf16.mxu0 0
      %660 = vmatpush1.bf16.msra.mxu0 %v566
      %661 = vmatprep.subr.bf16.mxu0 0
      %662 = vmatpush1.bf16.msra.mxu0 %v567
      %663 = vmatprep.subr.bf16.mxu0 0
      %664 = vmatpush1.bf16.msra.mxu0 %v568
      %665 = vmatprep.mubr.bf16.mxu0 %v354
      %666 = vmatmul.mubr.bf16.gmra.mrb[0].mxu0 %v353
      %v667 = vpop.f32.mrb[0].mxu0
      %v668 = vadd.f32 %v287, %v667
      %v669 = vpop.f32.mrb[0].mxu0
      %v670 = vpop.f32.mrb[0].mxu0
      %v671 = vadd.f32 %v287, %v670
      %v672 = vpop.f32.mrb[0].mxu0
      %673 = vmatprep.mubr.bf16.mxu0 %v359
      %674 = vmatmul.mubr.bf16.gmra.mrb[0].mxu0 %v358
      %v675 = vpop.f32.mrb[0].mxu0
      %v676 = vadd.f32 %v287, %v675
      %v677 = vpop.f32.mrb[0].mxu0
      %v678 = vpop.f32.mrb[0].mxu0
      %v679 = vadd.f32 %v287, %v678
      %v680 = vpop.f32.mrb[0].mxu0
      %681 = vmatprep.mubr.bf16.mxu0 %v364
      %682 = vmatmul.mubr.bf16.gmra.mrb[0].mxu0 %v363
      %v683 = vpop.f32.mrb[0].mxu0
      %v684 = vadd.f32 %v287, %v683
      %v685 = vpop.f32.mrb[0].mxu0
      %v686 = vpop.f32.mrb[0].mxu0
      %v687 = vadd.f32 %v287, %v686
      %v688 = vpop.f32.mrb[0].mxu0
      %689 = vmatprep.mubr.bf16.mxu0 %v369
      %690 = vmatmul.mubr.bf16.gmra.mrb[0].mxu0 %v368
      %v691 = vpop.f32.mrb[0].mxu0
      %v692 = vadd.f32 %v287, %v691
      %v693 = vpop.f32.mrb[0].mxu0
      %v694 = vpop.f32.mrb[0].mxu0
      %v695 = vadd.f32 %v287, %v694
      %v696 = vpop.f32.mrb[0].mxu0
      %697 = vdwg.mxu0
      %698 = vmatprep.subr.bf16.mxu0 0
      %699 = vmatpush1.bf16.msra.mxu0 %v569
      %700 = vmatprep.subr.bf16.mxu0 0
      %701 = vmatpush1.bf16.msra.mxu0 %v570
      %702 = vmatprep.subr.bf16.mxu0 0
      %703 = vmatpush1.bf16.msra.mxu0 %v571
      %704 = vmatprep.subr.bf16.mxu0 0
      %705 = vmatpush1.bf16.msra.mxu0 %v572
      %706 = vmatprep.subr.bf16.mxu0 0
      %707 = vmatpush1.bf16.msra.mxu0 %v573
      %708 = vmatprep.subr.bf16.mxu0 0
      %709 = vmatpush1.bf16.msra.mxu0 %v574
      %710 = vmatprep.subr.bf16.mxu0 0
      %711 = vmatpush1.bf16.msra.mxu0 %v575
      %712 = vmatprep.subr.bf16.mxu0 0
      %713 = vmatpush1.bf16.msra.mxu0 %v576
      %714 = vmatprep.subr.bf16.mxu0 0
      %715 = vmatpush1.bf16.msra.mxu0 %v577
      %716 = vmatprep.subr.bf16.mxu0 0
      %717 = vmatpush1.bf16.msra.mxu0 %v578
      %718 = vmatprep.subr.bf16.mxu0 0
      %719 = vmatpush1.bf16.msra.mxu0 %v579
      %720 = vmatprep.subr.bf16.mxu0 0
      %721 = vmatpush1.bf16.msra.mxu0 %v580
      %722 = vmatprep.subr.bf16.mxu0 0
      %723 = vmatpush1.bf16.msra.mxu0 %v581
      %724 = vmatprep.subr.bf16.mxu0 0
      %725 = vmatpush1.bf16.msra.mxu0 %v582
      %726 = vmatprep.subr.bf16.mxu0 0
      %727 = vmatpush1.bf16.msra.mxu0 %v583
      %728 = vmatprep.subr.bf16.mxu0 0
      %729 = vmatpush1.bf16.msra.mxu0 %v584
      %730 = vmatprep.mubr.bf16.mxu0 %v356
      %731 = vmatmul.mubr.bf16.gmra.mrb[0].mxu0 %v355
      %v732 = vpop.f32.mrb[0].mxu0
      %v733 = vadd.f32 %v668, %v732
      %v734 = vpop.f32.mrb[0].mxu0
      %v735 = vpop.f32.mrb[0].mxu0
      %v736 = vadd.f32 %v671, %v735
      %v737 = vpop.f32.mrb[0].mxu0
      %738 = vmatprep.mubr.bf16.mxu0 %v361
      %739 = vmatmul.mubr.bf16.gmra.mrb[0].mxu0 %v360
      %v740 = vpop.f32.mrb[0].mxu0
      %v741 = vadd.f32 %v676, %v740
      %v742 = vpop.f32.mrb[0].mxu0
      %v743 = vpop.f32.mrb[0].mxu0
      %v744 = vadd.f32 %v679, %v743
      %v745 = vpop.f32.mrb[0].mxu0
      %746 = vmatprep.mubr.bf16.mxu0 %v366
      %747 = vmatmul.mubr.bf16.gmra.mrb[0].mxu0 %v365
      %v748 = vpop.f32.mrb[0].mxu0
      %v749 = vadd.f32 %v684, %v748
      %v750 = vpop.f32.mrb[0].mxu0
      %v751 = vpop.f32.mrb[0].mxu0
      %v752 = vadd.f32 %v687, %v751
      %v753 = vpop.f32.mrb[0].mxu0
      %754 = vmatprep.mubr.bf16.mxu0 %v371
      %755 = vmatmul.mubr.bf16.gmra.mrb[0].mxu0 %v370
      %v756 = vpop.f32.mrb[0].mxu0
      %v757 = vadd.f32 %v692, %v756
      %v758 = vpop.f32.mrb[0].mxu0
      %v759 = vpop.f32.mrb[0].mxu0
      %v760 = vadd.f32 %v695, %v759
      %v761 = vpop.f32.mrb[0].mxu0
      %762 = vdwg.mxu0
      %763 = vmatprep.subr.bf16.mxu0 0
      %764 = vmatpush1.bf16.msra.mxu0 %v585
      %765 = vmatprep.subr.bf16.mxu0 0
      %766 = vmatpush1.bf16.msra.mxu0 %v586
      %767 = vmatprep.subr.bf16.mxu0 0
      %768 = vmatpush1.bf16.msra.mxu0 %v587
      %769 = vmatprep.subr.bf16.mxu0 0
      %770 = vmatpush1.bf16.msra.mxu0 %v588
      %771 = vmatprep.subr.bf16.mxu0 0
      %772 = vmatpush1.bf16.msra.mxu0 %v589
      %773 = vmatprep.subr.bf16.mxu0 0
      %774 = vmatpush1.bf16.msra.mxu0 %v590
      %775 = vmatprep.subr.bf16.mxu0 0
      %776 = vmatpush1.bf16.msra.mxu0 %v591
      %777 = vmatprep.subr.bf16.mxu0 0
      %778 = vmatpush1.bf16.msra.mxu0 %v592
      %779 = vmatprep.subr.bf16.mxu0 0
      %780 = vmatpush1.bf16.msra.mxu0 0
      %781 = vmatprep.subr.bf16.mxu0 0
      %782 = vmatpush1.bf16.msra.mxu0 0
      %783 = vmatprep.subr.bf16.mxu0 0
      %784 = vmatpush1.bf16.msra.mxu0 0
      %785 = vmatprep.subr.bf16.mxu0 0
      %786 = vmatpush1.bf16.msra.mxu0 0
      %787 = vmatprep.subr.bf16.mxu0 0
      %788 = vmatpush1.bf16.msra.mxu0 0
      %789 = vmatprep.subr.bf16.mxu0 0
      %790 = vmatpush1.bf16.msra.mxu0 0
      %791 = vmatprep.subr.bf16.mxu0 0
      %792 = vmatpush1.bf16.msra.mxu0 0
      %793 = vmatprep.subr.bf16.mxu0 0
      %794 = vmatpush1.bf16.msra.mxu0 0
      %795 = vmatprep.mubr.bf16.mxu0 0
      %796 = vmatmul.mubr.bf16.gmra.mrb[0].mxu0 %v357
      %v797 = vpop.f32.mrb[0].mxu0
      %v798 = vadd.f32 %v733, %v797
      %v799 = vpop.f32.mrb[0].mxu0
      %v800 = vpop.f32.mrb[0].mxu0
      %v801 = vadd.f32 %v736, %v800
      %v802 = vpop.f32.mrb[0].mxu0
      %803 = vmatprep.mubr.bf16.mxu0 0
      %804 = vmatmul.mubr.bf16.gmra.mrb[0].mxu0 %v362
      %v805 = vpop.f32.mrb[0].mxu0
      %v806 = vadd.f32 %v741, %v805
      %v807 = vpop.f32.mrb[0].mxu0
      %v808 = vpop.f32.mrb[0].mxu0
      %v809 = vadd.f32 %v744, %v808
      %v810 = vpop.f32.mrb[0].mxu0
      %811 = vmatprep.mubr.bf16.mxu0 0
      %812 = vmatmul.mubr.bf16.gmra.mrb[0].mxu0 %v367
      %v813 = vpop.f32.mrb[0].mxu0
      %v814 = vadd.f32 %v749, %v813
      %v815 = vpop.f32.mrb[0].mxu0
      %v816 = vpop.f32.mrb[0].mxu0
      %v817 = vadd.f32 %v752, %v816
      %v818 = vpop.f32.mrb[0].mxu0
      %819 = vmatprep.mubr.bf16.mxu0 0
      %820 = vmatmul.mubr.bf16.gmra.mrb[0].mxu0 %v372
      %v821 = vpop.f32.mrb[0].mxu0
      %v822 = vadd.f32 %v757, %v821
      %v823 = vpop.f32.mrb[0].mxu0
      %v824 = vpop.f32.mrb[0].mxu0
      %v825 = vadd.f32 %v760, %v824
      %v826 = vpop.f32.mrb[0].mxu0
      %827 = vdwg.mxu0
      %v828 = vmax.f32 %v798, 0.0
      %v829 = vmax.f32 %v801, 0.0
      %v830 = vmax.f32 %v806, 0.0
      %v831 = vmax.f32 %v809, 0.0
      %v832 = vmax.f32 %v814, 0.0
      %v833 = vmax.f32 %v817, 0.0
      %v834 = vmax.f32 %v822, 0.0
      %v835 = vmax.f32 %v825, 0.0
      %v836 = vpack.c.bf16 %v829, %v828
      %v837 = vpack.c.bf16 %v831, %v830
      %v838 = vpack.c.bf16 %v833, %v832
      %v839 = vpack.c.bf16 %v835, %v834
      %v844 = vunpack.c.l.b16 %v836
      %v845 = vunpack.c.h.b16 %v836
      %v846 = vunpack.c.l.b16 %v837
      %v847 = vunpack.c.h.b16 %v837
      %v848 = vunpack.c.l.b16 %v838
      %v849 = vunpack.c.h.b16 %v838
      %v850 = vunpack.c.l.b16 %v839
      %v851 = vunpack.c.h.b16 %v839
      %v852 = vpack.c.b16 %v844, %v844
      %v853 = vpack.c.b16 %v845, %v845
      %v854 = vpack.c.b16 %v846, %v846
      %v855 = vpack.c.b16 %v847, %v847
      %v856 = vpack.c.b16 %v848, %v848
      %v857 = vpack.c.b16 %v849, %v849
      %v858 = vpack.c.b16 %v850, %v850
      %v859 = vpack.c.b16 %v851, %v851
      %868 = vst [vmem:[%s175] sm:$0xf] %v852
      %869 = vst [vmem:[%s175 + $0x4] sm:$0xf] %v853
      %870 = vst [vmem:[%s175 + $0x8] sm:$0xf] %v854
      %871 = vst [vmem:[%s175 + $0xc] sm:$0xf] %v855
      %872 = vst [vmem:[%s175 + $0x10] sm:$0xf] %v856
      %873 = vst [vmem:[%s175 + $0x14] sm:$0xf] %v857
      %874 = vst [vmem:[%s175 + $0x18] sm:$0xf] %v858
      %875 = vst [vmem:[%s175 + $0x1c] sm:$0xf] %v859
      %s876 = smul.u32 8, %s14
      %p877 = scmp.lt.s32.totalorder %s876, 15
      %s878 = scalar_select %p877, %s876, 15
      %s879 = smul.addr %s878, 4
      %s880 = scalar_lea.vmem %s3, %s879
      // Predicated region
      $region33: #{fwd.14} parent=31 // pred_check
        %p881 = pneg %p100
      $region34: #{fwd.14} parent=31 // pred_check_branch
        %883 = sbr.rel (%p881) target = $region36
      $region35: #{fwd.14} parent=31 // pred_region
        %s884 = smul.u32 8, %s14
      $region36: #{fwd.14} parent=31 // pred_fallthru
        _
    $region32: #{fwd.14} parent=5 // pred_fallthru
      _
    %p885 = scmp.le.s32.totalorder 2, %s9
    // Predicated region
    $region37: #{fwd.14} parent=5 // pred_check
      %p886 = pneg %p885
    $region38: #{fwd.14} parent=5 // pred_check_branch
      %888 = sbr.rel (%p886) target = $region40
    $region39: #{fwd.14} parent=5 // pred_region
      %s889 = ssub.s32 %s9, 2
      // Predicated region
      $region41: #{fwd.14} parent=39 // pred_check
        %p890 = pneg %p106
      $region42: #{fwd.14} parent=39 // pred_check_branch
        %892 = sbr.rel (%p890) target = $region44
      $region43: #{fwd.14} parent=39 // pred_region
        %s893 = smul.u32 8, %s15
        %p894 = scmp.lt.s32.totalorder %s893, 15
        %s895 = scalar_select %p894, %s893, 15
        %s896 = smul.addr %s895, 4
        %s897 = scalar_lea.vmem %s3, %s896
      $region44: #{fwd.14} parent=39 // pred_fallthru
        _
    $region40: #{fwd.14} parent=5 // pred_fallthru
      _
  $region6: #{fwd.14} parent=0 // loop_footer
    %s13 = sadd.s32 1, %s9
  $region7: #{fwd.14} parent=0 // loop_footer_branch
    %8 = sbr.rel target = $region3
  $region8: #{fwd.14} parent=0 // loop_exit
    _

// kernel: fwd.15
$region0: #{fwd.15}
  #allocation0 [shape = 'u32[]', space=smem, size = 0x4, offset = 0x4, fixed_abs, tag = 'smem constant byte address 0x4 - core index']
  #allocation1 [shape = 'u32[144,128]{1,0:T(1,128)}', space=vmem, size = 0x12000, scoped, tag = 'internal scratch']
  %s0 = inlined_call_operand.vmem [shape: bf16[2,64,128], index: 0, kind: input, shape index: {}]
  %s1 = inlined_call_operand.vmem [shape: f32[128,128], index: 1, kind: input, shape index: {}]
  %s2 = inlined_call_operand.vmem [shape: f32[1,128], index: 2, kind: input, shape index: {}]
  %s3 = inlined_call_operand.hbm [shape: f32[2,128], index: 3, kind: output, shape index: {}]
  %s4 = sld [smem:[#allocation0]]
  $region22: #{fwd.15} parent=0
    _
  %s6 = ssub.s32 1, %s4
  %s7 = scalar_select 0, %s6, %s4
  $region1: #{fwd.15} parent=0
    #allocation2 [shape = 'u8[1024]{0}', space=vmem, size = 0x400, scoped, tag = 'output window, operand 0, single buffered']
    #allocation3 [shape = 's32[1]{0}', space=sflag, size = 0x4, scoped, tag = 'scoped memory for fwd.15']
    %8 = vsyncpa [#allocation3], 0
    // Predicated region
    $region2: #{fwd.15} parent=1 // pred_check
      _
    $region3: #{fwd.15} parent=1 // pred_check_branch
      %10 = sbr.rel (0) target = $region5
    $region4: #{fwd.15} parent=1 // pred_region
      _
    $region5: #{fwd.15} parent=1 // pred_fallthru
      _
    // Predicated region
    $region6: #{fwd.15} parent=1 // pred_check
      _
    $region7: #{fwd.15} parent=1 // pred_check_branch
      %12 = sbr.rel (0) target = $region9
    $region8: #{fwd.15} parent=1 // pred_region
      _
    $region9: #{fwd.15} parent=1 // pred_fallthru
      _
    // Predicated region
    $region10: #{fwd.15} parent=1 // pred_check
      _
    $region11: #{fwd.15} parent=1 // pred_check_branch
      %14 = sbr.rel (0) target = $region13
    $region12: #{fwd.15} parent=1 // pred_region
      _
    $region13: #{fwd.15} parent=1 // pred_fallthru
      _
    %v15 = vld [vmem:[%s0] sm:$0xf]
    %v16 = vld [vmem:[%s0 + $0x4] sm:$0xf]
    %v17 = vld [vmem:[%s0 + $0x8] sm:$0xf]
    %v18 = vld [vmem:[%s0 + $0xc] sm:$0xf]
    %v19 = vld [vmem:[%s0 + $0x10] sm:$0xf]
    %v20 = vld [vmem:[%s0 + $0x14] sm:$0xf]
    %v21 = vld [vmem:[%s0 + $0x18] sm:$0xf]
    %v22 = vld [vmem:[%s0 + $0x1c] sm:$0xf]
    %v23 = vld [vmem:[%s0 + $0x20] sm:$0xf]
    %v24 = vld [vmem:[%s0 + $0x24] sm:$0xf]
    %v25 = vld [vmem:[%s0 + $0x28] sm:$0xf]
    %v26 = vld [vmem:[%s0 + $0x2c] sm:$0xf]
    %v27 = vld [vmem:[%s0 + $0x30] sm:$0xf]
    %v28 = vld [vmem:[%s0 + $0x34] sm:$0xf]
    %v29 = vld [vmem:[%s0 + $0x38] sm:$0xf]
    %v30 = vld [vmem:[%s0 + $0x3c] sm:$0xf]
    %v31 = vunpack.c.l.bf16 %v15
    %v32 = vunpack.c.l.bf16 %v16
    %v33 = vunpack.c.l.bf16 %v17
    %v34 = vunpack.c.l.bf16 %v18
    %v35 = vunpack.c.l.bf16 %v19
    %v36 = vunpack.c.l.bf16 %v20
    %v37 = vunpack.c.l.bf16 %v21
    %v38 = vunpack.c.l.bf16 %v22
    %v39 = vunpack.c.l.bf16 %v23
    %v40 = vunpack.c.l.bf16 %v24
    %v41 = vunpack.c.l.bf16 %v25
    %v42 = vunpack.c.l.bf16 %v26
    %v43 = vunpack.c.l.bf16 %v27
    %v44 = vunpack.c.l.bf16 %v28
    %v45 = vunpack.c.l.bf16 %v29
    %v46 = vunpack.c.l.bf16 %v30
    %v47 = vadd.f32 %v31, %v32
    %v48 = vadd.f32 %v47, %v33
    %v49 = vadd.f32 %v48, %v34
    %v50 = vadd.f32 %v49, %v35
    %v51 = vadd.f32 %v50, %v36
    %v52 = vadd.f32 %v51, %v37
    %v53 = vadd.f32 %v52, %v38
    %v54 = vrot.slane %v53, 4
    %v55 = vadd.f32 %v53, %v54
    %v56 = vrot.slane %v55, 2
    %v57 = vadd.f32 %v55, %v56
    %v58 = vrot.slane %v57, 1
    %v59 = vadd.f32 %v57, %v58
    %v60 = vadd.f32 %v39, %v40
    %v61 = vadd.f32 %v60, %v41
    %v62 = vadd.f32 %v61, %v42
    %v63 = vadd.f32 %v62, %v43
    %v64 = vadd.f32 %v63, %v44
    %v65 = vadd.f32 %v64, %v45
    %v66 = vadd.f32 %v65, %v46
    %v67 = vrot.slane %v66, 4
    %v68 = vadd.f32 %v66, %v67
    %v69 = vrot.slane %v68, 2
    %v70 = vadd.f32 %v68, %v69
    %v71 = vrot.slane %v70, 1
    %v72 = vadd.f32 %v70, %v71
    %v73 = vmul.f32 %v59, 0.015625
    %v74 = vmul.f32 %v72, 0.015625
    %v75 = vld [vmem:[%s1] sm:$0xff]
    %v76 = vld [vmem:[%s1 + $0x8] sm:$0xff]
    %v77 = vld [vmem:[%s1 + $0x10] sm:$0xff]
    %v78 = vld [vmem:[%s1 + $0x18] sm:$0xff]
    %v79 = vld [vmem:[%s1 + $0x20] sm:$0xff]
    %v80 = vld [vmem:[%s1 + $0x28] sm:$0xff]
    %v81 = vld [vmem:[%s1 + $0x30] sm:$0xff]
    %v82 = vld [vmem:[%s1 + $0x38] sm:$0xff]
    %v83 = vld [vmem:[%s1 + $0x40] sm:$0xff]
    %v84 = vld [vmem:[%s1 + $0x48] sm:$0xff]
    %v85 = vld [vmem:[%s1 + $0x50] sm:$0xff]
    %v86 = vld [vmem:[%s1 + $0x58] sm:$0xff]
    %v87 = vld [vmem:[%s1 + $0x60] sm:$0xff]
    %v88 = vld [vmem:[%s1 + $0x68] sm:$0xff]
    %v89 = vld [vmem:[%s1 + $0x70] sm:$0xff]
    %v90 = vld [vmem:[%s1 + $0x78] sm:$0xff]
    %v91 = vld [vmem:[%s2] sm:$0x1]
    %v93 = vlaneseq
    %v94 = vshrl.u32 %v93, 7
    %v95 = vsub.s32 0, %v94
    %v96 = vrot.slane %v91, %v95
    %vm100 = vcmask 1041409
    %v101 = vsel %vm100, %v74, %v73
    %103 = vmatprep.subr.mxu0 0.0
    %104 = vmatpush1.msra.mxu0 %v75
    %105 = vmatprep.subr.mxu0 0.0
    %106 = vmatpush1.msra.mxu0 %v76
    %107 = vmatprep.subr.mxu0 0.0
    %108 = vmatpush1.msra.mxu0 %v77
    %109 = vmatprep.subr.mxu0 0.0
    %110 = vmatpush1.msra.mxu0 %v78
    %111 = vmatprep.subr.mxu0 0.0
    %112 = vmatpush1.msra.mxu0 %v79
    %113 = vmatprep.subr.mxu0 0.0
    %114 = vmatpush1.msra.mxu0 %v80
    %115 = vmatprep.subr.mxu0 0.0
    %116 = vmatpush1.msra.mxu0 %v81
    %117 = vmatprep.subr.mxu0 0.0
    %118 = vmatpush1.msra.mxu0 %v82
    %119 = vmatprep.subr.mxu0 0.0
    %120 = vmatpush1.msra.mxu0 %v83
    %121 = vmatprep.subr.mxu0 0.0
    %122 = vmatpush1.msra.mxu0 %v84
    %123 = vmatprep.subr.mxu0 0.0
    %124 = vmatpush1.msra.mxu0 %v85
    %125 = vmatprep.subr.mxu0 0.0
    %126 = vmatpush1.msra.mxu0 %v86
    %127 = vmatprep.subr.mxu0 0.0
    %128 = vmatpush1.msra.mxu0 %v87
    %129 = vmatprep.subr.mxu0 0.0
    %130 = vmatpush1.msra.mxu0 %v88
    %131 = vmatprep.subr.mxu0 0.0
    %132 = vmatpush1.msra.mxu0 %v89
    %133 = vmatprep.subr.mxu0 0.0
    %134 = vmatpush1.msra.mxu0 %v90
    %135 = vmatprep.subr.mxu0 0.0
    %136 = vmatpush1.msra.mxu0 0.0
    %137 = vmatprep.subr.mxu0 0.0
    %138 = vmatpush1.msra.mxu0 0.0
    %139 = vmatprep.subr.mxu0 0.0
    %140 = vmatpush1.msra.mxu0 0.0
    %141 = vmatprep.subr.mxu0 0.0
    %142 = vmatpush1.msra.mxu0 0.0
    %143 = vmatprep.subr.mxu0 0.0
    %144 = vmatpush1.msra.mxu0 0.0
    %145 = vmatprep.subr.mxu0 0.0
    %146 = vmatpush1.msra.mxu0 0.0
    %147 = vmatprep.subr.mxu0 0.0
    %148 = vmatpush1.msra.mxu0 0.0
    %149 = vmatprep.subr.mxu0 0.0
    %150 = vmatpush1.msra.mxu0 0.0
    %151 = vmatprep.subr.mxu0 0.0
    %152 = vmatpush1.msra.mxu0 0.0
    %153 = vmatprep.subr.mxu0 0.0
    %154 = vmatpush1.msra.mxu0 0.0
    %155 = vmatprep.subr.mxu0 0.0
    %156 = vmatpush1.msra.mxu0 0.0
    %157 = vmatprep.subr.mxu0 0.0
    %158 = vmatpush1.msra.mxu0 0.0
    %159 = vmatprep.subr.mxu0 0.0
    %160 = vmatpush1.msra.mxu0 0.0
    %161 = vmatprep.subr.mxu0 0.0
    %162 = vmatpush1.msra.mxu0 0.0
    %163 = vmatprep.subr.mxu0 0.0
    %164 = vmatpush1.msra.mxu0 0.0
    %165 = vmatprep.subr.mxu0 0.0
    %166 = vmatpush1.msra.mxu0 0.0
    %167 = vmatprep.mubr.f32.mxu0 0.0
    %168 = vmatmul.mubr.f32.gmra.mrb[0].mxu0 %v101
    %v169 = vpop.f32.mrb[0].mxu0
    %v170 = vadd.f32 %v96, %v169
    %v171 = vpop.f32.mrb[0].mxu0
    %172 = vdwg.mxu0
    %173 = vst [vmem:[#allocation2] sm:$0x3] %v170
    // Predicated region
    $region14: #{fwd.15} parent=1 // pred_check
      _
    $region15: #{fwd.15} parent=1 // pred_check_branch
      %175 = sbr.rel (0) target = $region17
    $region16: #{fwd.15} parent=1 // pred_region
      %s177 = ssub.s32 32, 32
      %178 = vsyncadd [#allocation3], %s177
      %s180 = sshll.u32 [#allocation2], 4
      %s181 = int_to_ptr.vmem [resolvable:$true] %s180
      %183 = dma.vmem_to_hbm [thread:$0]  %s181, 32, %s3, [#allocation3]
    $region17: #{fwd.15} parent=1 // pred_fallthru
      _
    // Predicated region
    $region18: #{fwd.15} parent=1 // pred_check
      _
    $region19: #{fwd.15} parent=1 // pred_check_branch
      %185 = sbr.rel (0) target = $region21
    $region20: #{fwd.15} parent=1 // pred_region
      %186 = dma.done [#allocation3], 32
    $region21: #{fwd.15} parent=1 // pred_fallthru
      _
    %187 = vsyncpa [#allocation3], 1

</llo_original>
